<compile_context>
chip_gen: v6e
topology: v6e:2x2x1
jax: 0.10.0
libtpu: 0.0.40
codegen_flags: <defaults>
</compile_context>

<pallas_src>
import functools
import math

import jax
import jax.numpy as jnp
from jax import lax
from jax.experimental import pallas as pl
from jax.experimental.pallas import tpu as pltpu

# ----------------------------- config (stand-in for nhi_config) --------------
N_MFCC = 16
D = 32                    # TRANSFORMER_DIM
H = 4                     # TRANSFORMER_HEADS
HD = D // H               # head dim = 8
ENC_LAYERS = 2            # TRANSFORMER_ENCODER_LAYERS
FFN = 2048                # nn.TransformerEncoder/DecoderLayer default dim_feedforward
LN_EPS = 1e-5
ATTN_SCALE = 1.0 / math.sqrt(HD)


# ------------------- in-kernel building blocks (VMEM-resident values) --------
def _layer_norm(x, g, b):
    mu = jnp.mean(x, axis=-1, keepdims=True)
    d = x - mu
    var = jnp.mean(d * d, axis=-1, keepdims=True)
    return d * lax.rsqrt(var + LN_EPS) * g + b


def _softmax_last(s):
    s = s - jnp.max(s, axis=-1, keepdims=True)
    e = jnp.exp(s)
    return e * pl.reciprocal(jnp.sum(e, axis=-1, keepdims=True), approx=True)


def _heads_attention(q, k, v):
    """q: (Sq, D), k/v: (Sk, D). Per-head scaled dot-product attention -> (Sq, D)."""
    outs = []
    for hh in range(H):                       # unrolled at trace time (H = 4)
        sl = slice(hh * HD, (hh + 1) * HD)
        # q_h @ k_h^T without materializing a transpose (NT matmul on the MXU).
        s = lax.dot_general(q[:, sl], k[:, sl], (((1,), (1,)), ((), ())),
                            preferred_element_type=jnp.float32) * ATTN_SCALE
        p = _softmax_last(s)
        outs.append(jnp.dot(p, v[:, sl], preferred_element_type=jnp.float32))
    return jnp.concatenate(outs, axis=-1)


def _encoder_layer(x, p):
    """post-norm nn.TransformerEncoderLayer (relu, eval-mode dropout = identity)."""
    qkv = jnp.dot(x, p["wqkv"][...], preferred_element_type=jnp.float32) + p["bqkv"][...]
    a = _heads_attention(qkv[:, 0:D], qkv[:, D:2 * D], qkv[:, 2 * D:3 * D])
    a = jnp.dot(a, p["wo"][...], preferred_element_type=jnp.float32) + p["bo"][...]
    x = _layer_norm(x + a, p["ln1_g"][...], p["ln1_b"][...])
    f = jnp.maximum(jnp.dot(x, p["w1"][...], preferred_element_type=jnp.float32)
                    + p["b1"][...], 0.0)
    f = jnp.dot(f, p["w2"][...], preferred_element_type=jnp.float32) + p["b2"][...]
    return _layer_norm(x + f, p["ln2_g"][...], p["ln2_b"][...])


def _decoder_layer(t, mem, p):
    """post-norm nn.TransformerDecoderLayer, no masks, eval mode."""
    qkv = jnp.dot(t, p["sa_wqkv"][...], preferred_element_type=jnp.float32) + p["sa_bqkv"][...]
    a = _heads_attention(qkv[:, 0:D], qkv[:, D:2 * D], qkv[:, 2 * D:3 * D])
    a = jnp.dot(a, p["sa_wo"][...], preferred_element_type=jnp.float32) + p["sa_bo"][...]
    t = _layer_norm(t + a, p["ln1_g"][...], p["ln1_b"][...])

    q = jnp.dot(t, p["ca_wq"][...], preferred_element_type=jnp.float32) + p["ca_bq"][...]
    kv = jnp.dot(mem, p["ca_wkv"][...], preferred_element_type=jnp.float32) + p["ca_bkv"][...]
    a = _heads_attention(q, kv[:, 0:D], kv[:, D:2 * D])
    a = jnp.dot(a, p["ca_wo"][...], preferred_element_type=jnp.float32) + p["ca_bo"][...]
    t = _layer_norm(t + a, p["ln2_g"][...], p["ln2_b"][...])

    f = jnp.maximum(jnp.dot(t, p["w1"][...], preferred_element_type=jnp.float32)
                    + p["b1"][...], 0.0)
    f = jnp.dot(f, p["w2"][...], preferred_element_type=jnp.float32) + p["b2"][...]
    return _layer_norm(t + f, p["ln3_g"][...], p["ln3_b"][...])


# ----------------------------- fused kernel ----------------------------------
def _fused_forward_kernel(*refs, treedef, n_params):
    """One grid step = one batch sample; the whole network runs out of VMEM."""
    x_ref = refs[0]
    p = jax.tree_util.tree_unflatten(treedef, refs[1:1 + n_params])
    o_ref = refs[1 + n_params]

    x = x_ref[0]                                                      # (S, N_MFCC)
    y = jnp.dot(x, p["lin_w"][...], preferred_element_type=jnp.float32) + p["lin_b"][...]
    h = pl.reciprocal(1.0 + jnp.exp(-y), approx=True)                 # sigmoid
    for lp in p["enc"]:                                               # unrolled (2 layers)
        h = _encoder_layer(h, lp)
    t = jnp.zeros((1, D), jnp.float32)                                # tgt = zeros(B,1,D)
    o_ref[0] = _decoder_layer(t, h, p["dec"])                         # (1, D)


def momo_tzuyu_forward(x, params):
    """x: (B, S, N_MFCC) f32 -> (B, D) f32."""
    B, S, _ = x.shape
    leaves, treedef = jax.tree_util.tree_flatten(params)
    n_params = len(leaves)
    kernel = functools.partial(_fused_forward_kernel, treedef=treedef, n_params=n_params)

    # all weights are 2D and passed as full blocks; constant block index -> DMA'd once
    weight_specs = [pl.BlockSpec(l.shape, lambda i: (0, 0)) for l in leaves]

    out = pl.pallas_call(
        kernel,
        out_shape=jax.ShapeDtypeStruct((B, 1, D), jnp.float32),
        grid=(B,),
        in_specs=[pl.BlockSpec((1, S, N_MFCC), lambda i: (i, 0, 0))] + weight_specs,
        out_specs=pl.BlockSpec((1, 1, D), lambda i: (i, 0, 0)),
        compiler_params=pltpu.CompilerParams(
            dimension_semantics=("parallel",),
            vmem_limit_bytes=32 * 1024 * 1024,
        ),
    )(x, *leaves)
    return out[:, 0, :]


# ----------------------------- parameter init --------------------------------
def init_params(key):
    """Random stand-in weights, stored pre-transposed for x @ W layout.
    Mapping from PyTorch: wqkv = in_proj_weight.T (D,3D); wo = out_proj.weight.T;
    w1/w2 = linear1/2.weight.T; ca_wq / ca_wkv are the q / kv column blocks of the
    decoder cross-attention in_proj_weight.T. All biases / LN params kept 2D (1, N)."""
    ks = iter(jax.random.split(key, 64))

    def w(shape, scale=0.08):
        return (jax.random.normal(next(ks), shape) * scale).astype(jnp.float32)

    def ones(n):
        return jnp.ones((1, n), jnp.float32)

    def zeros(n):
        return jnp.zeros((1, n), jnp.float32)

    def enc_layer():
        return dict(
            wqkv=w((D, 3 * D)), bqkv=w((1, 3 * D), 0.02),
            wo=w((D, D)), bo=w((1, D), 0.02),
            ln1_g=ones(D), ln1_b=zeros(D),
            w1=w((D, FFN)), b1=w((1, FFN), 0.02),
            w2=w((FFN, D), 0.02), b2=w((1, D), 0.02),
            ln2_g=ones(D), ln2_b=zeros(D),
        )

    def dec_layer():
        return dict(
            sa_wqkv=w((D, 3 * D)), sa_bqkv=w((1, 3 * D), 0.02),
            sa_wo=w((D, D)), sa_bo=w((1, D), 0.02),
            ln1_g=ones(D), ln1_b=zeros(D),
            ca_wq=w((D, D)), ca_bq=w((1, D), 0.02),
            ca_wkv=w((D, 2 * D)), ca_bkv=w((1, 2 * D), 0.02),
            ca_wo=w((D, D)), ca_bo=w((1, D), 0.02),
            ln2_g=ones(D), ln2_b=zeros(D),
            w1=w((D, FFN)), b1=w((1, FFN), 0.02),
            w2=w((FFN, D), 0.02), b2=w((1, D), 0.02),
            ln3_g=ones(D), ln3_b=zeros(D),
        )

    return dict(
        lin_w=w((N_MFCC, D)),          # nn.Linear(N_MFCC, D).weight.T
        lin_b=w((1, D), 0.02),
        enc=[enc_layer() for _ in range(ENC_LAYERS)],
        dec=dec_layer(),
    )


# ----------------------------- main -------------------------------------------
if __name__ == "__main__":
    B, S = 2, 8
    key = jax.random.PRNGKey(0)
    k_x, k_p = jax.random.split(key)
    x = jax.random.normal(k_x, (B, S, N_MFCC), dtype=jnp.float32)
    params = init_params(k_p)

    forward = jax.jit(momo_tzuyu_forward)
    out = jax.block_until_ready(forward(x, params))

    assert out.shape == (B, D), out.shape
    assert bool(jnp.all(jnp.isfinite(out)))
    print("KERNEL_OK")
</pallas_src>

<mosaic_0001>
module attributes {stable_mosaic.version = 11 : i64} {
  func.func @_fused_forward_kernel(%arg0: i32, %arg1: memref<1x8x16xf32, #tpu.memory_space<vmem>>, %arg2: memref<1x2048xf32, #tpu.memory_space<vmem>>, %arg3: memref<1x32xf32, #tpu.memory_space<vmem>>, %arg4: memref<1x64xf32, #tpu.memory_space<vmem>>, %arg5: memref<1x32xf32, #tpu.memory_space<vmem>>, %arg6: memref<1x32xf32, #tpu.memory_space<vmem>>, %arg7: memref<32x64xf32, #tpu.memory_space<vmem>>, %arg8: memref<32x32xf32, #tpu.memory_space<vmem>>, %arg9: memref<32x32xf32, #tpu.memory_space<vmem>>, %arg10: memref<1x32xf32, #tpu.memory_space<vmem>>, %arg11: memref<1x32xf32, #tpu.memory_space<vmem>>, %arg12: memref<1x32xf32, #tpu.memory_space<vmem>>, %arg13: memref<1x32xf32, #tpu.memory_space<vmem>>, %arg14: memref<1x32xf32, #tpu.memory_space<vmem>>, %arg15: memref<1x32xf32, #tpu.memory_space<vmem>>, %arg16: memref<1x32xf32, #tpu.memory_space<vmem>>, %arg17: memref<1x96xf32, #tpu.memory_space<vmem>>, %arg18: memref<32x32xf32, #tpu.memory_space<vmem>>, %arg19: memref<32x96xf32, #tpu.memory_space<vmem>>, %arg20: memref<32x2048xf32, #tpu.memory_space<vmem>>, %arg21: memref<2048x32xf32, #tpu.memory_space<vmem>>, %arg22: memref<1x2048xf32, #tpu.memory_space<vmem>>, %arg23: memref<1x32xf32, #tpu.memory_space<vmem>>, %arg24: memref<1x32xf32, #tpu.memory_space<vmem>>, %arg25: memref<1x96xf32, #tpu.memory_space<vmem>>, %arg26: memref<1x32xf32, #tpu.memory_space<vmem>>, %arg27: memref<1x32xf32, #tpu.memory_space<vmem>>, %arg28: memref<1x32xf32, #tpu.memory_space<vmem>>, %arg29: memref<1x32xf32, #tpu.memory_space<vmem>>, %arg30: memref<32x2048xf32, #tpu.memory_space<vmem>>, %arg31: memref<2048x32xf32, #tpu.memory_space<vmem>>, %arg32: memref<32x32xf32, #tpu.memory_space<vmem>>, %arg33: memref<32x96xf32, #tpu.memory_space<vmem>>, %arg34: memref<1x2048xf32, #tpu.memory_space<vmem>>, %arg35: memref<1x32xf32, #tpu.memory_space<vmem>>, %arg36: memref<1x32xf32, #tpu.memory_space<vmem>>, %arg37: memref<1x96xf32, #tpu.memory_space<vmem>>, %arg38: memref<1x32xf32, #tpu.memory_space<vmem>>, %arg39: memref<1x32xf32, #tpu.memory_space<vmem>>, %arg40: memref<1x32xf32, #tpu.memory_space<vmem>>, %arg41: memref<1x32xf32, #tpu.memory_space<vmem>>, %arg42: memref<32x2048xf32, #tpu.memory_space<vmem>>, %arg43: memref<2048x32xf32, #tpu.memory_space<vmem>>, %arg44: memref<32x32xf32, #tpu.memory_space<vmem>>, %arg45: memref<32x96xf32, #tpu.memory_space<vmem>>, %arg46: memref<1x32xf32, #tpu.memory_space<vmem>>, %arg47: memref<16x32xf32, #tpu.memory_space<vmem>>, %arg48: memref<1x1x32xf32, #tpu.memory_space<vmem>>) attributes {dimension_semantics = [#tpu.dimension_semantics<parallel>], iteration_bounds = array<i64: 2>, scalar_prefetch = 0 : i64, scratch_operands = 0 : i64, tpu.core_type = #tpu.core_type<tc>, window_params = [{transform_indices = @transform_0, window_bounds = array<i64: 1, 8, 16>}, {pipeline_mode = #tpu.pipeline_mode<synchronous>, transform_indices = @transform_1, window_bounds = array<i64: 1, 2048>}, {pipeline_mode = #tpu.pipeline_mode<synchronous>, transform_indices = @transform_2, window_bounds = array<i64: 1, 32>}, {pipeline_mode = #tpu.pipeline_mode<synchronous>, transform_indices = @transform_3, window_bounds = array<i64: 1, 64>}, {pipeline_mode = #tpu.pipeline_mode<synchronous>, transform_indices = @transform_4, window_bounds = array<i64: 1, 32>}, {pipeline_mode = #tpu.pipeline_mode<synchronous>, transform_indices = @transform_5, window_bounds = array<i64: 1, 32>}, {pipeline_mode = #tpu.pipeline_mode<synchronous>, transform_indices = @transform_6, window_bounds = array<i64: 32, 64>}, {pipeline_mode = #tpu.pipeline_mode<synchronous>, transform_indices = @transform_7, window_bounds = array<i64: 32, 32>}, {pipeline_mode = #tpu.pipeline_mode<synchronous>, transform_indices = @transform_8, window_bounds = array<i64: 32, 32>}, {pipeline_mode = #tpu.pipeline_mode<synchronous>, transform_indices = @transform_9, window_bounds = array<i64: 1, 32>}, {pipeline_mode = #tpu.pipeline_mode<synchronous>, transform_indices = @transform_10, window_bounds = array<i64: 1, 32>}, {pipeline_mode = #tpu.pipeline_mode<synchronous>, transform_indices = @transform_11, window_bounds = array<i64: 1, 32>}, {pipeline_mode = #tpu.pipeline_mode<synchronous>, transform_indices = @transform_12, window_bounds = array<i64: 1, 32>}, {pipeline_mode = #tpu.pipeline_mode<synchronous>, transform_indices = @transform_13, window_bounds = array<i64: 1, 32>}, {pipeline_mode = #tpu.pipeline_mode<synchronous>, transform_indices = @transform_14, window_bounds = array<i64: 1, 32>}, {pipeline_mode = #tpu.pipeline_mode<synchronous>, transform_indices = @transform_15, window_bounds = array<i64: 1, 32>}, {pipeline_mode = #tpu.pipeline_mode<synchronous>, transform_indices = @transform_16, window_bounds = array<i64: 1, 96>}, {pipeline_mode = #tpu.pipeline_mode<synchronous>, transform_indices = @transform_17, window_bounds = array<i64: 32, 32>}, {pipeline_mode = #tpu.pipeline_mode<synchronous>, transform_indices = @transform_18, window_bounds = array<i64: 32, 96>}, {pipeline_mode = #tpu.pipeline_mode<synchronous>, transform_indices = @transform_19, window_bounds = array<i64: 32, 2048>}, {pipeline_mode = #tpu.pipeline_mode<synchronous>, transform_indices = @transform_20, window_bounds = array<i64: 2048, 32>}, {pipeline_mode = #tpu.pipeline_mode<synchronous>, transform_indices = @transform_21, window_bounds = array<i64: 1, 2048>}, {pipeline_mode = #tpu.pipeline_mode<synchronous>, transform_indices = @transform_22, window_bounds = array<i64: 1, 32>}, {pipeline_mode = #tpu.pipeline_mode<synchronous>, transform_indices = @transform_23, window_bounds = array<i64: 1, 32>}, {pipeline_mode = #tpu.pipeline_mode<synchronous>, transform_indices = @transform_24, window_bounds = array<i64: 1, 96>}, {pipeline_mode = #tpu.pipeline_mode<synchronous>, transform_indices = @transform_25, window_bounds = array<i64: 1, 32>}, {pipeline_mode = #tpu.pipeline_mode<synchronous>, transform_indices = @transform_26, window_bounds = array<i64: 1, 32>}, {pipeline_mode = #tpu.pipeline_mode<synchronous>, transform_indices = @transform_27, window_bounds = array<i64: 1, 32>}, {pipeline_mode = #tpu.pipeline_mode<synchronous>, transform_indices = @transform_28, window_bounds = array<i64: 1, 32>}, {pipeline_mode = #tpu.pipeline_mode<synchronous>, transform_indices = @transform_29, window_bounds = array<i64: 32, 2048>}, {pipeline_mode = #tpu.pipeline_mode<synchronous>, transform_indices = @transform_30, window_bounds = array<i64: 2048, 32>}, {pipeline_mode = #tpu.pipeline_mode<synchronous>, transform_indices = @transform_31, window_bounds = array<i64: 32, 32>}, {pipeline_mode = #tpu.pipeline_mode<synchronous>, transform_indices = @transform_32, window_bounds = array<i64: 32, 96>}, {pipeline_mode = #tpu.pipeline_mode<synchronous>, transform_indices = @transform_33, window_bounds = array<i64: 1, 2048>}, {pipeline_mode = #tpu.pipeline_mode<synchronous>, transform_indices = @transform_34, window_bounds = array<i64: 1, 32>}, {pipeline_mode = #tpu.pipeline_mode<synchronous>, transform_indices = @transform_35, window_bounds = array<i64: 1, 32>}, {pipeline_mode = #tpu.pipeline_mode<synchronous>, transform_indices = @transform_36, window_bounds = array<i64: 1, 96>}, {pipeline_mode = #tpu.pipeline_mode<synchronous>, transform_indices = @transform_37, window_bounds = array<i64: 1, 32>}, {pipeline_mode = #tpu.pipeline_mode<synchronous>, transform_indices = @transform_38, window_bounds = array<i64: 1, 32>}, {pipeline_mode = #tpu.pipeline_mode<synchronous>, transform_indices = @transform_39, window_bounds = array<i64: 1, 32>}, {pipeline_mode = #tpu.pipeline_mode<synchronous>, transform_indices = @transform_40, window_bounds = array<i64: 1, 32>}, {pipeline_mode = #tpu.pipeline_mode<synchronous>, transform_indices = @transform_41, window_bounds = array<i64: 32, 2048>}, {pipeline_mode = #tpu.pipeline_mode<synchronous>, transform_indices = @transform_42, window_bounds = array<i64: 2048, 32>}, {pipeline_mode = #tpu.pipeline_mode<synchronous>, transform_indices = @transform_43, window_bounds = array<i64: 32, 32>}, {pipeline_mode = #tpu.pipeline_mode<synchronous>, transform_indices = @transform_44, window_bounds = array<i64: 32, 96>}, {pipeline_mode = #tpu.pipeline_mode<synchronous>, transform_indices = @transform_45, window_bounds = array<i64: 1, 32>}, {pipeline_mode = #tpu.pipeline_mode<synchronous>, transform_indices = @transform_46, window_bounds = array<i64: 16, 32>}, {transform_indices = @transform_47, window_bounds = array<i64: 1, 1, 32>}]} {
    %c0 = arith.constant 0 : index
    %c0_0 = arith.constant 0 : index
    %c0_1 = arith.constant 0 : index
    %0 = vector.load %arg1[%c0, %c0_0, %c0_1] : memref<1x8x16xf32, #tpu.memory_space<vmem>>, vector<1x8x16xf32>
    %1 = vector.shape_cast %0 : vector<1x8x16xf32> to vector<8x16xf32>
    %c0_2 = arith.constant 0 : index
    %c0_3 = arith.constant 0 : index
    %2 = vector.load %arg47[%c0_2, %c0_3] : memref<16x32xf32, #tpu.memory_space<vmem>>, vector<16x32xf32>
    %cst = arith.constant dense<0.000000e+00> : vector<8x32xf32>
    %3 = tpu.matmul %1, %2, %cst {dimension_numbers = #tpu.dot_dimension_numbers<[1], [0], [0], [1], [0, 0, 1, 1], [], []>} : vector<8x16xf32>, vector<16x32xf32>, vector<8x32xf32> -> vector<8x32xf32>
    %c0_4 = arith.constant 0 : index
    %c0_5 = arith.constant 0 : index
    %4 = vector.load %arg46[%c0_4, %c0_5] : memref<1x32xf32, #tpu.memory_space<vmem>>, vector<1x32xf32>
    %5 = vector.broadcast %4 : vector<1x32xf32> to vector<8x32xf32>
    %6 = arith.addf %3, %5 : vector<8x32xf32>
    %cst_6 = arith.constant 0.000000e+00 : f32
    %7 = vector.broadcast %cst_6 : f32 to vector<8x32xf32>
    %8 = arith.subf %7, %6 : vector<8x32xf32>
    %9 = math.exp %8 : vector<8x32xf32>
    %cst_7 = arith.constant 1.000000e+00 : f32
    %10 = vector.broadcast %cst_7 : f32 to vector<8x32xf32>
    %11 = arith.addf %10, %9 : vector<8x32xf32>
    %12 = tpu.reciprocal %11 {approx = true} : vector<8x32xf32> -> vector<8x32xf32>
    %c0_8 = arith.constant 0 : index
    %c0_9 = arith.constant 0 : index
    %13 = vector.load %arg33[%c0_8, %c0_9] : memref<32x96xf32, #tpu.memory_space<vmem>>, vector<32x96xf32>
    %cst_10 = arith.constant dense<0.000000e+00> : vector<8x96xf32>
    %14 = tpu.matmul %12, %13, %cst_10 {dimension_numbers = #tpu.dot_dimension_numbers<[1], [0], [0], [1], [0, 0, 1, 1], [], []>} : vector<8x32xf32>, vector<32x96xf32>, vector<8x96xf32> -> vector<8x96xf32>
    %c0_11 = arith.constant 0 : index
    %c0_12 = arith.constant 0 : index
    %15 = vector.load %arg25[%c0_11, %c0_12] : memref<1x96xf32, #tpu.memory_space<vmem>>, vector<1x96xf32>
    %16 = vector.broadcast %15 : vector<1x96xf32> to vector<8x96xf32>
    %17 = arith.addf %14, %16 : vector<8x96xf32>
    %18 = vector.extract_strided_slice %17 {offsets = [0, 0], sizes = [8, 32], strides = [1, 1]} : vector<8x96xf32> to vector<8x32xf32>
    %19 = vector.extract_strided_slice %17 {offsets = [0, 32], sizes = [8, 32], strides = [1, 1]} : vector<8x96xf32> to vector<8x32xf32>
    %20 = vector.extract_strided_slice %17 {offsets = [0, 64], sizes = [8, 32], strides = [1, 1]} : vector<8x96xf32> to vector<8x32xf32>
    %21 = vector.extract_strided_slice %18 {offsets = [0, 0], sizes = [8, 8], strides = [1, 1]} : vector<8x32xf32> to vector<8x8xf32>
    %22 = vector.extract_strided_slice %19 {offsets = [0, 0], sizes = [8, 8], strides = [1, 1]} : vector<8x32xf32> to vector<8x8xf32>
    %cst_13 = arith.constant dense<0.000000e+00> : vector<8x8xf32>
    %23 = tpu.matmul %21, %22, %cst_13 {dimension_numbers = #tpu.dot_dimension_numbers<[1], [1], [0], [0], [0, 0, 1, 0], [], []>} : vector<8x8xf32>, vector<8x8xf32>, vector<8x8xf32> -> vector<8x8xf32>
    %cst_14 = arith.constant 0.353553385 : f32
    %24 = vector.broadcast %cst_14 : f32 to vector<8x8xf32>
    %25 = arith.mulf %23, %24 : vector<8x8xf32>
    %cst_15 = arith.constant dense<0xFF800000> : vector<8xf32>
    %26 = vector.multi_reduction <maximumf>, %25, %cst_15 [1] : vector<8x8xf32> to vector<8xf32>
    %27 = vector.shape_cast %26 : vector<8xf32> to vector<8x1xf32>
    %28 = vector.broadcast %27 : vector<8x1xf32> to vector<8x8xf32>
    %29 = arith.subf %25, %28 : vector<8x8xf32>
    %30 = math.exp %29 : vector<8x8xf32>
    %cst_16 = arith.constant dense<0.000000e+00> : vector<8xf32>
    %31 = vector.multi_reduction <add>, %30, %cst_16 [1] : vector<8x8xf32> to vector<8xf32>
    %32 = vector.shape_cast %31 : vector<8xf32> to vector<8x1xf32>
    %33 = tpu.reciprocal %32 {approx = true} : vector<8x1xf32> -> vector<8x1xf32>
    %34 = vector.broadcast %33 : vector<8x1xf32> to vector<8x8xf32>
    %35 = arith.mulf %30, %34 : vector<8x8xf32>
    %36 = vector.extract_strided_slice %20 {offsets = [0, 0], sizes = [8, 8], strides = [1, 1]} : vector<8x32xf32> to vector<8x8xf32>
    %cst_17 = arith.constant dense<0.000000e+00> : vector<8x8xf32>
    %37 = tpu.matmul %35, %36, %cst_17 {dimension_numbers = #tpu.dot_dimension_numbers<[1], [0], [0], [1], [0, 0, 1, 1], [], []>} : vector<8x8xf32>, vector<8x8xf32>, vector<8x8xf32> -> vector<8x8xf32>
    %38 = vector.extract_strided_slice %18 {offsets = [0, 8], sizes = [8, 8], strides = [1, 1]} : vector<8x32xf32> to vector<8x8xf32>
    %39 = vector.extract_strided_slice %19 {offsets = [0, 8], sizes = [8, 8], strides = [1, 1]} : vector<8x32xf32> to vector<8x8xf32>
    %cst_18 = arith.constant dense<0.000000e+00> : vector<8x8xf32>
    %40 = tpu.matmul %38, %39, %cst_18 {dimension_numbers = #tpu.dot_dimension_numbers<[1], [1], [0], [0], [0, 0, 1, 0], [], []>} : vector<8x8xf32>, vector<8x8xf32>, vector<8x8xf32> -> vector<8x8xf32>
    %cst_19 = arith.constant 0.353553385 : f32
    %41 = vector.broadcast %cst_19 : f32 to vector<8x8xf32>
    %42 = arith.mulf %40, %41 : vector<8x8xf32>
    %cst_20 = arith.constant dense<0xFF800000> : vector<8xf32>
    %43 = vector.multi_reduction <maximumf>, %42, %cst_20 [1] : vector<8x8xf32> to vector<8xf32>
    %44 = vector.shape_cast %43 : vector<8xf32> to vector<8x1xf32>
    %45 = vector.broadcast %44 : vector<8x1xf32> to vector<8x8xf32>
    %46 = arith.subf %42, %45 : vector<8x8xf32>
    %47 = math.exp %46 : vector<8x8xf32>
    %cst_21 = arith.constant dense<0.000000e+00> : vector<8xf32>
    %48 = vector.multi_reduction <add>, %47, %cst_21 [1] : vector<8x8xf32> to vector<8xf32>
    %49 = vector.shape_cast %48 : vector<8xf32> to vector<8x1xf32>
    %50 = tpu.reciprocal %49 {approx = true} : vector<8x1xf32> -> vector<8x1xf32>
    %51 = vector.broadcast %50 : vector<8x1xf32> to vector<8x8xf32>
    %52 = arith.mulf %47, %51 : vector<8x8xf32>
    %53 = vector.extract_strided_slice %20 {offsets = [0, 8], sizes = [8, 8], strides = [1, 1]} : vector<8x32xf32> to vector<8x8xf32>
    %cst_22 = arith.constant dense<0.000000e+00> : vector<8x8xf32>
    %54 = tpu.matmul %52, %53, %cst_22 {dimension_numbers = #tpu.dot_dimension_numbers<[1], [0], [0], [1], [0, 0, 1, 1], [], []>} : vector<8x8xf32>, vector<8x8xf32>, vector<8x8xf32> -> vector<8x8xf32>
    %55 = vector.extract_strided_slice %18 {offsets = [0, 16], sizes = [8, 8], strides = [1, 1]} : vector<8x32xf32> to vector<8x8xf32>
    %56 = vector.extract_strided_slice %19 {offsets = [0, 16], sizes = [8, 8], strides = [1, 1]} : vector<8x32xf32> to vector<8x8xf32>
    %cst_23 = arith.constant dense<0.000000e+00> : vector<8x8xf32>
    %57 = tpu.matmul %55, %56, %cst_23 {dimension_numbers = #tpu.dot_dimension_numbers<[1], [1], [0], [0], [0, 0, 1, 0], [], []>} : vector<8x8xf32>, vector<8x8xf32>, vector<8x8xf32> -> vector<8x8xf32>
    %cst_24 = arith.constant 0.353553385 : f32
    %58 = vector.broadcast %cst_24 : f32 to vector<8x8xf32>
    %59 = arith.mulf %57, %58 : vector<8x8xf32>
    %cst_25 = arith.constant dense<0xFF800000> : vector<8xf32>
    %60 = vector.multi_reduction <maximumf>, %59, %cst_25 [1] : vector<8x8xf32> to vector<8xf32>
    %61 = vector.shape_cast %60 : vector<8xf32> to vector<8x1xf32>
    %62 = vector.broadcast %61 : vector<8x1xf32> to vector<8x8xf32>
    %63 = arith.subf %59, %62 : vector<8x8xf32>
    %64 = math.exp %63 : vector<8x8xf32>
    %cst_26 = arith.constant dense<0.000000e+00> : vector<8xf32>
    %65 = vector.multi_reduction <add>, %64, %cst_26 [1] : vector<8x8xf32> to vector<8xf32>
    %66 = vector.shape_cast %65 : vector<8xf32> to vector<8x1xf32>
    %67 = tpu.reciprocal %66 {approx = true} : vector<8x1xf32> -> vector<8x1xf32>
    %68 = vector.broadcast %67 : vector<8x1xf32> to vector<8x8xf32>
    %69 = arith.mulf %64, %68 : vector<8x8xf32>
    %70 = vector.extract_strided_slice %20 {offsets = [0, 16], sizes = [8, 8], strides = [1, 1]} : vector<8x32xf32> to vector<8x8xf32>
    %cst_27 = arith.constant dense<0.000000e+00> : vector<8x8xf32>
    %71 = tpu.matmul %69, %70, %cst_27 {dimension_numbers = #tpu.dot_dimension_numbers<[1], [0], [0], [1], [0, 0, 1, 1], [], []>} : vector<8x8xf32>, vector<8x8xf32>, vector<8x8xf32> -> vector<8x8xf32>
    %72 = vector.extract_strided_slice %18 {offsets = [0, 24], sizes = [8, 8], strides = [1, 1]} : vector<8x32xf32> to vector<8x8xf32>
    %73 = vector.extract_strided_slice %19 {offsets = [0, 24], sizes = [8, 8], strides = [1, 1]} : vector<8x32xf32> to vector<8x8xf32>
    %cst_28 = arith.constant dense<0.000000e+00> : vector<8x8xf32>
    %74 = tpu.matmul %72, %73, %cst_28 {dimension_numbers = #tpu.dot_dimension_numbers<[1], [1], [0], [0], [0, 0, 1, 0], [], []>} : vector<8x8xf32>, vector<8x8xf32>, vector<8x8xf32> -> vector<8x8xf32>
    %cst_29 = arith.constant 0.353553385 : f32
    %75 = vector.broadcast %cst_29 : f32 to vector<8x8xf32>
    %76 = arith.mulf %74, %75 : vector<8x8xf32>
    %cst_30 = arith.constant dense<0xFF800000> : vector<8xf32>
    %77 = vector.multi_reduction <maximumf>, %76, %cst_30 [1] : vector<8x8xf32> to vector<8xf32>
    %78 = vector.shape_cast %77 : vector<8xf32> to vector<8x1xf32>
    %79 = vector.broadcast %78 : vector<8x1xf32> to vector<8x8xf32>
    %80 = arith.subf %76, %79 : vector<8x8xf32>
    %81 = math.exp %80 : vector<8x8xf32>
    %cst_31 = arith.constant dense<0.000000e+00> : vector<8xf32>
    %82 = vector.multi_reduction <add>, %81, %cst_31 [1] : vector<8x8xf32> to vector<8xf32>
    %83 = vector.shape_cast %82 : vector<8xf32> to vector<8x1xf32>
    %84 = tpu.reciprocal %83 {approx = true} : vector<8x1xf32> -> vector<8x1xf32>
    %85 = vector.broadcast %84 : vector<8x1xf32> to vector<8x8xf32>
    %86 = arith.mulf %81, %85 : vector<8x8xf32>
    %87 = vector.extract_strided_slice %20 {offsets = [0, 24], sizes = [8, 8], strides = [1, 1]} : vector<8x32xf32> to vector<8x8xf32>
    %cst_32 = arith.constant dense<0.000000e+00> : vector<8x8xf32>
    %88 = tpu.matmul %86, %87, %cst_32 {dimension_numbers = #tpu.dot_dimension_numbers<[1], [0], [0], [1], [0, 0, 1, 1], [], []>} : vector<8x8xf32>, vector<8x8xf32>, vector<8x8xf32> -> vector<8x8xf32>
    %89 = tpu.concatenate %37, %54, %71, %88 in 1 : vector<8x8xf32>, vector<8x8xf32>, vector<8x8xf32>, vector<8x8xf32> -> vector<8x32xf32>
    %c0_33 = arith.constant 0 : index
    %c0_34 = arith.constant 0 : index
    %90 = vector.load %arg32[%c0_33, %c0_34] : memref<32x32xf32, #tpu.memory_space<vmem>>, vector<32x32xf32>
    %cst_35 = arith.constant dense<0.000000e+00> : vector<8x32xf32>
    %91 = tpu.matmul %89, %90, %cst_35 {dimension_numbers = #tpu.dot_dimension_numbers<[1], [0], [0], [1], [0, 0, 1, 1], [], []>} : vector<8x32xf32>, vector<32x32xf32>, vector<8x32xf32> -> vector<8x32xf32>
    %c0_36 = arith.constant 0 : index
    %c0_37 = arith.constant 0 : index
    %92 = vector.load %arg24[%c0_36, %c0_37] : memref<1x32xf32, #tpu.memory_space<vmem>>, vector<1x32xf32>
    %93 = vector.broadcast %92 : vector<1x32xf32> to vector<8x32xf32>
    %94 = arith.addf %91, %93 : vector<8x32xf32>
    %95 = arith.addf %12, %94 : vector<8x32xf32>
    %c0_38 = arith.constant 0 : index
    %c0_39 = arith.constant 0 : index
    %96 = vector.load %arg27[%c0_38, %c0_39] : memref<1x32xf32, #tpu.memory_space<vmem>>, vector<1x32xf32>
    %c0_40 = arith.constant 0 : index
    %c0_41 = arith.constant 0 : index
    %97 = vector.load %arg26[%c0_40, %c0_41] : memref<1x32xf32, #tpu.memory_space<vmem>>, vector<1x32xf32>
    %cst_42 = arith.constant dense<0.000000e+00> : vector<8xf32>
    %98 = vector.multi_reduction <add>, %95, %cst_42 [1] : vector<8x32xf32> to vector<8xf32>
    %99 = vector.shape_cast %98 : vector<8xf32> to vector<8x1xf32>
    %cst_43 = arith.constant 3.200000e+01 : f32
    %100 = vector.broadcast %cst_43 : f32 to vector<8x1xf32>
    %101 = arith.divf %99, %100 : vector<8x1xf32>
    %102 = vector.broadcast %101 : vector<8x1xf32> to vector<8x32xf32>
    %103 = arith.subf %95, %102 : vector<8x32xf32>
    %104 = arith.mulf %103, %103 : vector<8x32xf32>
    %cst_44 = arith.constant dense<0.000000e+00> : vector<8xf32>
    %105 = vector.multi_reduction <add>, %104, %cst_44 [1] : vector<8x32xf32> to vector<8xf32>
    %106 = vector.shape_cast %105 : vector<8xf32> to vector<8x1xf32>
    %cst_45 = arith.constant 3.200000e+01 : f32
    %107 = vector.broadcast %cst_45 : f32 to vector<8x1xf32>
    %108 = arith.divf %106, %107 : vector<8x1xf32>
    %cst_46 = arith.constant 9.99999974E-6 : f32
    %109 = vector.broadcast %cst_46 : f32 to vector<8x1xf32>
    %110 = arith.addf %108, %109 : vector<8x1xf32>
    %111 = math.rsqrt %110 : vector<8x1xf32>
    %112 = vector.broadcast %111 : vector<8x1xf32> to vector<8x32xf32>
    %113 = arith.mulf %103, %112 : vector<8x32xf32>
    %114 = vector.broadcast %96 : vector<1x32xf32> to vector<8x32xf32>
    %115 = arith.mulf %113, %114 : vector<8x32xf32>
    %116 = vector.broadcast %97 : vector<1x32xf32> to vector<8x32xf32>
    %117 = arith.addf %115, %116 : vector<8x32xf32>
    %c0_47 = arith.constant 0 : index
    %c0_48 = arith.constant 0 : index
    %118 = vector.load %arg30[%c0_47, %c0_48] : memref<32x2048xf32, #tpu.memory_space<vmem>>, vector<32x2048xf32>
    %cst_49 = arith.constant dense<0.000000e+00> : vector<8x2048xf32>
    %119 = tpu.matmul %117, %118, %cst_49 {dimension_numbers = #tpu.dot_dimension_numbers<[1], [0], [0], [1], [0, 0, 1, 1], [], []>} : vector<8x32xf32>, vector<32x2048xf32>, vector<8x2048xf32> -> vector<8x2048xf32>
    %c0_50 = arith.constant 0 : index
    %c0_51 = arith.constant 0 : index
    %120 = vector.load %arg22[%c0_50, %c0_51] : memref<1x2048xf32, #tpu.memory_space<vmem>>, vector<1x2048xf32>
    %121 = vector.broadcast %120 : vector<1x2048xf32> to vector<8x2048xf32>
    %122 = arith.addf %119, %121 : vector<8x2048xf32>
    %cst_52 = arith.constant 0.000000e+00 : f32
    %123 = vector.broadcast %cst_52 : f32 to vector<8x2048xf32>
    %124 = arith.maximumf %122, %123 : vector<8x2048xf32>
    %c0_53 = arith.constant 0 : index
    %c0_54 = arith.constant 0 : index
    %125 = vector.load %arg31[%c0_53, %c0_54] : memref<2048x32xf32, #tpu.memory_space<vmem>>, vector<2048x32xf32>
    %cst_55 = arith.constant dense<0.000000e+00> : vector<8x32xf32>
    %126 = tpu.matmul %124, %125, %cst_55 {dimension_numbers = #tpu.dot_dimension_numbers<[1], [0], [0], [1], [0, 0, 1, 1], [], []>} : vector<8x2048xf32>, vector<2048x32xf32>, vector<8x32xf32> -> vector<8x32xf32>
    %c0_56 = arith.constant 0 : index
    %c0_57 = arith.constant 0 : index
    %127 = vector.load %arg23[%c0_56, %c0_57] : memref<1x32xf32, #tpu.memory_space<vmem>>, vector<1x32xf32>
    %128 = vector.broadcast %127 : vector<1x32xf32> to vector<8x32xf32>
    %129 = arith.addf %126, %128 : vector<8x32xf32>
    %130 = arith.addf %117, %129 : vector<8x32xf32>
    %c0_58 = arith.constant 0 : index
    %c0_59 = arith.constant 0 : index
    %131 = vector.load %arg29[%c0_58, %c0_59] : memref<1x32xf32, #tpu.memory_space<vmem>>, vector<1x32xf32>
    %c0_60 = arith.constant 0 : index
    %c0_61 = arith.constant 0 : index
    %132 = vector.load %arg28[%c0_60, %c0_61] : memref<1x32xf32, #tpu.memory_space<vmem>>, vector<1x32xf32>
    %cst_62 = arith.constant dense<0.000000e+00> : vector<8xf32>
    %133 = vector.multi_reduction <add>, %130, %cst_62 [1] : vector<8x32xf32> to vector<8xf32>
    %134 = vector.shape_cast %133 : vector<8xf32> to vector<8x1xf32>
    %cst_63 = arith.constant 3.200000e+01 : f32
    %135 = vector.broadcast %cst_63 : f32 to vector<8x1xf32>
    %136 = arith.divf %134, %135 : vector<8x1xf32>
    %137 = vector.broadcast %136 : vector<8x1xf32> to vector<8x32xf32>
    %138 = arith.subf %130, %137 : vector<8x32xf32>
    %139 = arith.mulf %138, %138 : vector<8x32xf32>
    %cst_64 = arith.constant dense<0.000000e+00> : vector<8xf32>
    %140 = vector.multi_reduction <add>, %139, %cst_64 [1] : vector<8x32xf32> to vector<8xf32>
    %141 = vector.shape_cast %140 : vector<8xf32> to vector<8x1xf32>
    %cst_65 = arith.constant 3.200000e+01 : f32
    %142 = vector.broadcast %cst_65 : f32 to vector<8x1xf32>
    %143 = arith.divf %141, %142 : vector<8x1xf32>
    %cst_66 = arith.constant 9.99999974E-6 : f32
    %144 = vector.broadcast %cst_66 : f32 to vector<8x1xf32>
    %145 = arith.addf %143, %144 : vector<8x1xf32>
    %146 = math.rsqrt %145 : vector<8x1xf32>
    %147 = vector.broadcast %146 : vector<8x1xf32> to vector<8x32xf32>
    %148 = arith.mulf %138, %147 : vector<8x32xf32>
    %149 = vector.broadcast %131 : vector<1x32xf32> to vector<8x32xf32>
    %150 = arith.mulf %148, %149 : vector<8x32xf32>
    %151 = vector.broadcast %132 : vector<1x32xf32> to vector<8x32xf32>
    %152 = arith.addf %150, %151 : vector<8x32xf32>
    %c0_67 = arith.constant 0 : index
    %c0_68 = arith.constant 0 : index
    %153 = vector.load %arg45[%c0_67, %c0_68] : memref<32x96xf32, #tpu.memory_space<vmem>>, vector<32x96xf32>
    %cst_69 = arith.constant dense<0.000000e+00> : vector<8x96xf32>
    %154 = tpu.matmul %152, %153, %cst_69 {dimension_numbers = #tpu.dot_dimension_numbers<[1], [0], [0], [1], [0, 0, 1, 1], [], []>} : vector<8x32xf32>, vector<32x96xf32>, vector<8x96xf32> -> vector<8x96xf32>
    %c0_70 = arith.constant 0 : index
    %c0_71 = arith.constant 0 : index
    %155 = vector.load %arg37[%c0_70, %c0_71] : memref<1x96xf32, #tpu.memory_space<vmem>>, vector<1x96xf32>
    %156 = vector.broadcast %155 : vector<1x96xf32> to vector<8x96xf32>
    %157 = arith.addf %154, %156 : vector<8x96xf32>
    %158 = vector.extract_strided_slice %157 {offsets = [0, 0], sizes = [8, 32], strides = [1, 1]} : vector<8x96xf32> to vector<8x32xf32>
    %159 = vector.extract_strided_slice %157 {offsets = [0, 32], sizes = [8, 32], strides = [1, 1]} : vector<8x96xf32> to vector<8x32xf32>
    %160 = vector.extract_strided_slice %157 {offsets = [0, 64], sizes = [8, 32], strides = [1, 1]} : vector<8x96xf32> to vector<8x32xf32>
    %161 = vector.extract_strided_slice %158 {offsets = [0, 0], sizes = [8, 8], strides = [1, 1]} : vector<8x32xf32> to vector<8x8xf32>
    %162 = vector.extract_strided_slice %159 {offsets = [0, 0], sizes = [8, 8], strides = [1, 1]} : vector<8x32xf32> to vector<8x8xf32>
    %cst_72 = arith.constant dense<0.000000e+00> : vector<8x8xf32>
    %163 = tpu.matmul %161, %162, %cst_72 {dimension_numbers = #tpu.dot_dimension_numbers<[1], [1], [0], [0], [0, 0, 1, 0], [], []>} : vector<8x8xf32>, vector<8x8xf32>, vector<8x8xf32> -> vector<8x8xf32>
    %cst_73 = arith.constant 0.353553385 : f32
    %164 = vector.broadcast %cst_73 : f32 to vector<8x8xf32>
    %165 = arith.mulf %163, %164 : vector<8x8xf32>
    %cst_74 = arith.constant dense<0xFF800000> : vector<8xf32>
    %166 = vector.multi_reduction <maximumf>, %165, %cst_74 [1] : vector<8x8xf32> to vector<8xf32>
    %167 = vector.shape_cast %166 : vector<8xf32> to vector<8x1xf32>
    %168 = vector.broadcast %167 : vector<8x1xf32> to vector<8x8xf32>
    %169 = arith.subf %165, %168 : vector<8x8xf32>
    %170 = math.exp %169 : vector<8x8xf32>
    %cst_75 = arith.constant dense<0.000000e+00> : vector<8xf32>
    %171 = vector.multi_reduction <add>, %170, %cst_75 [1] : vector<8x8xf32> to vector<8xf32>
    %172 = vector.shape_cast %171 : vector<8xf32> to vector<8x1xf32>
    %173 = tpu.reciprocal %172 {approx = true} : vector<8x1xf32> -> vector<8x1xf32>
    %174 = vector.broadcast %173 : vector<8x1xf32> to vector<8x8xf32>
    %175 = arith.mulf %170, %174 : vector<8x8xf32>
    %176 = vector.extract_strided_slice %160 {offsets = [0, 0], sizes = [8, 8], strides = [1, 1]} : vector<8x32xf32> to vector<8x8xf32>
    %cst_76 = arith.constant dense<0.000000e+00> : vector<8x8xf32>
    %177 = tpu.matmul %175, %176, %cst_76 {dimension_numbers = #tpu.dot_dimension_numbers<[1], [0], [0], [1], [0, 0, 1, 1], [], []>} : vector<8x8xf32>, vector<8x8xf32>, vector<8x8xf32> -> vector<8x8xf32>
    %178 = vector.extract_strided_slice %158 {offsets = [0, 8], sizes = [8, 8], strides = [1, 1]} : vector<8x32xf32> to vector<8x8xf32>
    %179 = vector.extract_strided_slice %159 {offsets = [0, 8], sizes = [8, 8], strides = [1, 1]} : vector<8x32xf32> to vector<8x8xf32>
    %cst_77 = arith.constant dense<0.000000e+00> : vector<8x8xf32>
    %180 = tpu.matmul %178, %179, %cst_77 {dimension_numbers = #tpu.dot_dimension_numbers<[1], [1], [0], [0], [0, 0, 1, 0], [], []>} : vector<8x8xf32>, vector<8x8xf32>, vector<8x8xf32> -> vector<8x8xf32>
    %cst_78 = arith.constant 0.353553385 : f32
    %181 = vector.broadcast %cst_78 : f32 to vector<8x8xf32>
    %182 = arith.mulf %180, %181 : vector<8x8xf32>
    %cst_79 = arith.constant dense<0xFF800000> : vector<8xf32>
    %183 = vector.multi_reduction <maximumf>, %182, %cst_79 [1] : vector<8x8xf32> to vector<8xf32>
    %184 = vector.shape_cast %183 : vector<8xf32> to vector<8x1xf32>
    %185 = vector.broadcast %184 : vector<8x1xf32> to vector<8x8xf32>
    %186 = arith.subf %182, %185 : vector<8x8xf32>
    %187 = math.exp %186 : vector<8x8xf32>
    %cst_80 = arith.constant dense<0.000000e+00> : vector<8xf32>
    %188 = vector.multi_reduction <add>, %187, %cst_80 [1] : vector<8x8xf32> to vector<8xf32>
    %189 = vector.shape_cast %188 : vector<8xf32> to vector<8x1xf32>
    %190 = tpu.reciprocal %189 {approx = true} : vector<8x1xf32> -> vector<8x1xf32>
    %191 = vector.broadcast %190 : vector<8x1xf32> to vector<8x8xf32>
    %192 = arith.mulf %187, %191 : vector<8x8xf32>
    %193 = vector.extract_strided_slice %160 {offsets = [0, 8], sizes = [8, 8], strides = [1, 1]} : vector<8x32xf32> to vector<8x8xf32>
    %cst_81 = arith.constant dense<0.000000e+00> : vector<8x8xf32>
    %194 = tpu.matmul %192, %193, %cst_81 {dimension_numbers = #tpu.dot_dimension_numbers<[1], [0], [0], [1], [0, 0, 1, 1], [], []>} : vector<8x8xf32>, vector<8x8xf32>, vector<8x8xf32> -> vector<8x8xf32>
    %195 = vector.extract_strided_slice %158 {offsets = [0, 16], sizes = [8, 8], strides = [1, 1]} : vector<8x32xf32> to vector<8x8xf32>
    %196 = vector.extract_strided_slice %159 {offsets = [0, 16], sizes = [8, 8], strides = [1, 1]} : vector<8x32xf32> to vector<8x8xf32>
    %cst_82 = arith.constant dense<0.000000e+00> : vector<8x8xf32>
    %197 = tpu.matmul %195, %196, %cst_82 {dimension_numbers = #tpu.dot_dimension_numbers<[1], [1], [0], [0], [0, 0, 1, 0], [], []>} : vector<8x8xf32>, vector<8x8xf32>, vector<8x8xf32> -> vector<8x8xf32>
    %cst_83 = arith.constant 0.353553385 : f32
    %198 = vector.broadcast %cst_83 : f32 to vector<8x8xf32>
    %199 = arith.mulf %197, %198 : vector<8x8xf32>
    %cst_84 = arith.constant dense<0xFF800000> : vector<8xf32>
    %200 = vector.multi_reduction <maximumf>, %199, %cst_84 [1] : vector<8x8xf32> to vector<8xf32>
    %201 = vector.shape_cast %200 : vector<8xf32> to vector<8x1xf32>
    %202 = vector.broadcast %201 : vector<8x1xf32> to vector<8x8xf32>
    %203 = arith.subf %199, %202 : vector<8x8xf32>
    %204 = math.exp %203 : vector<8x8xf32>
    %cst_85 = arith.constant dense<0.000000e+00> : vector<8xf32>
    %205 = vector.multi_reduction <add>, %204, %cst_85 [1] : vector<8x8xf32> to vector<8xf32>
    %206 = vector.shape_cast %205 : vector<8xf32> to vector<8x1xf32>
    %207 = tpu.reciprocal %206 {approx = true} : vector<8x1xf32> -> vector<8x1xf32>
    %208 = vector.broadcast %207 : vector<8x1xf32> to vector<8x8xf32>
    %209 = arith.mulf %204, %208 : vector<8x8xf32>
    %210 = vector.extract_strided_slice %160 {offsets = [0, 16], sizes = [8, 8], strides = [1, 1]} : vector<8x32xf32> to vector<8x8xf32>
    %cst_86 = arith.constant dense<0.000000e+00> : vector<8x8xf32>
    %211 = tpu.matmul %209, %210, %cst_86 {dimension_numbers = #tpu.dot_dimension_numbers<[1], [0], [0], [1], [0, 0, 1, 1], [], []>} : vector<8x8xf32>, vector<8x8xf32>, vector<8x8xf32> -> vector<8x8xf32>
    %212 = vector.extract_strided_slice %158 {offsets = [0, 24], sizes = [8, 8], strides = [1, 1]} : vector<8x32xf32> to vector<8x8xf32>
    %213 = vector.extract_strided_slice %159 {offsets = [0, 24], sizes = [8, 8], strides = [1, 1]} : vector<8x32xf32> to vector<8x8xf32>
    %cst_87 = arith.constant dense<0.000000e+00> : vector<8x8xf32>
    %214 = tpu.matmul %212, %213, %cst_87 {dimension_numbers = #tpu.dot_dimension_numbers<[1], [1], [0], [0], [0, 0, 1, 0], [], []>} : vector<8x8xf32>, vector<8x8xf32>, vector<8x8xf32> -> vector<8x8xf32>
    %cst_88 = arith.constant 0.353553385 : f32
    %215 = vector.broadcast %cst_88 : f32 to vector<8x8xf32>
    %216 = arith.mulf %214, %215 : vector<8x8xf32>
    %cst_89 = arith.constant dense<0xFF800000> : vector<8xf32>
    %217 = vector.multi_reduction <maximumf>, %216, %cst_89 [1] : vector<8x8xf32> to vector<8xf32>
    %218 = vector.shape_cast %217 : vector<8xf32> to vector<8x1xf32>
    %219 = vector.broadcast %218 : vector<8x1xf32> to vector<8x8xf32>
    %220 = arith.subf %216, %219 : vector<8x8xf32>
    %221 = math.exp %220 : vector<8x8xf32>
    %cst_90 = arith.constant dense<0.000000e+00> : vector<8xf32>
    %222 = vector.multi_reduction <add>, %221, %cst_90 [1] : vector<8x8xf32> to vector<8xf32>
    %223 = vector.shape_cast %222 : vector<8xf32> to vector<8x1xf32>
    %224 = tpu.reciprocal %223 {approx = true} : vector<8x1xf32> -> vector<8x1xf32>
    %225 = vector.broadcast %224 : vector<8x1xf32> to vector<8x8xf32>
    %226 = arith.mulf %221, %225 : vector<8x8xf32>
    %227 = vector.extract_strided_slice %160 {offsets = [0, 24], sizes = [8, 8], strides = [1, 1]} : vector<8x32xf32> to vector<8x8xf32>
    %cst_91 = arith.constant dense<0.000000e+00> : vector<8x8xf32>
    %228 = tpu.matmul %226, %227, %cst_91 {dimension_numbers = #tpu.dot_dimension_numbers<[1], [0], [0], [1], [0, 0, 1, 1], [], []>} : vector<8x8xf32>, vector<8x8xf32>, vector<8x8xf32> -> vector<8x8xf32>
    %229 = tpu.concatenate %177, %194, %211, %228 in 1 : vector<8x8xf32>, vector<8x8xf32>, vector<8x8xf32>, vector<8x8xf32> -> vector<8x32xf32>
    %c0_92 = arith.constant 0 : index
    %c0_93 = arith.constant 0 : index
    %230 = vector.load %arg44[%c0_92, %c0_93] : memref<32x32xf32, #tpu.memory_space<vmem>>, vector<32x32xf32>
    %cst_94 = arith.constant dense<0.000000e+00> : vector<8x32xf32>
    %231 = tpu.matmul %229, %230, %cst_94 {dimension_numbers = #tpu.dot_dimension_numbers<[1], [0], [0], [1], [0, 0, 1, 1], [], []>} : vector<8x32xf32>, vector<32x32xf32>, vector<8x32xf32> -> vector<8x32xf32>
    %c0_95 = arith.constant 0 : index
    %c0_96 = arith.constant 0 : index
    %232 = vector.load %arg36[%c0_95, %c0_96] : memref<1x32xf32, #tpu.memory_space<vmem>>, vector<1x32xf32>
    %233 = vector.broadcast %232 : vector<1x32xf32> to vector<8x32xf32>
    %234 = arith.addf %231, %233 : vector<8x32xf32>
    %235 = arith.addf %152, %234 : vector<8x32xf32>
    %c0_97 = arith.constant 0 : index
    %c0_98 = arith.constant 0 : index
    %236 = vector.load %arg39[%c0_97, %c0_98] : memref<1x32xf32, #tpu.memory_space<vmem>>, vector<1x32xf32>
    %c0_99 = arith.constant 0 : index
    %c0_100 = arith.constant 0 : index
    %237 = vector.load %arg38[%c0_99, %c0_100] : memref<1x32xf32, #tpu.memory_space<vmem>>, vector<1x32xf32>
    %cst_101 = arith.constant dense<0.000000e+00> : vector<8xf32>
    %238 = vector.multi_reduction <add>, %235, %cst_101 [1] : vector<8x32xf32> to vector<8xf32>
    %239 = vector.shape_cast %238 : vector<8xf32> to vector<8x1xf32>
    %cst_102 = arith.constant 3.200000e+01 : f32
    %240 = vector.broadcast %cst_102 : f32 to vector<8x1xf32>
    %241 = arith.divf %239, %240 : vector<8x1xf32>
    %242 = vector.broadcast %241 : vector<8x1xf32> to vector<8x32xf32>
    %243 = arith.subf %235, %242 : vector<8x32xf32>
    %244 = arith.mulf %243, %243 : vector<8x32xf32>
    %cst_103 = arith.constant dense<0.000000e+00> : vector<8xf32>
    %245 = vector.multi_reduction <add>, %244, %cst_103 [1] : vector<8x32xf32> to vector<8xf32>
    %246 = vector.shape_cast %245 : vector<8xf32> to vector<8x1xf32>
    %cst_104 = arith.constant 3.200000e+01 : f32
    %247 = vector.broadcast %cst_104 : f32 to vector<8x1xf32>
    %248 = arith.divf %246, %247 : vector<8x1xf32>
    %cst_105 = arith.constant 9.99999974E-6 : f32
    %249 = vector.broadcast %cst_105 : f32 to vector<8x1xf32>
    %250 = arith.addf %248, %249 : vector<8x1xf32>
    %251 = math.rsqrt %250 : vector<8x1xf32>
    %252 = vector.broadcast %251 : vector<8x1xf32> to vector<8x32xf32>
    %253 = arith.mulf %243, %252 : vector<8x32xf32>
    %254 = vector.broadcast %236 : vector<1x32xf32> to vector<8x32xf32>
    %255 = arith.mulf %253, %254 : vector<8x32xf32>
    %256 = vector.broadcast %237 : vector<1x32xf32> to vector<8x32xf32>
    %257 = arith.addf %255, %256 : vector<8x32xf32>
    %c0_106 = arith.constant 0 : index
    %c0_107 = arith.constant 0 : index
    %258 = vector.load %arg42[%c0_106, %c0_107] : memref<32x2048xf32, #tpu.memory_space<vmem>>, vector<32x2048xf32>
    %cst_108 = arith.constant dense<0.000000e+00> : vector<8x2048xf32>
    %259 = tpu.matmul %257, %258, %cst_108 {dimension_numbers = #tpu.dot_dimension_numbers<[1], [0], [0], [1], [0, 0, 1, 1], [], []>} : vector<8x32xf32>, vector<32x2048xf32>, vector<8x2048xf32> -> vector<8x2048xf32>
    %c0_109 = arith.constant 0 : index
    %c0_110 = arith.constant 0 : index
    %260 = vector.load %arg34[%c0_109, %c0_110] : memref<1x2048xf32, #tpu.memory_space<vmem>>, vector<1x2048xf32>
    %261 = vector.broadcast %260 : vector<1x2048xf32> to vector<8x2048xf32>
    %262 = arith.addf %259, %261 : vector<8x2048xf32>
    %cst_111 = arith.constant 0.000000e+00 : f32
    %263 = vector.broadcast %cst_111 : f32 to vector<8x2048xf32>
    %264 = arith.maximumf %262, %263 : vector<8x2048xf32>
    %c0_112 = arith.constant 0 : index
    %c0_113 = arith.constant 0 : index
    %265 = vector.load %arg43[%c0_112, %c0_113] : memref<2048x32xf32, #tpu.memory_space<vmem>>, vector<2048x32xf32>
    %cst_114 = arith.constant dense<0.000000e+00> : vector<8x32xf32>
    %266 = tpu.matmul %264, %265, %cst_114 {dimension_numbers = #tpu.dot_dimension_numbers<[1], [0], [0], [1], [0, 0, 1, 1], [], []>} : vector<8x2048xf32>, vector<2048x32xf32>, vector<8x32xf32> -> vector<8x32xf32>
    %c0_115 = arith.constant 0 : index
    %c0_116 = arith.constant 0 : index
    %267 = vector.load %arg35[%c0_115, %c0_116] : memref<1x32xf32, #tpu.memory_space<vmem>>, vector<1x32xf32>
    %268 = vector.broadcast %267 : vector<1x32xf32> to vector<8x32xf32>
    %269 = arith.addf %266, %268 : vector<8x32xf32>
    %270 = arith.addf %257, %269 : vector<8x32xf32>
    %c0_117 = arith.constant 0 : index
    %c0_118 = arith.constant 0 : index
    %271 = vector.load %arg41[%c0_117, %c0_118] : memref<1x32xf32, #tpu.memory_space<vmem>>, vector<1x32xf32>
    %c0_119 = arith.constant 0 : index
    %c0_120 = arith.constant 0 : index
    %272 = vector.load %arg40[%c0_119, %c0_120] : memref<1x32xf32, #tpu.memory_space<vmem>>, vector<1x32xf32>
    %cst_121 = arith.constant dense<0.000000e+00> : vector<8xf32>
    %273 = vector.multi_reduction <add>, %270, %cst_121 [1] : vector<8x32xf32> to vector<8xf32>
    %274 = vector.shape_cast %273 : vector<8xf32> to vector<8x1xf32>
    %cst_122 = arith.constant 3.200000e+01 : f32
    %275 = vector.broadcast %cst_122 : f32 to vector<8x1xf32>
    %276 = arith.divf %274, %275 : vector<8x1xf32>
    %277 = vector.broadcast %276 : vector<8x1xf32> to vector<8x32xf32>
    %278 = arith.subf %270, %277 : vector<8x32xf32>
    %279 = arith.mulf %278, %278 : vector<8x32xf32>
    %cst_123 = arith.constant dense<0.000000e+00> : vector<8xf32>
    %280 = vector.multi_reduction <add>, %279, %cst_123 [1] : vector<8x32xf32> to vector<8xf32>
    %281 = vector.shape_cast %280 : vector<8xf32> to vector<8x1xf32>
    %cst_124 = arith.constant 3.200000e+01 : f32
    %282 = vector.broadcast %cst_124 : f32 to vector<8x1xf32>
    %283 = arith.divf %281, %282 : vector<8x1xf32>
    %cst_125 = arith.constant 9.99999974E-6 : f32
    %284 = vector.broadcast %cst_125 : f32 to vector<8x1xf32>
    %285 = arith.addf %283, %284 : vector<8x1xf32>
    %286 = math.rsqrt %285 : vector<8x1xf32>
    %287 = vector.broadcast %286 : vector<8x1xf32> to vector<8x32xf32>
    %288 = arith.mulf %278, %287 : vector<8x32xf32>
    %289 = vector.broadcast %271 : vector<1x32xf32> to vector<8x32xf32>
    %290 = arith.mulf %288, %289 : vector<8x32xf32>
    %291 = vector.broadcast %272 : vector<1x32xf32> to vector<8x32xf32>
    %292 = arith.addf %290, %291 : vector<8x32xf32>
    %cst_126 = arith.constant 0.000000e+00 : f32
    %293 = vector.broadcast %cst_126 : f32 to vector<1x32xf32>
    %c0_127 = arith.constant 0 : index
    %c0_128 = arith.constant 0 : index
    %294 = vector.load %arg19[%c0_127, %c0_128] : memref<32x96xf32, #tpu.memory_space<vmem>>, vector<32x96xf32>
    %cst_129 = arith.constant dense<0.000000e+00> : vector<1x96xf32>
    %295 = tpu.matmul %293, %294, %cst_129 {dimension_numbers = #tpu.dot_dimension_numbers<[1], [0], [0], [1], [0, 0, 1, 1], [], []>} : vector<1x32xf32>, vector<32x96xf32>, vector<1x96xf32> -> vector<1x96xf32>
    %c0_130 = arith.constant 0 : index
    %c0_131 = arith.constant 0 : index
    %296 = vector.load %arg17[%c0_130, %c0_131] : memref<1x96xf32, #tpu.memory_space<vmem>>, vector<1x96xf32>
    %297 = arith.addf %295, %296 : vector<1x96xf32>
    %298 = vector.extract_strided_slice %297 {offsets = [0, 0], sizes = [1, 32], strides = [1, 1]} : vector<1x96xf32> to vector<1x32xf32>
    %299 = vector.extract_strided_slice %297 {offsets = [0, 32], sizes = [1, 32], strides = [1, 1]} : vector<1x96xf32> to vector<1x32xf32>
    %300 = vector.extract_strided_slice %297 {offsets = [0, 64], sizes = [1, 32], strides = [1, 1]} : vector<1x96xf32> to vector<1x32xf32>
    %301 = vector.extract_strided_slice %298 {offsets = [0, 0], sizes = [1, 8], strides = [1, 1]} : vector<1x32xf32> to vector<1x8xf32>
    %302 = vector.extract_strided_slice %299 {offsets = [0, 0], sizes = [1, 8], strides = [1, 1]} : vector<1x32xf32> to vector<1x8xf32>
    %cst_132 = arith.constant dense<0.000000e+00> : vector<1x1xf32>
    %303 = tpu.matmul %301, %302, %cst_132 {dimension_numbers = #tpu.dot_dimension_numbers<[1], [1], [0], [0], [0, 0, 1, 0], [], []>} : vector<1x8xf32>, vector<1x8xf32>, vector<1x1xf32> -> vector<1x1xf32>
    %cst_133 = arith.constant 0.353553385 : f32
    %304 = vector.broadcast %cst_133 : f32 to vector<1x1xf32>
    %305 = arith.mulf %303, %304 : vector<1x1xf32>
    %cst_134 = arith.constant dense<0xFF800000> : vector<1xf32>
    %306 = vector.multi_reduction <maximumf>, %305, %cst_134 [1] : vector<1x1xf32> to vector<1xf32>
    %307 = vector.shape_cast %306 : vector<1xf32> to vector<1x1xf32>
    %308 = arith.subf %305, %307 : vector<1x1xf32>
    %309 = math.exp %308 : vector<1x1xf32>
    %cst_135 = arith.constant dense<0.000000e+00> : vector<1xf32>
    %310 = vector.multi_reduction <add>, %309, %cst_135 [1] : vector<1x1xf32> to vector<1xf32>
    %311 = vector.shape_cast %310 : vector<1xf32> to vector<1x1xf32>
    %312 = tpu.reciprocal %311 {approx = true} : vector<1x1xf32> -> vector<1x1xf32>
    %313 = arith.mulf %309, %312 : vector<1x1xf32>
    %314 = vector.extract_strided_slice %300 {offsets = [0, 0], sizes = [1, 8], strides = [1, 1]} : vector<1x32xf32> to vector<1x8xf32>
    %cst_136 = arith.constant dense<0.000000e+00> : vector<1x8xf32>
    %315 = tpu.matmul %313, %314, %cst_136 {dimension_numbers = #tpu.dot_dimension_numbers<[1], [0], [0], [1], [0, 0, 1, 1], [], []>} : vector<1x1xf32>, vector<1x8xf32>, vector<1x8xf32> -> vector<1x8xf32>
    %316 = vector.extract_strided_slice %298 {offsets = [0, 8], sizes = [1, 8], strides = [1, 1]} : vector<1x32xf32> to vector<1x8xf32>
    %317 = vector.extract_strided_slice %299 {offsets = [0, 8], sizes = [1, 8], strides = [1, 1]} : vector<1x32xf32> to vector<1x8xf32>
    %cst_137 = arith.constant dense<0.000000e+00> : vector<1x1xf32>
    %318 = tpu.matmul %316, %317, %cst_137 {dimension_numbers = #tpu.dot_dimension_numbers<[1], [1], [0], [0], [0, 0, 1, 0], [], []>} : vector<1x8xf32>, vector<1x8xf32>, vector<1x1xf32> -> vector<1x1xf32>
    %cst_138 = arith.constant 0.353553385 : f32
    %319 = vector.broadcast %cst_138 : f32 to vector<1x1xf32>
    %320 = arith.mulf %318, %319 : vector<1x1xf32>
    %cst_139 = arith.constant dense<0xFF800000> : vector<1xf32>
    %321 = vector.multi_reduction <maximumf>, %320, %cst_139 [1] : vector<1x1xf32> to vector<1xf32>
    %322 = vector.shape_cast %321 : vector<1xf32> to vector<1x1xf32>
    %323 = arith.subf %320, %322 : vector<1x1xf32>
    %324 = math.exp %323 : vector<1x1xf32>
    %cst_140 = arith.constant dense<0.000000e+00> : vector<1xf32>
    %325 = vector.multi_reduction <add>, %324, %cst_140 [1] : vector<1x1xf32> to vector<1xf32>
    %326 = vector.shape_cast %325 : vector<1xf32> to vector<1x1xf32>
    %327 = tpu.reciprocal %326 {approx = true} : vector<1x1xf32> -> vector<1x1xf32>
    %328 = arith.mulf %324, %327 : vector<1x1xf32>
    %329 = vector.extract_strided_slice %300 {offsets = [0, 8], sizes = [1, 8], strides = [1, 1]} : vector<1x32xf32> to vector<1x8xf32>
    %cst_141 = arith.constant dense<0.000000e+00> : vector<1x8xf32>
    %330 = tpu.matmul %328, %329, %cst_141 {dimension_numbers = #tpu.dot_dimension_numbers<[1], [0], [0], [1], [0, 0, 1, 1], [], []>} : vector<1x1xf32>, vector<1x8xf32>, vector<1x8xf32> -> vector<1x8xf32>
    %331 = vector.extract_strided_slice %298 {offsets = [0, 16], sizes = [1, 8], strides = [1, 1]} : vector<1x32xf32> to vector<1x8xf32>
    %332 = vector.extract_strided_slice %299 {offsets = [0, 16], sizes = [1, 8], strides = [1, 1]} : vector<1x32xf32> to vector<1x8xf32>
    %cst_142 = arith.constant dense<0.000000e+00> : vector<1x1xf32>
    %333 = tpu.matmul %331, %332, %cst_142 {dimension_numbers = #tpu.dot_dimension_numbers<[1], [1], [0], [0], [0, 0, 1, 0], [], []>} : vector<1x8xf32>, vector<1x8xf32>, vector<1x1xf32> -> vector<1x1xf32>
    %cst_143 = arith.constant 0.353553385 : f32
    %334 = vector.broadcast %cst_143 : f32 to vector<1x1xf32>
    %335 = arith.mulf %333, %334 : vector<1x1xf32>
    %cst_144 = arith.constant dense<0xFF800000> : vector<1xf32>
    %336 = vector.multi_reduction <maximumf>, %335, %cst_144 [1] : vector<1x1xf32> to vector<1xf32>
    %337 = vector.shape_cast %336 : vector<1xf32> to vector<1x1xf32>
    %338 = arith.subf %335, %337 : vector<1x1xf32>
    %339 = math.exp %338 : vector<1x1xf32>
    %cst_145 = arith.constant dense<0.000000e+00> : vector<1xf32>
    %340 = vector.multi_reduction <add>, %339, %cst_145 [1] : vector<1x1xf32> to vector<1xf32>
    %341 = vector.shape_cast %340 : vector<1xf32> to vector<1x1xf32>
    %342 = tpu.reciprocal %341 {approx = true} : vector<1x1xf32> -> vector<1x1xf32>
    %343 = arith.mulf %339, %342 : vector<1x1xf32>
    %344 = vector.extract_strided_slice %300 {offsets = [0, 16], sizes = [1, 8], strides = [1, 1]} : vector<1x32xf32> to vector<1x8xf32>
    %cst_146 = arith.constant dense<0.000000e+00> : vector<1x8xf32>
    %345 = tpu.matmul %343, %344, %cst_146 {dimension_numbers = #tpu.dot_dimension_numbers<[1], [0], [0], [1], [0, 0, 1, 1], [], []>} : vector<1x1xf32>, vector<1x8xf32>, vector<1x8xf32> -> vector<1x8xf32>
    %346 = vector.extract_strided_slice %298 {offsets = [0, 24], sizes = [1, 8], strides = [1, 1]} : vector<1x32xf32> to vector<1x8xf32>
    %347 = vector.extract_strided_slice %299 {offsets = [0, 24], sizes = [1, 8], strides = [1, 1]} : vector<1x32xf32> to vector<1x8xf32>
    %cst_147 = arith.constant dense<0.000000e+00> : vector<1x1xf32>
    %348 = tpu.matmul %346, %347, %cst_147 {dimension_numbers = #tpu.dot_dimension_numbers<[1], [1], [0], [0], [0, 0, 1, 0], [], []>} : vector<1x8xf32>, vector<1x8xf32>, vector<1x1xf32> -> vector<1x1xf32>
    %cst_148 = arith.constant 0.353553385 : f32
    %349 = vector.broadcast %cst_148 : f32 to vector<1x1xf32>
    %350 = arith.mulf %348, %349 : vector<1x1xf32>
    %cst_149 = arith.constant dense<0xFF800000> : vector<1xf32>
    %351 = vector.multi_reduction <maximumf>, %350, %cst_149 [1] : vector<1x1xf32> to vector<1xf32>
    %352 = vector.shape_cast %351 : vector<1xf32> to vector<1x1xf32>
    %353 = arith.subf %350, %352 : vector<1x1xf32>
    %354 = math.exp %353 : vector<1x1xf32>
    %cst_150 = arith.constant dense<0.000000e+00> : vector<1xf32>
    %355 = vector.multi_reduction <add>, %354, %cst_150 [1] : vector<1x1xf32> to vector<1xf32>
    %356 = vector.shape_cast %355 : vector<1xf32> to vector<1x1xf32>
    %357 = tpu.reciprocal %356 {approx = true} : vector<1x1xf32> -> vector<1x1xf32>
    %358 = arith.mulf %354, %357 : vector<1x1xf32>
    %359 = vector.extract_strided_slice %300 {offsets = [0, 24], sizes = [1, 8], strides = [1, 1]} : vector<1x32xf32> to vector<1x8xf32>
    %cst_151 = arith.constant dense<0.000000e+00> : vector<1x8xf32>
    %360 = tpu.matmul %358, %359, %cst_151 {dimension_numbers = #tpu.dot_dimension_numbers<[1], [0], [0], [1], [0, 0, 1, 1], [], []>} : vector<1x1xf32>, vector<1x8xf32>, vector<1x8xf32> -> vector<1x8xf32>
    %361 = tpu.concatenate %315, %330, %345, %360 in 1 : vector<1x8xf32>, vector<1x8xf32>, vector<1x8xf32>, vector<1x8xf32> -> vector<1x32xf32>
    %c0_152 = arith.constant 0 : index
    %c0_153 = arith.constant 0 : index
    %362 = vector.load %arg18[%c0_152, %c0_153] : memref<32x32xf32, #tpu.memory_space<vmem>>, vector<32x32xf32>
    %cst_154 = arith.constant dense<0.000000e+00> : vector<1x32xf32>
    %363 = tpu.matmul %361, %362, %cst_154 {dimension_numbers = #tpu.dot_dimension_numbers<[1], [0], [0], [1], [0, 0, 1, 1], [], []>} : vector<1x32xf32>, vector<32x32xf32>, vector<1x32xf32> -> vector<1x32xf32>
    %c0_155 = arith.constant 0 : index
    %c0_156 = arith.constant 0 : index
    %364 = vector.load %arg16[%c0_155, %c0_156] : memref<1x32xf32, #tpu.memory_space<vmem>>, vector<1x32xf32>
    %365 = arith.addf %363, %364 : vector<1x32xf32>
    %366 = arith.addf %293, %365 : vector<1x32xf32>
    %c0_157 = arith.constant 0 : index
    %c0_158 = arith.constant 0 : index
    %367 = vector.load %arg11[%c0_157, %c0_158] : memref<1x32xf32, #tpu.memory_space<vmem>>, vector<1x32xf32>
    %c0_159 = arith.constant 0 : index
    %c0_160 = arith.constant 0 : index
    %368 = vector.load %arg10[%c0_159, %c0_160] : memref<1x32xf32, #tpu.memory_space<vmem>>, vector<1x32xf32>
    %cst_161 = arith.constant dense<0.000000e+00> : vector<1xf32>
    %369 = vector.multi_reduction <add>, %366, %cst_161 [1] : vector<1x32xf32> to vector<1xf32>
    %370 = vector.shape_cast %369 : vector<1xf32> to vector<1x1xf32>
    %cst_162 = arith.constant 3.200000e+01 : f32
    %371 = vector.broadcast %cst_162 : f32 to vector<1x1xf32>
    %372 = arith.divf %370, %371 : vector<1x1xf32>
    %373 = vector.broadcast %372 : vector<1x1xf32> to vector<1x32xf32>
    %374 = arith.subf %366, %373 : vector<1x32xf32>
    %375 = arith.mulf %374, %374 : vector<1x32xf32>
    %cst_163 = arith.constant dense<0.000000e+00> : vector<1xf32>
    %376 = vector.multi_reduction <add>, %375, %cst_163 [1] : vector<1x32xf32> to vector<1xf32>
    %377 = vector.shape_cast %376 : vector<1xf32> to vector<1x1xf32>
    %cst_164 = arith.constant 3.200000e+01 : f32
    %378 = vector.broadcast %cst_164 : f32 to vector<1x1xf32>
    %379 = arith.divf %377, %378 : vector<1x1xf32>
    %cst_165 = arith.constant 9.99999974E-6 : f32
    %380 = vector.broadcast %cst_165 : f32 to vector<1x1xf32>
    %381 = arith.addf %379, %380 : vector<1x1xf32>
    %382 = math.rsqrt %381 : vector<1x1xf32>
    %383 = vector.broadcast %382 : vector<1x1xf32> to vector<1x32xf32>
    %384 = arith.mulf %374, %383 : vector<1x32xf32>
    %385 = arith.mulf %384, %367 : vector<1x32xf32>
    %386 = arith.addf %385, %368 : vector<1x32xf32>
    %c0_166 = arith.constant 0 : index
    %c0_167 = arith.constant 0 : index
    %387 = vector.load %arg9[%c0_166, %c0_167] : memref<32x32xf32, #tpu.memory_space<vmem>>, vector<32x32xf32>
    %cst_168 = arith.constant dense<0.000000e+00> : vector<1x32xf32>
    %388 = tpu.matmul %386, %387, %cst_168 {dimension_numbers = #tpu.dot_dimension_numbers<[1], [0], [0], [1], [0, 0, 1, 1], [], []>} : vector<1x32xf32>, vector<32x32xf32>, vector<1x32xf32> -> vector<1x32xf32>
    %c0_169 = arith.constant 0 : index
    %c0_170 = arith.constant 0 : index
    %389 = vector.load %arg6[%c0_169, %c0_170] : memref<1x32xf32, #tpu.memory_space<vmem>>, vector<1x32xf32>
    %390 = arith.addf %388, %389 : vector<1x32xf32>
    %c0_171 = arith.constant 0 : index
    %c0_172 = arith.constant 0 : index
    %391 = vector.load %arg7[%c0_171, %c0_172] : memref<32x64xf32, #tpu.memory_space<vmem>>, vector<32x64xf32>
    %cst_173 = arith.constant dense<0.000000e+00> : vector<8x64xf32>
    %392 = tpu.matmul %292, %391, %cst_173 {dimension_numbers = #tpu.dot_dimension_numbers<[1], [0], [0], [1], [0, 0, 1, 1], [], []>} : vector<8x32xf32>, vector<32x64xf32>, vector<8x64xf32> -> vector<8x64xf32>
    %c0_174 = arith.constant 0 : index
    %c0_175 = arith.constant 0 : index
    %393 = vector.load %arg4[%c0_174, %c0_175] : memref<1x64xf32, #tpu.memory_space<vmem>>, vector<1x64xf32>
    %394 = vector.broadcast %393 : vector<1x64xf32> to vector<8x64xf32>
    %395 = arith.addf %392, %394 : vector<8x64xf32>
    %396 = vector.extract_strided_slice %395 {offsets = [0, 0], sizes = [8, 32], strides = [1, 1]} : vector<8x64xf32> to vector<8x32xf32>
    %397 = vector.extract_strided_slice %395 {offsets = [0, 32], sizes = [8, 32], strides = [1, 1]} : vector<8x64xf32> to vector<8x32xf32>
    %398 = vector.extract_strided_slice %390 {offsets = [0, 0], sizes = [1, 8], strides = [1, 1]} : vector<1x32xf32> to vector<1x8xf32>
    %399 = vector.extract_strided_slice %396 {offsets = [0, 0], sizes = [8, 8], strides = [1, 1]} : vector<8x32xf32> to vector<8x8xf32>
    %cst_176 = arith.constant dense<0.000000e+00> : vector<1x8xf32>
    %400 = tpu.matmul %398, %399, %cst_176 {dimension_numbers = #tpu.dot_dimension_numbers<[1], [1], [0], [0], [0, 0, 1, 0], [], []>} : vector<1x8xf32>, vector<8x8xf32>, vector<1x8xf32> -> vector<1x8xf32>
    %cst_177 = arith.constant 0.353553385 : f32
    %401 = vector.broadcast %cst_177 : f32 to vector<1x8xf32>
    %402 = arith.mulf %400, %401 : vector<1x8xf32>
    %cst_178 = arith.constant dense<0xFF800000> : vector<1xf32>
    %403 = vector.multi_reduction <maximumf>, %402, %cst_178 [1] : vector<1x8xf32> to vector<1xf32>
    %404 = vector.shape_cast %403 : vector<1xf32> to vector<1x1xf32>
    %405 = vector.broadcast %404 : vector<1x1xf32> to vector<1x8xf32>
    %406 = arith.subf %402, %405 : vector<1x8xf32>
    %407 = math.exp %406 : vector<1x8xf32>
    %cst_179 = arith.constant dense<0.000000e+00> : vector<1xf32>
    %408 = vector.multi_reduction <add>, %407, %cst_179 [1] : vector<1x8xf32> to vector<1xf32>
    %409 = vector.shape_cast %408 : vector<1xf32> to vector<1x1xf32>
    %410 = tpu.reciprocal %409 {approx = true} : vector<1x1xf32> -> vector<1x1xf32>
    %411 = vector.broadcast %410 : vector<1x1xf32> to vector<1x8xf32>
    %412 = arith.mulf %407, %411 : vector<1x8xf32>
    %413 = vector.extract_strided_slice %397 {offsets = [0, 0], sizes = [8, 8], strides = [1, 1]} : vector<8x32xf32> to vector<8x8xf32>
    %cst_180 = arith.constant dense<0.000000e+00> : vector<1x8xf32>
    %414 = tpu.matmul %412, %413, %cst_180 {dimension_numbers = #tpu.dot_dimension_numbers<[1], [0], [0], [1], [0, 0, 1, 1], [], []>} : vector<1x8xf32>, vector<8x8xf32>, vector<1x8xf32> -> vector<1x8xf32>
    %415 = vector.extract_strided_slice %390 {offsets = [0, 8], sizes = [1, 8], strides = [1, 1]} : vector<1x32xf32> to vector<1x8xf32>
    %416 = vector.extract_strided_slice %396 {offsets = [0, 8], sizes = [8, 8], strides = [1, 1]} : vector<8x32xf32> to vector<8x8xf32>
    %cst_181 = arith.constant dense<0.000000e+00> : vector<1x8xf32>
    %417 = tpu.matmul %415, %416, %cst_181 {dimension_numbers = #tpu.dot_dimension_numbers<[1], [1], [0], [0], [0, 0, 1, 0], [], []>} : vector<1x8xf32>, vector<8x8xf32>, vector<1x8xf32> -> vector<1x8xf32>
    %cst_182 = arith.constant 0.353553385 : f32
    %418 = vector.broadcast %cst_182 : f32 to vector<1x8xf32>
    %419 = arith.mulf %417, %418 : vector<1x8xf32>
    %cst_183 = arith.constant dense<0xFF800000> : vector<1xf32>
    %420 = vector.multi_reduction <maximumf>, %419, %cst_183 [1] : vector<1x8xf32> to vector<1xf32>
    %421 = vector.shape_cast %420 : vector<1xf32> to vector<1x1xf32>
    %422 = vector.broadcast %421 : vector<1x1xf32> to vector<1x8xf32>
    %423 = arith.subf %419, %422 : vector<1x8xf32>
    %424 = math.exp %423 : vector<1x8xf32>
    %cst_184 = arith.constant dense<0.000000e+00> : vector<1xf32>
    %425 = vector.multi_reduction <add>, %424, %cst_184 [1] : vector<1x8xf32> to vector<1xf32>
    %426 = vector.shape_cast %425 : vector<1xf32> to vector<1x1xf32>
    %427 = tpu.reciprocal %426 {approx = true} : vector<1x1xf32> -> vector<1x1xf32>
    %428 = vector.broadcast %427 : vector<1x1xf32> to vector<1x8xf32>
    %429 = arith.mulf %424, %428 : vector<1x8xf32>
    %430 = vector.extract_strided_slice %397 {offsets = [0, 8], sizes = [8, 8], strides = [1, 1]} : vector<8x32xf32> to vector<8x8xf32>
    %cst_185 = arith.constant dense<0.000000e+00> : vector<1x8xf32>
    %431 = tpu.matmul %429, %430, %cst_185 {dimension_numbers = #tpu.dot_dimension_numbers<[1], [0], [0], [1], [0, 0, 1, 1], [], []>} : vector<1x8xf32>, vector<8x8xf32>, vector<1x8xf32> -> vector<1x8xf32>
    %432 = vector.extract_strided_slice %390 {offsets = [0, 16], sizes = [1, 8], strides = [1, 1]} : vector<1x32xf32> to vector<1x8xf32>
    %433 = vector.extract_strided_slice %396 {offsets = [0, 16], sizes = [8, 8], strides = [1, 1]} : vector<8x32xf32> to vector<8x8xf32>
    %cst_186 = arith.constant dense<0.000000e+00> : vector<1x8xf32>
    %434 = tpu.matmul %432, %433, %cst_186 {dimension_numbers = #tpu.dot_dimension_numbers<[1], [1], [0], [0], [0, 0, 1, 0], [], []>} : vector<1x8xf32>, vector<8x8xf32>, vector<1x8xf32> -> vector<1x8xf32>
    %cst_187 = arith.constant 0.353553385 : f32
    %435 = vector.broadcast %cst_187 : f32 to vector<1x8xf32>
    %436 = arith.mulf %434, %435 : vector<1x8xf32>
    %cst_188 = arith.constant dense<0xFF800000> : vector<1xf32>
    %437 = vector.multi_reduction <maximumf>, %436, %cst_188 [1] : vector<1x8xf32> to vector<1xf32>
    %438 = vector.shape_cast %437 : vector<1xf32> to vector<1x1xf32>
    %439 = vector.broadcast %438 : vector<1x1xf32> to vector<1x8xf32>
    %440 = arith.subf %436, %439 : vector<1x8xf32>
    %441 = math.exp %440 : vector<1x8xf32>
    %cst_189 = arith.constant dense<0.000000e+00> : vector<1xf32>
    %442 = vector.multi_reduction <add>, %441, %cst_189 [1] : vector<1x8xf32> to vector<1xf32>
    %443 = vector.shape_cast %442 : vector<1xf32> to vector<1x1xf32>
    %444 = tpu.reciprocal %443 {approx = true} : vector<1x1xf32> -> vector<1x1xf32>
    %445 = vector.broadcast %444 : vector<1x1xf32> to vector<1x8xf32>
    %446 = arith.mulf %441, %445 : vector<1x8xf32>
    %447 = vector.extract_strided_slice %397 {offsets = [0, 16], sizes = [8, 8], strides = [1, 1]} : vector<8x32xf32> to vector<8x8xf32>
    %cst_190 = arith.constant dense<0.000000e+00> : vector<1x8xf32>
    %448 = tpu.matmul %446, %447, %cst_190 {dimension_numbers = #tpu.dot_dimension_numbers<[1], [0], [0], [1], [0, 0, 1, 1], [], []>} : vector<1x8xf32>, vector<8x8xf32>, vector<1x8xf32> -> vector<1x8xf32>
    %449 = vector.extract_strided_slice %390 {offsets = [0, 24], sizes = [1, 8], strides = [1, 1]} : vector<1x32xf32> to vector<1x8xf32>
    %450 = vector.extract_strided_slice %396 {offsets = [0, 24], sizes = [8, 8], strides = [1, 1]} : vector<8x32xf32> to vector<8x8xf32>
    %cst_191 = arith.constant dense<0.000000e+00> : vector<1x8xf32>
    %451 = tpu.matmul %449, %450, %cst_191 {dimension_numbers = #tpu.dot_dimension_numbers<[1], [1], [0], [0], [0, 0, 1, 0], [], []>} : vector<1x8xf32>, vector<8x8xf32>, vector<1x8xf32> -> vector<1x8xf32>
    %cst_192 = arith.constant 0.353553385 : f32
    %452 = vector.broadcast %cst_192 : f32 to vector<1x8xf32>
    %453 = arith.mulf %451, %452 : vector<1x8xf32>
    %cst_193 = arith.constant dense<0xFF800000> : vector<1xf32>
    %454 = vector.multi_reduction <maximumf>, %453, %cst_193 [1] : vector<1x8xf32> to vector<1xf32>
    %455 = vector.shape_cast %454 : vector<1xf32> to vector<1x1xf32>
    %456 = vector.broadcast %455 : vector<1x1xf32> to vector<1x8xf32>
    %457 = arith.subf %453, %456 : vector<1x8xf32>
    %458 = math.exp %457 : vector<1x8xf32>
    %cst_194 = arith.constant dense<0.000000e+00> : vector<1xf32>
    %459 = vector.multi_reduction <add>, %458, %cst_194 [1] : vector<1x8xf32> to vector<1xf32>
    %460 = vector.shape_cast %459 : vector<1xf32> to vector<1x1xf32>
    %461 = tpu.reciprocal %460 {approx = true} : vector<1x1xf32> -> vector<1x1xf32>
    %462 = vector.broadcast %461 : vector<1x1xf32> to vector<1x8xf32>
    %463 = arith.mulf %458, %462 : vector<1x8xf32>
    %464 = vector.extract_strided_slice %397 {offsets = [0, 24], sizes = [8, 8], strides = [1, 1]} : vector<8x32xf32> to vector<8x8xf32>
    %cst_195 = arith.constant dense<0.000000e+00> : vector<1x8xf32>
    %465 = tpu.matmul %463, %464, %cst_195 {dimension_numbers = #tpu.dot_dimension_numbers<[1], [0], [0], [1], [0, 0, 1, 1], [], []>} : vector<1x8xf32>, vector<8x8xf32>, vector<1x8xf32> -> vector<1x8xf32>
    %466 = tpu.concatenate %414, %431, %448, %465 in 1 : vector<1x8xf32>, vector<1x8xf32>, vector<1x8xf32>, vector<1x8xf32> -> vector<1x32xf32>
    %c0_196 = arith.constant 0 : index
    %c0_197 = arith.constant 0 : index
    %467 = vector.load %arg8[%c0_196, %c0_197] : memref<32x32xf32, #tpu.memory_space<vmem>>, vector<32x32xf32>
    %cst_198 = arith.constant dense<0.000000e+00> : vector<1x32xf32>
    %468 = tpu.matmul %466, %467, %cst_198 {dimension_numbers = #tpu.dot_dimension_numbers<[1], [0], [0], [1], [0, 0, 1, 1], [], []>} : vector<1x32xf32>, vector<32x32xf32>, vector<1x32xf32> -> vector<1x32xf32>
    %c0_199 = arith.constant 0 : index
    %c0_200 = arith.constant 0 : index
    %469 = vector.load %arg5[%c0_199, %c0_200] : memref<1x32xf32, #tpu.memory_space<vmem>>, vector<1x32xf32>
    %470 = arith.addf %468, %469 : vector<1x32xf32>
    %471 = arith.addf %386, %470 : vector<1x32xf32>
    %c0_201 = arith.constant 0 : index
    %c0_202 = arith.constant 0 : index
    %472 = vector.load %arg13[%c0_201, %c0_202] : memref<1x32xf32, #tpu.memory_space<vmem>>, vector<1x32xf32>
    %c0_203 = arith.constant 0 : index
    %c0_204 = arith.constant 0 : index
    %473 = vector.load %arg12[%c0_203, %c0_204] : memref<1x32xf32, #tpu.memory_space<vmem>>, vector<1x32xf32>
    %cst_205 = arith.constant dense<0.000000e+00> : vector<1xf32>
    %474 = vector.multi_reduction <add>, %471, %cst_205 [1] : vector<1x32xf32> to vector<1xf32>
    %475 = vector.shape_cast %474 : vector<1xf32> to vector<1x1xf32>
    %cst_206 = arith.constant 3.200000e+01 : f32
    %476 = vector.broadcast %cst_206 : f32 to vector<1x1xf32>
    %477 = arith.divf %475, %476 : vector<1x1xf32>
    %478 = vector.broadcast %477 : vector<1x1xf32> to vector<1x32xf32>
    %479 = arith.subf %471, %478 : vector<1x32xf32>
    %480 = arith.mulf %479, %479 : vector<1x32xf32>
    %cst_207 = arith.constant dense<0.000000e+00> : vector<1xf32>
    %481 = vector.multi_reduction <add>, %480, %cst_207 [1] : vector<1x32xf32> to vector<1xf32>
    %482 = vector.shape_cast %481 : vector<1xf32> to vector<1x1xf32>
    %cst_208 = arith.constant 3.200000e+01 : f32
    %483 = vector.broadcast %cst_208 : f32 to vector<1x1xf32>
    %484 = arith.divf %482, %483 : vector<1x1xf32>
    %cst_209 = arith.constant 9.99999974E-6 : f32
    %485 = vector.broadcast %cst_209 : f32 to vector<1x1xf32>
    %486 = arith.addf %484, %485 : vector<1x1xf32>
    %487 = math.rsqrt %486 : vector<1x1xf32>
    %488 = vector.broadcast %487 : vector<1x1xf32> to vector<1x32xf32>
    %489 = arith.mulf %479, %488 : vector<1x32xf32>
    %490 = arith.mulf %489, %472 : vector<1x32xf32>
    %491 = arith.addf %490, %473 : vector<1x32xf32>
    %c0_210 = arith.constant 0 : index
    %c0_211 = arith.constant 0 : index
    %492 = vector.load %arg20[%c0_210, %c0_211] : memref<32x2048xf32, #tpu.memory_space<vmem>>, vector<32x2048xf32>
    %cst_212 = arith.constant dense<0.000000e+00> : vector<1x2048xf32>
    %493 = tpu.matmul %491, %492, %cst_212 {dimension_numbers = #tpu.dot_dimension_numbers<[1], [0], [0], [1], [0, 0, 1, 1], [], []>} : vector<1x32xf32>, vector<32x2048xf32>, vector<1x2048xf32> -> vector<1x2048xf32>
    %c0_213 = arith.constant 0 : index
    %c0_214 = arith.constant 0 : index
    %494 = vector.load %arg2[%c0_213, %c0_214] : memref<1x2048xf32, #tpu.memory_space<vmem>>, vector<1x2048xf32>
    %495 = arith.addf %493, %494 : vector<1x2048xf32>
    %cst_215 = arith.constant 0.000000e+00 : f32
    %496 = vector.broadcast %cst_215 : f32 to vector<1x2048xf32>
    %497 = arith.maximumf %495, %496 : vector<1x2048xf32>
    %c0_216 = arith.constant 0 : index
    %c0_217 = arith.constant 0 : index
    %498 = vector.load %arg21[%c0_216, %c0_217] : memref<2048x32xf32, #tpu.memory_space<vmem>>, vector<2048x32xf32>
    %cst_218 = arith.constant dense<0.000000e+00> : vector<1x32xf32>
    %499 = tpu.matmul %497, %498, %cst_218 {dimension_numbers = #tpu.dot_dimension_numbers<[1], [0], [0], [1], [0, 0, 1, 1], [], []>} : vector<1x2048xf32>, vector<2048x32xf32>, vector<1x32xf32> -> vector<1x32xf32>
    %c0_219 = arith.constant 0 : index
    %c0_220 = arith.constant 0 : index
    %500 = vector.load %arg3[%c0_219, %c0_220] : memref<1x32xf32, #tpu.memory_space<vmem>>, vector<1x32xf32>
    %501 = arith.addf %499, %500 : vector<1x32xf32>
    %502 = arith.addf %491, %501 : vector<1x32xf32>
    %c0_221 = arith.constant 0 : index
    %c0_222 = arith.constant 0 : index
    %503 = vector.load %arg15[%c0_221, %c0_222] : memref<1x32xf32, #tpu.memory_space<vmem>>, vector<1x32xf32>
    %c0_223 = arith.constant 0 : index
    %c0_224 = arith.constant 0 : index
    %504 = vector.load %arg14[%c0_223, %c0_224] : memref<1x32xf32, #tpu.memory_space<vmem>>, vector<1x32xf32>
    %cst_225 = arith.constant dense<0.000000e+00> : vector<1xf32>
    %505 = vector.multi_reduction <add>, %502, %cst_225 [1] : vector<1x32xf32> to vector<1xf32>
    %506 = vector.shape_cast %505 : vector<1xf32> to vector<1x1xf32>
    %cst_226 = arith.constant 3.200000e+01 : f32
    %507 = vector.broadcast %cst_226 : f32 to vector<1x1xf32>
    %508 = arith.divf %506, %507 : vector<1x1xf32>
    %509 = vector.broadcast %508 : vector<1x1xf32> to vector<1x32xf32>
    %510 = arith.subf %502, %509 : vector<1x32xf32>
    %511 = arith.mulf %510, %510 : vector<1x32xf32>
    %cst_227 = arith.constant dense<0.000000e+00> : vector<1xf32>
    %512 = vector.multi_reduction <add>, %511, %cst_227 [1] : vector<1x32xf32> to vector<1xf32>
    %513 = vector.shape_cast %512 : vector<1xf32> to vector<1x1xf32>
    %cst_228 = arith.constant 3.200000e+01 : f32
    %514 = vector.broadcast %cst_228 : f32 to vector<1x1xf32>
    %515 = arith.divf %513, %514 : vector<1x1xf32>
    %cst_229 = arith.constant 9.99999974E-6 : f32
    %516 = vector.broadcast %cst_229 : f32 to vector<1x1xf32>
    %517 = arith.addf %515, %516 : vector<1x1xf32>
    %518 = math.rsqrt %517 : vector<1x1xf32>
    %519 = vector.broadcast %518 : vector<1x1xf32> to vector<1x32xf32>
    %520 = arith.mulf %510, %519 : vector<1x32xf32>
    %521 = arith.mulf %520, %503 : vector<1x32xf32>
    %522 = arith.addf %521, %504 : vector<1x32xf32>
    %c0_230 = arith.constant 0 : index
    %c0_231 = arith.constant 0 : index
    %c0_232 = arith.constant 0 : index
    %523 = vector.load %arg48[%c0_230, %c0_231, %c0_232] : memref<1x1x32xf32, #tpu.memory_space<vmem>>, vector<1x1x32xf32>
    %524 = vector.shape_cast %523 : vector<1x1x32xf32> to vector<1x32xf32>
    %525 = vector.shape_cast %522 : vector<1x32xf32> to vector<1x1x32xf32>
    tpu.vector_store %arg48[%c0_230, %c0_231, %c0_232], %525 {strides = array<i32>} : memref<1x1x32xf32, #tpu.memory_space<vmem>>, vector<1x1x32xf32>,
    return
  }
  func.func @transform_0(%arg0: i32) -> (i32, i32, i32) {
    %c0_i32 = arith.constant 0 : i32
    %c0_i32_0 = arith.constant 0 : i32
    %c0_i32_1 = arith.constant 0 : i32
    return %arg0, %c0_i32, %c0_i32_0 : i32, i32, i32
  }
  func.func @transform_1(%arg0: i32) -> (i32, i32) {
    %c0_i32 = arith.constant 0 : i32
    %c0_i32_0 = arith.constant 0 : i32
    %c0_i32_1 = arith.constant 0 : i32
    return %c0_i32, %c0_i32_0 : i32, i32
  }
  func.func @transform_2(%arg0: i32) -> (i32, i32) {
    %c0_i32 = arith.constant 0 : i32
    %c0_i32_0 = arith.constant 0 : i32
    %c0_i32_1 = arith.constant 0 : i32
    return %c0_i32, %c0_i32_0 : i32, i32
  }
  func.func @transform_3(%arg0: i32) -> (i32, i32) {
    %c0_i32 = arith.constant 0 : i32
    %c0_i32_0 = arith.constant 0 : i32
    %c0_i32_1 = arith.constant 0 : i32
    return %c0_i32, %c0_i32_0 : i32, i32
  }
  func.func @transform_4(%arg0: i32) -> (i32, i32) {
    %c0_i32 = arith.constant 0 : i32
    %c0_i32_0 = arith.constant 0 : i32
    %c0_i32_1 = arith.constant 0 : i32
    return %c0_i32, %c0_i32_0 : i32, i32
  }
  func.func @transform_5(%arg0: i32) -> (i32, i32) {
    %c0_i32 = arith.constant 0 : i32
    %c0_i32_0 = arith.constant 0 : i32
    %c0_i32_1 = arith.constant 0 : i32
    return %c0_i32, %c0_i32_0 : i32, i32
  }
  func.func @transform_6(%arg0: i32) -> (i32, i32) {
    %c0_i32 = arith.constant 0 : i32
    %c0_i32_0 = arith.constant 0 : i32
    %c0_i32_1 = arith.constant 0 : i32
    return %c0_i32, %c0_i32_0 : i32, i32
  }
  func.func @transform_7(%arg0: i32) -> (i32, i32) {
    %c0_i32 = arith.constant 0 : i32
    %c0_i32_0 = arith.constant 0 : i32
    %c0_i32_1 = arith.constant 0 : i32
    return %c0_i32, %c0_i32_0 : i32, i32
  }
  func.func @transform_8(%arg0: i32) -> (i32, i32) {
    %c0_i32 = arith.constant 0 : i32
    %c0_i32_0 = arith.constant 0 : i32
    %c0_i32_1 = arith.constant 0 : i32
    return %c0_i32, %c0_i32_0 : i32, i32
  }
  func.func @transform_9(%arg0: i32) -> (i32, i32) {
    %c0_i32 = arith.constant 0 : i32
    %c0_i32_0 = arith.constant 0 : i32
    %c0_i32_1 = arith.constant 0 : i32
    return %c0_i32, %c0_i32_0 : i32, i32
  }
  func.func @transform_10(%arg0: i32) -> (i32, i32) {
    %c0_i32 = arith.constant 0 : i32
    %c0_i32_0 = arith.constant 0 : i32
    %c0_i32_1 = arith.constant 0 : i32
    return %c0_i32, %c0_i32_0 : i32, i32
  }
  func.func @transform_11(%arg0: i32) -> (i32, i32) {
    %c0_i32 = arith.constant 0 : i32
    %c0_i32_0 = arith.constant 0 : i32
    %c0_i32_1 = arith.constant 0 : i32
    return %c0_i32, %c0_i32_0 : i32, i32
  }
  func.func @transform_12(%arg0: i32) -> (i32, i32) {
    %c0_i32 = arith.constant 0 : i32
    %c0_i32_0 = arith.constant 0 : i32
    %c0_i32_1 = arith.constant 0 : i32
    return %c0_i32, %c0_i32_0 : i32, i32
  }
  func.func @transform_13(%arg0: i32) -> (i32, i32) {
    %c0_i32 = arith.constant 0 : i32
    %c0_i32_0 = arith.constant 0 : i32
    %c0_i32_1 = arith.constant 0 : i32
    return %c0_i32, %c0_i32_0 : i32, i32
  }
  func.func @transform_14(%arg0: i32) -> (i32, i32) {
    %c0_i32 = arith.constant 0 : i32
    %c0_i32_0 = arith.constant 0 : i32
    %c0_i32_1 = arith.constant 0 : i32
    return %c0_i32, %c0_i32_0 : i32, i32
  }
  func.func @transform_15(%arg0: i32) -> (i32, i32) {
    %c0_i32 = arith.constant 0 : i32
    %c0_i32_0 = arith.constant 0 : i32
    %c0_i32_1 = arith.constant 0 : i32
    return %c0_i32, %c0_i32_0 : i32, i32
  }
  func.func @transform_16(%arg0: i32) -> (i32, i32) {
    %c0_i32 = arith.constant 0 : i32
    %c0_i32_0 = arith.constant 0 : i32
    %c0_i32_1 = arith.constant 0 : i32
    return %c0_i32, %c0_i32_0 : i32, i32
  }
  func.func @transform_17(%arg0: i32) -> (i32, i32) {
    %c0_i32 = arith.constant 0 : i32
    %c0_i32_0 = arith.constant 0 : i32
    %c0_i32_1 = arith.constant 0 : i32
    return %c0_i32, %c0_i32_0 : i32, i32
  }
  func.func @transform_18(%arg0: i32) -> (i32, i32) {
    %c0_i32 = arith.constant 0 : i32
    %c0_i32_0 = arith.constant 0 : i32
    %c0_i32_1 = arith.constant 0 : i32
    return %c0_i32, %c0_i32_0 : i32, i32
  }
  func.func @transform_19(%arg0: i32) -> (i32, i32) {
    %c0_i32 = arith.constant 0 : i32
    %c0_i32_0 = arith.constant 0 : i32
    %c0_i32_1 = arith.constant 0 : i32
    return %c0_i32, %c0_i32_0 : i32, i32
  }
  func.func @transform_20(%arg0: i32) -> (i32, i32) {
    %c0_i32 = arith.constant 0 : i32
    %c0_i32_0 = arith.constant 0 : i32
    %c0_i32_1 = arith.constant 0 : i32
    return %c0_i32, %c0_i32_0 : i32, i32
  }
  func.func @transform_21(%arg0: i32) -> (i32, i32) {
    %c0_i32 = arith.constant 0 : i32
    %c0_i32_0 = arith.constant 0 : i32
    %c0_i32_1 = arith.constant 0 : i32
    return %c0_i32, %c0_i32_0 : i32, i32
  }
  func.func @transform_22(%arg0: i32) -> (i32, i32) {
    %c0_i32 = arith.constant 0 : i32
    %c0_i32_0 = arith.constant 0 : i32
    %c0_i32_1 = arith.constant 0 : i32
    return %c0_i32, %c0_i32_0 : i32, i32
  }
  func.func @transform_23(%arg0: i32) -> (i32, i32) {
    %c0_i32 = arith.constant 0 : i32
    %c0_i32_0 = arith.constant 0 : i32
    %c0_i32_1 = arith.constant 0 : i32
    return %c0_i32, %c0_i32_0 : i32, i32
  }
  func.func @transform_24(%arg0: i32) -> (i32, i32) {
    %c0_i32 = arith.constant 0 : i32
    %c0_i32_0 = arith.constant 0 : i32
    %c0_i32_1 = arith.constant 0 : i32
    return %c0_i32, %c0_i32_0 : i32, i32
  }
  func.func @transform_25(%arg0: i32) -> (i32, i32) {
    %c0_i32 = arith.constant 0 : i32
    %c0_i32_0 = arith.constant 0 : i32
    %c0_i32_1 = arith.constant 0 : i32
    return %c0_i32, %c0_i32_0 : i32, i32
  }
  func.func @transform_26(%arg0: i32) -> (i32, i32) {
    %c0_i32 = arith.constant 0 : i32
    %c0_i32_0 = arith.constant 0 : i32
    %c0_i32_1 = arith.constant 0 : i32
    return %c0_i32, %c0_i32_0 : i32, i32
  }
  func.func @transform_27(%arg0: i32) -> (i32, i32) {
    %c0_i32 = arith.constant 0 : i32
    %c0_i32_0 = arith.constant 0 : i32
    %c0_i32_1 = arith.constant 0 : i32
    return %c0_i32, %c0_i32_0 : i32, i32
  }
  func.func @transform_28(%arg0: i32) -> (i32, i32) {
    %c0_i32 = arith.constant 0 : i32
    %c0_i32_0 = arith.constant 0 : i32
    %c0_i32_1 = arith.constant 0 : i32
    return %c0_i32, %c0_i32_0 : i32, i32
  }
  func.func @transform_29(%arg0: i32) -> (i32, i32) {
    %c0_i32 = arith.constant 0 : i32
    %c0_i32_0 = arith.constant 0 : i32
    %c0_i32_1 = arith.constant 0 : i32
    return %c0_i32, %c0_i32_0 : i32, i32
  }
  func.func @transform_30(%arg0: i32) -> (i32, i32) {
    %c0_i32 = arith.constant 0 : i32
    %c0_i32_0 = arith.constant 0 : i32
    %c0_i32_1 = arith.constant 0 : i32
    return %c0_i32, %c0_i32_0 : i32, i32
  }
  func.func @transform_31(%arg0: i32) -> (i32, i32) {
    %c0_i32 = arith.constant 0 : i32
    %c0_i32_0 = arith.constant 0 : i32
    %c0_i32_1 = arith.constant 0 : i32
    return %c0_i32, %c0_i32_0 : i32, i32
  }
  func.func @transform_32(%arg0: i32) -> (i32, i32) {
    %c0_i32 = arith.constant 0 : i32
    %c0_i32_0 = arith.constant 0 : i32
    %c0_i32_1 = arith.constant 0 : i32
    return %c0_i32, %c0_i32_0 : i32, i32
  }
  func.func @transform_33(%arg0: i32) -> (i32, i32) {
    %c0_i32 = arith.constant 0 : i32
    %c0_i32_0 = arith.constant 0 : i32
    %c0_i32_1 = arith.constant 0 : i32
    return %c0_i32, %c0_i32_0 : i32, i32
  }
  func.func @transform_34(%arg0: i32) -> (i32, i32) {
    %c0_i32 = arith.constant 0 : i32
    %c0_i32_0 = arith.constant 0 : i32
    %c0_i32_1 = arith.constant 0 : i32
    return %c0_i32, %c0_i32_0 : i32, i32
  }
  func.func @transform_35(%arg0: i32) -> (i32, i32) {
    %c0_i32 = arith.constant 0 : i32
    %c0_i32_0 = arith.constant 0 : i32
    %c0_i32_1 = arith.constant 0 : i32
    return %c0_i32, %c0_i32_0 : i32, i32
  }
  func.func @transform_36(%arg0: i32) -> (i32, i32) {
    %c0_i32 = arith.constant 0 : i32
    %c0_i32_0 = arith.constant 0 : i32
    %c0_i32_1 = arith.constant 0 : i32
    return %c0_i32, %c0_i32_0 : i32, i32
  }
  func.func @transform_37(%arg0: i32) -> (i32, i32) {
    %c0_i32 = arith.constant 0 : i32
    %c0_i32_0 = arith.constant 0 : i32
    %c0_i32_1 = arith.constant 0 : i32
    return %c0_i32, %c0_i32_0 : i32, i32
  }
  func.func @transform_38(%arg0: i32) -> (i32, i32) {
    %c0_i32 = arith.constant 0 : i32
    %c0_i32_0 = arith.constant 0 : i32
    %c0_i32_1 = arith.constant 0 : i32
    return %c0_i32, %c0_i32_0 : i32, i32
  }
  func.func @transform_39(%arg0: i32) -> (i32, i32) {
    %c0_i32 = arith.constant 0 : i32
    %c0_i32_0 = arith.constant 0 : i32
    %c0_i32_1 = arith.constant 0 : i32
    return %c0_i32, %c0_i32_0 : i32, i32
  }
  func.func @transform_40(%arg0: i32) -> (i32, i32) {
    %c0_i32 = arith.constant 0 : i32
    %c0_i32_0 = arith.constant 0 : i32
    %c0_i32_1 = arith.constant 0 : i32
    return %c0_i32, %c0_i32_0 : i32, i32
  }
  func.func @transform_41(%arg0: i32) -> (i32, i32) {
    %c0_i32 = arith.constant 0 : i32
    %c0_i32_0 = arith.constant 0 : i32
    %c0_i32_1 = arith.constant 0 : i32
    return %c0_i32, %c0_i32_0 : i32, i32
  }
  func.func @transform_42(%arg0: i32) -> (i32, i32) {
    %c0_i32 = arith.constant 0 : i32
    %c0_i32_0 = arith.constant 0 : i32
    %c0_i32_1 = arith.constant 0 : i32
    return %c0_i32, %c0_i32_0 : i32, i32
  }
  func.func @transform_43(%arg0: i32) -> (i32, i32) {
    %c0_i32 = arith.constant 0 : i32
    %c0_i32_0 = arith.constant 0 : i32
    %c0_i32_1 = arith.constant 0 : i32
    return %c0_i32, %c0_i32_0 : i32, i32
  }
  func.func @transform_44(%arg0: i32) -> (i32, i32) {
    %c0_i32 = arith.constant 0 : i32
    %c0_i32_0 = arith.constant 0 : i32
    %c0_i32_1 = arith.constant 0 : i32
    return %c0_i32, %c0_i32_0 : i32, i32
  }
  func.func @transform_45(%arg0: i32) -> (i32, i32) {
    %c0_i32 = arith.constant 0 : i32
    %c0_i32_0 = arith.constant 0 : i32
    %c0_i32_1 = arith.constant 0 : i32
    return %c0_i32, %c0_i32_0 : i32, i32
  }
  func.func @transform_46(%arg0: i32) -> (i32, i32) {
    %c0_i32 = arith.constant 0 : i32
    %c0_i32_0 = arith.constant 0 : i32
    %c0_i32_1 = arith.constant 0 : i32
    return %c0_i32, %c0_i32_0 : i32, i32
  }
  func.func @transform_47(%arg0: i32) -> (i32, i32, i32) {
    %c0_i32 = arith.constant 0 : i32
    %c0_i32_0 = arith.constant 0 : i32
    %c0_i32_1 = arith.constant 0 : i32
    return %arg0, %c0_i32, %c0_i32_0 : i32, i32, i32
  }
}

</mosaic_0001>

<llo_original>
// kernel: momo_tzuyu_forward.1
$region0: #{momo_tzuyu_forward.1}
  #allocation0 [shape = 'u32[]', space=smem, size = 0x4, offset = 0x4, fixed_abs, tag = 'smem constant byte address 0x4 - core index']
  #allocation1 [shape = 'u32[144,128]{1,0:T(1,128)}', space=vmem, size = 0x12000, scoped, tag = 'internal scratch']
  %s0 = inlined_call_operand.smem [shape: u32[48], index: -1, kind: input, shape index: {}]
  %s1 = sld [smem:[%s0]]
  %s2 = scalar_lea.smem %s0, 1
  %s3 = sld [smem:[%s2]]
  %s4 = scalar_lea.smem %s0, 2
  %s5 = sld [smem:[%s4]]
  %s6 = scalar_lea.smem %s0, 3
  %s7 = sld [smem:[%s6]]
  %s8 = scalar_lea.smem %s0, 4
  %s9 = sld [smem:[%s8]]
  %s10 = scalar_lea.smem %s0, 5
  %s11 = sld [smem:[%s10]]
  %s12 = scalar_lea.smem %s0, 6
  %s13 = sld [smem:[%s12]]
  %s14 = scalar_lea.smem %s0, 7
  %s15 = sld [smem:[%s14]]
  %s16 = scalar_lea.smem %s0, 8
  %s17 = sld [smem:[%s16]]
  %s18 = scalar_lea.smem %s0, 9
  %s19 = sld [smem:[%s18]]
  %s20 = scalar_lea.smem %s0, 10
  %s21 = sld [smem:[%s20]]
  %s22 = scalar_lea.smem %s0, 11
  %s23 = sld [smem:[%s22]]
  %s24 = scalar_lea.smem %s0, 12
  %s25 = sld [smem:[%s24]]
  %s26 = scalar_lea.smem %s0, 13
  %s27 = sld [smem:[%s26]]
  %s28 = scalar_lea.smem %s0, 14
  %s29 = sld [smem:[%s28]]
  %s30 = scalar_lea.smem %s0, 15
  %s31 = sld [smem:[%s30]]
  %s32 = scalar_lea.smem %s0, 16
  %s33 = sld [smem:[%s32]]
  %s34 = scalar_lea.smem %s0, 17
  %s35 = sld [smem:[%s34]]
  %s36 = scalar_lea.smem %s0, 18
  %s37 = sld [smem:[%s36]]
  %s38 = scalar_lea.smem %s0, 19
  %s39 = sld [smem:[%s38]]
  %s40 = scalar_lea.smem %s0, 20
  %s41 = sld [smem:[%s40]]
  %s42 = scalar_lea.smem %s0, 21
  %s43 = sld [smem:[%s42]]
  %s44 = scalar_lea.smem %s0, 22
  %s45 = sld [smem:[%s44]]
  %s46 = scalar_lea.smem %s0, 23
  %s47 = sld [smem:[%s46]]
  %s48 = scalar_lea.smem %s0, 24
  %s49 = sld [smem:[%s48]]
  %s50 = scalar_lea.smem %s0, 25
  %s51 = sld [smem:[%s50]]
  %s52 = scalar_lea.smem %s0, 26
  %s53 = sld [smem:[%s52]]
  %s54 = scalar_lea.smem %s0, 27
  %s55 = sld [smem:[%s54]]
  %s56 = scalar_lea.smem %s0, 28
  %s57 = sld [smem:[%s56]]
  %s58 = scalar_lea.smem %s0, 29
  %s59 = sld [smem:[%s58]]
  %s60 = scalar_lea.smem %s0, 30
  %s61 = sld [smem:[%s60]]
  %s62 = scalar_lea.smem %s0, 31
  %s63 = sld [smem:[%s62]]
  %s64 = scalar_lea.smem %s0, 32
  %s65 = sld [smem:[%s64]]
  %s66 = scalar_lea.smem %s0, 33
  %s67 = sld [smem:[%s66]]
  %s68 = scalar_lea.smem %s0, 34
  %s69 = sld [smem:[%s68]]
  %s70 = scalar_lea.smem %s0, 35
  %s71 = sld [smem:[%s70]]
  %s72 = scalar_lea.smem %s0, 36
  %s73 = sld [smem:[%s72]]
  %s74 = scalar_lea.smem %s0, 37
  %s75 = sld [smem:[%s74]]
  %s76 = scalar_lea.smem %s0, 38
  %s77 = sld [smem:[%s76]]
  %s78 = scalar_lea.smem %s0, 39
  %s79 = sld [smem:[%s78]]
  %s80 = scalar_lea.smem %s0, 40
  %s81 = sld [smem:[%s80]]
  %s82 = scalar_lea.smem %s0, 41
  %s83 = sld [smem:[%s82]]
  %s84 = scalar_lea.smem %s0, 42
  %s85 = sld [smem:[%s84]]
  %s86 = scalar_lea.smem %s0, 43
  %s87 = sld [smem:[%s86]]
  %s88 = scalar_lea.smem %s0, 44
  %s89 = sld [smem:[%s88]]
  %s90 = scalar_lea.smem %s0, 45
  %s91 = sld [smem:[%s90]]
  %s92 = scalar_lea.smem %s0, 46
  %s93 = sld [smem:[%s92]]
  %s94 = scalar_lea.smem %s0, 47
  %s95 = sld [smem:[%s94]]
  %s96 = sld [smem:[#allocation0]]
  $region245: #{momo_tzuyu_forward.1} parent=0
    _
  %s98 = ssub.s32 1, %s96
  %s99 = scalar_select 0, %s98, %s96
  $region1: #{momo_tzuyu_forward.1} parent=0
    #allocation2 [shape = 'u8[512]{0}', space=vmem, size = 0x400, scoped, tag = 'input window, operand 36, single buffered']
    #allocation3 [shape = 's32[2]{0}', space=sflag, size = 0x8, scoped, tag = 'scoped memory for momo_tzuyu_forward.1']
    #allocation4 [shape = 's32[2]{0}', space=sflag, size = 0x8, scoped, tag = 'scoped memory for momo_tzuyu_forward.1']
    #allocation5 [shape = 'u8[512]{0}', space=vmem, size = 0x400, scoped, tag = 'input window, operand 37, single buffered']
    #allocation6 [shape = 's32[1]{0}', space=sflag, size = 0x4, scoped, tag = 'scoped memory for momo_tzuyu_forward.1']
    #allocation7 [shape = 'u8[512]{0}', space=vmem, size = 0x400, scoped, tag = 'input window, operand 38, single buffered']
    #allocation8 [shape = 'u8[512]{0}', space=vmem, size = 0x400, scoped, tag = 'input window, operand 39, single buffered']
    #allocation9 [shape = 's32[1]{0}', space=sflag, size = 0x4, scoped, tag = 'scoped memory for momo_tzuyu_forward.1']
    #allocation10 [shape = 'u8[512]{0}', space=vmem, size = 0x400, scoped, tag = 'input window, operand 40, single buffered']
    #allocation11 [shape = 'u8[512]{0}', space=vmem, size = 0x400, scoped, tag = 'input window, operand 45, single buffered']
    #allocation12 [shape = 's32[1]{0}', space=sflag, size = 0x4, scoped, tag = 'scoped memory for momo_tzuyu_forward.1']
    #allocation13 [shape = 'u8[1024]{0}', space=vmem, size = 0x400, scoped, tag = 'output window, operand 0']
    %100 = vsyncpa [#allocation3], 0
    %101 = vsyncpa [#allocation6], 0
    %102 = vsyncpa [#allocation9], 0
    %103 = vsyncpa [#allocation12], 0
    %104 = vsyncpa [#allocation4], 0
    %s105 = scalar_lea.sflag [#allocation4], 1
    %106 = vsyncpa %s105, 0
    loop: start=0, step=1, limit=4
    $region2: #{momo_tzuyu_forward.1} parent=1 // loop_pre_header
      _
    $region3: #{momo_tzuyu_forward.1} parent=1 // loop_header
      %s108 = sphi 0, %s112
      %p109 = scmp.ge.s32.totalorder %s108, 4
      %s118 = sphi 0, %s120
      %s121 = sphi 0, %s118
      %s122 = sphi 0, %s121
      %s138 = sphi 0, %s122
      %s142 = sphi 0, %s142
      %s144 = sphi 0, %s142
      %s145 = sphi 0, %s144
      %s159 = sphi 0, %s145
      %s163 = sphi 0, %s163
      %s165 = sphi 0, %s163
      %s166 = sphi 0, %s165
      %s180 = sphi 0, %s166
      %s184 = sphi 0, %s184
      %s186 = sphi 0, %s184
      %s187 = sphi 0, %s186
      %s201 = sphi 0, %s187
      %s205 = sphi 0, %s205
      %s207 = sphi 0, %s205
      %s208 = sphi 0, %s207
      %s222 = sphi 0, %s208
      %s226 = sphi 0, %s226
      %s228 = sphi 0, %s226
      %s229 = sphi 0, %s228
      %s243 = sphi 0, %s229
      %s247 = sphi 0, %s247
      %s249 = sphi 0, %s247
      %s250 = sphi 0, %s249
      %s264 = sphi 0, %s250
      %s268 = sphi 0, %s268
      %s270 = sphi 0, %s268
      %s271 = sphi 0, %s270
      %s285 = sphi 0, %s271
      %s289 = sphi 0, %s289
      %s291 = sphi 0, %s289
      %s292 = sphi 0, %s291
      %s306 = sphi 0, %s292
      %s310 = sphi 0, %s310
      %s312 = sphi 0, %s310
      %s313 = sphi 0, %s312
      %s327 = sphi 0, %s313
      %s331 = sphi 0, %s331
      %s333 = sphi 0, %s331
      %s334 = sphi 0, %s333
      %s348 = sphi 0, %s334
      %s352 = sphi 0, %s352
      %s354 = sphi 0, %s352
      %s355 = sphi 0, %s354
      %s369 = sphi 0, %s355
      %s373 = sphi 0, %s373
      %s375 = sphi 0, %s373
      %s376 = sphi 0, %s375
      %s390 = sphi 0, %s376
      %s394 = sphi 0, %s394
      %s396 = sphi 0, %s394
      %s397 = sphi 0, %s396
      %s411 = sphi 0, %s397
      %s415 = sphi 0, %s415
      %s417 = sphi 0, %s415
      %s418 = sphi 0, %s417
      %s432 = sphi 0, %s418
      %s436 = sphi 0, %s436
      %s438 = sphi 0, %s436
      %s439 = sphi 0, %s438
      %s453 = sphi 0, %s439
      %s457 = sphi 0, %s457
      %s459 = sphi 0, %s457
      %s460 = sphi 0, %s459
      %s474 = sphi 0, %s460
      %s478 = sphi 0, %s478
      %s480 = sphi 0, %s478
      %s481 = sphi 0, %s480
      %s495 = sphi 0, %s481
      %s499 = sphi 0, %s499
      %s501 = sphi 0, %s499
      %s502 = sphi 0, %s501
      %s516 = sphi 0, %s502
      %s520 = sphi 0, %s520
      %s522 = sphi 0, %s520
      %s523 = sphi 0, %s522
      %s537 = sphi 0, %s523
      %s541 = sphi 0, %s541
      %s543 = sphi 0, %s541
      %s544 = sphi 0, %s543
      %s558 = sphi 0, %s544
      %s562 = sphi 0, %s562
      %s564 = sphi 0, %s562
      %s565 = sphi 0, %s564
      %s579 = sphi 0, %s565
      %s583 = sphi 0, %s583
      %s585 = sphi 0, %s583
      %s586 = sphi 0, %s585
      %s600 = sphi 0, %s586
      %s604 = sphi 0, %s604
      %s606 = sphi 0, %s604
      %s607 = sphi 0, %s606
      %s621 = sphi 0, %s607
      %s625 = sphi 0, %s625
      %s627 = sphi 0, %s625
      %s628 = sphi 0, %s627
      %s642 = sphi 0, %s628
      %s646 = sphi 0, %s646
      %s648 = sphi 0, %s646
      %s649 = sphi 0, %s648
      %s663 = sphi 0, %s649
      %s667 = sphi 0, %s667
      %s669 = sphi 0, %s667
      %s670 = sphi 0, %s669
      %s684 = sphi 0, %s670
      %s688 = sphi 0, %s688
      %s690 = sphi 0, %s688
      %s691 = sphi 0, %s690
      %s705 = sphi 0, %s691
      %s709 = sphi 0, %s709
      %s711 = sphi 0, %s709
      %s712 = sphi 0, %s711
      %s726 = sphi 0, %s712
      %s730 = sphi 0, %s730
      %s732 = sphi 0, %s730
      %s733 = sphi 0, %s732
      %s747 = sphi 0, %s733
      %s751 = sphi 0, %s751
      %s753 = sphi 0, %s751
      %s754 = sphi 0, %s753
      %s768 = sphi 0, %s754
      %s772 = sphi 0, %s772
      %s774 = sphi 0, %s772
      %s775 = sphi 0, %s774
      %s789 = sphi 0, %s775
      %s793 = sphi 0, %s793
      %s795 = sphi 0, %s793
      %s796 = sphi 0, %s795
      %s810 = sphi 0, %s796
      %s814 = sphi 0, %s814
      %s816 = sphi 0, %s814
      %s817 = sphi 0, %s816
      %s831 = sphi 0, %s817
      %s835 = sphi 0, %s835
      %s837 = sphi 0, %s835
      %s838 = sphi 0, %s837
      %s852 = sphi 0, %s838
      %s856 = sphi 0, %s856
      %s858 = sphi 0, %s856
      %s859 = sphi 0, %s858
      %s873 = sphi 0, %s859
      %s877 = sphi 0, %s877
      %s879 = sphi 0, %s877
      %s880 = sphi 0, %s879
      %s894 = sphi 0, %s880
      %s898 = sphi 0, %s898
      %s900 = sphi 0, %s898
      %s901 = sphi 0, %s900
      %s915 = sphi 0, %s901
      %s919 = sphi 0, %s919
      %s921 = sphi 0, %s919
      %s922 = sphi 0, %s921
      %s936 = sphi 0, %s922
      %s940 = sphi 0, %s940
      %s942 = sphi 0, %s940
      %s943 = sphi 0, %s942
      %s957 = sphi 0, %s943
      %s961 = sphi 0, %s961
      %s963 = sphi 0, %s961
      %s964 = sphi 0, %s963
      %s978 = sphi 0, %s964
      %s982 = sphi 0, %s982
      %s984 = sphi 0, %s982
      %s985 = sphi 0, %s984
      %s999 = sphi 0, %s985
      %s1003 = sphi 0, %s1003
      %s1005 = sphi 0, %s1003
      %s1006 = sphi 0, %s1005
      %s1020 = sphi 0, %s1006
      %s1024 = sphi 0, %s1024
      %s1026 = sphi 0, %s1024
      %s1027 = sphi 0, %s1026
      %s1041 = sphi 0, %s1027
      %s1045 = sphi 0, %s1045
      %s1047 = sphi 0, %s1045
      %s1048 = sphi 0, %s1047
      %s1062 = sphi 0, %s1048
      %s1066 = sphi 0, %s1066
      %s1068 = sphi 0, %s1066
      %s1069 = sphi 0, %s1068
      %s1083 = sphi 0, %s1069
      %s1087 = sphi 0, %s1087
      %s1089 = sphi 0, %s1087
      %s1090 = sphi 0, %s1089
      %s1104 = sphi 0, %s1090
      %s1110 = sphi 0, %s1112
      %s1113 = sphi 0, %s1110
      %s1114 = sphi 0, %s1113
      %s1130 = sphi 0, %s1114
    $region4: #{momo_tzuyu_forward.1} parent=1 // loop_header_branch
      %111 = sbr.rel (%p109) target = $region8
    $region5: #{momo_tzuyu_forward.1} parent=1 // loop_body
      %s113 = ssub.s32 %s108, 1
      %s114 = ssub.s32 %s108, 2
      %s115 = sadd.s32 %s108, 1
      %s116 = ssub.s32 %s108, %s115
      %p117 = scmp.eq.s32.totalorder %s116, 0
      %s119 = sadd.s32 %s118, 1
      %s120 = scalar_select %p117, %s118, %s119
      %p123 = pneg %p117
      %p124 = scmp.eq.s32.totalorder %s108, 1
      %p125 = por %p123, %p124
      %p126 = scmp.ne.s32.totalorder %s118, %s121
      %p127 = scmp.eq.s32.totalorder %s108, 0
      %p128 = por %p126, %p127
      %p129 = scmp.ne.s32.totalorder %s118, %s121
      %p130 = scmp.eq.s32.totalorder %s113, 1
      %p131 = por %p129, %p130
      %p132 = scmp.ne.s32.totalorder %s121, %s122
      %p133 = scmp.eq.s32.totalorder %s113, 0
      %p134 = por %p132, %p133
      %p135 = scmp.ne.s32.totalorder %s121, %s122
      %p136 = scmp.eq.s32.totalorder %s114, 1
      %p137 = por %p135, %p136
      %p139 = scmp.ne.s32.totalorder %s122, %s138
      %p140 = scmp.eq.s32.totalorder %s114, 0
      %p141 = por %p139, %p140
      %s143 = sadd.s32 %s142, 1
      %p146 = scmp.eq.s32.totalorder %s108, 1
      %p147 = scmp.ne.s32.totalorder %s142, %s144
      %p148 = scmp.eq.s32.totalorder %s108, 0
      %p149 = por %p147, %p148
      %p150 = scmp.ne.s32.totalorder %s142, %s144
      %p151 = scmp.eq.s32.totalorder %s113, 1
      %p152 = por %p150, %p151
      %p153 = scmp.ne.s32.totalorder %s144, %s145
      %p154 = scmp.eq.s32.totalorder %s113, 0
      %p155 = por %p153, %p154
      %p156 = scmp.ne.s32.totalorder %s144, %s145
      %p157 = scmp.eq.s32.totalorder %s114, 1
      %p158 = por %p156, %p157
      %p160 = scmp.ne.s32.totalorder %s145, %s159
      %p161 = scmp.eq.s32.totalorder %s114, 0
      %p162 = por %p160, %p161
      %s164 = sadd.s32 %s163, 1
      %p167 = scmp.eq.s32.totalorder %s108, 1
      %p168 = scmp.ne.s32.totalorder %s163, %s165
      %p169 = scmp.eq.s32.totalorder %s108, 0
      %p170 = por %p168, %p169
      %p171 = scmp.ne.s32.totalorder %s163, %s165
      %p172 = scmp.eq.s32.totalorder %s113, 1
      %p173 = por %p171, %p172
      %p174 = scmp.ne.s32.totalorder %s165, %s166
      %p175 = scmp.eq.s32.totalorder %s113, 0
      %p176 = por %p174, %p175
      %p177 = scmp.ne.s32.totalorder %s165, %s166
      %p178 = scmp.eq.s32.totalorder %s114, 1
      %p179 = por %p177, %p178
      %p181 = scmp.ne.s32.totalorder %s166, %s180
      %p182 = scmp.eq.s32.totalorder %s114, 0
      %p183 = por %p181, %p182
      %s185 = sadd.s32 %s184, 1
      %p188 = scmp.eq.s32.totalorder %s108, 1
      %p189 = scmp.ne.s32.totalorder %s184, %s186
      %p190 = scmp.eq.s32.totalorder %s108, 0
      %p191 = por %p189, %p190
      %p192 = scmp.ne.s32.totalorder %s184, %s186
      %p193 = scmp.eq.s32.totalorder %s113, 1
      %p194 = por %p192, %p193
      %p195 = scmp.ne.s32.totalorder %s186, %s187
      %p196 = scmp.eq.s32.totalorder %s113, 0
      %p197 = por %p195, %p196
      %p198 = scmp.ne.s32.totalorder %s186, %s187
      %p199 = scmp.eq.s32.totalorder %s114, 1
      %p200 = por %p198, %p199
      %p202 = scmp.ne.s32.totalorder %s187, %s201
      %p203 = scmp.eq.s32.totalorder %s114, 0
      %p204 = por %p202, %p203
      %s206 = sadd.s32 %s205, 1
      %p209 = scmp.eq.s32.totalorder %s108, 1
      %p210 = scmp.ne.s32.totalorder %s205, %s207
      %p211 = scmp.eq.s32.totalorder %s108, 0
      %p212 = por %p210, %p211
      %p213 = scmp.ne.s32.totalorder %s205, %s207
      %p214 = scmp.eq.s32.totalorder %s113, 1
      %p215 = por %p213, %p214
      %p216 = scmp.ne.s32.totalorder %s207, %s208
      %p217 = scmp.eq.s32.totalorder %s113, 0
      %p218 = por %p216, %p217
      %p219 = scmp.ne.s32.totalorder %s207, %s208
      %p220 = scmp.eq.s32.totalorder %s114, 1
      %p221 = por %p219, %p220
      %p223 = scmp.ne.s32.totalorder %s208, %s222
      %p224 = scmp.eq.s32.totalorder %s114, 0
      %p225 = por %p223, %p224
      %s227 = sadd.s32 %s226, 1
      %p230 = scmp.eq.s32.totalorder %s108, 1
      %p231 = scmp.ne.s32.totalorder %s226, %s228
      %p232 = scmp.eq.s32.totalorder %s108, 0
      %p233 = por %p231, %p232
      %p234 = scmp.ne.s32.totalorder %s226, %s228
      %p235 = scmp.eq.s32.totalorder %s113, 1
      %p236 = por %p234, %p235
      %p237 = scmp.ne.s32.totalorder %s228, %s229
      %p238 = scmp.eq.s32.totalorder %s113, 0
      %p239 = por %p237, %p238
      %p240 = scmp.ne.s32.totalorder %s228, %s229
      %p241 = scmp.eq.s32.totalorder %s114, 1
      %p242 = por %p240, %p241
      %p244 = scmp.ne.s32.totalorder %s229, %s243
      %p245 = scmp.eq.s32.totalorder %s114, 0
      %p246 = por %p244, %p245
      %s248 = sadd.s32 %s247, 1
      %p251 = scmp.eq.s32.totalorder %s108, 1
      %p252 = scmp.ne.s32.totalorder %s247, %s249
      %p253 = scmp.eq.s32.totalorder %s108, 0
      %p254 = por %p252, %p253
      %p255 = scmp.ne.s32.totalorder %s247, %s249
      %p256 = scmp.eq.s32.totalorder %s113, 1
      %p257 = por %p255, %p256
      %p258 = scmp.ne.s32.totalorder %s249, %s250
      %p259 = scmp.eq.s32.totalorder %s113, 0
      %p260 = por %p258, %p259
      %p261 = scmp.ne.s32.totalorder %s249, %s250
      %p262 = scmp.eq.s32.totalorder %s114, 1
      %p263 = por %p261, %p262
      %p265 = scmp.ne.s32.totalorder %s250, %s264
      %p266 = scmp.eq.s32.totalorder %s114, 0
      %p267 = por %p265, %p266
      %s269 = sadd.s32 %s268, 1
      %p272 = scmp.eq.s32.totalorder %s108, 1
      %p273 = scmp.ne.s32.totalorder %s268, %s270
      %p274 = scmp.eq.s32.totalorder %s108, 0
      %p275 = por %p273, %p274
      %p276 = scmp.ne.s32.totalorder %s268, %s270
      %p277 = scmp.eq.s32.totalorder %s113, 1
      %p278 = por %p276, %p277
      %p279 = scmp.ne.s32.totalorder %s270, %s271
      %p280 = scmp.eq.s32.totalorder %s113, 0
      %p281 = por %p279, %p280
      %p282 = scmp.ne.s32.totalorder %s270, %s271
      %p283 = scmp.eq.s32.totalorder %s114, 1
      %p284 = por %p282, %p283
      %p286 = scmp.ne.s32.totalorder %s271, %s285
      %p287 = scmp.eq.s32.totalorder %s114, 0
      %p288 = por %p286, %p287
      %s290 = sadd.s32 %s289, 1
      %p293 = scmp.eq.s32.totalorder %s108, 1
      %p294 = scmp.ne.s32.totalorder %s289, %s291
      %p295 = scmp.eq.s32.totalorder %s108, 0
      %p296 = por %p294, %p295
      %p297 = scmp.ne.s32.totalorder %s289, %s291
      %p298 = scmp.eq.s32.totalorder %s113, 1
      %p299 = por %p297, %p298
      %p300 = scmp.ne.s32.totalorder %s291, %s292
      %p301 = scmp.eq.s32.totalorder %s113, 0
      %p302 = por %p300, %p301
      %p303 = scmp.ne.s32.totalorder %s291, %s292
      %p304 = scmp.eq.s32.totalorder %s114, 1
      %p305 = por %p303, %p304
      %p307 = scmp.ne.s32.totalorder %s292, %s306
      %p308 = scmp.eq.s32.totalorder %s114, 0
      %p309 = por %p307, %p308
      %s311 = sadd.s32 %s310, 1
      %p314 = scmp.eq.s32.totalorder %s108, 1
      %p315 = scmp.ne.s32.totalorder %s310, %s312
      %p316 = scmp.eq.s32.totalorder %s108, 0
      %p317 = por %p315, %p316
      %p318 = scmp.ne.s32.totalorder %s310, %s312
      %p319 = scmp.eq.s32.totalorder %s113, 1
      %p320 = por %p318, %p319
      %p321 = scmp.ne.s32.totalorder %s312, %s313
      %p322 = scmp.eq.s32.totalorder %s113, 0
      %p323 = por %p321, %p322
      %p324 = scmp.ne.s32.totalorder %s312, %s313
      %p325 = scmp.eq.s32.totalorder %s114, 1
      %p326 = por %p324, %p325
      %p328 = scmp.ne.s32.totalorder %s313, %s327
      %p329 = scmp.eq.s32.totalorder %s114, 0
      %p330 = por %p328, %p329
      %s332 = sadd.s32 %s331, 1
      %p335 = scmp.eq.s32.totalorder %s108, 1
      %p336 = scmp.ne.s32.totalorder %s331, %s333
      %p337 = scmp.eq.s32.totalorder %s108, 0
      %p338 = por %p336, %p337
      %p339 = scmp.ne.s32.totalorder %s331, %s333
      %p340 = scmp.eq.s32.totalorder %s113, 1
      %p341 = por %p339, %p340
      %p342 = scmp.ne.s32.totalorder %s333, %s334
      %p343 = scmp.eq.s32.totalorder %s113, 0
      %p344 = por %p342, %p343
      %p345 = scmp.ne.s32.totalorder %s333, %s334
      %p346 = scmp.eq.s32.totalorder %s114, 1
      %p347 = por %p345, %p346
      %p349 = scmp.ne.s32.totalorder %s334, %s348
      %p350 = scmp.eq.s32.totalorder %s114, 0
      %p351 = por %p349, %p350
      %s353 = sadd.s32 %s352, 1
      %p356 = scmp.eq.s32.totalorder %s108, 1
      %p357 = scmp.ne.s32.totalorder %s352, %s354
      %p358 = scmp.eq.s32.totalorder %s108, 0
      %p359 = por %p357, %p358
      %p360 = scmp.ne.s32.totalorder %s352, %s354
      %p361 = scmp.eq.s32.totalorder %s113, 1
      %p362 = por %p360, %p361
      %p363 = scmp.ne.s32.totalorder %s354, %s355
      %p364 = scmp.eq.s32.totalorder %s113, 0
      %p365 = por %p363, %p364
      %p366 = scmp.ne.s32.totalorder %s354, %s355
      %p367 = scmp.eq.s32.totalorder %s114, 1
      %p368 = por %p366, %p367
      %p370 = scmp.ne.s32.totalorder %s355, %s369
      %p371 = scmp.eq.s32.totalorder %s114, 0
      %p372 = por %p370, %p371
      %s374 = sadd.s32 %s373, 1
      %p377 = scmp.eq.s32.totalorder %s108, 1
      %p378 = scmp.ne.s32.totalorder %s373, %s375
      %p379 = scmp.eq.s32.totalorder %s108, 0
      %p380 = por %p378, %p379
      %p381 = scmp.ne.s32.totalorder %s373, %s375
      %p382 = scmp.eq.s32.totalorder %s113, 1
      %p383 = por %p381, %p382
      %p384 = scmp.ne.s32.totalorder %s375, %s376
      %p385 = scmp.eq.s32.totalorder %s113, 0
      %p386 = por %p384, %p385
      %p387 = scmp.ne.s32.totalorder %s375, %s376
      %p388 = scmp.eq.s32.totalorder %s114, 1
      %p389 = por %p387, %p388
      %p391 = scmp.ne.s32.totalorder %s376, %s390
      %p392 = scmp.eq.s32.totalorder %s114, 0
      %p393 = por %p391, %p392
      %s395 = sadd.s32 %s394, 1
      %p398 = scmp.eq.s32.totalorder %s108, 1
      %p399 = scmp.ne.s32.totalorder %s394, %s396
      %p400 = scmp.eq.s32.totalorder %s108, 0
      %p401 = por %p399, %p400
      %p402 = scmp.ne.s32.totalorder %s394, %s396
      %p403 = scmp.eq.s32.totalorder %s113, 1
      %p404 = por %p402, %p403
      %p405 = scmp.ne.s32.totalorder %s396, %s397
      %p406 = scmp.eq.s32.totalorder %s113, 0
      %p407 = por %p405, %p406
      %p408 = scmp.ne.s32.totalorder %s396, %s397
      %p409 = scmp.eq.s32.totalorder %s114, 1
      %p410 = por %p408, %p409
      %p412 = scmp.ne.s32.totalorder %s397, %s411
      %p413 = scmp.eq.s32.totalorder %s114, 0
      %p414 = por %p412, %p413
      %s416 = sadd.s32 %s415, 1
      %p419 = scmp.eq.s32.totalorder %s108, 1
      %p420 = scmp.ne.s32.totalorder %s415, %s417
      %p421 = scmp.eq.s32.totalorder %s108, 0
      %p422 = por %p420, %p421
      %p423 = scmp.ne.s32.totalorder %s415, %s417
      %p424 = scmp.eq.s32.totalorder %s113, 1
      %p425 = por %p423, %p424
      %p426 = scmp.ne.s32.totalorder %s417, %s418
      %p427 = scmp.eq.s32.totalorder %s113, 0
      %p428 = por %p426, %p427
      %p429 = scmp.ne.s32.totalorder %s417, %s418
      %p430 = scmp.eq.s32.totalorder %s114, 1
      %p431 = por %p429, %p430
      %p433 = scmp.ne.s32.totalorder %s418, %s432
      %p434 = scmp.eq.s32.totalorder %s114, 0
      %p435 = por %p433, %p434
      %s437 = sadd.s32 %s436, 1
      %p440 = scmp.eq.s32.totalorder %s108, 1
      %p441 = scmp.ne.s32.totalorder %s436, %s438
      %p442 = scmp.eq.s32.totalorder %s108, 0
      %p443 = por %p441, %p442
      %p444 = scmp.ne.s32.totalorder %s436, %s438
      %p445 = scmp.eq.s32.totalorder %s113, 1
      %p446 = por %p444, %p445
      %p447 = scmp.ne.s32.totalorder %s438, %s439
      %p448 = scmp.eq.s32.totalorder %s113, 0
      %p449 = por %p447, %p448
      %p450 = scmp.ne.s32.totalorder %s438, %s439
      %p451 = scmp.eq.s32.totalorder %s114, 1
      %p452 = por %p450, %p451
      %p454 = scmp.ne.s32.totalorder %s439, %s453
      %p455 = scmp.eq.s32.totalorder %s114, 0
      %p456 = por %p454, %p455
      %s458 = sadd.s32 %s457, 1
      %p461 = scmp.eq.s32.totalorder %s108, 1
      %p462 = scmp.ne.s32.totalorder %s457, %s459
      %p463 = scmp.eq.s32.totalorder %s108, 0
      %p464 = por %p462, %p463
      %p465 = scmp.ne.s32.totalorder %s457, %s459
      %p466 = scmp.eq.s32.totalorder %s113, 1
      %p467 = por %p465, %p466
      %p468 = scmp.ne.s32.totalorder %s459, %s460
      %p469 = scmp.eq.s32.totalorder %s113, 0
      %p470 = por %p468, %p469
      %p471 = scmp.ne.s32.totalorder %s459, %s460
      %p472 = scmp.eq.s32.totalorder %s114, 1
      %p473 = por %p471, %p472
      %p475 = scmp.ne.s32.totalorder %s460, %s474
      %p476 = scmp.eq.s32.totalorder %s114, 0
      %p477 = por %p475, %p476
      %s479 = sadd.s32 %s478, 1
      %p482 = scmp.eq.s32.totalorder %s108, 1
      %p483 = scmp.ne.s32.totalorder %s478, %s480
      %p484 = scmp.eq.s32.totalorder %s108, 0
      %p485 = por %p483, %p484
      %p486 = scmp.ne.s32.totalorder %s478, %s480
      %p487 = scmp.eq.s32.totalorder %s113, 1
      %p488 = por %p486, %p487
      %p489 = scmp.ne.s32.totalorder %s480, %s481
      %p490 = scmp.eq.s32.totalorder %s113, 0
      %p491 = por %p489, %p490
      %p492 = scmp.ne.s32.totalorder %s480, %s481
      %p493 = scmp.eq.s32.totalorder %s114, 1
      %p494 = por %p492, %p493
      %p496 = scmp.ne.s32.totalorder %s481, %s495
      %p497 = scmp.eq.s32.totalorder %s114, 0
      %p498 = por %p496, %p497
      %s500 = sadd.s32 %s499, 1
      %p503 = scmp.eq.s32.totalorder %s108, 1
      %p504 = scmp.ne.s32.totalorder %s499, %s501
      %p505 = scmp.eq.s32.totalorder %s108, 0
      %p506 = por %p504, %p505
      %p507 = scmp.ne.s32.totalorder %s499, %s501
      %p508 = scmp.eq.s32.totalorder %s113, 1
      %p509 = por %p507, %p508
      %p510 = scmp.ne.s32.totalorder %s501, %s502
      %p511 = scmp.eq.s32.totalorder %s113, 0
      %p512 = por %p510, %p511
      %p513 = scmp.ne.s32.totalorder %s501, %s502
      %p514 = scmp.eq.s32.totalorder %s114, 1
      %p515 = por %p513, %p514
      %p517 = scmp.ne.s32.totalorder %s502, %s516
      %p518 = scmp.eq.s32.totalorder %s114, 0
      %p519 = por %p517, %p518
      %s521 = sadd.s32 %s520, 1
      %p524 = scmp.eq.s32.totalorder %s108, 1
      %p525 = scmp.ne.s32.totalorder %s520, %s522
      %p526 = scmp.eq.s32.totalorder %s108, 0
      %p527 = por %p525, %p526
      %p528 = scmp.ne.s32.totalorder %s520, %s522
      %p529 = scmp.eq.s32.totalorder %s113, 1
      %p530 = por %p528, %p529
      %p531 = scmp.ne.s32.totalorder %s522, %s523
      %p532 = scmp.eq.s32.totalorder %s113, 0
      %p533 = por %p531, %p532
      %p534 = scmp.ne.s32.totalorder %s522, %s523
      %p535 = scmp.eq.s32.totalorder %s114, 1
      %p536 = por %p534, %p535
      %p538 = scmp.ne.s32.totalorder %s523, %s537
      %p539 = scmp.eq.s32.totalorder %s114, 0
      %p540 = por %p538, %p539
      %s542 = sadd.s32 %s541, 1
      %p545 = scmp.eq.s32.totalorder %s108, 1
      %p546 = scmp.ne.s32.totalorder %s541, %s543
      %p547 = scmp.eq.s32.totalorder %s108, 0
      %p548 = por %p546, %p547
      %p549 = scmp.ne.s32.totalorder %s541, %s543
      %p550 = scmp.eq.s32.totalorder %s113, 1
      %p551 = por %p549, %p550
      %p552 = scmp.ne.s32.totalorder %s543, %s544
      %p553 = scmp.eq.s32.totalorder %s113, 0
      %p554 = por %p552, %p553
      %p555 = scmp.ne.s32.totalorder %s543, %s544
      %p556 = scmp.eq.s32.totalorder %s114, 1
      %p557 = por %p555, %p556
      %p559 = scmp.ne.s32.totalorder %s544, %s558
      %p560 = scmp.eq.s32.totalorder %s114, 0
      %p561 = por %p559, %p560
      %s563 = sadd.s32 %s562, 1
      %p566 = scmp.eq.s32.totalorder %s108, 1
      %p567 = scmp.ne.s32.totalorder %s562, %s564
      %p568 = scmp.eq.s32.totalorder %s108, 0
      %p569 = por %p567, %p568
      %p570 = scmp.ne.s32.totalorder %s562, %s564
      %p571 = scmp.eq.s32.totalorder %s113, 1
      %p572 = por %p570, %p571
      %p573 = scmp.ne.s32.totalorder %s564, %s565
      %p574 = scmp.eq.s32.totalorder %s113, 0
      %p575 = por %p573, %p574
      %p576 = scmp.ne.s32.totalorder %s564, %s565
      %p577 = scmp.eq.s32.totalorder %s114, 1
      %p578 = por %p576, %p577
      %p580 = scmp.ne.s32.totalorder %s565, %s579
      %p581 = scmp.eq.s32.totalorder %s114, 0
      %p582 = por %p580, %p581
      %s584 = sadd.s32 %s583, 1
      %p587 = scmp.eq.s32.totalorder %s108, 1
      %p588 = scmp.ne.s32.totalorder %s583, %s585
      %p589 = scmp.eq.s32.totalorder %s108, 0
      %p590 = por %p588, %p589
      %p591 = scmp.ne.s32.totalorder %s583, %s585
      %p592 = scmp.eq.s32.totalorder %s113, 1
      %p593 = por %p591, %p592
      %p594 = scmp.ne.s32.totalorder %s585, %s586
      %p595 = scmp.eq.s32.totalorder %s113, 0
      %p596 = por %p594, %p595
      %p597 = scmp.ne.s32.totalorder %s585, %s586
      %p598 = scmp.eq.s32.totalorder %s114, 1
      %p599 = por %p597, %p598
      %p601 = scmp.ne.s32.totalorder %s586, %s600
      %p602 = scmp.eq.s32.totalorder %s114, 0
      %p603 = por %p601, %p602
      %s605 = sadd.s32 %s604, 1
      %p608 = scmp.eq.s32.totalorder %s108, 1
      %p609 = scmp.ne.s32.totalorder %s604, %s606
      %p610 = scmp.eq.s32.totalorder %s108, 0
      %p611 = por %p609, %p610
      %p612 = scmp.ne.s32.totalorder %s604, %s606
      %p613 = scmp.eq.s32.totalorder %s113, 1
      %p614 = por %p612, %p613
      %p615 = scmp.ne.s32.totalorder %s606, %s607
      %p616 = scmp.eq.s32.totalorder %s113, 0
      %p617 = por %p615, %p616
      %p618 = scmp.ne.s32.totalorder %s606, %s607
      %p619 = scmp.eq.s32.totalorder %s114, 1
      %p620 = por %p618, %p619
      %p622 = scmp.ne.s32.totalorder %s607, %s621
      %p623 = scmp.eq.s32.totalorder %s114, 0
      %p624 = por %p622, %p623
      %s626 = sadd.s32 %s625, 1
      %p629 = scmp.eq.s32.totalorder %s108, 1
      %p630 = scmp.ne.s32.totalorder %s625, %s627
      %p631 = scmp.eq.s32.totalorder %s108, 0
      %p632 = por %p630, %p631
      %p633 = scmp.ne.s32.totalorder %s625, %s627
      %p634 = scmp.eq.s32.totalorder %s113, 1
      %p635 = por %p633, %p634
      %p636 = scmp.ne.s32.totalorder %s627, %s628
      %p637 = scmp.eq.s32.totalorder %s113, 0
      %p638 = por %p636, %p637
      %p639 = scmp.ne.s32.totalorder %s627, %s628
      %p640 = scmp.eq.s32.totalorder %s114, 1
      %p641 = por %p639, %p640
      %p643 = scmp.ne.s32.totalorder %s628, %s642
      %p644 = scmp.eq.s32.totalorder %s114, 0
      %p645 = por %p643, %p644
      %s647 = sadd.s32 %s646, 1
      %p650 = scmp.eq.s32.totalorder %s108, 1
      %p651 = scmp.ne.s32.totalorder %s646, %s648
      %p652 = scmp.eq.s32.totalorder %s108, 0
      %p653 = por %p651, %p652
      %p654 = scmp.ne.s32.totalorder %s646, %s648
      %p655 = scmp.eq.s32.totalorder %s113, 1
      %p656 = por %p654, %p655
      %p657 = scmp.ne.s32.totalorder %s648, %s649
      %p658 = scmp.eq.s32.totalorder %s113, 0
      %p659 = por %p657, %p658
      %p660 = scmp.ne.s32.totalorder %s648, %s649
      %p661 = scmp.eq.s32.totalorder %s114, 1
      %p662 = por %p660, %p661
      %p664 = scmp.ne.s32.totalorder %s649, %s663
      %p665 = scmp.eq.s32.totalorder %s114, 0
      %p666 = por %p664, %p665
      %s668 = sadd.s32 %s667, 1
      %p671 = scmp.eq.s32.totalorder %s108, 1
      %p672 = scmp.ne.s32.totalorder %s667, %s669
      %p673 = scmp.eq.s32.totalorder %s108, 0
      %p674 = por %p672, %p673
      %p675 = scmp.ne.s32.totalorder %s667, %s669
      %p676 = scmp.eq.s32.totalorder %s113, 1
      %p677 = por %p675, %p676
      %p678 = scmp.ne.s32.totalorder %s669, %s670
      %p679 = scmp.eq.s32.totalorder %s113, 0
      %p680 = por %p678, %p679
      %p681 = scmp.ne.s32.totalorder %s669, %s670
      %p682 = scmp.eq.s32.totalorder %s114, 1
      %p683 = por %p681, %p682
      %p685 = scmp.ne.s32.totalorder %s670, %s684
      %p686 = scmp.eq.s32.totalorder %s114, 0
      %p687 = por %p685, %p686
      %s689 = sadd.s32 %s688, 1
      %p692 = scmp.eq.s32.totalorder %s108, 1
      %p693 = scmp.ne.s32.totalorder %s688, %s690
      %p694 = scmp.eq.s32.totalorder %s108, 0
      %p695 = por %p693, %p694
      %p696 = scmp.ne.s32.totalorder %s688, %s690
      %p697 = scmp.eq.s32.totalorder %s113, 1
      %p698 = por %p696, %p697
      %p699 = scmp.ne.s32.totalorder %s690, %s691
      %p700 = scmp.eq.s32.totalorder %s113, 0
      %p701 = por %p699, %p700
      %p702 = scmp.ne.s32.totalorder %s690, %s691
      %p703 = scmp.eq.s32.totalorder %s114, 1
      %p704 = por %p702, %p703
      %p706 = scmp.ne.s32.totalorder %s691, %s705
      %p707 = scmp.eq.s32.totalorder %s114, 0
      %p708 = por %p706, %p707
      %s710 = sadd.s32 %s709, 1
      %p713 = scmp.eq.s32.totalorder %s108, 1
      %p714 = scmp.ne.s32.totalorder %s709, %s711
      %p715 = scmp.eq.s32.totalorder %s108, 0
      %p716 = por %p714, %p715
      %p717 = scmp.ne.s32.totalorder %s709, %s711
      %p718 = scmp.eq.s32.totalorder %s113, 1
      %p719 = por %p717, %p718
      %p720 = scmp.ne.s32.totalorder %s711, %s712
      %p721 = scmp.eq.s32.totalorder %s113, 0
      %p722 = por %p720, %p721
      %p723 = scmp.ne.s32.totalorder %s711, %s712
      %p724 = scmp.eq.s32.totalorder %s114, 1
      %p725 = por %p723, %p724
      %p727 = scmp.ne.s32.totalorder %s712, %s726
      %p728 = scmp.eq.s32.totalorder %s114, 0
      %p729 = por %p727, %p728
      %s731 = sadd.s32 %s730, 1
      %p734 = scmp.eq.s32.totalorder %s108, 1
      %p735 = scmp.ne.s32.totalorder %s730, %s732
      %p736 = scmp.eq.s32.totalorder %s108, 0
      %p737 = por %p735, %p736
      %p738 = scmp.ne.s32.totalorder %s730, %s732
      %p739 = scmp.eq.s32.totalorder %s113, 1
      %p740 = por %p738, %p739
      %p741 = scmp.ne.s32.totalorder %s732, %s733
      %p742 = scmp.eq.s32.totalorder %s113, 0
      %p743 = por %p741, %p742
      %p744 = scmp.ne.s32.totalorder %s732, %s733
      %p745 = scmp.eq.s32.totalorder %s114, 1
      %p746 = por %p744, %p745
      %p748 = scmp.ne.s32.totalorder %s733, %s747
      %p749 = scmp.eq.s32.totalorder %s114, 0
      %p750 = por %p748, %p749
      %s752 = sadd.s32 %s751, 1
      %p755 = scmp.eq.s32.totalorder %s108, 1
      %p756 = scmp.ne.s32.totalorder %s751, %s753
      %p757 = scmp.eq.s32.totalorder %s108, 0
      %p758 = por %p756, %p757
      %p759 = scmp.ne.s32.totalorder %s751, %s753
      %p760 = scmp.eq.s32.totalorder %s113, 1
      %p761 = por %p759, %p760
      %p762 = scmp.ne.s32.totalorder %s753, %s754
      %p763 = scmp.eq.s32.totalorder %s113, 0
      %p764 = por %p762, %p763
      %p765 = scmp.ne.s32.totalorder %s753, %s754
      %p766 = scmp.eq.s32.totalorder %s114, 1
      %p767 = por %p765, %p766
      %p769 = scmp.ne.s32.totalorder %s754, %s768
      %p770 = scmp.eq.s32.totalorder %s114, 0
      %p771 = por %p769, %p770
      %s773 = sadd.s32 %s772, 1
      %p776 = scmp.eq.s32.totalorder %s108, 1
      %p777 = scmp.ne.s32.totalorder %s772, %s774
      %p778 = scmp.eq.s32.totalorder %s108, 0
      %p779 = por %p777, %p778
      %p780 = scmp.ne.s32.totalorder %s772, %s774
      %p781 = scmp.eq.s32.totalorder %s113, 1
      %p782 = por %p780, %p781
      %p783 = scmp.ne.s32.totalorder %s774, %s775
      %p784 = scmp.eq.s32.totalorder %s113, 0
      %p785 = por %p783, %p784
      %p786 = scmp.ne.s32.totalorder %s774, %s775
      %p787 = scmp.eq.s32.totalorder %s114, 1
      %p788 = por %p786, %p787
      %p790 = scmp.ne.s32.totalorder %s775, %s789
      %p791 = scmp.eq.s32.totalorder %s114, 0
      %p792 = por %p790, %p791
      %s794 = sadd.s32 %s793, 1
      %p797 = scmp.eq.s32.totalorder %s108, 1
      %p798 = scmp.ne.s32.totalorder %s793, %s795
      %p799 = scmp.eq.s32.totalorder %s108, 0
      %p800 = por %p798, %p799
      %p801 = scmp.ne.s32.totalorder %s793, %s795
      %p802 = scmp.eq.s32.totalorder %s113, 1
      %p803 = por %p801, %p802
      %p804 = scmp.ne.s32.totalorder %s795, %s796
      %p805 = scmp.eq.s32.totalorder %s113, 0
      %p806 = por %p804, %p805
      %p807 = scmp.ne.s32.totalorder %s795, %s796
      %p808 = scmp.eq.s32.totalorder %s114, 1
      %p809 = por %p807, %p808
      %p811 = scmp.ne.s32.totalorder %s796, %s810
      %p812 = scmp.eq.s32.totalorder %s114, 0
      %p813 = por %p811, %p812
      %s815 = sadd.s32 %s814, 1
      %p818 = scmp.eq.s32.totalorder %s108, 1
      %p819 = scmp.ne.s32.totalorder %s814, %s816
      %p820 = scmp.eq.s32.totalorder %s108, 0
      %p821 = por %p819, %p820
      %p822 = scmp.ne.s32.totalorder %s814, %s816
      %p823 = scmp.eq.s32.totalorder %s113, 1
      %p824 = por %p822, %p823
      %p825 = scmp.ne.s32.totalorder %s816, %s817
      %p826 = scmp.eq.s32.totalorder %s113, 0
      %p827 = por %p825, %p826
      %p828 = scmp.ne.s32.totalorder %s816, %s817
      %p829 = scmp.eq.s32.totalorder %s114, 1
      %p830 = por %p828, %p829
      %p832 = scmp.ne.s32.totalorder %s817, %s831
      %p833 = scmp.eq.s32.totalorder %s114, 0
      %p834 = por %p832, %p833
      %s836 = sadd.s32 %s835, 1
      %p839 = scmp.eq.s32.totalorder %s108, 1
      %p840 = scmp.ne.s32.totalorder %s835, %s837
      %p841 = scmp.eq.s32.totalorder %s108, 0
      %p842 = por %p840, %p841
      %p843 = scmp.ne.s32.totalorder %s835, %s837
      %p844 = scmp.eq.s32.totalorder %s113, 1
      %p845 = por %p843, %p844
      %p846 = scmp.ne.s32.totalorder %s837, %s838
      %p847 = scmp.eq.s32.totalorder %s113, 0
      %p848 = por %p846, %p847
      %p849 = scmp.ne.s32.totalorder %s837, %s838
      %p850 = scmp.eq.s32.totalorder %s114, 1
      %p851 = por %p849, %p850
      %p853 = scmp.ne.s32.totalorder %s838, %s852
      %p854 = scmp.eq.s32.totalorder %s114, 0
      %p855 = por %p853, %p854
      %s857 = sadd.s32 %s856, 1
      %p860 = scmp.eq.s32.totalorder %s108, 1
      %p861 = scmp.ne.s32.totalorder %s856, %s858
      %p862 = scmp.eq.s32.totalorder %s108, 0
      %p863 = por %p861, %p862
      %p864 = scmp.ne.s32.totalorder %s856, %s858
      %p865 = scmp.eq.s32.totalorder %s113, 1
      %p866 = por %p864, %p865
      %p867 = scmp.ne.s32.totalorder %s858, %s859
      %p868 = scmp.eq.s32.totalorder %s113, 0
      %p869 = por %p867, %p868
      %p870 = scmp.ne.s32.totalorder %s858, %s859
      %p871 = scmp.eq.s32.totalorder %s114, 1
      %p872 = por %p870, %p871
      %p874 = scmp.ne.s32.totalorder %s859, %s873
      %p875 = scmp.eq.s32.totalorder %s114, 0
      %p876 = por %p874, %p875
      %s878 = sadd.s32 %s877, 1
      %p881 = scmp.eq.s32.totalorder %s108, 1
      %p882 = scmp.ne.s32.totalorder %s877, %s879
      %p883 = scmp.eq.s32.totalorder %s108, 0
      %p884 = por %p882, %p883
      %p885 = scmp.ne.s32.totalorder %s877, %s879
      %p886 = scmp.eq.s32.totalorder %s113, 1
      %p887 = por %p885, %p886
      %p888 = scmp.ne.s32.totalorder %s879, %s880
      %p889 = scmp.eq.s32.totalorder %s113, 0
      %p890 = por %p888, %p889
      %p891 = scmp.ne.s32.totalorder %s879, %s880
      %p892 = scmp.eq.s32.totalorder %s114, 1
      %p893 = por %p891, %p892
      %p895 = scmp.ne.s32.totalorder %s880, %s894
      %p896 = scmp.eq.s32.totalorder %s114, 0
      %p897 = por %p895, %p896
      %s899 = sadd.s32 %s898, 1
      %p902 = scmp.eq.s32.totalorder %s108, 1
      %p903 = scmp.ne.s32.totalorder %s898, %s900
      %p904 = scmp.eq.s32.totalorder %s108, 0
      %p905 = por %p903, %p904
      %p906 = scmp.ne.s32.totalorder %s898, %s900
      %p907 = scmp.eq.s32.totalorder %s113, 1
      %p908 = por %p906, %p907
      %p909 = scmp.ne.s32.totalorder %s900, %s901
      %p910 = scmp.eq.s32.totalorder %s113, 0
      %p911 = por %p909, %p910
      %p912 = scmp.ne.s32.totalorder %s900, %s901
      %p913 = scmp.eq.s32.totalorder %s114, 1
      %p914 = por %p912, %p913
      %p916 = scmp.ne.s32.totalorder %s901, %s915
      %p917 = scmp.eq.s32.totalorder %s114, 0
      %p918 = por %p916, %p917
      %s920 = sadd.s32 %s919, 1
      %p923 = scmp.eq.s32.totalorder %s108, 1
      %p924 = scmp.ne.s32.totalorder %s919, %s921
      %p925 = scmp.eq.s32.totalorder %s108, 0
      %p926 = por %p924, %p925
      %p927 = scmp.ne.s32.totalorder %s919, %s921
      %p928 = scmp.eq.s32.totalorder %s113, 1
      %p929 = por %p927, %p928
      %p930 = scmp.ne.s32.totalorder %s921, %s922
      %p931 = scmp.eq.s32.totalorder %s113, 0
      %p932 = por %p930, %p931
      %p933 = scmp.ne.s32.totalorder %s921, %s922
      %p934 = scmp.eq.s32.totalorder %s114, 1
      %p935 = por %p933, %p934
      %p937 = scmp.ne.s32.totalorder %s922, %s936
      %p938 = scmp.eq.s32.totalorder %s114, 0
      %p939 = por %p937, %p938
      %s941 = sadd.s32 %s940, 1
      %p944 = scmp.eq.s32.totalorder %s108, 1
      %p945 = scmp.ne.s32.totalorder %s940, %s942
      %p946 = scmp.eq.s32.totalorder %s108, 0
      %p947 = por %p945, %p946
      %p948 = scmp.ne.s32.totalorder %s940, %s942
      %p949 = scmp.eq.s32.totalorder %s113, 1
      %p950 = por %p948, %p949
      %p951 = scmp.ne.s32.totalorder %s942, %s943
      %p952 = scmp.eq.s32.totalorder %s113, 0
      %p953 = por %p951, %p952
      %p954 = scmp.ne.s32.totalorder %s942, %s943
      %p955 = scmp.eq.s32.totalorder %s114, 1
      %p956 = por %p954, %p955
      %p958 = scmp.ne.s32.totalorder %s943, %s957
      %p959 = scmp.eq.s32.totalorder %s114, 0
      %p960 = por %p958, %p959
      %s962 = sadd.s32 %s961, 1
      %p965 = scmp.eq.s32.totalorder %s108, 1
      %p966 = scmp.ne.s32.totalorder %s961, %s963
      %p967 = scmp.eq.s32.totalorder %s108, 0
      %p968 = por %p966, %p967
      %p969 = scmp.ne.s32.totalorder %s961, %s963
      %p970 = scmp.eq.s32.totalorder %s113, 1
      %p971 = por %p969, %p970
      %p972 = scmp.ne.s32.totalorder %s963, %s964
      %p973 = scmp.eq.s32.totalorder %s113, 0
      %p974 = por %p972, %p973
      %p975 = scmp.ne.s32.totalorder %s963, %s964
      %p976 = scmp.eq.s32.totalorder %s114, 1
      %p977 = por %p975, %p976
      %p979 = scmp.ne.s32.totalorder %s964, %s978
      %p980 = scmp.eq.s32.totalorder %s114, 0
      %p981 = por %p979, %p980
      %s983 = sadd.s32 %s982, 1
      %p986 = scmp.eq.s32.totalorder %s108, 1
      %p987 = scmp.ne.s32.totalorder %s982, %s984
      %p988 = scmp.eq.s32.totalorder %s108, 0
      %p989 = por %p987, %p988
      %p990 = scmp.ne.s32.totalorder %s982, %s984
      %p991 = scmp.eq.s32.totalorder %s113, 1
      %p992 = por %p990, %p991
      %p993 = scmp.ne.s32.totalorder %s984, %s985
      %p994 = scmp.eq.s32.totalorder %s113, 0
      %p995 = por %p993, %p994
      %p996 = scmp.ne.s32.totalorder %s984, %s985
      %p997 = scmp.eq.s32.totalorder %s114, 1
      %p998 = por %p996, %p997
      %p1000 = scmp.ne.s32.totalorder %s985, %s999
      %p1001 = scmp.eq.s32.totalorder %s114, 0
      %p1002 = por %p1000, %p1001
      %s1004 = sadd.s32 %s1003, 1
      %p1007 = scmp.eq.s32.totalorder %s108, 1
      %p1008 = scmp.ne.s32.totalorder %s1003, %s1005
      %p1009 = scmp.eq.s32.totalorder %s108, 0
      %p1010 = por %p1008, %p1009
      %p1011 = scmp.ne.s32.totalorder %s1003, %s1005
      %p1012 = scmp.eq.s32.totalorder %s113, 1
      %p1013 = por %p1011, %p1012
      %p1014 = scmp.ne.s32.totalorder %s1005, %s1006
      %p1015 = scmp.eq.s32.totalorder %s113, 0
      %p1016 = por %p1014, %p1015
      %p1017 = scmp.ne.s32.totalorder %s1005, %s1006
      %p1018 = scmp.eq.s32.totalorder %s114, 1
      %p1019 = por %p1017, %p1018
      %p1021 = scmp.ne.s32.totalorder %s1006, %s1020
      %p1022 = scmp.eq.s32.totalorder %s114, 0
      %p1023 = por %p1021, %p1022
      %s1025 = sadd.s32 %s1024, 1
      %p1028 = scmp.eq.s32.totalorder %s108, 1
      %p1029 = scmp.ne.s32.totalorder %s1024, %s1026
      %p1030 = scmp.eq.s32.totalorder %s108, 0
      %p1031 = por %p1029, %p1030
      %p1032 = scmp.ne.s32.totalorder %s1024, %s1026
      %p1033 = scmp.eq.s32.totalorder %s113, 1
      %p1034 = por %p1032, %p1033
      %p1035 = scmp.ne.s32.totalorder %s1026, %s1027
      %p1036 = scmp.eq.s32.totalorder %s113, 0
      %p1037 = por %p1035, %p1036
      %p1038 = scmp.ne.s32.totalorder %s1026, %s1027
      %p1039 = scmp.eq.s32.totalorder %s114, 1
      %p1040 = por %p1038, %p1039
      %p1042 = scmp.ne.s32.totalorder %s1027, %s1041
      %p1043 = scmp.eq.s32.totalorder %s114, 0
      %p1044 = por %p1042, %p1043
      %s1046 = sadd.s32 %s1045, 1
      %p1049 = scmp.eq.s32.totalorder %s108, 1
      %p1050 = scmp.ne.s32.totalorder %s1045, %s1047
      %p1051 = scmp.eq.s32.totalorder %s108, 0
      %p1052 = por %p1050, %p1051
      %p1053 = scmp.ne.s32.totalorder %s1045, %s1047
      %p1054 = scmp.eq.s32.totalorder %s113, 1
      %p1055 = por %p1053, %p1054
      %p1056 = scmp.ne.s32.totalorder %s1047, %s1048
      %p1057 = scmp.eq.s32.totalorder %s113, 0
      %p1058 = por %p1056, %p1057
      %p1059 = scmp.ne.s32.totalorder %s1047, %s1048
      %p1060 = scmp.eq.s32.totalorder %s114, 1
      %p1061 = por %p1059, %p1060
      %p1063 = scmp.ne.s32.totalorder %s1048, %s1062
      %p1064 = scmp.eq.s32.totalorder %s114, 0
      %p1065 = por %p1063, %p1064
      %s1067 = sadd.s32 %s1066, 1
      %p1070 = scmp.eq.s32.totalorder %s108, 1
      %p1071 = scmp.ne.s32.totalorder %s1066, %s1068
      %p1072 = scmp.eq.s32.totalorder %s108, 0
      %p1073 = por %p1071, %p1072
      %p1074 = scmp.ne.s32.totalorder %s1066, %s1068
      %p1075 = scmp.eq.s32.totalorder %s113, 1
      %p1076 = por %p1074, %p1075
      %p1077 = scmp.ne.s32.totalorder %s1068, %s1069
      %p1078 = scmp.eq.s32.totalorder %s113, 0
      %p1079 = por %p1077, %p1078
      %p1080 = scmp.ne.s32.totalorder %s1068, %s1069
      %p1081 = scmp.eq.s32.totalorder %s114, 1
      %p1082 = por %p1080, %p1081
      %p1084 = scmp.ne.s32.totalorder %s1069, %s1083
      %p1085 = scmp.eq.s32.totalorder %s114, 0
      %p1086 = por %p1084, %p1085
      %s1088 = sadd.s32 %s1087, 1
      %p1091 = scmp.eq.s32.totalorder %s108, 1
      %p1092 = scmp.ne.s32.totalorder %s1087, %s1089
      %p1093 = scmp.eq.s32.totalorder %s108, 0
      %p1094 = por %p1092, %p1093
      %p1095 = scmp.ne.s32.totalorder %s1087, %s1089
      %p1096 = scmp.eq.s32.totalorder %s113, 1
      %p1097 = por %p1095, %p1096
      %p1098 = scmp.ne.s32.totalorder %s1089, %s1090
      %p1099 = scmp.eq.s32.totalorder %s113, 0
      %p1100 = por %p1098, %p1099
      %p1101 = scmp.ne.s32.totalorder %s1089, %s1090
      %p1102 = scmp.eq.s32.totalorder %s114, 1
      %p1103 = por %p1101, %p1102
      %p1105 = scmp.ne.s32.totalorder %s1090, %s1104
      %p1106 = scmp.eq.s32.totalorder %s114, 0
      %p1107 = por %p1105, %p1106
      %s1108 = ssub.s32 %s108, %s115
      %p1109 = scmp.eq.s32.totalorder %s1108, 0
      %s1111 = sadd.s32 %s1110, 1
      %s1112 = scalar_select %p1109, %s1110, %s1111
      %p1115 = pneg %p1109
      %p1116 = scmp.eq.s32.totalorder %s108, 1
      %p1117 = por %p1115, %p1116
      %p1118 = scmp.ne.s32.totalorder %s1110, %s1113
      %p1119 = scmp.eq.s32.totalorder %s108, 0
      %p1120 = por %p1118, %p1119
      %p1121 = scmp.ne.s32.totalorder %s1110, %s1113
      %p1122 = scmp.eq.s32.totalorder %s113, 1
      %p1123 = por %p1121, %p1122
      %p1124 = scmp.ne.s32.totalorder %s1113, %s1114
      %p1125 = scmp.eq.s32.totalorder %s113, 0
      %p1126 = por %p1124, %p1125
      %p1127 = scmp.ne.s32.totalorder %s1113, %s1114
      %p1128 = scmp.eq.s32.totalorder %s114, 1
      %p1129 = por %p1127, %p1128
      %p1131 = scmp.ne.s32.totalorder %s1114, %s1130
      %p1132 = scmp.eq.s32.totalorder %s114, 0
      %p1133 = por %p1131, %p1132
      %p1134 = scmp.le.s32.totalorder 1, %s108
      %p1135 = scmp.lt.s32.totalorder %s108, 3
      %p1136 = pnand %p1134, %p1135
      %p1137 = pneg %p1136
      // Predicated region
      $region9: #{momo_tzuyu_forward.1} parent=5 // pred_check
        _
      $region10: #{momo_tzuyu_forward.1} parent=5 // pred_check_branch
        %1139 = sbr.rel (%p1136) target = $region12
      $region11: #{momo_tzuyu_forward.1} parent=5 // pred_region
        %s1140 = ssub.s32 %s108, 1
        // Predicated region
        $region13: #{momo_tzuyu_forward.1} parent=11 // pred_check
          %p1141 = pneg %p155
        $region14: #{momo_tzuyu_forward.1} parent=11 // pred_check_branch
          %1143 = sbr.rel (%p1141) target = $region16
        $region15: #{momo_tzuyu_forward.1} parent=11 // pred_region
          _
        $region16: #{momo_tzuyu_forward.1} parent=11 // pred_fallthru
          _
        // Predicated region
        $region17: #{momo_tzuyu_forward.1} parent=11 // pred_check
          %p1144 = pneg %p176
        $region18: #{momo_tzuyu_forward.1} parent=11 // pred_check_branch
          %1146 = sbr.rel (%p1144) target = $region20
        $region19: #{momo_tzuyu_forward.1} parent=11 // pred_region
          _
        $region20: #{momo_tzuyu_forward.1} parent=11 // pred_fallthru
          _
        // Predicated region
        $region21: #{momo_tzuyu_forward.1} parent=11 // pred_check
          %p1147 = pneg %p197
        $region22: #{momo_tzuyu_forward.1} parent=11 // pred_check_branch
          %1149 = sbr.rel (%p1147) target = $region24
        $region23: #{momo_tzuyu_forward.1} parent=11 // pred_region
          _
        $region24: #{momo_tzuyu_forward.1} parent=11 // pred_fallthru
          _
        // Predicated region
        $region25: #{momo_tzuyu_forward.1} parent=11 // pred_check
          %p1150 = pneg %p218
        $region26: #{momo_tzuyu_forward.1} parent=11 // pred_check_branch
          %1152 = sbr.rel (%p1150) target = $region28
        $region27: #{momo_tzuyu_forward.1} parent=11 // pred_region
          _
        $region28: #{momo_tzuyu_forward.1} parent=11 // pred_fallthru
          _
        // Predicated region
        $region29: #{momo_tzuyu_forward.1} parent=11 // pred_check
          %p1153 = pneg %p239
        $region30: #{momo_tzuyu_forward.1} parent=11 // pred_check_branch
          %1155 = sbr.rel (%p1153) target = $region32
        $region31: #{momo_tzuyu_forward.1} parent=11 // pred_region
          _
        $region32: #{momo_tzuyu_forward.1} parent=11 // pred_fallthru
          _
        // Predicated region
        $region33: #{momo_tzuyu_forward.1} parent=11 // pred_check
          %p1156 = pneg %p260
        $region34: #{momo_tzuyu_forward.1} parent=11 // pred_check_branch
          %1158 = sbr.rel (%p1156) target = $region36
        $region35: #{momo_tzuyu_forward.1} parent=11 // pred_region
          _
        $region36: #{momo_tzuyu_forward.1} parent=11 // pred_fallthru
          _
        // Predicated region
        $region37: #{momo_tzuyu_forward.1} parent=11 // pred_check
          %p1159 = pneg %p281
        $region38: #{momo_tzuyu_forward.1} parent=11 // pred_check_branch
          %1161 = sbr.rel (%p1159) target = $region40
        $region39: #{momo_tzuyu_forward.1} parent=11 // pred_region
          _
        $region40: #{momo_tzuyu_forward.1} parent=11 // pred_fallthru
          _
        // Predicated region
        $region41: #{momo_tzuyu_forward.1} parent=11 // pred_check
          %p1162 = pneg %p302
        $region42: #{momo_tzuyu_forward.1} parent=11 // pred_check_branch
          %1164 = sbr.rel (%p1162) target = $region44
        $region43: #{momo_tzuyu_forward.1} parent=11 // pred_region
          _
        $region44: #{momo_tzuyu_forward.1} parent=11 // pred_fallthru
          _
        // Predicated region
        $region45: #{momo_tzuyu_forward.1} parent=11 // pred_check
          %p1165 = pneg %p323
        $region46: #{momo_tzuyu_forward.1} parent=11 // pred_check_branch
          %1167 = sbr.rel (%p1165) target = $region48
        $region47: #{momo_tzuyu_forward.1} parent=11 // pred_region
          _
        $region48: #{momo_tzuyu_forward.1} parent=11 // pred_fallthru
          _
        // Predicated region
        $region49: #{momo_tzuyu_forward.1} parent=11 // pred_check
          %p1168 = pneg %p344
        $region50: #{momo_tzuyu_forward.1} parent=11 // pred_check_branch
          %1170 = sbr.rel (%p1168) target = $region52
        $region51: #{momo_tzuyu_forward.1} parent=11 // pred_region
          _
        $region52: #{momo_tzuyu_forward.1} parent=11 // pred_fallthru
          _
        // Predicated region
        $region53: #{momo_tzuyu_forward.1} parent=11 // pred_check
          %p1171 = pneg %p365
        $region54: #{momo_tzuyu_forward.1} parent=11 // pred_check_branch
          %1173 = sbr.rel (%p1171) target = $region56
        $region55: #{momo_tzuyu_forward.1} parent=11 // pred_region
          _
        $region56: #{momo_tzuyu_forward.1} parent=11 // pred_fallthru
          _
        // Predicated region
        $region57: #{momo_tzuyu_forward.1} parent=11 // pred_check
          %p1174 = pneg %p386
        $region58: #{momo_tzuyu_forward.1} parent=11 // pred_check_branch
          %1176 = sbr.rel (%p1174) target = $region60
        $region59: #{momo_tzuyu_forward.1} parent=11 // pred_region
          _
        $region60: #{momo_tzuyu_forward.1} parent=11 // pred_fallthru
          _
        // Predicated region
        $region61: #{momo_tzuyu_forward.1} parent=11 // pred_check
          %p1177 = pneg %p407
        $region62: #{momo_tzuyu_forward.1} parent=11 // pred_check_branch
          %1179 = sbr.rel (%p1177) target = $region64
        $region63: #{momo_tzuyu_forward.1} parent=11 // pred_region
          _
        $region64: #{momo_tzuyu_forward.1} parent=11 // pred_fallthru
          _
        // Predicated region
        $region65: #{momo_tzuyu_forward.1} parent=11 // pred_check
          %p1180 = pneg %p428
        $region66: #{momo_tzuyu_forward.1} parent=11 // pred_check_branch
          %1182 = sbr.rel (%p1180) target = $region68
        $region67: #{momo_tzuyu_forward.1} parent=11 // pred_region
          _
        $region68: #{momo_tzuyu_forward.1} parent=11 // pred_fallthru
          _
        // Predicated region
        $region69: #{momo_tzuyu_forward.1} parent=11 // pred_check
          %p1183 = pneg %p449
        $region70: #{momo_tzuyu_forward.1} parent=11 // pred_check_branch
          %1185 = sbr.rel (%p1183) target = $region72
        $region71: #{momo_tzuyu_forward.1} parent=11 // pred_region
          _
        $region72: #{momo_tzuyu_forward.1} parent=11 // pred_fallthru
          _
        // Predicated region
        $region73: #{momo_tzuyu_forward.1} parent=11 // pred_check
          %p1186 = pneg %p470
        $region74: #{momo_tzuyu_forward.1} parent=11 // pred_check_branch
          %1188 = sbr.rel (%p1186) target = $region76
        $region75: #{momo_tzuyu_forward.1} parent=11 // pred_region
          _
        $region76: #{momo_tzuyu_forward.1} parent=11 // pred_fallthru
          _
        // Predicated region
        $region77: #{momo_tzuyu_forward.1} parent=11 // pred_check
          %p1189 = pneg %p491
        $region78: #{momo_tzuyu_forward.1} parent=11 // pred_check_branch
          %1191 = sbr.rel (%p1189) target = $region80
        $region79: #{momo_tzuyu_forward.1} parent=11 // pred_region
          _
        $region80: #{momo_tzuyu_forward.1} parent=11 // pred_fallthru
          _
        // Predicated region
        $region81: #{momo_tzuyu_forward.1} parent=11 // pred_check
          %p1192 = pneg %p512
        $region82: #{momo_tzuyu_forward.1} parent=11 // pred_check_branch
          %1194 = sbr.rel (%p1192) target = $region84
        $region83: #{momo_tzuyu_forward.1} parent=11 // pred_region
          _
        $region84: #{momo_tzuyu_forward.1} parent=11 // pred_fallthru
          _
        // Predicated region
        $region85: #{momo_tzuyu_forward.1} parent=11 // pred_check
          %p1195 = pneg %p533
        $region86: #{momo_tzuyu_forward.1} parent=11 // pred_check_branch
          %1197 = sbr.rel (%p1195) target = $region88
        $region87: #{momo_tzuyu_forward.1} parent=11 // pred_region
          _
        $region88: #{momo_tzuyu_forward.1} parent=11 // pred_fallthru
          _
        // Predicated region
        $region89: #{momo_tzuyu_forward.1} parent=11 // pred_check
          %p1198 = pneg %p554
        $region90: #{momo_tzuyu_forward.1} parent=11 // pred_check_branch
          %1200 = sbr.rel (%p1198) target = $region92
        $region91: #{momo_tzuyu_forward.1} parent=11 // pred_region
          _
        $region92: #{momo_tzuyu_forward.1} parent=11 // pred_fallthru
          _
        // Predicated region
        $region93: #{momo_tzuyu_forward.1} parent=11 // pred_check
          %p1201 = pneg %p575
        $region94: #{momo_tzuyu_forward.1} parent=11 // pred_check_branch
          %1203 = sbr.rel (%p1201) target = $region96
        $region95: #{momo_tzuyu_forward.1} parent=11 // pred_region
          _
        $region96: #{momo_tzuyu_forward.1} parent=11 // pred_fallthru
          _
        // Predicated region
        $region97: #{momo_tzuyu_forward.1} parent=11 // pred_check
          %p1204 = pneg %p596
        $region98: #{momo_tzuyu_forward.1} parent=11 // pred_check_branch
          %1206 = sbr.rel (%p1204) target = $region100
        $region99: #{momo_tzuyu_forward.1} parent=11 // pred_region
          _
        $region100: #{momo_tzuyu_forward.1} parent=11 // pred_fallthru
          _
        // Predicated region
        $region101: #{momo_tzuyu_forward.1} parent=11 // pred_check
          %p1207 = pneg %p617
        $region102: #{momo_tzuyu_forward.1} parent=11 // pred_check_branch
          %1209 = sbr.rel (%p1207) target = $region104
        $region103: #{momo_tzuyu_forward.1} parent=11 // pred_region
          _
        $region104: #{momo_tzuyu_forward.1} parent=11 // pred_fallthru
          _
        // Predicated region
        $region105: #{momo_tzuyu_forward.1} parent=11 // pred_check
          %p1210 = pneg %p638
        $region106: #{momo_tzuyu_forward.1} parent=11 // pred_check_branch
          %1212 = sbr.rel (%p1210) target = $region108
        $region107: #{momo_tzuyu_forward.1} parent=11 // pred_region
          _
        $region108: #{momo_tzuyu_forward.1} parent=11 // pred_fallthru
          _
        // Predicated region
        $region109: #{momo_tzuyu_forward.1} parent=11 // pred_check
          %p1213 = pneg %p659
        $region110: #{momo_tzuyu_forward.1} parent=11 // pred_check_branch
          %1215 = sbr.rel (%p1213) target = $region112
        $region111: #{momo_tzuyu_forward.1} parent=11 // pred_region
          _
        $region112: #{momo_tzuyu_forward.1} parent=11 // pred_fallthru
          _
        // Predicated region
        $region113: #{momo_tzuyu_forward.1} parent=11 // pred_check
          %p1216 = pneg %p680
        $region114: #{momo_tzuyu_forward.1} parent=11 // pred_check_branch
          %1218 = sbr.rel (%p1216) target = $region116
        $region115: #{momo_tzuyu_forward.1} parent=11 // pred_region
          _
        $region116: #{momo_tzuyu_forward.1} parent=11 // pred_fallthru
          _
        // Predicated region
        $region117: #{momo_tzuyu_forward.1} parent=11 // pred_check
          %p1219 = pneg %p701
        $region118: #{momo_tzuyu_forward.1} parent=11 // pred_check_branch
          %1221 = sbr.rel (%p1219) target = $region120
        $region119: #{momo_tzuyu_forward.1} parent=11 // pred_region
          _
        $region120: #{momo_tzuyu_forward.1} parent=11 // pred_fallthru
          _
        // Predicated region
        $region121: #{momo_tzuyu_forward.1} parent=11 // pred_check
          %p1222 = pneg %p722
        $region122: #{momo_tzuyu_forward.1} parent=11 // pred_check_branch
          %1224 = sbr.rel (%p1222) target = $region124
        $region123: #{momo_tzuyu_forward.1} parent=11 // pred_region
          _
        $region124: #{momo_tzuyu_forward.1} parent=11 // pred_fallthru
          _
        // Predicated region
        $region125: #{momo_tzuyu_forward.1} parent=11 // pred_check
          %p1225 = pneg %p743
        $region126: #{momo_tzuyu_forward.1} parent=11 // pred_check_branch
          %1227 = sbr.rel (%p1225) target = $region128
        $region127: #{momo_tzuyu_forward.1} parent=11 // pred_region
          _
        $region128: #{momo_tzuyu_forward.1} parent=11 // pred_fallthru
          _
        // Predicated region
        $region129: #{momo_tzuyu_forward.1} parent=11 // pred_check
          %p1228 = pneg %p764
        $region130: #{momo_tzuyu_forward.1} parent=11 // pred_check_branch
          %1230 = sbr.rel (%p1228) target = $region132
        $region131: #{momo_tzuyu_forward.1} parent=11 // pred_region
          _
        $region132: #{momo_tzuyu_forward.1} parent=11 // pred_fallthru
          _
        // Predicated region
        $region133: #{momo_tzuyu_forward.1} parent=11 // pred_check
          %p1231 = pneg %p785
        $region134: #{momo_tzuyu_forward.1} parent=11 // pred_check_branch
          %1233 = sbr.rel (%p1231) target = $region136
        $region135: #{momo_tzuyu_forward.1} parent=11 // pred_region
          _
        $region136: #{momo_tzuyu_forward.1} parent=11 // pred_fallthru
          _
        // Predicated region
        $region137: #{momo_tzuyu_forward.1} parent=11 // pred_check
          %p1234 = pneg %p806
        $region138: #{momo_tzuyu_forward.1} parent=11 // pred_check_branch
          %1236 = sbr.rel (%p1234) target = $region140
        $region139: #{momo_tzuyu_forward.1} parent=11 // pred_region
          _
        $region140: #{momo_tzuyu_forward.1} parent=11 // pred_fallthru
          _
        // Predicated region
        $region141: #{momo_tzuyu_forward.1} parent=11 // pred_check
          %p1237 = pneg %p827
        $region142: #{momo_tzuyu_forward.1} parent=11 // pred_check_branch
          %1239 = sbr.rel (%p1237) target = $region144
        $region143: #{momo_tzuyu_forward.1} parent=11 // pred_region
          _
        $region144: #{momo_tzuyu_forward.1} parent=11 // pred_fallthru
          _
        // Predicated region
        $region145: #{momo_tzuyu_forward.1} parent=11 // pred_check
          %p1240 = pneg %p848
        $region146: #{momo_tzuyu_forward.1} parent=11 // pred_check_branch
          %1242 = sbr.rel (%p1240) target = $region148
        $region147: #{momo_tzuyu_forward.1} parent=11 // pred_region
          _
        $region148: #{momo_tzuyu_forward.1} parent=11 // pred_fallthru
          _
        // Predicated region
        $region149: #{momo_tzuyu_forward.1} parent=11 // pred_check
          %p1243 = pneg %p869
        $region150: #{momo_tzuyu_forward.1} parent=11 // pred_check_branch
          %1245 = sbr.rel (%p1243) target = $region152
        $region151: #{momo_tzuyu_forward.1} parent=11 // pred_region
          _
        $region152: #{momo_tzuyu_forward.1} parent=11 // pred_fallthru
          _
        // Predicated region
        $region153: #{momo_tzuyu_forward.1} parent=11 // pred_check
          %p1246 = pneg %p890
        $region154: #{momo_tzuyu_forward.1} parent=11 // pred_check_branch
          %1248 = sbr.rel (%p1246) target = $region156
        $region155: #{momo_tzuyu_forward.1} parent=11 // pred_region
          %s1250 = ssub.s32 16, 16
          %1251 = vsyncadd [#allocation3], %s1250
          %s1253 = sshll.u32 [#allocation2], 4
          %s1254 = int_to_ptr.vmem [resolvable:$true] %s1253
          %1256 = dma.hbm_to_vmem [thread:$0]  %s73, 16, %s1254, [#allocation3]
        $region156: #{momo_tzuyu_forward.1} parent=11 // pred_fallthru
          _
        // Predicated region
        $region157: #{momo_tzuyu_forward.1} parent=11 // pred_check
          %p1257 = pneg %p911
        $region158: #{momo_tzuyu_forward.1} parent=11 // pred_check_branch
          %1259 = sbr.rel (%p1257) target = $region160
        $region159: #{momo_tzuyu_forward.1} parent=11 // pred_region
          %s1261 = ssub.s32 16, 16
          %1262 = vsyncadd [#allocation6], %s1261
          %s1264 = sshll.u32 [#allocation5], 4
          %s1265 = int_to_ptr.vmem [resolvable:$true] %s1264
          %1267 = dma.hbm_to_vmem [thread:$0]  %s75, 16, %s1265, [#allocation6]
        $region160: #{momo_tzuyu_forward.1} parent=11 // pred_fallthru
          _
        // Predicated region
        $region161: #{momo_tzuyu_forward.1} parent=11 // pred_check
          %p1268 = pneg %p932
        $region162: #{momo_tzuyu_forward.1} parent=11 // pred_check_branch
          %1270 = sbr.rel (%p1268) target = $region164
        $region163: #{momo_tzuyu_forward.1} parent=11 // pred_region
          %s1272 = ssub.s32 16, 16
          %1273 = vsyncadd [#allocation6], %s1272
          %s1275 = sshll.u32 [#allocation7], 4
          %s1276 = int_to_ptr.vmem [resolvable:$true] %s1275
          %1278 = dma.hbm_to_vmem [thread:$0]  %s77, 16, %s1276, [#allocation6]
        $region164: #{momo_tzuyu_forward.1} parent=11 // pred_fallthru
          _
        // Predicated region
        $region165: #{momo_tzuyu_forward.1} parent=11 // pred_check
          %p1279 = pneg %p953
        $region166: #{momo_tzuyu_forward.1} parent=11 // pred_check_branch
          %1281 = sbr.rel (%p1279) target = $region168
        $region167: #{momo_tzuyu_forward.1} parent=11 // pred_region
          %s1283 = ssub.s32 16, 16
          %1284 = vsyncadd [#allocation9], %s1283
          %s1286 = sshll.u32 [#allocation8], 4
          %s1287 = int_to_ptr.vmem [resolvable:$true] %s1286
          %1289 = dma.hbm_to_vmem [thread:$0]  %s79, 16, %s1287, [#allocation9]
        $region168: #{momo_tzuyu_forward.1} parent=11 // pred_fallthru
          _
        // Predicated region
        $region169: #{momo_tzuyu_forward.1} parent=11 // pred_check
          %p1290 = pneg %p974
        $region170: #{momo_tzuyu_forward.1} parent=11 // pred_check_branch
          %1292 = sbr.rel (%p1290) target = $region172
        $region171: #{momo_tzuyu_forward.1} parent=11 // pred_region
          %s1294 = ssub.s32 16, 16
          %1295 = vsyncadd [#allocation9], %s1294
          %s1297 = sshll.u32 [#allocation10], 4
          %s1298 = int_to_ptr.vmem [resolvable:$true] %s1297
          %1300 = dma.hbm_to_vmem [thread:$0]  %s81, 16, %s1298, [#allocation9]
        $region172: #{momo_tzuyu_forward.1} parent=11 // pred_fallthru
          _
        // Predicated region
        $region173: #{momo_tzuyu_forward.1} parent=11 // pred_check
          %p1301 = pneg %p995
        $region174: #{momo_tzuyu_forward.1} parent=11 // pred_check_branch
          %1303 = sbr.rel (%p1301) target = $region176
        $region175: #{momo_tzuyu_forward.1} parent=11 // pred_region
          _
        $region176: #{momo_tzuyu_forward.1} parent=11 // pred_fallthru
          _
        // Predicated region
        $region177: #{momo_tzuyu_forward.1} parent=11 // pred_check
          %p1304 = pneg %p1016
        $region178: #{momo_tzuyu_forward.1} parent=11 // pred_check_branch
          %1306 = sbr.rel (%p1304) target = $region180
        $region179: #{momo_tzuyu_forward.1} parent=11 // pred_region
          _
        $region180: #{momo_tzuyu_forward.1} parent=11 // pred_fallthru
          _
        // Predicated region
        $region181: #{momo_tzuyu_forward.1} parent=11 // pred_check
          %p1307 = pneg %p1037
        $region182: #{momo_tzuyu_forward.1} parent=11 // pred_check_branch
          %1309 = sbr.rel (%p1307) target = $region184
        $region183: #{momo_tzuyu_forward.1} parent=11 // pred_region
          _
        $region184: #{momo_tzuyu_forward.1} parent=11 // pred_fallthru
          _
        // Predicated region
        $region185: #{momo_tzuyu_forward.1} parent=11 // pred_check
          %p1310 = pneg %p1058
        $region186: #{momo_tzuyu_forward.1} parent=11 // pred_check_branch
          %1312 = sbr.rel (%p1310) target = $region188
        $region187: #{momo_tzuyu_forward.1} parent=11 // pred_region
          _
        $region188: #{momo_tzuyu_forward.1} parent=11 // pred_fallthru
          _
        // Predicated region
        $region189: #{momo_tzuyu_forward.1} parent=11 // pred_check
          %p1313 = pneg %p1079
        $region190: #{momo_tzuyu_forward.1} parent=11 // pred_check_branch
          %1315 = sbr.rel (%p1313) target = $region192
        $region191: #{momo_tzuyu_forward.1} parent=11 // pred_region
          %s1317 = ssub.s32 16, 16
          %1318 = vsyncadd [#allocation12], %s1317
          %s1320 = sshll.u32 [#allocation11], 4
          %s1321 = int_to_ptr.vmem [resolvable:$true] %s1320
          %1323 = dma.hbm_to_vmem [thread:$0]  %s91, 16, %s1321, [#allocation12]
        $region192: #{momo_tzuyu_forward.1} parent=11 // pred_fallthru
          _
        // Predicated region
        $region193: #{momo_tzuyu_forward.1} parent=11 // pred_check
          %p1324 = pneg %p1100
        $region194: #{momo_tzuyu_forward.1} parent=11 // pred_check_branch
          %1326 = sbr.rel (%p1324) target = $region196
        $region195: #{momo_tzuyu_forward.1} parent=11 // pred_region
          _
        $region196: #{momo_tzuyu_forward.1} parent=11 // pred_fallthru
          _
      $region12: #{momo_tzuyu_forward.1} parent=5 // pred_fallthru
        _
      %p1327 = scmp.lt.s32.totalorder %s108, 2
      // Predicated region
      $region197: #{momo_tzuyu_forward.1} parent=5 // pred_check
        %p1328 = pneg %p1327
      $region198: #{momo_tzuyu_forward.1} parent=5 // pred_check_branch
        %1330 = sbr.rel (%p1328) target = $region200
      $region199: #{momo_tzuyu_forward.1} parent=5 // pred_region
        // Predicated region
        $region201: #{momo_tzuyu_forward.1} parent=199 // pred_check
          %p1331 = pneg %p128
        $region202: #{momo_tzuyu_forward.1} parent=199 // pred_check_branch
          %1333 = sbr.rel (%p1331) target = $region204
        $region203: #{momo_tzuyu_forward.1} parent=199 // pred_region
          %p1334 = scmp.lt.s32.totalorder %s108, 1
          %s1335 = scalar_select %p1334, %s108, 1
          %s1336 = smul.addr %s1335, 8
          %s1337 = scalar_lea.vmem %s1, %s1336
        $region204: #{momo_tzuyu_forward.1} parent=199 // pred_fallthru
          _
      $region200: #{momo_tzuyu_forward.1} parent=5 // pred_fallthru
        _
      %p1338 = scmp.le.s32.totalorder 1, %s108
      %p1339 = scmp.lt.s32.totalorder %s108, 3
      %p1340 = pnand %p1338, %p1339
      %p1341 = pneg %p1340
      // Predicated region
      $region205: #{momo_tzuyu_forward.1} parent=5 // pred_check
        _
      $region206: #{momo_tzuyu_forward.1} parent=5 // pred_check_branch
        %1343 = sbr.rel (%p1340) target = $region208
      $region207: #{momo_tzuyu_forward.1} parent=5 // pred_region
        %s1344 = ssub.s32 %s108, 1
        // Predicated region
        $region209: #{momo_tzuyu_forward.1} parent=207 // pred_check
          %p1345 = pneg %p890
        $region210: #{momo_tzuyu_forward.1} parent=207 // pred_check_branch
          %1347 = sbr.rel (%p1345) target = $region212
        $region211: #{momo_tzuyu_forward.1} parent=207 // pred_region
          %1348 = dma.done [#allocation3], 16
        $region212: #{momo_tzuyu_forward.1} parent=207 // pred_fallthru
          _
        // Predicated region
        $region213: #{momo_tzuyu_forward.1} parent=207 // pred_check
          %p1349 = pneg %p911
        $region214: #{momo_tzuyu_forward.1} parent=207 // pred_check_branch
          %1351 = sbr.rel (%p1349) target = $region216
        $region215: #{momo_tzuyu_forward.1} parent=207 // pred_region
          %1352 = dma.done [#allocation6], 16
        $region216: #{momo_tzuyu_forward.1} parent=207 // pred_fallthru
          _
        // Predicated region
        $region217: #{momo_tzuyu_forward.1} parent=207 // pred_check
          %p1353 = pneg %p932
        $region218: #{momo_tzuyu_forward.1} parent=207 // pred_check_branch
          %1355 = sbr.rel (%p1353) target = $region220
        $region219: #{momo_tzuyu_forward.1} parent=207 // pred_region
          %1356 = dma.done [#allocation6], 16
        $region220: #{momo_tzuyu_forward.1} parent=207 // pred_fallthru
          _
        // Predicated region
        $region221: #{momo_tzuyu_forward.1} parent=207 // pred_check
          %p1357 = pneg %p953
        $region222: #{momo_tzuyu_forward.1} parent=207 // pred_check_branch
          %1359 = sbr.rel (%p1357) target = $region224
        $region223: #{momo_tzuyu_forward.1} parent=207 // pred_region
          %1360 = dma.done [#allocation9], 16
        $region224: #{momo_tzuyu_forward.1} parent=207 // pred_fallthru
          _
        // Predicated region
        $region225: #{momo_tzuyu_forward.1} parent=207 // pred_check
          %p1361 = pneg %p974
        $region226: #{momo_tzuyu_forward.1} parent=207 // pred_check_branch
          %1363 = sbr.rel (%p1361) target = $region228
        $region227: #{momo_tzuyu_forward.1} parent=207 // pred_region
          %1364 = dma.done [#allocation9], 16
        $region228: #{momo_tzuyu_forward.1} parent=207 // pred_fallthru
          _
        // Predicated region
        $region229: #{momo_tzuyu_forward.1} parent=207 // pred_check
          %p1365 = pneg %p1079
        $region230: #{momo_tzuyu_forward.1} parent=207 // pred_check_branch
          %1367 = sbr.rel (%p1365) target = $region232
        $region231: #{momo_tzuyu_forward.1} parent=207 // pred_region
          %1368 = dma.done [#allocation12], 16
        $region232: #{momo_tzuyu_forward.1} parent=207 // pred_fallthru
          _
        %p1369 = scmp.lt.s32.totalorder %s113, 1
        %s1370 = scalar_select %p1369, %s113, 1
        %s1371 = smul.addr %s1370, 8
        %s1372 = scalar_lea.vmem %s1, %s1371
        %p1373 = pneg %p134
        %p1374 = pneg %p131
        %p1375 = pneg %p155
        %p1376 = pneg %p152
        %p1377 = pneg %p176
        %p1378 = pneg %p173
        %p1379 = pneg %p197
        %p1380 = pneg %p194
        %p1381 = pneg %p218
        %p1382 = pneg %p215
        %p1383 = pneg %p239
        %p1384 = pneg %p236
        %p1385 = pneg %p260
        %p1386 = pneg %p257
        %p1387 = pneg %p281
        %p1388 = pneg %p278
        %p1389 = pneg %p302
        %p1390 = pneg %p299
        %p1391 = pneg %p323
        %p1392 = pneg %p320
        %p1393 = pneg %p344
        %p1394 = pneg %p341
        %p1395 = pneg %p365
        %p1396 = pneg %p362
        %p1397 = pneg %p386
        %p1398 = pneg %p383
        %p1399 = pneg %p407
        %p1400 = pneg %p404
        %p1401 = pneg %p428
        %p1402 = pneg %p425
        %p1403 = pneg %p449
        %p1404 = pneg %p446
        %p1405 = pneg %p470
        %p1406 = pneg %p467
        %p1407 = pneg %p491
        %p1408 = pneg %p488
        %p1409 = pneg %p512
        %p1410 = pneg %p509
        %p1411 = pneg %p533
        %p1412 = pneg %p530
        %p1413 = pneg %p554
        %p1414 = pneg %p551
        %p1415 = pneg %p575
        %p1416 = pneg %p572
        %p1417 = pneg %p596
        %p1418 = pneg %p593
        %p1419 = pneg %p617
        %p1420 = pneg %p614
        %p1421 = pneg %p638
        %p1422 = pneg %p635
        %p1423 = pneg %p659
        %p1424 = pneg %p656
        %p1425 = pneg %p680
        %p1426 = pneg %p677
        %p1427 = pneg %p701
        %p1428 = pneg %p698
        %p1429 = pneg %p722
        %p1430 = pneg %p719
        %p1431 = pneg %p743
        %p1432 = pneg %p740
        %p1433 = pneg %p764
        %p1434 = pneg %p761
        %p1435 = pneg %p785
        %p1436 = pneg %p782
        %p1437 = pneg %p806
        %p1438 = pneg %p803
        %p1439 = pneg %p827
        %p1440 = pneg %p824
        %p1441 = pneg %p848
        %p1442 = pneg %p845
        %p1443 = pneg %p869
        %p1444 = pneg %p866
        %p1445 = pneg %p890
        %p1446 = pneg %p887
        %p1447 = pneg %p911
        %p1448 = pneg %p908
        %p1449 = pneg %p932
        %p1450 = pneg %p929
        %p1451 = pneg %p953
        %p1452 = pneg %p950
        %p1453 = pneg %p974
        %p1454 = pneg %p971
        %p1455 = pneg %p995
        %p1456 = pneg %p992
        %p1457 = pneg %p1016
        %p1458 = pneg %p1013
        %p1459 = pneg %p1037
        %p1460 = pneg %p1034
        %p1461 = pneg %p1058
        %p1462 = pneg %p1055
        %p1463 = pneg %p1079
        %p1464 = pneg %p1076
        %p1465 = pneg %p1100
        %p1466 = pneg %p1097
        %p1467 = pneg %p1126
        %p1468 = pneg %p1123
        %s1469 = sand.u32 %s1113, 1
        %s1470 = scalar_lea.sflag [#allocation4], %s1469
        %s1471 = sand.u32 %s1113, 1
        %s1472 = scalar_lea.vmem [#allocation13], %s1471
        %p1473 = scmp.lt.s32.totalorder %s113, 1
        %s1474 = scalar_select %p1473, %s113, 1
        %s1475 = smul.addr %s1474, 8
        %s1476 = scalar_lea.vmem %s1, %s1475
        %v1477 = vld [vmem:[%s1476] sm:$0xff]
        %v1478 = vld [vmem:[%s93] sm:$0xff]
        %v1479 = vld [vmem:[%s93 + $0x8] sm:$0xff]
        %v1480 = vld [vmem:[#allocation11] sm:$0x1]
        %v1482 = vlaneseq
        %v1483 = vshrl.u32 %v1482, 7
        %v1484 = vsub.s32 0, %v1483
        %v1485 = vrot.slane %v1480, %v1484
        %vm1487 = vcmask 130048
        %v1489 = vsel %vm1487, %v1477, 0
        %1491 = vmatprep.subr.mxu0 0.0
        %1492 = vmatpush1.msra.mxu0 0.0
        %1493 = vmatprep.subr.mxu0 0.0
        %1494 = vmatpush1.msra.mxu0 0.0
        %1495 = vmatprep.subr.mxu0 0.0
        %1496 = vmatpush1.msra.mxu0 0.0
        %1497 = vmatprep.subr.mxu0 0.0
        %1498 = vmatpush1.msra.mxu0 0.0
        %1499 = vmatprep.subr.mxu0 0.0
        %1500 = vmatpush1.msra.mxu0 0.0
        %1501 = vmatprep.subr.mxu0 0.0
        %1502 = vmatpush1.msra.mxu0 0.0
        %1503 = vmatprep.subr.mxu0 0.0
        %1504 = vmatpush1.msra.mxu0 0.0
        %1505 = vmatprep.subr.mxu0 0.0
        %1506 = vmatpush1.msra.mxu0 0.0
        %1507 = vmatprep.subr.mxu0 0.0
        %1508 = vmatpush1.msra.mxu0 0.0
        %1509 = vmatprep.subr.mxu0 0.0
        %1510 = vmatpush1.msra.mxu0 0.0
        %1511 = vmatprep.subr.mxu0 0.0
        %1512 = vmatpush1.msra.mxu0 0.0
        %1513 = vmatprep.subr.mxu0 0.0
        %1514 = vmatpush1.msra.mxu0 0.0
        %1515 = vmatprep.subr.mxu0 0.0
        %1516 = vmatpush1.msra.mxu0 0.0
        %1517 = vmatprep.subr.mxu0 0.0
        %1518 = vmatpush1.msra.mxu0 0.0
        %1519 = vmatprep.subr.mxu0 0.0
        %1520 = vmatpush1.msra.mxu0 %v1479
        %1521 = vmatprep.subr.mxu0 0.0
        %1522 = vmatpush1.msra.mxu0 %v1478
        %1523 = vmatprep.subr.mxu0 0.0
        %1524 = vmatpush2.msra.mxu0 0.0
        %1525 = vmatprep.subr.mxu0 0.0
        %1526 = vmatpush2.msra.mxu0 0.0
        %1527 = vmatprep.subr.mxu0 0.0
        %1528 = vmatpush2.msra.mxu0 0.0
        %1529 = vmatprep.subr.mxu0 0.0
        %1530 = vmatpush2.msra.mxu0 0.0
        %1531 = vmatprep.subr.mxu0 0.0
        %1532 = vmatpush2.msra.mxu0 0.0
        %1533 = vmatprep.subr.mxu0 0.0
        %1534 = vmatpush2.msra.mxu0 0.0
        %1535 = vmatprep.subr.mxu0 0.0
        %1536 = vmatpush2.msra.mxu0 0.0
        %1537 = vmatprep.subr.mxu0 0.0
        %1538 = vmatpush2.msra.mxu0 0.0
        %1539 = vmatprep.subr.mxu0 0.0
        %1540 = vmatpush2.msra.mxu0 0.0
        %1541 = vmatprep.subr.mxu0 0.0
        %1542 = vmatpush2.msra.mxu0 0.0
        %1543 = vmatprep.subr.mxu0 0.0
        %1544 = vmatpush2.msra.mxu0 0.0
        %1545 = vmatprep.subr.mxu0 0.0
        %1546 = vmatpush2.msra.mxu0 0.0
        %1547 = vmatprep.subr.mxu0 0.0
        %1548 = vmatpush2.msra.mxu0 0.0
        %1549 = vmatprep.subr.mxu0 0.0
        %1550 = vmatpush2.msra.mxu0 0.0
        %1551 = vmatprep.subr.mxu0 0.0
        %1552 = vmatpush2.msra.mxu0 0.0
        %1553 = vmatprep.subr.mxu0 0.0
        %1554 = vmatpush2.msra.mxu0 0.0
        %1555 = vmatprep.mubr.f32.mxu0 0.0
        %1556 = vmatmul.mubr.f32.gmra.mxu0 %v1489
        %v1557 = vpop.f32.mrf.mxu0
        %v1558 = vadd.f32 %v1485, %v1557
        %v1559 = vpop.f32.mrf.mxu0
        %1560 = vdwg.mxu0
        %v1561 = vsub.f32 0.0, %v1558
        %v1562 = vmul.f32 %v1561, 1.442695
        %v1563 = vpow.pop %v1562
        %v1564 = vadd.f32 %v1563, 1.0
        %v1565 = vrcp.pop %v1564
        %v1566 = vld [vmem:[%s65] sm:$0xff]
        %v1567 = vld [vmem:[%s65 + $0x8] sm:$0xff]
        %v1568 = vld [vmem:[%s65 + $0x10] sm:$0xff]
        %v1569 = vld [vmem:[%s65 + $0x18] sm:$0xff]
        %v1570 = vld [vmem:[%s49] sm:$0x1]
        %v1572 = vlaneseq
        %v1573 = vshrl.u32 %v1572, 7
        %v1574 = vsub.s32 0, %v1573
        %v1575 = vrot.slane %v1570, %v1574
        %vm1577 = vcmask 261120
        %v1579 = vsel %vm1577, %v1565, 0
        %1581 = vmatprep.subr.mxu0 0.0
        %1582 = vmatpush1.msra.mxu0 0.0
        %1583 = vmatprep.subr.mxu0 0.0
        %1584 = vmatpush1.msra.mxu0 0.0
        %1585 = vmatprep.subr.mxu0 0.0
        %1586 = vmatpush1.msra.mxu0 0.0
        %1587 = vmatprep.subr.mxu0 0.0
        %1588 = vmatpush1.msra.mxu0 0.0
        %1589 = vmatprep.subr.mxu0 0.0
        %1590 = vmatpush1.msra.mxu0 0.0
        %1591 = vmatprep.subr.mxu0 0.0
        %1592 = vmatpush1.msra.mxu0 0.0
        %1593 = vmatprep.subr.mxu0 0.0
        %1594 = vmatpush1.msra.mxu0 0.0
        %1595 = vmatprep.subr.mxu0 0.0
        %1596 = vmatpush1.msra.mxu0 0.0
        %1597 = vmatprep.subr.mxu0 0.0
        %1598 = vmatpush1.msra.mxu0 0.0
        %1599 = vmatprep.subr.mxu0 0.0
        %1600 = vmatpush1.msra.mxu0 0.0
        %1601 = vmatprep.subr.mxu0 0.0
        %1602 = vmatpush1.msra.mxu0 0.0
        %1603 = vmatprep.subr.mxu0 0.0
        %1604 = vmatpush1.msra.mxu0 0.0
        %1605 = vmatprep.subr.mxu0 0.0
        %1606 = vmatpush1.msra.mxu0 %v1569
        %1607 = vmatprep.subr.mxu0 0.0
        %1608 = vmatpush1.msra.mxu0 %v1568
        %1609 = vmatprep.subr.mxu0 0.0
        %1610 = vmatpush1.msra.mxu0 %v1567
        %1611 = vmatprep.subr.mxu0 0.0
        %1612 = vmatpush1.msra.mxu0 %v1566
        %1613 = vmatprep.subr.mxu0 0.0
        %1614 = vmatpush2.msra.mxu0 0.0
        %1615 = vmatprep.subr.mxu0 0.0
        %1616 = vmatpush2.msra.mxu0 0.0
        %1617 = vmatprep.subr.mxu0 0.0
        %1618 = vmatpush2.msra.mxu0 0.0
        %1619 = vmatprep.subr.mxu0 0.0
        %1620 = vmatpush2.msra.mxu0 0.0
        %1621 = vmatprep.subr.mxu0 0.0
        %1622 = vmatpush2.msra.mxu0 0.0
        %1623 = vmatprep.subr.mxu0 0.0
        %1624 = vmatpush2.msra.mxu0 0.0
        %1625 = vmatprep.subr.mxu0 0.0
        %1626 = vmatpush2.msra.mxu0 0.0
        %1627 = vmatprep.subr.mxu0 0.0
        %1628 = vmatpush2.msra.mxu0 0.0
        %1629 = vmatprep.subr.mxu0 0.0
        %1630 = vmatpush2.msra.mxu0 0.0
        %1631 = vmatprep.subr.mxu0 0.0
        %1632 = vmatpush2.msra.mxu0 0.0
        %1633 = vmatprep.subr.mxu0 0.0
        %1634 = vmatpush2.msra.mxu0 0.0
        %1635 = vmatprep.subr.mxu0 0.0
        %1636 = vmatpush2.msra.mxu0 0.0
        %1637 = vmatprep.subr.mxu0 0.0
        %1638 = vmatpush2.msra.mxu0 0.0
        %1639 = vmatprep.subr.mxu0 0.0
        %1640 = vmatpush2.msra.mxu0 0.0
        %1641 = vmatprep.subr.mxu0 0.0
        %1642 = vmatpush2.msra.mxu0 0.0
        %1643 = vmatprep.subr.mxu0 0.0
        %1644 = vmatpush2.msra.mxu0 0.0
        %1645 = vmatprep.mubr.f32.mxu0 0.0
        %1646 = vmatmul.mubr.f32.gmra.mxu0 %v1579
        %v1647 = vpop.f32.mrf.mxu0
        %v1648 = vadd.f32 %v1575, %v1647
        %v1649 = vpop.f32.mrf.mxu0
        %1650 = vdwg.mxu0
        %1652 = vrot.lane.b32.xlu0 %v1648, 96
        %v1653 = vpop.permute.xlu0 %1652
        %vm1654 = vcmask 64512
        %v1655 = vsel %vm1654, %v1648, 0
        %v1657 = vsel %vm1654, %v1653, 0
        %1659 = vmatprep.subr.mxu0 0.0
        %1660 = vmatpush1.xpose.msra.mxu0 0.0
        %1661 = vmatprep.subr.mxu0 0.0
        %1662 = vmatpush1.xpose.msra.mxu0 0.0
        %1663 = vmatprep.subr.mxu0 0.0
        %1664 = vmatpush1.xpose.msra.mxu0 0.0
        %1665 = vmatprep.subr.mxu0 0.0
        %1666 = vmatpush1.xpose.msra.mxu0 0.0
        %1667 = vmatprep.subr.mxu0 0.0
        %1668 = vmatpush1.xpose.msra.mxu0 0.0
        %1669 = vmatprep.subr.mxu0 0.0
        %1670 = vmatpush1.xpose.msra.mxu0 0.0
        %1671 = vmatprep.subr.mxu0 0.0
        %1672 = vmatpush1.xpose.msra.mxu0 0.0
        %1673 = vmatprep.subr.mxu0 0.0
        %1674 = vmatpush1.xpose.msra.mxu0 0.0
        %1675 = vmatprep.subr.mxu0 0.0
        %1676 = vmatpush1.xpose.msra.mxu0 0.0
        %1677 = vmatprep.subr.mxu0 0.0
        %1678 = vmatpush1.xpose.msra.mxu0 0.0
        %1679 = vmatprep.subr.mxu0 0.0
        %1680 = vmatpush1.xpose.msra.mxu0 0.0
        %1681 = vmatprep.subr.mxu0 0.0
        %1682 = vmatpush1.xpose.msra.mxu0 0.0
        %1683 = vmatprep.subr.mxu0 0.0
        %1684 = vmatpush1.xpose.msra.mxu0 0.0
        %1685 = vmatprep.subr.mxu0 0.0
        %1686 = vmatpush1.xpose.msra.mxu0 0.0
        %1687 = vmatprep.subr.mxu0 0.0
        %1688 = vmatpush1.xpose.msra.mxu0 0.0
        %1689 = vmatprep.subr.mxu0 0.0
        %1690 = vmatpush1.xpose.msra.mxu0 %v1657
        %1691 = vmatprep.subr.mxu0 0.0
        %1692 = vmatpush2.xpose.msra.mxu0 0.0
        %1693 = vmatprep.subr.mxu0 0.0
        %1694 = vmatpush2.xpose.msra.mxu0 0.0
        %1695 = vmatprep.subr.mxu0 0.0
        %1696 = vmatpush2.xpose.msra.mxu0 0.0
        %1697 = vmatprep.subr.mxu0 0.0
        %1698 = vmatpush2.xpose.msra.mxu0 0.0
        %1699 = vmatprep.subr.mxu0 0.0
        %1700 = vmatpush2.xpose.msra.mxu0 0.0
        %1701 = vmatprep.subr.mxu0 0.0
        %1702 = vmatpush2.xpose.msra.mxu0 0.0
        %1703 = vmatprep.subr.mxu0 0.0
        %1704 = vmatpush2.xpose.msra.mxu0 0.0
        %1705 = vmatprep.subr.mxu0 0.0
        %1706 = vmatpush2.xpose.msra.mxu0 0.0
        %1707 = vmatprep.subr.mxu0 0.0
        %1708 = vmatpush2.xpose.msra.mxu0 0.0
        %1709 = vmatprep.subr.mxu0 0.0
        %1710 = vmatpush2.xpose.msra.mxu0 0.0
        %1711 = vmatprep.subr.mxu0 0.0
        %1712 = vmatpush2.xpose.msra.mxu0 0.0
        %1713 = vmatprep.subr.mxu0 0.0
        %1714 = vmatpush2.xpose.msra.mxu0 0.0
        %1715 = vmatprep.subr.mxu0 0.0
        %1716 = vmatpush2.xpose.msra.mxu0 0.0
        %1717 = vmatprep.subr.mxu0 0.0
        %1718 = vmatpush2.xpose.msra.mxu0 0.0
        %1719 = vmatprep.subr.mxu0 0.0
        %1720 = vmatpush2.xpose.msra.mxu0 0.0
        %1721 = vmatprep.subr.mxu0 0.0
        %1722 = vmatpush2.xpose.msra.mxu0 0.0
        %1723 = vmatprep.mubr.f32.mxu0 0.0
        %1724 = vmatmul.mubr.f32.gmra.mxu0 %v1655
        %v1725 = vpop.f32.mrf.mxu0
        %v1726 = vadd.f32 0.0, %v1725
        %v1727 = vpop.f32.mrf.mxu0
        %1728 = vdwg.mxu0
        %v1729 = vmul.f32 %v1726, 0.35355338
        %v1730 = vsel %vm1654, %v1729, -inf
        %1731 = vmax.xlane.f32.xlu0 %v1730
        %v1732 = vpop.xlane.xlu0 %1731
        %v1733 = vsub.f32 %v1729, %v1732
        %v1734 = vmul.f32 %v1733, 1.442695
        %v1735 = vpow.pop %v1734
        %v1736 = vsel %vm1654, %v1735, 0.0
        %1737 = vadd.xlane.f32.xlu0 %v1736
        %v1738 = vpop.xlane.xlu0 %1737
        %v1739 = vrcp.pop %v1738
        %v1740 = vmul.f32 %v1735, %v1739
        %1741 = vrot.lane.b32.xlu0 %v1648, 64
        %v1742 = vpop.permute.xlu0 %1741
        %v1745 = vsel %vm1654, %v1740, 0
        %1747 = vmatprep.subr.mxu0 0.0
        %1748 = vmatpush1.msra.mxu0 0.0
        %1749 = vmatprep.subr.mxu0 0.0
        %1750 = vmatpush1.msra.mxu0 0.0
        %1751 = vmatprep.subr.mxu0 0.0
        %1752 = vmatpush1.msra.mxu0 0.0
        %1753 = vmatprep.subr.mxu0 0.0
        %1754 = vmatpush1.msra.mxu0 0.0
        %1755 = vmatprep.subr.mxu0 0.0
        %1756 = vmatpush1.msra.mxu0 0.0
        %1757 = vmatprep.subr.mxu0 0.0
        %1758 = vmatpush1.msra.mxu0 0.0
        %1759 = vmatprep.subr.mxu0 0.0
        %1760 = vmatpush1.msra.mxu0 0.0
        %1761 = vmatprep.subr.mxu0 0.0
        %1762 = vmatpush1.msra.mxu0 0.0
        %1763 = vmatprep.subr.mxu0 0.0
        %1764 = vmatpush1.msra.mxu0 0.0
        %1765 = vmatprep.subr.mxu0 0.0
        %1766 = vmatpush1.msra.mxu0 0.0
        %1767 = vmatprep.subr.mxu0 0.0
        %1768 = vmatpush1.msra.mxu0 0.0
        %1769 = vmatprep.subr.mxu0 0.0
        %1770 = vmatpush1.msra.mxu0 0.0
        %1771 = vmatprep.subr.mxu0 0.0
        %1772 = vmatpush1.msra.mxu0 0.0
        %1773 = vmatprep.subr.mxu0 0.0
        %1774 = vmatpush1.msra.mxu0 0.0
        %1775 = vmatprep.subr.mxu0 0.0
        %1776 = vmatpush1.msra.mxu0 0.0
        %1777 = vmatprep.subr.mxu0 0.0
        %1778 = vmatpush1.msra.mxu0 %v1742
        %1779 = vmatprep.subr.mxu0 0.0
        %1780 = vmatpush2.msra.mxu0 0.0
        %1781 = vmatprep.subr.mxu0 0.0
        %1782 = vmatpush2.msra.mxu0 0.0
        %1783 = vmatprep.subr.mxu0 0.0
        %1784 = vmatpush2.msra.mxu0 0.0
        %1785 = vmatprep.subr.mxu0 0.0
        %1786 = vmatpush2.msra.mxu0 0.0
        %1787 = vmatprep.subr.mxu0 0.0
        %1788 = vmatpush2.msra.mxu0 0.0
        %1789 = vmatprep.subr.mxu0 0.0
        %1790 = vmatpush2.msra.mxu0 0.0
        %1791 = vmatprep.subr.mxu0 0.0
        %1792 = vmatpush2.msra.mxu0 0.0
        %1793 = vmatprep.subr.mxu0 0.0
        %1794 = vmatpush2.msra.mxu0 0.0
        %1795 = vmatprep.subr.mxu0 0.0
        %1796 = vmatpush2.msra.mxu0 0.0
        %1797 = vmatprep.subr.mxu0 0.0
        %1798 = vmatpush2.msra.mxu0 0.0
        %1799 = vmatprep.subr.mxu0 0.0
        %1800 = vmatpush2.msra.mxu0 0.0
        %1801 = vmatprep.subr.mxu0 0.0
        %1802 = vmatpush2.msra.mxu0 0.0
        %1803 = vmatprep.subr.mxu0 0.0
        %1804 = vmatpush2.msra.mxu0 0.0
        %1805 = vmatprep.subr.mxu0 0.0
        %1806 = vmatpush2.msra.mxu0 0.0
        %1807 = vmatprep.subr.mxu0 0.0
        %1808 = vmatpush2.msra.mxu0 0.0
        %1809 = vmatprep.subr.mxu0 0.0
        %1810 = vmatpush2.msra.mxu0 0.0
        %1811 = vmatprep.mubr.f32.mxu0 0.0
        %1812 = vmatmul.mubr.f32.gmra.mxu0 %v1745
        %v1813 = vpop.f32.mrf.mxu0
        %v1814 = vadd.f32 0.0, %v1813
        %v1815 = vpop.f32.mrf.mxu0
        %1816 = vdwg.mxu0
        %1817 = vrot.lane.b32.xlu0 %v1648, 120
        %v1818 = vpop.permute.xlu0 %1817
        %1819 = vrot.lane.b32.xlu0 %v1648, 88
        %v1820 = vpop.permute.xlu0 %1819
        %v1821 = vsel %vm1654, %v1818, 0
        %v1823 = vsel %vm1654, %v1820, 0
        %1825 = vmatprep.subr.mxu0 0.0
        %1826 = vmatpush1.xpose.msra.mxu0 0.0
        %1827 = vmatprep.subr.mxu0 0.0
        %1828 = vmatpush1.xpose.msra.mxu0 0.0
        %1829 = vmatprep.subr.mxu0 0.0
        %1830 = vmatpush1.xpose.msra.mxu0 0.0
        %1831 = vmatprep.subr.mxu0 0.0
        %1832 = vmatpush1.xpose.msra.mxu0 0.0
        %1833 = vmatprep.subr.mxu0 0.0
        %1834 = vmatpush1.xpose.msra.mxu0 0.0
        %1835 = vmatprep.subr.mxu0 0.0
        %1836 = vmatpush1.xpose.msra.mxu0 0.0
        %1837 = vmatprep.subr.mxu0 0.0
        %1838 = vmatpush1.xpose.msra.mxu0 0.0
        %1839 = vmatprep.subr.mxu0 0.0
        %1840 = vmatpush1.xpose.msra.mxu0 0.0
        %1841 = vmatprep.subr.mxu0 0.0
        %1842 = vmatpush1.xpose.msra.mxu0 0.0
        %1843 = vmatprep.subr.mxu0 0.0
        %1844 = vmatpush1.xpose.msra.mxu0 0.0
        %1845 = vmatprep.subr.mxu0 0.0
        %1846 = vmatpush1.xpose.msra.mxu0 0.0
        %1847 = vmatprep.subr.mxu0 0.0
        %1848 = vmatpush1.xpose.msra.mxu0 0.0
        %1849 = vmatprep.subr.mxu0 0.0
        %1850 = vmatpush1.xpose.msra.mxu0 0.0
        %1851 = vmatprep.subr.mxu0 0.0
        %1852 = vmatpush1.xpose.msra.mxu0 0.0
        %1853 = vmatprep.subr.mxu0 0.0
        %1854 = vmatpush1.xpose.msra.mxu0 0.0
        %1855 = vmatprep.subr.mxu0 0.0
        %1856 = vmatpush1.xpose.msra.mxu0 %v1823
        %1857 = vmatprep.subr.mxu0 0.0
        %1858 = vmatpush2.xpose.msra.mxu0 0.0
        %1859 = vmatprep.subr.mxu0 0.0
        %1860 = vmatpush2.xpose.msra.mxu0 0.0
        %1861 = vmatprep.subr.mxu0 0.0
        %1862 = vmatpush2.xpose.msra.mxu0 0.0
        %1863 = vmatprep.subr.mxu0 0.0
        %1864 = vmatpush2.xpose.msra.mxu0 0.0
        %1865 = vmatprep.subr.mxu0 0.0
        %1866 = vmatpush2.xpose.msra.mxu0 0.0
        %1867 = vmatprep.subr.mxu0 0.0
        %1868 = vmatpush2.xpose.msra.mxu0 0.0
        %1869 = vmatprep.subr.mxu0 0.0
        %1870 = vmatpush2.xpose.msra.mxu0 0.0
        %1871 = vmatprep.subr.mxu0 0.0
        %1872 = vmatpush2.xpose.msra.mxu0 0.0
        %1873 = vmatprep.subr.mxu0 0.0
        %1874 = vmatpush2.xpose.msra.mxu0 0.0
        %1875 = vmatprep.subr.mxu0 0.0
        %1876 = vmatpush2.xpose.msra.mxu0 0.0
        %1877 = vmatprep.subr.mxu0 0.0
        %1878 = vmatpush2.xpose.msra.mxu0 0.0
        %1879 = vmatprep.subr.mxu0 0.0
        %1880 = vmatpush2.xpose.msra.mxu0 0.0
        %1881 = vmatprep.subr.mxu0 0.0
        %1882 = vmatpush2.xpose.msra.mxu0 0.0
        %1883 = vmatprep.subr.mxu0 0.0
        %1884 = vmatpush2.xpose.msra.mxu0 0.0
        %1885 = vmatprep.subr.mxu0 0.0
        %1886 = vmatpush2.xpose.msra.mxu0 0.0
        %1887 = vmatprep.subr.mxu0 0.0
        %1888 = vmatpush2.xpose.msra.mxu0 0.0
        %1889 = vmatprep.mubr.f32.mxu0 0.0
        %1890 = vmatmul.mubr.f32.gmra.mxu0 %v1821
        %v1891 = vpop.f32.mrf.mxu0
        %v1892 = vadd.f32 0.0, %v1891
        %v1893 = vpop.f32.mrf.mxu0
        %1894 = vdwg.mxu0
        %v1895 = vmul.f32 %v1892, 0.35355338
        %v1896 = vsel %vm1654, %v1895, -inf
        %1897 = vmax.xlane.f32.xlu0 %v1896
        %v1898 = vpop.xlane.xlu0 %1897
        %v1899 = vsub.f32 %v1895, %v1898
        %v1900 = vmul.f32 %v1899, 1.442695
        %v1901 = vpow.pop %v1900
        %v1902 = vsel %vm1654, %v1901, 0.0
        %1903 = vadd.xlane.f32.xlu0 %v1902
        %v1904 = vpop.xlane.xlu0 %1903
        %v1905 = vrcp.pop %v1904
        %v1906 = vmul.f32 %v1901, %v1905
        %1907 = vrot.lane.b32.xlu0 %v1648, 56
        %v1908 = vpop.permute.xlu0 %1907
        %v1911 = vsel %vm1654, %v1906, 0
        %1913 = vmatprep.subr.mxu0 0.0
        %1914 = vmatpush1.msra.mxu0 0.0
        %1915 = vmatprep.subr.mxu0 0.0
        %1916 = vmatpush1.msra.mxu0 0.0
        %1917 = vmatprep.subr.mxu0 0.0
        %1918 = vmatpush1.msra.mxu0 0.0
        %1919 = vmatprep.subr.mxu0 0.0
        %1920 = vmatpush1.msra.mxu0 0.0
        %1921 = vmatprep.subr.mxu0 0.0
        %1922 = vmatpush1.msra.mxu0 0.0
        %1923 = vmatprep.subr.mxu0 0.0
        %1924 = vmatpush1.msra.mxu0 0.0
        %1925 = vmatprep.subr.mxu0 0.0
        %1926 = vmatpush1.msra.mxu0 0.0
        %1927 = vmatprep.subr.mxu0 0.0
        %1928 = vmatpush1.msra.mxu0 0.0
        %1929 = vmatprep.subr.mxu0 0.0
        %1930 = vmatpush1.msra.mxu0 0.0
        %1931 = vmatprep.subr.mxu0 0.0
        %1932 = vmatpush1.msra.mxu0 0.0
        %1933 = vmatprep.subr.mxu0 0.0
        %1934 = vmatpush1.msra.mxu0 0.0
        %1935 = vmatprep.subr.mxu0 0.0
        %1936 = vmatpush1.msra.mxu0 0.0
        %1937 = vmatprep.subr.mxu0 0.0
        %1938 = vmatpush1.msra.mxu0 0.0
        %1939 = vmatprep.subr.mxu0 0.0
        %1940 = vmatpush1.msra.mxu0 0.0
        %1941 = vmatprep.subr.mxu0 0.0
        %1942 = vmatpush1.msra.mxu0 0.0
        %1943 = vmatprep.subr.mxu0 0.0
        %1944 = vmatpush1.msra.mxu0 %v1908
        %1945 = vmatprep.subr.mxu0 0.0
        %1946 = vmatpush2.msra.mxu0 0.0
        %1947 = vmatprep.subr.mxu0 0.0
        %1948 = vmatpush2.msra.mxu0 0.0
        %1949 = vmatprep.subr.mxu0 0.0
        %1950 = vmatpush2.msra.mxu0 0.0
        %1951 = vmatprep.subr.mxu0 0.0
        %1952 = vmatpush2.msra.mxu0 0.0
        %1953 = vmatprep.subr.mxu0 0.0
        %1954 = vmatpush2.msra.mxu0 0.0
        %1955 = vmatprep.subr.mxu0 0.0
        %1956 = vmatpush2.msra.mxu0 0.0
        %1957 = vmatprep.subr.mxu0 0.0
        %1958 = vmatpush2.msra.mxu0 0.0
        %1959 = vmatprep.subr.mxu0 0.0
        %1960 = vmatpush2.msra.mxu0 0.0
        %1961 = vmatprep.subr.mxu0 0.0
        %1962 = vmatpush2.msra.mxu0 0.0
        %1963 = vmatprep.subr.mxu0 0.0
        %1964 = vmatpush2.msra.mxu0 0.0
        %1965 = vmatprep.subr.mxu0 0.0
        %1966 = vmatpush2.msra.mxu0 0.0
        %1967 = vmatprep.subr.mxu0 0.0
        %1968 = vmatpush2.msra.mxu0 0.0
        %1969 = vmatprep.subr.mxu0 0.0
        %1970 = vmatpush2.msra.mxu0 0.0
        %1971 = vmatprep.subr.mxu0 0.0
        %1972 = vmatpush2.msra.mxu0 0.0
        %1973 = vmatprep.subr.mxu0 0.0
        %1974 = vmatpush2.msra.mxu0 0.0
        %1975 = vmatprep.subr.mxu0 0.0
        %1976 = vmatpush2.msra.mxu0 0.0
        %1977 = vmatprep.mubr.f32.mxu0 0.0
        %1978 = vmatmul.mubr.f32.gmra.mxu0 %v1911
        %v1979 = vpop.f32.mrf.mxu0
        %v1980 = vadd.f32 0.0, %v1979
        %v1981 = vpop.f32.mrf.mxu0
        %1982 = vdwg.mxu0
        %1983 = vrot.lane.b32.xlu0 %v1648, 112
        %v1984 = vpop.permute.xlu0 %1983
        %1985 = vrot.lane.b32.xlu0 %v1648, 80
        %v1986 = vpop.permute.xlu0 %1985
        %v1987 = vsel %vm1654, %v1984, 0
        %v1989 = vsel %vm1654, %v1986, 0
        %1991 = vmatprep.subr.mxu0 0.0
        %1992 = vmatpush1.xpose.msra.mxu0 0.0
        %1993 = vmatprep.subr.mxu0 0.0
        %1994 = vmatpush1.xpose.msra.mxu0 0.0
        %1995 = vmatprep.subr.mxu0 0.0
        %1996 = vmatpush1.xpose.msra.mxu0 0.0
        %1997 = vmatprep.subr.mxu0 0.0
        %1998 = vmatpush1.xpose.msra.mxu0 0.0
        %1999 = vmatprep.subr.mxu0 0.0
        %2000 = vmatpush1.xpose.msra.mxu0 0.0
        %2001 = vmatprep.subr.mxu0 0.0
        %2002 = vmatpush1.xpose.msra.mxu0 0.0
        %2003 = vmatprep.subr.mxu0 0.0
        %2004 = vmatpush1.xpose.msra.mxu0 0.0
        %2005 = vmatprep.subr.mxu0 0.0
        %2006 = vmatpush1.xpose.msra.mxu0 0.0
        %2007 = vmatprep.subr.mxu0 0.0
        %2008 = vmatpush1.xpose.msra.mxu0 0.0
        %2009 = vmatprep.subr.mxu0 0.0
        %2010 = vmatpush1.xpose.msra.mxu0 0.0
        %2011 = vmatprep.subr.mxu0 0.0
        %2012 = vmatpush1.xpose.msra.mxu0 0.0
        %2013 = vmatprep.subr.mxu0 0.0
        %2014 = vmatpush1.xpose.msra.mxu0 0.0
        %2015 = vmatprep.subr.mxu0 0.0
        %2016 = vmatpush1.xpose.msra.mxu0 0.0
        %2017 = vmatprep.subr.mxu0 0.0
        %2018 = vmatpush1.xpose.msra.mxu0 0.0
        %2019 = vmatprep.subr.mxu0 0.0
        %2020 = vmatpush1.xpose.msra.mxu0 0.0
        %2021 = vmatprep.subr.mxu0 0.0
        %2022 = vmatpush1.xpose.msra.mxu0 %v1989
        %2023 = vmatprep.subr.mxu0 0.0
        %2024 = vmatpush2.xpose.msra.mxu0 0.0
        %2025 = vmatprep.subr.mxu0 0.0
        %2026 = vmatpush2.xpose.msra.mxu0 0.0
        %2027 = vmatprep.subr.mxu0 0.0
        %2028 = vmatpush2.xpose.msra.mxu0 0.0
        %2029 = vmatprep.subr.mxu0 0.0
        %2030 = vmatpush2.xpose.msra.mxu0 0.0
        %2031 = vmatprep.subr.mxu0 0.0
        %2032 = vmatpush2.xpose.msra.mxu0 0.0
        %2033 = vmatprep.subr.mxu0 0.0
        %2034 = vmatpush2.xpose.msra.mxu0 0.0
        %2035 = vmatprep.subr.mxu0 0.0
        %2036 = vmatpush2.xpose.msra.mxu0 0.0
        %2037 = vmatprep.subr.mxu0 0.0
        %2038 = vmatpush2.xpose.msra.mxu0 0.0
        %2039 = vmatprep.subr.mxu0 0.0
        %2040 = vmatpush2.xpose.msra.mxu0 0.0
        %2041 = vmatprep.subr.mxu0 0.0
        %2042 = vmatpush2.xpose.msra.mxu0 0.0
        %2043 = vmatprep.subr.mxu0 0.0
        %2044 = vmatpush2.xpose.msra.mxu0 0.0
        %2045 = vmatprep.subr.mxu0 0.0
        %2046 = vmatpush2.xpose.msra.mxu0 0.0
        %2047 = vmatprep.subr.mxu0 0.0
        %2048 = vmatpush2.xpose.msra.mxu0 0.0
        %2049 = vmatprep.subr.mxu0 0.0
        %2050 = vmatpush2.xpose.msra.mxu0 0.0
        %2051 = vmatprep.subr.mxu0 0.0
        %2052 = vmatpush2.xpose.msra.mxu0 0.0
        %2053 = vmatprep.subr.mxu0 0.0
        %2054 = vmatpush2.xpose.msra.mxu0 0.0
        %2055 = vmatprep.mubr.f32.mxu0 0.0
        %2056 = vmatmul.mubr.f32.gmra.mxu0 %v1987
        %v2057 = vpop.f32.mrf.mxu0
        %v2058 = vadd.f32 0.0, %v2057
        %v2059 = vpop.f32.mrf.mxu0
        %2060 = vdwg.mxu0
        %v2061 = vmul.f32 %v2058, 0.35355338
        %v2062 = vsel %vm1654, %v2061, -inf
        %2063 = vmax.xlane.f32.xlu0 %v2062
        %v2064 = vpop.xlane.xlu0 %2063
        %v2065 = vsub.f32 %v2061, %v2064
        %v2066 = vmul.f32 %v2065, 1.442695
        %v2067 = vpow.pop %v2066
        %v2068 = vsel %vm1654, %v2067, 0.0
        %2069 = vadd.xlane.f32.xlu0 %v2068
        %v2070 = vpop.xlane.xlu0 %2069
        %v2071 = vrcp.pop %v2070
        %v2072 = vmul.f32 %v2067, %v2071
        %2073 = vrot.lane.b32.xlu0 %v1648, 48
        %v2074 = vpop.permute.xlu0 %2073
        %v2077 = vsel %vm1654, %v2072, 0
        %2079 = vmatprep.subr.mxu0 0.0
        %2080 = vmatpush1.msra.mxu0 0.0
        %2081 = vmatprep.subr.mxu0 0.0
        %2082 = vmatpush1.msra.mxu0 0.0
        %2083 = vmatprep.subr.mxu0 0.0
        %2084 = vmatpush1.msra.mxu0 0.0
        %2085 = vmatprep.subr.mxu0 0.0
        %2086 = vmatpush1.msra.mxu0 0.0
        %2087 = vmatprep.subr.mxu0 0.0
        %2088 = vmatpush1.msra.mxu0 0.0
        %2089 = vmatprep.subr.mxu0 0.0
        %2090 = vmatpush1.msra.mxu0 0.0
        %2091 = vmatprep.subr.mxu0 0.0
        %2092 = vmatpush1.msra.mxu0 0.0
        %2093 = vmatprep.subr.mxu0 0.0
        %2094 = vmatpush1.msra.mxu0 0.0
        %2095 = vmatprep.subr.mxu0 0.0
        %2096 = vmatpush1.msra.mxu0 0.0
        %2097 = vmatprep.subr.mxu0 0.0
        %2098 = vmatpush1.msra.mxu0 0.0
        %2099 = vmatprep.subr.mxu0 0.0
        %2100 = vmatpush1.msra.mxu0 0.0
        %2101 = vmatprep.subr.mxu0 0.0
        %2102 = vmatpush1.msra.mxu0 0.0
        %2103 = vmatprep.subr.mxu0 0.0
        %2104 = vmatpush1.msra.mxu0 0.0
        %2105 = vmatprep.subr.mxu0 0.0
        %2106 = vmatpush1.msra.mxu0 0.0
        %2107 = vmatprep.subr.mxu0 0.0
        %2108 = vmatpush1.msra.mxu0 0.0
        %2109 = vmatprep.subr.mxu0 0.0
        %2110 = vmatpush1.msra.mxu0 %v2074
        %2111 = vmatprep.subr.mxu0 0.0
        %2112 = vmatpush2.msra.mxu0 0.0
        %2113 = vmatprep.subr.mxu0 0.0
        %2114 = vmatpush2.msra.mxu0 0.0
        %2115 = vmatprep.subr.mxu0 0.0
        %2116 = vmatpush2.msra.mxu0 0.0
        %2117 = vmatprep.subr.mxu0 0.0
        %2118 = vmatpush2.msra.mxu0 0.0
        %2119 = vmatprep.subr.mxu0 0.0
        %2120 = vmatpush2.msra.mxu0 0.0
        %2121 = vmatprep.subr.mxu0 0.0
        %2122 = vmatpush2.msra.mxu0 0.0
        %2123 = vmatprep.subr.mxu0 0.0
        %2124 = vmatpush2.msra.mxu0 0.0
        %2125 = vmatprep.subr.mxu0 0.0
        %2126 = vmatpush2.msra.mxu0 0.0
        %2127 = vmatprep.subr.mxu0 0.0
        %2128 = vmatpush2.msra.mxu0 0.0
        %2129 = vmatprep.subr.mxu0 0.0
        %2130 = vmatpush2.msra.mxu0 0.0
        %2131 = vmatprep.subr.mxu0 0.0
        %2132 = vmatpush2.msra.mxu0 0.0
        %2133 = vmatprep.subr.mxu0 0.0
        %2134 = vmatpush2.msra.mxu0 0.0
        %2135 = vmatprep.subr.mxu0 0.0
        %2136 = vmatpush2.msra.mxu0 0.0
        %2137 = vmatprep.subr.mxu0 0.0
        %2138 = vmatpush2.msra.mxu0 0.0
        %2139 = vmatprep.subr.mxu0 0.0
        %2140 = vmatpush2.msra.mxu0 0.0
        %2141 = vmatprep.subr.mxu0 0.0
        %2142 = vmatpush2.msra.mxu0 0.0
        %2143 = vmatprep.mubr.f32.mxu0 0.0
        %2144 = vmatmul.mubr.f32.gmra.mxu0 %v2077
        %v2145 = vpop.f32.mrf.mxu0
        %v2146 = vadd.f32 0.0, %v2145
        %v2147 = vpop.f32.mrf.mxu0
        %2148 = vdwg.mxu0
        %2149 = vrot.lane.b32.xlu0 %v1648, 104
        %v2150 = vpop.permute.xlu0 %2149
        %2151 = vrot.lane.b32.xlu0 %v1648, 72
        %v2152 = vpop.permute.xlu0 %2151
        %v2153 = vsel %vm1654, %v2150, 0
        %v2155 = vsel %vm1654, %v2152, 0
        %2157 = vmatprep.subr.mxu0 0.0
        %2158 = vmatpush1.xpose.msra.mxu0 0.0
        %2159 = vmatprep.subr.mxu0 0.0
        %2160 = vmatpush1.xpose.msra.mxu0 0.0
        %2161 = vmatprep.subr.mxu0 0.0
        %2162 = vmatpush1.xpose.msra.mxu0 0.0
        %2163 = vmatprep.subr.mxu0 0.0
        %2164 = vmatpush1.xpose.msra.mxu0 0.0
        %2165 = vmatprep.subr.mxu0 0.0
        %2166 = vmatpush1.xpose.msra.mxu0 0.0
        %2167 = vmatprep.subr.mxu0 0.0
        %2168 = vmatpush1.xpose.msra.mxu0 0.0
        %2169 = vmatprep.subr.mxu0 0.0
        %2170 = vmatpush1.xpose.msra.mxu0 0.0
        %2171 = vmatprep.subr.mxu0 0.0
        %2172 = vmatpush1.xpose.msra.mxu0 0.0
        %2173 = vmatprep.subr.mxu0 0.0
        %2174 = vmatpush1.xpose.msra.mxu0 0.0
        %2175 = vmatprep.subr.mxu0 0.0
        %2176 = vmatpush1.xpose.msra.mxu0 0.0
        %2177 = vmatprep.subr.mxu0 0.0
        %2178 = vmatpush1.xpose.msra.mxu0 0.0
        %2179 = vmatprep.subr.mxu0 0.0
        %2180 = vmatpush1.xpose.msra.mxu0 0.0
        %2181 = vmatprep.subr.mxu0 0.0
        %2182 = vmatpush1.xpose.msra.mxu0 0.0
        %2183 = vmatprep.subr.mxu0 0.0
        %2184 = vmatpush1.xpose.msra.mxu0 0.0
        %2185 = vmatprep.subr.mxu0 0.0
        %2186 = vmatpush1.xpose.msra.mxu0 0.0
        %2187 = vmatprep.subr.mxu0 0.0
        %2188 = vmatpush1.xpose.msra.mxu0 %v2155
        %2189 = vmatprep.subr.mxu0 0.0
        %2190 = vmatpush2.xpose.msra.mxu0 0.0
        %2191 = vmatprep.subr.mxu0 0.0
        %2192 = vmatpush2.xpose.msra.mxu0 0.0
        %2193 = vmatprep.subr.mxu0 0.0
        %2194 = vmatpush2.xpose.msra.mxu0 0.0
        %2195 = vmatprep.subr.mxu0 0.0
        %2196 = vmatpush2.xpose.msra.mxu0 0.0
        %2197 = vmatprep.subr.mxu0 0.0
        %2198 = vmatpush2.xpose.msra.mxu0 0.0
        %2199 = vmatprep.subr.mxu0 0.0
        %2200 = vmatpush2.xpose.msra.mxu0 0.0
        %2201 = vmatprep.subr.mxu0 0.0
        %2202 = vmatpush2.xpose.msra.mxu0 0.0
        %2203 = vmatprep.subr.mxu0 0.0
        %2204 = vmatpush2.xpose.msra.mxu0 0.0
        %2205 = vmatprep.subr.mxu0 0.0
        %2206 = vmatpush2.xpose.msra.mxu0 0.0
        %2207 = vmatprep.subr.mxu0 0.0
        %2208 = vmatpush2.xpose.msra.mxu0 0.0
        %2209 = vmatprep.subr.mxu0 0.0
        %2210 = vmatpush2.xpose.msra.mxu0 0.0
        %2211 = vmatprep.subr.mxu0 0.0
        %2212 = vmatpush2.xpose.msra.mxu0 0.0
        %2213 = vmatprep.subr.mxu0 0.0
        %2214 = vmatpush2.xpose.msra.mxu0 0.0
        %2215 = vmatprep.subr.mxu0 0.0
        %2216 = vmatpush2.xpose.msra.mxu0 0.0
        %2217 = vmatprep.subr.mxu0 0.0
        %2218 = vmatpush2.xpose.msra.mxu0 0.0
        %2219 = vmatprep.subr.mxu0 0.0
        %2220 = vmatpush2.xpose.msra.mxu0 0.0
        %2221 = vmatprep.mubr.f32.mxu0 0.0
        %2222 = vmatmul.mubr.f32.gmra.mxu0 %v2153
        %v2223 = vpop.f32.mrf.mxu0
        %v2224 = vadd.f32 0.0, %v2223
        %v2225 = vpop.f32.mrf.mxu0
        %2226 = vdwg.mxu0
        %v2227 = vmul.f32 %v2224, 0.35355338
        %v2228 = vsel %vm1654, %v2227, -inf
        %2229 = vmax.xlane.f32.xlu0 %v2228
        %v2230 = vpop.xlane.xlu0 %2229
        %v2231 = vsub.f32 %v2227, %v2230
        %v2232 = vmul.f32 %v2231, 1.442695
        %v2233 = vpow.pop %v2232
        %v2234 = vsel %vm1654, %v2233, 0.0
        %2235 = vadd.xlane.f32.xlu0 %v2234
        %v2236 = vpop.xlane.xlu0 %2235
        %v2237 = vrcp.pop %v2236
        %v2238 = vmul.f32 %v2233, %v2237
        %2239 = vrot.lane.b32.xlu0 %v1648, 40
        %v2240 = vpop.permute.xlu0 %2239
        %v2243 = vsel %vm1654, %v2238, 0
        %2245 = vmatprep.subr.mxu0 0.0
        %2246 = vmatpush1.msra.mxu0 0.0
        %2247 = vmatprep.subr.mxu0 0.0
        %2248 = vmatpush1.msra.mxu0 0.0
        %2249 = vmatprep.subr.mxu0 0.0
        %2250 = vmatpush1.msra.mxu0 0.0
        %2251 = vmatprep.subr.mxu0 0.0
        %2252 = vmatpush1.msra.mxu0 0.0
        %2253 = vmatprep.subr.mxu0 0.0
        %2254 = vmatpush1.msra.mxu0 0.0
        %2255 = vmatprep.subr.mxu0 0.0
        %2256 = vmatpush1.msra.mxu0 0.0
        %2257 = vmatprep.subr.mxu0 0.0
        %2258 = vmatpush1.msra.mxu0 0.0
        %2259 = vmatprep.subr.mxu0 0.0
        %2260 = vmatpush1.msra.mxu0 0.0
        %2261 = vmatprep.subr.mxu0 0.0
        %2262 = vmatpush1.msra.mxu0 0.0
        %2263 = vmatprep.subr.mxu0 0.0
        %2264 = vmatpush1.msra.mxu0 0.0
        %2265 = vmatprep.subr.mxu0 0.0
        %2266 = vmatpush1.msra.mxu0 0.0
        %2267 = vmatprep.subr.mxu0 0.0
        %2268 = vmatpush1.msra.mxu0 0.0
        %2269 = vmatprep.subr.mxu0 0.0
        %2270 = vmatpush1.msra.mxu0 0.0
        %2271 = vmatprep.subr.mxu0 0.0
        %2272 = vmatpush1.msra.mxu0 0.0
        %2273 = vmatprep.subr.mxu0 0.0
        %2274 = vmatpush1.msra.mxu0 0.0
        %2275 = vmatprep.subr.mxu0 0.0
        %2276 = vmatpush1.msra.mxu0 %v2240
        %2277 = vmatprep.subr.mxu0 0.0
        %2278 = vmatpush2.msra.mxu0 0.0
        %2279 = vmatprep.subr.mxu0 0.0
        %2280 = vmatpush2.msra.mxu0 0.0
        %2281 = vmatprep.subr.mxu0 0.0
        %2282 = vmatpush2.msra.mxu0 0.0
        %2283 = vmatprep.subr.mxu0 0.0
        %2284 = vmatpush2.msra.mxu0 0.0
        %2285 = vmatprep.subr.mxu0 0.0
        %2286 = vmatpush2.msra.mxu0 0.0
        %2287 = vmatprep.subr.mxu0 0.0
        %2288 = vmatpush2.msra.mxu0 0.0
        %2289 = vmatprep.subr.mxu0 0.0
        %2290 = vmatpush2.msra.mxu0 0.0
        %2291 = vmatprep.subr.mxu0 0.0
        %2292 = vmatpush2.msra.mxu0 0.0
        %2293 = vmatprep.subr.mxu0 0.0
        %2294 = vmatpush2.msra.mxu0 0.0
        %2295 = vmatprep.subr.mxu0 0.0
        %2296 = vmatpush2.msra.mxu0 0.0
        %2297 = vmatprep.subr.mxu0 0.0
        %2298 = vmatpush2.msra.mxu0 0.0
        %2299 = vmatprep.subr.mxu0 0.0
        %2300 = vmatpush2.msra.mxu0 0.0
        %2301 = vmatprep.subr.mxu0 0.0
        %2302 = vmatpush2.msra.mxu0 0.0
        %2303 = vmatprep.subr.mxu0 0.0
        %2304 = vmatpush2.msra.mxu0 0.0
        %2305 = vmatprep.subr.mxu0 0.0
        %2306 = vmatpush2.msra.mxu0 0.0
        %2307 = vmatprep.subr.mxu0 0.0
        %2308 = vmatpush2.msra.mxu0 0.0
        %2309 = vmatprep.mubr.f32.mxu0 0.0
        %2310 = vmatmul.mubr.f32.gmra.mxu0 %v2243
        %v2311 = vpop.f32.mrf.mxu0
        %v2312 = vadd.f32 0.0, %v2311
        %v2313 = vpop.f32.mrf.mxu0
        %2314 = vdwg.mxu0
        %2316 = vrot.lane.b32.xlu0 %v1980, 8
        %v2317 = vpop.permute.xlu0 %2316
        %2320 = vrot.lane.b32.xlu0 %v2146, 16
        %v2321 = vpop.permute.xlu0 %2320
        %2324 = vrot.lane.b32.xlu0 %v2312, 24
        %v2325 = vpop.permute.xlu0 %2324
        %v2327 = vsel %vm1654, %v1814, %v2317
        %v2328 = vsel %vm1487, %v2327, %v2321
        %vm2329 = vcmask 195584
        %v2330 = vsel %vm2329, %v2328, %v2325
        %v2331 = vld [vmem:[%s63] sm:$0xff]
        %v2332 = vld [vmem:[%s63 + $0x8] sm:$0xff]
        %v2333 = vld [vmem:[%s63 + $0x10] sm:$0xff]
        %v2334 = vld [vmem:[%s63 + $0x18] sm:$0xff]
        %v2335 = vld [vmem:[%s47] sm:$0x1]
        %v2337 = vlaneseq
        %v2338 = vshrl.u32 %v2337, 7
        %v2339 = vsub.s32 0, %v2338
        %v2340 = vrot.slane %v2335, %v2339
        %v2343 = vsel %vm1577, %v2330, 0
        %2345 = vmatprep.subr.mxu0 0.0
        %2346 = vmatpush1.msra.mxu0 0.0
        %2347 = vmatprep.subr.mxu0 0.0
        %2348 = vmatpush1.msra.mxu0 0.0
        %2349 = vmatprep.subr.mxu0 0.0
        %2350 = vmatpush1.msra.mxu0 0.0
        %2351 = vmatprep.subr.mxu0 0.0
        %2352 = vmatpush1.msra.mxu0 0.0
        %2353 = vmatprep.subr.mxu0 0.0
        %2354 = vmatpush1.msra.mxu0 0.0
        %2355 = vmatprep.subr.mxu0 0.0
        %2356 = vmatpush1.msra.mxu0 0.0
        %2357 = vmatprep.subr.mxu0 0.0
        %2358 = vmatpush1.msra.mxu0 0.0
        %2359 = vmatprep.subr.mxu0 0.0
        %2360 = vmatpush1.msra.mxu0 0.0
        %2361 = vmatprep.subr.mxu0 0.0
        %2362 = vmatpush1.msra.mxu0 0.0
        %2363 = vmatprep.subr.mxu0 0.0
        %2364 = vmatpush1.msra.mxu0 0.0
        %2365 = vmatprep.subr.mxu0 0.0
        %2366 = vmatpush1.msra.mxu0 0.0
        %2367 = vmatprep.subr.mxu0 0.0
        %2368 = vmatpush1.msra.mxu0 0.0
        %2369 = vmatprep.subr.mxu0 0.0
        %2370 = vmatpush1.msra.mxu0 %v2334
        %2371 = vmatprep.subr.mxu0 0.0
        %2372 = vmatpush1.msra.mxu0 %v2333
        %2373 = vmatprep.subr.mxu0 0.0
        %2374 = vmatpush1.msra.mxu0 %v2332
        %2375 = vmatprep.subr.mxu0 0.0
        %2376 = vmatpush1.msra.mxu0 %v2331
        %2377 = vmatprep.subr.mxu0 0.0
        %2378 = vmatpush2.msra.mxu0 0.0
        %2379 = vmatprep.subr.mxu0 0.0
        %2380 = vmatpush2.msra.mxu0 0.0
        %2381 = vmatprep.subr.mxu0 0.0
        %2382 = vmatpush2.msra.mxu0 0.0
        %2383 = vmatprep.subr.mxu0 0.0
        %2384 = vmatpush2.msra.mxu0 0.0
        %2385 = vmatprep.subr.mxu0 0.0
        %2386 = vmatpush2.msra.mxu0 0.0
        %2387 = vmatprep.subr.mxu0 0.0
        %2388 = vmatpush2.msra.mxu0 0.0
        %2389 = vmatprep.subr.mxu0 0.0
        %2390 = vmatpush2.msra.mxu0 0.0
        %2391 = vmatprep.subr.mxu0 0.0
        %2392 = vmatpush2.msra.mxu0 0.0
        %2393 = vmatprep.subr.mxu0 0.0
        %2394 = vmatpush2.msra.mxu0 0.0
        %2395 = vmatprep.subr.mxu0 0.0
        %2396 = vmatpush2.msra.mxu0 0.0
        %2397 = vmatprep.subr.mxu0 0.0
        %2398 = vmatpush2.msra.mxu0 0.0
        %2399 = vmatprep.subr.mxu0 0.0
        %2400 = vmatpush2.msra.mxu0 0.0
        %2401 = vmatprep.subr.mxu0 0.0
        %2402 = vmatpush2.msra.mxu0 0.0
        %2403 = vmatprep.subr.mxu0 0.0
        %2404 = vmatpush2.msra.mxu0 0.0
        %2405 = vmatprep.subr.mxu0 0.0
        %2406 = vmatpush2.msra.mxu0 0.0
        %2407 = vmatprep.subr.mxu0 0.0
        %2408 = vmatpush2.msra.mxu0 0.0
        %2409 = vmatprep.mubr.f32.mxu0 0.0
        %2410 = vmatmul.mubr.f32.gmra.mxu0 %v2343
        %v2411 = vpop.f32.mrf.mxu0
        %v2412 = vadd.f32 %v2340, %v2411
        %v2413 = vpop.f32.mrf.mxu0
        %2414 = vdwg.mxu0
        %v2415 = vadd.f32 %v1565, %v2412
        %v2416 = vld [vmem:[%s53] sm:$0x1]
        %v2417 = vld [vmem:[%s51] sm:$0x1]
        %v2418 = vsel %vm1577, %v2415, 0.0
        %2419 = vadd.xlane.f32.xlu0 %v2418
        %v2420 = vpop.xlane.xlu0 %2419
        %v2421 = vrcp.pop 32.0
        %v2422 = vmul.f32 %v2420, %v2421
        %v2423 = vsub.f32 %v2415, %v2422
        %v2424 = vmul.f32 %v2423, %v2423
        %v2425 = vsel %vm1577, %v2424, 0.0
        %2426 = vadd.xlane.f32.xlu0 %v2425
        %v2427 = vpop.xlane.xlu0 %2426
        %v2428 = vmul.f32 %v2427, %v2421
        %v2429 = vadd.f32 %v2428, 1e-05
        %v2430 = vrsqrt.pop %v2429
        %v2431 = vmul.f32 %v2423, %v2430
        %v2433 = vlaneseq
        %v2434 = vshrl.u32 %v2433, 7
        %v2435 = vsub.s32 0, %v2434
        %v2436 = vrot.slane %v2416, %v2435
        %v2438 = vmul.f32 %v2431, %v2436
        %v2440 = vlaneseq
        %v2441 = vshrl.u32 %v2440, 7
        %v2442 = vsub.s32 0, %v2441
        %v2443 = vrot.slane %v2417, %v2442
        %v2445 = vadd.f32 %v2438, %v2443
        %v2446 = vld [vmem:[%s59] sm:$0xff]
        %v2447 = vld [vmem:[%s59 + $0x8] sm:$0xff]
        %v2448 = vld [vmem:[%s59 + $0x10] sm:$0xff]
        %v2449 = vld [vmem:[%s59 + $0x18] sm:$0xff]
        %v2450 = vld [vmem:[%s59 + $0x20] sm:$0xff]
        %v2451 = vld [vmem:[%s59 + $0x28] sm:$0xff]
        %v2452 = vld [vmem:[%s59 + $0x30] sm:$0xff]
        %v2453 = vld [vmem:[%s59 + $0x38] sm:$0xff]
        %v2454 = vld [vmem:[%s59 + $0x40] sm:$0xff]
        %v2455 = vld [vmem:[%s59 + $0x48] sm:$0xff]
        %v2456 = vld [vmem:[%s59 + $0x50] sm:$0xff]
        %v2457 = vld [vmem:[%s59 + $0x58] sm:$0xff]
        %v2458 = vld [vmem:[%s59 + $0x60] sm:$0xff]
        %v2459 = vld [vmem:[%s59 + $0x68] sm:$0xff]
        %v2460 = vld [vmem:[%s59 + $0x70] sm:$0xff]
        %v2461 = vld [vmem:[%s59 + $0x78] sm:$0xff]
        %v2462 = vld [vmem:[%s59 + $0x80] sm:$0xff]
        %v2463 = vld [vmem:[%s59 + $0x88] sm:$0xff]
        %v2464 = vld [vmem:[%s59 + $0x90] sm:$0xff]
        %v2465 = vld [vmem:[%s59 + $0x98] sm:$0xff]
        %v2466 = vld [vmem:[%s59 + $0xa0] sm:$0xff]
        %v2467 = vld [vmem:[%s59 + $0xa8] sm:$0xff]
        %v2468 = vld [vmem:[%s59 + $0xb0] sm:$0xff]
        %v2469 = vld [vmem:[%s59 + $0xb8] sm:$0xff]
        %v2470 = vld [vmem:[%s59 + $0xc0] sm:$0xff]
        %v2471 = vld [vmem:[%s59 + $0xc8] sm:$0xff]
        %v2472 = vld [vmem:[%s59 + $0xd0] sm:$0xff]
        %v2473 = vld [vmem:[%s59 + $0xd8] sm:$0xff]
        %v2474 = vld [vmem:[%s59 + $0xe0] sm:$0xff]
        %v2475 = vld [vmem:[%s59 + $0xe8] sm:$0xff]
        %v2476 = vld [vmem:[%s59 + $0xf0] sm:$0xff]
        %v2477 = vld [vmem:[%s59 + $0xf8] sm:$0xff]
        %v2478 = vld [vmem:[%s59 + $0x100] sm:$0xff]
        %v2479 = vld [vmem:[%s59 + $0x108] sm:$0xff]
        %v2480 = vld [vmem:[%s59 + $0x110] sm:$0xff]
        %v2481 = vld [vmem:[%s59 + $0x118] sm:$0xff]
        %v2482 = vld [vmem:[%s59 + $0x120] sm:$0xff]
        %v2483 = vld [vmem:[%s59 + $0x128] sm:$0xff]
        %v2484 = vld [vmem:[%s59 + $0x130] sm:$0xff]
        %v2485 = vld [vmem:[%s59 + $0x138] sm:$0xff]
        %v2486 = vld [vmem:[%s59 + $0x140] sm:$0xff]
        %v2487 = vld [vmem:[%s59 + $0x148] sm:$0xff]
        %v2488 = vld [vmem:[%s59 + $0x150] sm:$0xff]
        %v2489 = vld [vmem:[%s59 + $0x158] sm:$0xff]
        %v2490 = vld [vmem:[%s59 + $0x160] sm:$0xff]
        %v2491 = vld [vmem:[%s59 + $0x168] sm:$0xff]
        %v2492 = vld [vmem:[%s59 + $0x170] sm:$0xff]
        %v2493 = vld [vmem:[%s59 + $0x178] sm:$0xff]
        %v2494 = vld [vmem:[%s59 + $0x180] sm:$0xff]
        %v2495 = vld [vmem:[%s59 + $0x188] sm:$0xff]
        %v2496 = vld [vmem:[%s59 + $0x190] sm:$0xff]
        %v2497 = vld [vmem:[%s59 + $0x198] sm:$0xff]
        %v2498 = vld [vmem:[%s59 + $0x1a0] sm:$0xff]
        %v2499 = vld [vmem:[%s59 + $0x1a8] sm:$0xff]
        %v2500 = vld [vmem:[%s59 + $0x1b0] sm:$0xff]
        %v2501 = vld [vmem:[%s59 + $0x1b8] sm:$0xff]
        %v2502 = vld [vmem:[%s59 + $0x1c0] sm:$0xff]
        %v2503 = vld [vmem:[%s59 + $0x1c8] sm:$0xff]
        %v2504 = vld [vmem:[%s59 + $0x1d0] sm:$0xff]
        %v2505 = vld [vmem:[%s59 + $0x1d8] sm:$0xff]
        %v2506 = vld [vmem:[%s59 + $0x1e0] sm:$0xff]
        %v2507 = vld [vmem:[%s59 + $0x1e8] sm:$0xff]
        %v2508 = vld [vmem:[%s59 + $0x1f0] sm:$0xff]
        %v2509 = vld [vmem:[%s59 + $0x1f8] sm:$0xff]
        %v2510 = vld [vmem:[%s43] sm:$0xff]
        %v2511 = vld [vmem:[%s43 + $0x8] sm:$0xff]
        %v2514 = vlaneseq
        %v2515 = vshrl.u32 %v2514, 7
        %v2516 = vsub.s32 0, %v2515
        %v2517 = vrot.slane %v2510, %v2516
        %v2518 = vlaneseq
        %v2519 = vshrl.u32 %v2518, 7
        %v2520 = vsub.s32 1, %v2519
        %v2521 = vrot.slane %v2510, %v2520
        %v2522 = vlaneseq
        %v2523 = vshrl.u32 %v2522, 7
        %v2524 = vsub.s32 2, %v2523
        %v2525 = vrot.slane %v2510, %v2524
        %v2526 = vlaneseq
        %v2527 = vshrl.u32 %v2526, 7
        %v2528 = vsub.s32 3, %v2527
        %v2529 = vrot.slane %v2510, %v2528
        %v2530 = vlaneseq
        %v2531 = vshrl.u32 %v2530, 7
        %v2532 = vsub.s32 4, %v2531
        %v2533 = vrot.slane %v2510, %v2532
        %v2534 = vlaneseq
        %v2535 = vshrl.u32 %v2534, 7
        %v2536 = vsub.s32 5, %v2535
        %v2537 = vrot.slane %v2510, %v2536
        %v2538 = vlaneseq
        %v2539 = vshrl.u32 %v2538, 7
        %v2540 = vsub.s32 6, %v2539
        %v2541 = vrot.slane %v2510, %v2540
        %v2542 = vlaneseq
        %v2543 = vshrl.u32 %v2542, 7
        %v2544 = vsub.s32 7, %v2543
        %v2545 = vrot.slane %v2510, %v2544
        %v2546 = vlaneseq
        %v2547 = vshrl.u32 %v2546, 7
        %v2548 = vsub.s32 0, %v2547
        %v2549 = vrot.slane %v2511, %v2548
        %v2550 = vlaneseq
        %v2551 = vshrl.u32 %v2550, 7
        %v2552 = vsub.s32 1, %v2551
        %v2553 = vrot.slane %v2511, %v2552
        %v2554 = vlaneseq
        %v2555 = vshrl.u32 %v2554, 7
        %v2556 = vsub.s32 2, %v2555
        %v2557 = vrot.slane %v2511, %v2556
        %v2558 = vlaneseq
        %v2559 = vshrl.u32 %v2558, 7
        %v2560 = vsub.s32 3, %v2559
        %v2561 = vrot.slane %v2511, %v2560
        %v2562 = vlaneseq
        %v2563 = vshrl.u32 %v2562, 7
        %v2564 = vsub.s32 4, %v2563
        %v2565 = vrot.slane %v2511, %v2564
        %v2566 = vlaneseq
        %v2567 = vshrl.u32 %v2566, 7
        %v2568 = vsub.s32 5, %v2567
        %v2569 = vrot.slane %v2511, %v2568
        %v2570 = vlaneseq
        %v2571 = vshrl.u32 %v2570, 7
        %v2572 = vsub.s32 6, %v2571
        %v2573 = vrot.slane %v2511, %v2572
        %v2574 = vlaneseq
        %v2575 = vshrl.u32 %v2574, 7
        %v2576 = vsub.s32 7, %v2575
        %v2577 = vrot.slane %v2511, %v2576
        %v2595 = vsel %vm1577, %v2445, 0
        %2597 = vmatprep.subr.mxu0 0.0
        %2598 = vmatpush1.msra.mxu0 0.0
        %2599 = vmatprep.subr.mxu0 0.0
        %2600 = vmatpush1.msra.mxu0 0.0
        %2601 = vmatprep.subr.mxu0 0.0
        %2602 = vmatpush1.msra.mxu0 0.0
        %2603 = vmatprep.subr.mxu0 0.0
        %2604 = vmatpush1.msra.mxu0 0.0
        %2605 = vmatprep.subr.mxu0 0.0
        %2606 = vmatpush1.msra.mxu0 0.0
        %2607 = vmatprep.subr.mxu0 0.0
        %2608 = vmatpush1.msra.mxu0 0.0
        %2609 = vmatprep.subr.mxu0 0.0
        %2610 = vmatpush1.msra.mxu0 0.0
        %2611 = vmatprep.subr.mxu0 0.0
        %2612 = vmatpush1.msra.mxu0 0.0
        %2613 = vmatprep.subr.mxu0 0.0
        %2614 = vmatpush1.msra.mxu0 0.0
        %2615 = vmatprep.subr.mxu0 0.0
        %2616 = vmatpush1.msra.mxu0 0.0
        %2617 = vmatprep.subr.mxu0 0.0
        %2618 = vmatpush1.msra.mxu0 0.0
        %2619 = vmatprep.subr.mxu0 0.0
        %2620 = vmatpush1.msra.mxu0 0.0
        %2621 = vmatprep.subr.mxu0 %v2495
        %2622 = vmatpush1.msra.mxu0 %v2494
        %2623 = vmatprep.subr.mxu0 %v2479
        %2624 = vmatpush1.msra.mxu0 %v2478
        %2625 = vmatprep.subr.mxu0 %v2463
        %2626 = vmatpush1.msra.mxu0 %v2462
        %2627 = vmatprep.subr.mxu0 %v2447
        %2628 = vmatpush1.msra.mxu0 %v2446
        %2629 = vmatprep.subr.mxu0 0.0
        %2630 = vmatpush2.msra.mxu0 0.0
        %2631 = vmatprep.subr.mxu0 0.0
        %2632 = vmatpush2.msra.mxu0 0.0
        %2633 = vmatprep.subr.mxu0 0.0
        %2634 = vmatpush2.msra.mxu0 0.0
        %2635 = vmatprep.subr.mxu0 0.0
        %2636 = vmatpush2.msra.mxu0 0.0
        %2637 = vmatprep.subr.mxu0 0.0
        %2638 = vmatpush2.msra.mxu0 0.0
        %2639 = vmatprep.subr.mxu0 0.0
        %2640 = vmatpush2.msra.mxu0 0.0
        %2641 = vmatprep.subr.mxu0 0.0
        %2642 = vmatpush2.msra.mxu0 0.0
        %2643 = vmatprep.subr.mxu0 0.0
        %2644 = vmatpush2.msra.mxu0 0.0
        %2645 = vmatprep.subr.mxu0 0.0
        %2646 = vmatpush2.msra.mxu0 0.0
        %2647 = vmatprep.subr.mxu0 0.0
        %2648 = vmatpush2.msra.mxu0 0.0
        %2649 = vmatprep.subr.mxu0 0.0
        %2650 = vmatpush2.msra.mxu0 0.0
        %2651 = vmatprep.subr.mxu0 0.0
        %2652 = vmatpush2.msra.mxu0 0.0
        %2653 = vmatprep.subr.mxu0 0.0
        %2654 = vmatpush2.msra.mxu0 0.0
        %2655 = vmatprep.subr.mxu0 0.0
        %2656 = vmatpush2.msra.mxu0 0.0
        %2657 = vmatprep.subr.mxu0 0.0
        %2658 = vmatpush2.msra.mxu0 0.0
        %2659 = vmatprep.subr.mxu0 0.0
        %2660 = vmatpush2.msra.mxu0 0.0
        %2661 = vmatprep.mubr.f32.mxu0 0.0
        %2662 = vmatmul.mubr.f32.gmra.mxu0 %v2595
        %v2663 = vpop.f32.mrf.mxu0
        %v2664 = vadd.f32 %v2517, %v2663
        %v2665 = vpop.f32.mrf.mxu0
        %v2666 = vadd.f32 %v2521, %v2665
        %2667 = vdwg.mxu0
        %2668 = vmatprep.subr.mxu0 0.0
        %2669 = vmatpush1.msra.mxu0 0.0
        %2670 = vmatprep.subr.mxu0 0.0
        %2671 = vmatpush1.msra.mxu0 0.0
        %2672 = vmatprep.subr.mxu0 0.0
        %2673 = vmatpush1.msra.mxu0 0.0
        %2674 = vmatprep.subr.mxu0 0.0
        %2675 = vmatpush1.msra.mxu0 0.0
        %2676 = vmatprep.subr.mxu0 0.0
        %2677 = vmatpush1.msra.mxu0 0.0
        %2678 = vmatprep.subr.mxu0 0.0
        %2679 = vmatpush1.msra.mxu0 0.0
        %2680 = vmatprep.subr.mxu0 0.0
        %2681 = vmatpush1.msra.mxu0 0.0
        %2682 = vmatprep.subr.mxu0 0.0
        %2683 = vmatpush1.msra.mxu0 0.0
        %2684 = vmatprep.subr.mxu0 0.0
        %2685 = vmatpush1.msra.mxu0 0.0
        %2686 = vmatprep.subr.mxu0 0.0
        %2687 = vmatpush1.msra.mxu0 0.0
        %2688 = vmatprep.subr.mxu0 0.0
        %2689 = vmatpush1.msra.mxu0 0.0
        %2690 = vmatprep.subr.mxu0 0.0
        %2691 = vmatpush1.msra.mxu0 0.0
        %2692 = vmatprep.subr.mxu0 %v2497
        %2693 = vmatpush1.msra.mxu0 %v2496
        %2694 = vmatprep.subr.mxu0 %v2481
        %2695 = vmatpush1.msra.mxu0 %v2480
        %2696 = vmatprep.subr.mxu0 %v2465
        %2697 = vmatpush1.msra.mxu0 %v2464
        %2698 = vmatprep.subr.mxu0 %v2449
        %2699 = vmatpush1.msra.mxu0 %v2448
        %2700 = vmatprep.subr.mxu0 0.0
        %2701 = vmatpush2.msra.mxu0 0.0
        %2702 = vmatprep.subr.mxu0 0.0
        %2703 = vmatpush2.msra.mxu0 0.0
        %2704 = vmatprep.subr.mxu0 0.0
        %2705 = vmatpush2.msra.mxu0 0.0
        %2706 = vmatprep.subr.mxu0 0.0
        %2707 = vmatpush2.msra.mxu0 0.0
        %2708 = vmatprep.subr.mxu0 0.0
        %2709 = vmatpush2.msra.mxu0 0.0
        %2710 = vmatprep.subr.mxu0 0.0
        %2711 = vmatpush2.msra.mxu0 0.0
        %2712 = vmatprep.subr.mxu0 0.0
        %2713 = vmatpush2.msra.mxu0 0.0
        %2714 = vmatprep.subr.mxu0 0.0
        %2715 = vmatpush2.msra.mxu0 0.0
        %2716 = vmatprep.subr.mxu0 0.0
        %2717 = vmatpush2.msra.mxu0 0.0
        %2718 = vmatprep.subr.mxu0 0.0
        %2719 = vmatpush2.msra.mxu0 0.0
        %2720 = vmatprep.subr.mxu0 0.0
        %2721 = vmatpush2.msra.mxu0 0.0
        %2722 = vmatprep.subr.mxu0 0.0
        %2723 = vmatpush2.msra.mxu0 0.0
        %2724 = vmatprep.subr.mxu0 0.0
        %2725 = vmatpush2.msra.mxu0 0.0
        %2726 = vmatprep.subr.mxu0 0.0
        %2727 = vmatpush2.msra.mxu0 0.0
        %2728 = vmatprep.subr.mxu0 0.0
        %2729 = vmatpush2.msra.mxu0 0.0
        %2730 = vmatprep.subr.mxu0 0.0
        %2731 = vmatpush2.msra.mxu0 0.0
        %2732 = vmatprep.mubr.f32.mxu0 0.0
        %2733 = vmatmul.mubr.f32.gmra.mxu0 %v2595
        %v2734 = vpop.f32.mrf.mxu0
        %v2735 = vadd.f32 %v2525, %v2734
        %v2736 = vpop.f32.mrf.mxu0
        %v2737 = vadd.f32 %v2529, %v2736
        %2738 = vdwg.mxu0
        %2739 = vmatprep.subr.mxu0 0.0
        %2740 = vmatpush1.msra.mxu0 0.0
        %2741 = vmatprep.subr.mxu0 0.0
        %2742 = vmatpush1.msra.mxu0 0.0
        %2743 = vmatprep.subr.mxu0 0.0
        %2744 = vmatpush1.msra.mxu0 0.0
        %2745 = vmatprep.subr.mxu0 0.0
        %2746 = vmatpush1.msra.mxu0 0.0
        %2747 = vmatprep.subr.mxu0 0.0
        %2748 = vmatpush1.msra.mxu0 0.0
        %2749 = vmatprep.subr.mxu0 0.0
        %2750 = vmatpush1.msra.mxu0 0.0
        %2751 = vmatprep.subr.mxu0 0.0
        %2752 = vmatpush1.msra.mxu0 0.0
        %2753 = vmatprep.subr.mxu0 0.0
        %2754 = vmatpush1.msra.mxu0 0.0
        %2755 = vmatprep.subr.mxu0 0.0
        %2756 = vmatpush1.msra.mxu0 0.0
        %2757 = vmatprep.subr.mxu0 0.0
        %2758 = vmatpush1.msra.mxu0 0.0
        %2759 = vmatprep.subr.mxu0 0.0
        %2760 = vmatpush1.msra.mxu0 0.0
        %2761 = vmatprep.subr.mxu0 0.0
        %2762 = vmatpush1.msra.mxu0 0.0
        %2763 = vmatprep.subr.mxu0 %v2499
        %2764 = vmatpush1.msra.mxu0 %v2498
        %2765 = vmatprep.subr.mxu0 %v2483
        %2766 = vmatpush1.msra.mxu0 %v2482
        %2767 = vmatprep.subr.mxu0 %v2467
        %2768 = vmatpush1.msra.mxu0 %v2466
        %2769 = vmatprep.subr.mxu0 %v2451
        %2770 = vmatpush1.msra.mxu0 %v2450
        %2771 = vmatprep.subr.mxu0 0.0
        %2772 = vmatpush2.msra.mxu0 0.0
        %2773 = vmatprep.subr.mxu0 0.0
        %2774 = vmatpush2.msra.mxu0 0.0
        %2775 = vmatprep.subr.mxu0 0.0
        %2776 = vmatpush2.msra.mxu0 0.0
        %2777 = vmatprep.subr.mxu0 0.0
        %2778 = vmatpush2.msra.mxu0 0.0
        %2779 = vmatprep.subr.mxu0 0.0
        %2780 = vmatpush2.msra.mxu0 0.0
        %2781 = vmatprep.subr.mxu0 0.0
        %2782 = vmatpush2.msra.mxu0 0.0
        %2783 = vmatprep.subr.mxu0 0.0
        %2784 = vmatpush2.msra.mxu0 0.0
        %2785 = vmatprep.subr.mxu0 0.0
        %2786 = vmatpush2.msra.mxu0 0.0
        %2787 = vmatprep.subr.mxu0 0.0
        %2788 = vmatpush2.msra.mxu0 0.0
        %2789 = vmatprep.subr.mxu0 0.0
        %2790 = vmatpush2.msra.mxu0 0.0
        %2791 = vmatprep.subr.mxu0 0.0
        %2792 = vmatpush2.msra.mxu0 0.0
        %2793 = vmatprep.subr.mxu0 0.0
        %2794 = vmatpush2.msra.mxu0 0.0
        %2795 = vmatprep.subr.mxu0 0.0
        %2796 = vmatpush2.msra.mxu0 0.0
        %2797 = vmatprep.subr.mxu0 0.0
        %2798 = vmatpush2.msra.mxu0 0.0
        %2799 = vmatprep.subr.mxu0 0.0
        %2800 = vmatpush2.msra.mxu0 0.0
        %2801 = vmatprep.subr.mxu0 0.0
        %2802 = vmatpush2.msra.mxu0 0.0
        %2803 = vmatprep.mubr.f32.mxu0 0.0
        %2804 = vmatmul.mubr.f32.gmra.mxu0 %v2595
        %v2805 = vpop.f32.mrf.mxu0
        %v2806 = vadd.f32 %v2533, %v2805
        %v2807 = vpop.f32.mrf.mxu0
        %v2808 = vadd.f32 %v2537, %v2807
        %2809 = vdwg.mxu0
        %2810 = vmatprep.subr.mxu0 0.0
        %2811 = vmatpush1.msra.mxu0 0.0
        %2812 = vmatprep.subr.mxu0 0.0
        %2813 = vmatpush1.msra.mxu0 0.0
        %2814 = vmatprep.subr.mxu0 0.0
        %2815 = vmatpush1.msra.mxu0 0.0
        %2816 = vmatprep.subr.mxu0 0.0
        %2817 = vmatpush1.msra.mxu0 0.0
        %2818 = vmatprep.subr.mxu0 0.0
        %2819 = vmatpush1.msra.mxu0 0.0
        %2820 = vmatprep.subr.mxu0 0.0
        %2821 = vmatpush1.msra.mxu0 0.0
        %2822 = vmatprep.subr.mxu0 0.0
        %2823 = vmatpush1.msra.mxu0 0.0
        %2824 = vmatprep.subr.mxu0 0.0
        %2825 = vmatpush1.msra.mxu0 0.0
        %2826 = vmatprep.subr.mxu0 0.0
        %2827 = vmatpush1.msra.mxu0 0.0
        %2828 = vmatprep.subr.mxu0 0.0
        %2829 = vmatpush1.msra.mxu0 0.0
        %2830 = vmatprep.subr.mxu0 0.0
        %2831 = vmatpush1.msra.mxu0 0.0
        %2832 = vmatprep.subr.mxu0 0.0
        %2833 = vmatpush1.msra.mxu0 0.0
        %2834 = vmatprep.subr.mxu0 %v2501
        %2835 = vmatpush1.msra.mxu0 %v2500
        %2836 = vmatprep.subr.mxu0 %v2485
        %2837 = vmatpush1.msra.mxu0 %v2484
        %2838 = vmatprep.subr.mxu0 %v2469
        %2839 = vmatpush1.msra.mxu0 %v2468
        %2840 = vmatprep.subr.mxu0 %v2453
        %2841 = vmatpush1.msra.mxu0 %v2452
        %2842 = vmatprep.subr.mxu0 0.0
        %2843 = vmatpush2.msra.mxu0 0.0
        %2844 = vmatprep.subr.mxu0 0.0
        %2845 = vmatpush2.msra.mxu0 0.0
        %2846 = vmatprep.subr.mxu0 0.0
        %2847 = vmatpush2.msra.mxu0 0.0
        %2848 = vmatprep.subr.mxu0 0.0
        %2849 = vmatpush2.msra.mxu0 0.0
        %2850 = vmatprep.subr.mxu0 0.0
        %2851 = vmatpush2.msra.mxu0 0.0
        %2852 = vmatprep.subr.mxu0 0.0
        %2853 = vmatpush2.msra.mxu0 0.0
        %2854 = vmatprep.subr.mxu0 0.0
        %2855 = vmatpush2.msra.mxu0 0.0
        %2856 = vmatprep.subr.mxu0 0.0
        %2857 = vmatpush2.msra.mxu0 0.0
        %2858 = vmatprep.subr.mxu0 0.0
        %2859 = vmatpush2.msra.mxu0 0.0
        %2860 = vmatprep.subr.mxu0 0.0
        %2861 = vmatpush2.msra.mxu0 0.0
        %2862 = vmatprep.subr.mxu0 0.0
        %2863 = vmatpush2.msra.mxu0 0.0
        %2864 = vmatprep.subr.mxu0 0.0
        %2865 = vmatpush2.msra.mxu0 0.0
        %2866 = vmatprep.subr.mxu0 0.0
        %2867 = vmatpush2.msra.mxu0 0.0
        %2868 = vmatprep.subr.mxu0 0.0
        %2869 = vmatpush2.msra.mxu0 0.0
        %2870 = vmatprep.subr.mxu0 0.0
        %2871 = vmatpush2.msra.mxu0 0.0
        %2872 = vmatprep.subr.mxu0 0.0
        %2873 = vmatpush2.msra.mxu0 0.0
        %2874 = vmatprep.mubr.f32.mxu0 0.0
        %2875 = vmatmul.mubr.f32.gmra.mxu0 %v2595
        %v2876 = vpop.f32.mrf.mxu0
        %v2877 = vadd.f32 %v2541, %v2876
        %v2878 = vpop.f32.mrf.mxu0
        %v2879 = vadd.f32 %v2545, %v2878
        %2880 = vdwg.mxu0
        %2881 = vmatprep.subr.mxu0 0.0
        %2882 = vmatpush1.msra.mxu0 0.0
        %2883 = vmatprep.subr.mxu0 0.0
        %2884 = vmatpush1.msra.mxu0 0.0
        %2885 = vmatprep.subr.mxu0 0.0
        %2886 = vmatpush1.msra.mxu0 0.0
        %2887 = vmatprep.subr.mxu0 0.0
        %2888 = vmatpush1.msra.mxu0 0.0
        %2889 = vmatprep.subr.mxu0 0.0
        %2890 = vmatpush1.msra.mxu0 0.0
        %2891 = vmatprep.subr.mxu0 0.0
        %2892 = vmatpush1.msra.mxu0 0.0
        %2893 = vmatprep.subr.mxu0 0.0
        %2894 = vmatpush1.msra.mxu0 0.0
        %2895 = vmatprep.subr.mxu0 0.0
        %2896 = vmatpush1.msra.mxu0 0.0
        %2897 = vmatprep.subr.mxu0 0.0
        %2898 = vmatpush1.msra.mxu0 0.0
        %2899 = vmatprep.subr.mxu0 0.0
        %2900 = vmatpush1.msra.mxu0 0.0
        %2901 = vmatprep.subr.mxu0 0.0
        %2902 = vmatpush1.msra.mxu0 0.0
        %2903 = vmatprep.subr.mxu0 0.0
        %2904 = vmatpush1.msra.mxu0 0.0
        %2905 = vmatprep.subr.mxu0 %v2503
        %2906 = vmatpush1.msra.mxu0 %v2502
        %2907 = vmatprep.subr.mxu0 %v2487
        %2908 = vmatpush1.msra.mxu0 %v2486
        %2909 = vmatprep.subr.mxu0 %v2471
        %2910 = vmatpush1.msra.mxu0 %v2470
        %2911 = vmatprep.subr.mxu0 %v2455
        %2912 = vmatpush1.msra.mxu0 %v2454
        %2913 = vmatprep.subr.mxu0 0.0
        %2914 = vmatpush2.msra.mxu0 0.0
        %2915 = vmatprep.subr.mxu0 0.0
        %2916 = vmatpush2.msra.mxu0 0.0
        %2917 = vmatprep.subr.mxu0 0.0
        %2918 = vmatpush2.msra.mxu0 0.0
        %2919 = vmatprep.subr.mxu0 0.0
        %2920 = vmatpush2.msra.mxu0 0.0
        %2921 = vmatprep.subr.mxu0 0.0
        %2922 = vmatpush2.msra.mxu0 0.0
        %2923 = vmatprep.subr.mxu0 0.0
        %2924 = vmatpush2.msra.mxu0 0.0
        %2925 = vmatprep.subr.mxu0 0.0
        %2926 = vmatpush2.msra.mxu0 0.0
        %2927 = vmatprep.subr.mxu0 0.0
        %2928 = vmatpush2.msra.mxu0 0.0
        %2929 = vmatprep.subr.mxu0 0.0
        %2930 = vmatpush2.msra.mxu0 0.0
        %2931 = vmatprep.subr.mxu0 0.0
        %2932 = vmatpush2.msra.mxu0 0.0
        %2933 = vmatprep.subr.mxu0 0.0
        %2934 = vmatpush2.msra.mxu0 0.0
        %2935 = vmatprep.subr.mxu0 0.0
        %2936 = vmatpush2.msra.mxu0 0.0
        %2937 = vmatprep.subr.mxu0 0.0
        %2938 = vmatpush2.msra.mxu0 0.0
        %2939 = vmatprep.subr.mxu0 0.0
        %2940 = vmatpush2.msra.mxu0 0.0
        %2941 = vmatprep.subr.mxu0 0.0
        %2942 = vmatpush2.msra.mxu0 0.0
        %2943 = vmatprep.subr.mxu0 0.0
        %2944 = vmatpush2.msra.mxu0 0.0
        %2945 = vmatprep.mubr.f32.mxu0 0.0
        %2946 = vmatmul.mubr.f32.gmra.mxu0 %v2595
        %v2947 = vpop.f32.mrf.mxu0
        %v2948 = vadd.f32 %v2549, %v2947
        %v2949 = vpop.f32.mrf.mxu0
        %v2950 = vadd.f32 %v2553, %v2949
        %2951 = vdwg.mxu0
        %2952 = vmatprep.subr.mxu0 0.0
        %2953 = vmatpush1.msra.mxu0 0.0
        %2954 = vmatprep.subr.mxu0 0.0
        %2955 = vmatpush1.msra.mxu0 0.0
        %2956 = vmatprep.subr.mxu0 0.0
        %2957 = vmatpush1.msra.mxu0 0.0
        %2958 = vmatprep.subr.mxu0 0.0
        %2959 = vmatpush1.msra.mxu0 0.0
        %2960 = vmatprep.subr.mxu0 0.0
        %2961 = vmatpush1.msra.mxu0 0.0
        %2962 = vmatprep.subr.mxu0 0.0
        %2963 = vmatpush1.msra.mxu0 0.0
        %2964 = vmatprep.subr.mxu0 0.0
        %2965 = vmatpush1.msra.mxu0 0.0
        %2966 = vmatprep.subr.mxu0 0.0
        %2967 = vmatpush1.msra.mxu0 0.0
        %2968 = vmatprep.subr.mxu0 0.0
        %2969 = vmatpush1.msra.mxu0 0.0
        %2970 = vmatprep.subr.mxu0 0.0
        %2971 = vmatpush1.msra.mxu0 0.0
        %2972 = vmatprep.subr.mxu0 0.0
        %2973 = vmatpush1.msra.mxu0 0.0
        %2974 = vmatprep.subr.mxu0 0.0
        %2975 = vmatpush1.msra.mxu0 0.0
        %2976 = vmatprep.subr.mxu0 %v2505
        %2977 = vmatpush1.msra.mxu0 %v2504
        %2978 = vmatprep.subr.mxu0 %v2489
        %2979 = vmatpush1.msra.mxu0 %v2488
        %2980 = vmatprep.subr.mxu0 %v2473
        %2981 = vmatpush1.msra.mxu0 %v2472
        %2982 = vmatprep.subr.mxu0 %v2457
        %2983 = vmatpush1.msra.mxu0 %v2456
        %2984 = vmatprep.subr.mxu0 0.0
        %2985 = vmatpush2.msra.mxu0 0.0
        %2986 = vmatprep.subr.mxu0 0.0
        %2987 = vmatpush2.msra.mxu0 0.0
        %2988 = vmatprep.subr.mxu0 0.0
        %2989 = vmatpush2.msra.mxu0 0.0
        %2990 = vmatprep.subr.mxu0 0.0
        %2991 = vmatpush2.msra.mxu0 0.0
        %2992 = vmatprep.subr.mxu0 0.0
        %2993 = vmatpush2.msra.mxu0 0.0
        %2994 = vmatprep.subr.mxu0 0.0
        %2995 = vmatpush2.msra.mxu0 0.0
        %2996 = vmatprep.subr.mxu0 0.0
        %2997 = vmatpush2.msra.mxu0 0.0
        %2998 = vmatprep.subr.mxu0 0.0
        %2999 = vmatpush2.msra.mxu0 0.0
        %3000 = vmatprep.subr.mxu0 0.0
        %3001 = vmatpush2.msra.mxu0 0.0
        %3002 = vmatprep.subr.mxu0 0.0
        %3003 = vmatpush2.msra.mxu0 0.0
        %3004 = vmatprep.subr.mxu0 0.0
        %3005 = vmatpush2.msra.mxu0 0.0
        %3006 = vmatprep.subr.mxu0 0.0
        %3007 = vmatpush2.msra.mxu0 0.0
        %3008 = vmatprep.subr.mxu0 0.0
        %3009 = vmatpush2.msra.mxu0 0.0
        %3010 = vmatprep.subr.mxu0 0.0
        %3011 = vmatpush2.msra.mxu0 0.0
        %3012 = vmatprep.subr.mxu0 0.0
        %3013 = vmatpush2.msra.mxu0 0.0
        %3014 = vmatprep.subr.mxu0 0.0
        %3015 = vmatpush2.msra.mxu0 0.0
        %3016 = vmatprep.mubr.f32.mxu0 0.0
        %3017 = vmatmul.mubr.f32.gmra.mxu0 %v2595
        %v3018 = vpop.f32.mrf.mxu0
        %v3019 = vadd.f32 %v2557, %v3018
        %v3020 = vpop.f32.mrf.mxu0
        %v3021 = vadd.f32 %v2561, %v3020
        %3022 = vdwg.mxu0
        %3023 = vmatprep.subr.mxu0 0.0
        %3024 = vmatpush1.msra.mxu0 0.0
        %3025 = vmatprep.subr.mxu0 0.0
        %3026 = vmatpush1.msra.mxu0 0.0
        %3027 = vmatprep.subr.mxu0 0.0
        %3028 = vmatpush1.msra.mxu0 0.0
        %3029 = vmatprep.subr.mxu0 0.0
        %3030 = vmatpush1.msra.mxu0 0.0
        %3031 = vmatprep.subr.mxu0 0.0
        %3032 = vmatpush1.msra.mxu0 0.0
        %3033 = vmatprep.subr.mxu0 0.0
        %3034 = vmatpush1.msra.mxu0 0.0
        %3035 = vmatprep.subr.mxu0 0.0
        %3036 = vmatpush1.msra.mxu0 0.0
        %3037 = vmatprep.subr.mxu0 0.0
        %3038 = vmatpush1.msra.mxu0 0.0
        %3039 = vmatprep.subr.mxu0 0.0
        %3040 = vmatpush1.msra.mxu0 0.0
        %3041 = vmatprep.subr.mxu0 0.0
        %3042 = vmatpush1.msra.mxu0 0.0
        %3043 = vmatprep.subr.mxu0 0.0
        %3044 = vmatpush1.msra.mxu0 0.0
        %3045 = vmatprep.subr.mxu0 0.0
        %3046 = vmatpush1.msra.mxu0 0.0
        %3047 = vmatprep.subr.mxu0 %v2507
        %3048 = vmatpush1.msra.mxu0 %v2506
        %3049 = vmatprep.subr.mxu0 %v2491
        %3050 = vmatpush1.msra.mxu0 %v2490
        %3051 = vmatprep.subr.mxu0 %v2475
        %3052 = vmatpush1.msra.mxu0 %v2474
        %3053 = vmatprep.subr.mxu0 %v2459
        %3054 = vmatpush1.msra.mxu0 %v2458
        %3055 = vmatprep.subr.mxu0 0.0
        %3056 = vmatpush2.msra.mxu0 0.0
        %3057 = vmatprep.subr.mxu0 0.0
        %3058 = vmatpush2.msra.mxu0 0.0
        %3059 = vmatprep.subr.mxu0 0.0
        %3060 = vmatpush2.msra.mxu0 0.0
        %3061 = vmatprep.subr.mxu0 0.0
        %3062 = vmatpush2.msra.mxu0 0.0
        %3063 = vmatprep.subr.mxu0 0.0
        %3064 = vmatpush2.msra.mxu0 0.0
        %3065 = vmatprep.subr.mxu0 0.0
        %3066 = vmatpush2.msra.mxu0 0.0
        %3067 = vmatprep.subr.mxu0 0.0
        %3068 = vmatpush2.msra.mxu0 0.0
        %3069 = vmatprep.subr.mxu0 0.0
        %3070 = vmatpush2.msra.mxu0 0.0
        %3071 = vmatprep.subr.mxu0 0.0
        %3072 = vmatpush2.msra.mxu0 0.0
        %3073 = vmatprep.subr.mxu0 0.0
        %3074 = vmatpush2.msra.mxu0 0.0
        %3075 = vmatprep.subr.mxu0 0.0
        %3076 = vmatpush2.msra.mxu0 0.0
        %3077 = vmatprep.subr.mxu0 0.0
        %3078 = vmatpush2.msra.mxu0 0.0
        %3079 = vmatprep.subr.mxu0 0.0
        %3080 = vmatpush2.msra.mxu0 0.0
        %3081 = vmatprep.subr.mxu0 0.0
        %3082 = vmatpush2.msra.mxu0 0.0
        %3083 = vmatprep.subr.mxu0 0.0
        %3084 = vmatpush2.msra.mxu0 0.0
        %3085 = vmatprep.subr.mxu0 0.0
        %3086 = vmatpush2.msra.mxu0 0.0
        %3087 = vmatprep.mubr.f32.mxu0 0.0
        %3088 = vmatmul.mubr.f32.gmra.mxu0 %v2595
        %v3089 = vpop.f32.mrf.mxu0
        %v3090 = vadd.f32 %v2565, %v3089
        %v3091 = vpop.f32.mrf.mxu0
        %v3092 = vadd.f32 %v2569, %v3091
        %3093 = vdwg.mxu0
        %3094 = vmatprep.subr.mxu0 0.0
        %3095 = vmatpush1.msra.mxu0 0.0
        %3096 = vmatprep.subr.mxu0 0.0
        %3097 = vmatpush1.msra.mxu0 0.0
        %3098 = vmatprep.subr.mxu0 0.0
        %3099 = vmatpush1.msra.mxu0 0.0
        %3100 = vmatprep.subr.mxu0 0.0
        %3101 = vmatpush1.msra.mxu0 0.0
        %3102 = vmatprep.subr.mxu0 0.0
        %3103 = vmatpush1.msra.mxu0 0.0
        %3104 = vmatprep.subr.mxu0 0.0
        %3105 = vmatpush1.msra.mxu0 0.0
        %3106 = vmatprep.subr.mxu0 0.0
        %3107 = vmatpush1.msra.mxu0 0.0
        %3108 = vmatprep.subr.mxu0 0.0
        %3109 = vmatpush1.msra.mxu0 0.0
        %3110 = vmatprep.subr.mxu0 0.0
        %3111 = vmatpush1.msra.mxu0 0.0
        %3112 = vmatprep.subr.mxu0 0.0
        %3113 = vmatpush1.msra.mxu0 0.0
        %3114 = vmatprep.subr.mxu0 0.0
        %3115 = vmatpush1.msra.mxu0 0.0
        %3116 = vmatprep.subr.mxu0 0.0
        %3117 = vmatpush1.msra.mxu0 0.0
        %3118 = vmatprep.subr.mxu0 %v2509
        %3119 = vmatpush1.msra.mxu0 %v2508
        %3120 = vmatprep.subr.mxu0 %v2493
        %3121 = vmatpush1.msra.mxu0 %v2492
        %3122 = vmatprep.subr.mxu0 %v2477
        %3123 = vmatpush1.msra.mxu0 %v2476
        %3124 = vmatprep.subr.mxu0 %v2461
        %3125 = vmatpush1.msra.mxu0 %v2460
        %3126 = vmatprep.subr.mxu0 0.0
        %3127 = vmatpush2.msra.mxu0 0.0
        %3128 = vmatprep.subr.mxu0 0.0
        %3129 = vmatpush2.msra.mxu0 0.0
        %3130 = vmatprep.subr.mxu0 0.0
        %3131 = vmatpush2.msra.mxu0 0.0
        %3132 = vmatprep.subr.mxu0 0.0
        %3133 = vmatpush2.msra.mxu0 0.0
        %3134 = vmatprep.subr.mxu0 0.0
        %3135 = vmatpush2.msra.mxu0 0.0
        %3136 = vmatprep.subr.mxu0 0.0
        %3137 = vmatpush2.msra.mxu0 0.0
        %3138 = vmatprep.subr.mxu0 0.0
        %3139 = vmatpush2.msra.mxu0 0.0
        %3140 = vmatprep.subr.mxu0 0.0
        %3141 = vmatpush2.msra.mxu0 0.0
        %3142 = vmatprep.subr.mxu0 0.0
        %3143 = vmatpush2.msra.mxu0 0.0
        %3144 = vmatprep.subr.mxu0 0.0
        %3145 = vmatpush2.msra.mxu0 0.0
        %3146 = vmatprep.subr.mxu0 0.0
        %3147 = vmatpush2.msra.mxu0 0.0
        %3148 = vmatprep.subr.mxu0 0.0
        %3149 = vmatpush2.msra.mxu0 0.0
        %3150 = vmatprep.subr.mxu0 0.0
        %3151 = vmatpush2.msra.mxu0 0.0
        %3152 = vmatprep.subr.mxu0 0.0
        %3153 = vmatpush2.msra.mxu0 0.0
        %3154 = vmatprep.subr.mxu0 0.0
        %3155 = vmatpush2.msra.mxu0 0.0
        %3156 = vmatprep.subr.mxu0 0.0
        %3157 = vmatpush2.msra.mxu0 0.0
        %3158 = vmatprep.mubr.f32.mxu0 0.0
        %3159 = vmatmul.mubr.f32.gmra.mxu0 %v2595
        %v3160 = vpop.f32.mrf.mxu0
        %v3161 = vadd.f32 %v2573, %v3160
        %v3162 = vpop.f32.mrf.mxu0
        %v3163 = vadd.f32 %v2577, %v3162
        %3164 = vdwg.mxu0
        %v3165 = vmax.f32 %v2664, 0.0
        %v3166 = vmax.f32 %v2666, 0.0
        %v3167 = vmax.f32 %v2735, 0.0
        %v3168 = vmax.f32 %v2737, 0.0
        %v3169 = vmax.f32 %v2806, 0.0
        %v3170 = vmax.f32 %v2808, 0.0
        %v3171 = vmax.f32 %v2877, 0.0
        %v3172 = vmax.f32 %v2879, 0.0
        %v3173 = vmax.f32 %v2948, 0.0
        %v3174 = vmax.f32 %v2950, 0.0
        %v3175 = vmax.f32 %v3019, 0.0
        %v3176 = vmax.f32 %v3021, 0.0
        %v3177 = vmax.f32 %v3090, 0.0
        %v3178 = vmax.f32 %v3092, 0.0
        %v3179 = vmax.f32 %v3161, 0.0
        %v3180 = vmax.f32 %v3163, 0.0
        %v3181 = vld [vmem:[%s61] sm:$0xff]
        %v3182 = vld [vmem:[%s61 + $0x8] sm:$0xff]
        %v3183 = vld [vmem:[%s61 + $0x10] sm:$0xff]
        %v3184 = vld [vmem:[%s61 + $0x18] sm:$0xff]
        %v3185 = vld [vmem:[%s61 + $0x20] sm:$0xff]
        %v3186 = vld [vmem:[%s61 + $0x28] sm:$0xff]
        %v3187 = vld [vmem:[%s61 + $0x30] sm:$0xff]
        %v3188 = vld [vmem:[%s61 + $0x38] sm:$0xff]
        %v3189 = vld [vmem:[%s61 + $0x40] sm:$0xff]
        %v3190 = vld [vmem:[%s61 + $0x48] sm:$0xff]
        %v3191 = vld [vmem:[%s61 + $0x50] sm:$0xff]
        %v3192 = vld [vmem:[%s61 + $0x58] sm:$0xff]
        %v3193 = vld [vmem:[%s61 + $0x60] sm:$0xff]
        %v3194 = vld [vmem:[%s61 + $0x68] sm:$0xff]
        %v3195 = vld [vmem:[%s61 + $0x70] sm:$0xff]
        %v3196 = vld [vmem:[%s61 + $0x78] sm:$0xff]
        %v3197 = vld [vmem:[%s61 + $0x80] sm:$0xff]
        %v3198 = vld [vmem:[%s61 + $0x88] sm:$0xff]
        %v3199 = vld [vmem:[%s61 + $0x90] sm:$0xff]
        %v3200 = vld [vmem:[%s61 + $0x98] sm:$0xff]
        %v3201 = vld [vmem:[%s61 + $0xa0] sm:$0xff]
        %v3202 = vld [vmem:[%s61 + $0xa8] sm:$0xff]
        %v3203 = vld [vmem:[%s61 + $0xb0] sm:$0xff]
        %v3204 = vld [vmem:[%s61 + $0xb8] sm:$0xff]
        %v3205 = vld [vmem:[%s61 + $0xc0] sm:$0xff]
        %v3206 = vld [vmem:[%s61 + $0xc8] sm:$0xff]
        %v3207 = vld [vmem:[%s61 + $0xd0] sm:$0xff]
        %v3208 = vld [vmem:[%s61 + $0xd8] sm:$0xff]
        %v3209 = vld [vmem:[%s61 + $0xe0] sm:$0xff]
        %v3210 = vld [vmem:[%s61 + $0xe8] sm:$0xff]
        %v3211 = vld [vmem:[%s61 + $0xf0] sm:$0xff]
        %v3212 = vld [vmem:[%s61 + $0xf8] sm:$0xff]
        %v3213 = vld [vmem:[%s61 + $0x100] sm:$0xff]
        %v3214 = vld [vmem:[%s61 + $0x108] sm:$0xff]
        %v3215 = vld [vmem:[%s61 + $0x110] sm:$0xff]
        %v3216 = vld [vmem:[%s61 + $0x118] sm:$0xff]
        %v3217 = vld [vmem:[%s61 + $0x120] sm:$0xff]
        %v3218 = vld [vmem:[%s61 + $0x128] sm:$0xff]
        %v3219 = vld [vmem:[%s61 + $0x130] sm:$0xff]
        %v3220 = vld [vmem:[%s61 + $0x138] sm:$0xff]
        %v3221 = vld [vmem:[%s61 + $0x140] sm:$0xff]
        %v3222 = vld [vmem:[%s61 + $0x148] sm:$0xff]
        %v3223 = vld [vmem:[%s61 + $0x150] sm:$0xff]
        %v3224 = vld [vmem:[%s61 + $0x158] sm:$0xff]
        %v3225 = vld [vmem:[%s61 + $0x160] sm:$0xff]
        %v3226 = vld [vmem:[%s61 + $0x168] sm:$0xff]
        %v3227 = vld [vmem:[%s61 + $0x170] sm:$0xff]
        %v3228 = vld [vmem:[%s61 + $0x178] sm:$0xff]
        %v3229 = vld [vmem:[%s61 + $0x180] sm:$0xff]
        %v3230 = vld [vmem:[%s61 + $0x188] sm:$0xff]
        %v3231 = vld [vmem:[%s61 + $0x190] sm:$0xff]
        %v3232 = vld [vmem:[%s61 + $0x198] sm:$0xff]
        %v3233 = vld [vmem:[%s61 + $0x1a0] sm:$0xff]
        %v3234 = vld [vmem:[%s61 + $0x1a8] sm:$0xff]
        %v3235 = vld [vmem:[%s61 + $0x1b0] sm:$0xff]
        %v3236 = vld [vmem:[%s61 + $0x1b8] sm:$0xff]
        %v3237 = vld [vmem:[%s61 + $0x1c0] sm:$0xff]
        %v3238 = vld [vmem:[%s61 + $0x1c8] sm:$0xff]
        %v3239 = vld [vmem:[%s61 + $0x1d0] sm:$0xff]
        %v3240 = vld [vmem:[%s61 + $0x1d8] sm:$0xff]
        %v3241 = vld [vmem:[%s61 + $0x1e0] sm:$0xff]
        %v3242 = vld [vmem:[%s61 + $0x1e8] sm:$0xff]
        %v3243 = vld [vmem:[%s61 + $0x1f0] sm:$0xff]
        %v3244 = vld [vmem:[%s61 + $0x1f8] sm:$0xff]
        %v3245 = vld [vmem:[%s61 + $0x200] sm:$0xff]
        %v3246 = vld [vmem:[%s61 + $0x208] sm:$0xff]
        %v3247 = vld [vmem:[%s61 + $0x210] sm:$0xff]
        %v3248 = vld [vmem:[%s61 + $0x218] sm:$0xff]
        %v3249 = vld [vmem:[%s61 + $0x220] sm:$0xff]
        %v3250 = vld [vmem:[%s61 + $0x228] sm:$0xff]
        %v3251 = vld [vmem:[%s61 + $0x230] sm:$0xff]
        %v3252 = vld [vmem:[%s61 + $0x238] sm:$0xff]
        %v3253 = vld [vmem:[%s61 + $0x240] sm:$0xff]
        %v3254 = vld [vmem:[%s61 + $0x248] sm:$0xff]
        %v3255 = vld [vmem:[%s61 + $0x250] sm:$0xff]
        %v3256 = vld [vmem:[%s61 + $0x258] sm:$0xff]
        %v3257 = vld [vmem:[%s61 + $0x260] sm:$0xff]
        %v3258 = vld [vmem:[%s61 + $0x268] sm:$0xff]
        %v3259 = vld [vmem:[%s61 + $0x270] sm:$0xff]
        %v3260 = vld [vmem:[%s61 + $0x278] sm:$0xff]
        %v3261 = vld [vmem:[%s61 + $0x280] sm:$0xff]
        %v3262 = vld [vmem:[%s61 + $0x288] sm:$0xff]
        %v3263 = vld [vmem:[%s61 + $0x290] sm:$0xff]
        %v3264 = vld [vmem:[%s61 + $0x298] sm:$0xff]
        %v3265 = vld [vmem:[%s61 + $0x2a0] sm:$0xff]
        %v3266 = vld [vmem:[%s61 + $0x2a8] sm:$0xff]
        %v3267 = vld [vmem:[%s61 + $0x2b0] sm:$0xff]
        %v3268 = vld [vmem:[%s61 + $0x2b8] sm:$0xff]
        %v3269 = vld [vmem:[%s61 + $0x2c0] sm:$0xff]
        %v3270 = vld [vmem:[%s61 + $0x2c8] sm:$0xff]
        %v3271 = vld [vmem:[%s61 + $0x2d0] sm:$0xff]
        %v3272 = vld [vmem:[%s61 + $0x2d8] sm:$0xff]
        %v3273 = vld [vmem:[%s61 + $0x2e0] sm:$0xff]
        %v3274 = vld [vmem:[%s61 + $0x2e8] sm:$0xff]
        %v3275 = vld [vmem:[%s61 + $0x2f0] sm:$0xff]
        %v3276 = vld [vmem:[%s61 + $0x2f8] sm:$0xff]
        %v3277 = vld [vmem:[%s61 + $0x300] sm:$0xff]
        %v3278 = vld [vmem:[%s61 + $0x308] sm:$0xff]
        %v3279 = vld [vmem:[%s61 + $0x310] sm:$0xff]
        %v3280 = vld [vmem:[%s61 + $0x318] sm:$0xff]
        %v3281 = vld [vmem:[%s61 + $0x320] sm:$0xff]
        %v3282 = vld [vmem:[%s61 + $0x328] sm:$0xff]
        %v3283 = vld [vmem:[%s61 + $0x330] sm:$0xff]
        %v3284 = vld [vmem:[%s61 + $0x338] sm:$0xff]
        %v3285 = vld [vmem:[%s61 + $0x340] sm:$0xff]
        %v3286 = vld [vmem:[%s61 + $0x348] sm:$0xff]
        %v3287 = vld [vmem:[%s61 + $0x350] sm:$0xff]
        %v3288 = vld [vmem:[%s61 + $0x358] sm:$0xff]
        %v3289 = vld [vmem:[%s61 + $0x360] sm:$0xff]
        %v3290 = vld [vmem:[%s61 + $0x368] sm:$0xff]
        %v3291 = vld [vmem:[%s61 + $0x370] sm:$0xff]
        %v3292 = vld [vmem:[%s61 + $0x378] sm:$0xff]
        %v3293 = vld [vmem:[%s61 + $0x380] sm:$0xff]
        %v3294 = vld [vmem:[%s61 + $0x388] sm:$0xff]
        %v3295 = vld [vmem:[%s61 + $0x390] sm:$0xff]
        %v3296 = vld [vmem:[%s61 + $0x398] sm:$0xff]
        %v3297 = vld [vmem:[%s61 + $0x3a0] sm:$0xff]
        %v3298 = vld [vmem:[%s61 + $0x3a8] sm:$0xff]
        %v3299 = vld [vmem:[%s61 + $0x3b0] sm:$0xff]
        %v3300 = vld [vmem:[%s61 + $0x3b8] sm:$0xff]
        %v3301 = vld [vmem:[%s61 + $0x3c0] sm:$0xff]
        %v3302 = vld [vmem:[%s61 + $0x3c8] sm:$0xff]
        %v3303 = vld [vmem:[%s61 + $0x3d0] sm:$0xff]
        %v3304 = vld [vmem:[%s61 + $0x3d8] sm:$0xff]
        %v3305 = vld [vmem:[%s61 + $0x3e0] sm:$0xff]
        %v3306 = vld [vmem:[%s61 + $0x3e8] sm:$0xff]
        %v3307 = vld [vmem:[%s61 + $0x3f0] sm:$0xff]
        %v3308 = vld [vmem:[%s61 + $0x3f8] sm:$0xff]
        %v3309 = vld [vmem:[%s61 + $0x400] sm:$0xff]
        %v3310 = vld [vmem:[%s61 + $0x408] sm:$0xff]
        %v3311 = vld [vmem:[%s61 + $0x410] sm:$0xff]
        %v3312 = vld [vmem:[%s61 + $0x418] sm:$0xff]
        %v3313 = vld [vmem:[%s61 + $0x420] sm:$0xff]
        %v3314 = vld [vmem:[%s61 + $0x428] sm:$0xff]
        %v3315 = vld [vmem:[%s61 + $0x430] sm:$0xff]
        %v3316 = vld [vmem:[%s61 + $0x438] sm:$0xff]
        %v3317 = vld [vmem:[%s61 + $0x440] sm:$0xff]
        %v3318 = vld [vmem:[%s61 + $0x448] sm:$0xff]
        %v3319 = vld [vmem:[%s61 + $0x450] sm:$0xff]
        %v3320 = vld [vmem:[%s61 + $0x458] sm:$0xff]
        %v3321 = vld [vmem:[%s61 + $0x460] sm:$0xff]
        %v3322 = vld [vmem:[%s61 + $0x468] sm:$0xff]
        %v3323 = vld [vmem:[%s61 + $0x470] sm:$0xff]
        %v3324 = vld [vmem:[%s61 + $0x478] sm:$0xff]
        %v3325 = vld [vmem:[%s61 + $0x480] sm:$0xff]
        %v3326 = vld [vmem:[%s61 + $0x488] sm:$0xff]
        %v3327 = vld [vmem:[%s61 + $0x490] sm:$0xff]
        %v3328 = vld [vmem:[%s61 + $0x498] sm:$0xff]
        %v3329 = vld [vmem:[%s61 + $0x4a0] sm:$0xff]
        %v3330 = vld [vmem:[%s61 + $0x4a8] sm:$0xff]
        %v3331 = vld [vmem:[%s61 + $0x4b0] sm:$0xff]
        %v3332 = vld [vmem:[%s61 + $0x4b8] sm:$0xff]
        %v3333 = vld [vmem:[%s61 + $0x4c0] sm:$0xff]
        %v3334 = vld [vmem:[%s61 + $0x4c8] sm:$0xff]
        %v3335 = vld [vmem:[%s61 + $0x4d0] sm:$0xff]
        %v3336 = vld [vmem:[%s61 + $0x4d8] sm:$0xff]
        %v3337 = vld [vmem:[%s61 + $0x4e0] sm:$0xff]
        %v3338 = vld [vmem:[%s61 + $0x4e8] sm:$0xff]
        %v3339 = vld [vmem:[%s61 + $0x4f0] sm:$0xff]
        %v3340 = vld [vmem:[%s61 + $0x4f8] sm:$0xff]
        %v3341 = vld [vmem:[%s61 + $0x500] sm:$0xff]
        %v3342 = vld [vmem:[%s61 + $0x508] sm:$0xff]
        %v3343 = vld [vmem:[%s61 + $0x510] sm:$0xff]
        %v3344 = vld [vmem:[%s61 + $0x518] sm:$0xff]
        %v3345 = vld [vmem:[%s61 + $0x520] sm:$0xff]
        %v3346 = vld [vmem:[%s61 + $0x528] sm:$0xff]
        %v3347 = vld [vmem:[%s61 + $0x530] sm:$0xff]
        %v3348 = vld [vmem:[%s61 + $0x538] sm:$0xff]
        %v3349 = vld [vmem:[%s61 + $0x540] sm:$0xff]
        %v3350 = vld [vmem:[%s61 + $0x548] sm:$0xff]
        %v3351 = vld [vmem:[%s61 + $0x550] sm:$0xff]
        %v3352 = vld [vmem:[%s61 + $0x558] sm:$0xff]
        %v3353 = vld [vmem:[%s61 + $0x560] sm:$0xff]
        %v3354 = vld [vmem:[%s61 + $0x568] sm:$0xff]
        %v3355 = vld [vmem:[%s61 + $0x570] sm:$0xff]
        %v3356 = vld [vmem:[%s61 + $0x578] sm:$0xff]
        %v3357 = vld [vmem:[%s61 + $0x580] sm:$0xff]
        %v3358 = vld [vmem:[%s61 + $0x588] sm:$0xff]
        %v3359 = vld [vmem:[%s61 + $0x590] sm:$0xff]
        %v3360 = vld [vmem:[%s61 + $0x598] sm:$0xff]
        %v3361 = vld [vmem:[%s61 + $0x5a0] sm:$0xff]
        %v3362 = vld [vmem:[%s61 + $0x5a8] sm:$0xff]
        %v3363 = vld [vmem:[%s61 + $0x5b0] sm:$0xff]
        %v3364 = vld [vmem:[%s61 + $0x5b8] sm:$0xff]
        %v3365 = vld [vmem:[%s61 + $0x5c0] sm:$0xff]
        %v3366 = vld [vmem:[%s61 + $0x5c8] sm:$0xff]
        %v3367 = vld [vmem:[%s61 + $0x5d0] sm:$0xff]
        %v3368 = vld [vmem:[%s61 + $0x5d8] sm:$0xff]
        %v3369 = vld [vmem:[%s61 + $0x5e0] sm:$0xff]
        %v3370 = vld [vmem:[%s61 + $0x5e8] sm:$0xff]
        %v3371 = vld [vmem:[%s61 + $0x5f0] sm:$0xff]
        %v3372 = vld [vmem:[%s61 + $0x5f8] sm:$0xff]
        %v3373 = vld [vmem:[%s61 + $0x600] sm:$0xff]
        %v3374 = vld [vmem:[%s61 + $0x608] sm:$0xff]
        %v3375 = vld [vmem:[%s61 + $0x610] sm:$0xff]
        %v3376 = vld [vmem:[%s61 + $0x618] sm:$0xff]
        %v3377 = vld [vmem:[%s61 + $0x620] sm:$0xff]
        %v3378 = vld [vmem:[%s61 + $0x628] sm:$0xff]
        %v3379 = vld [vmem:[%s61 + $0x630] sm:$0xff]
        %v3380 = vld [vmem:[%s61 + $0x638] sm:$0xff]
        %v3381 = vld [vmem:[%s61 + $0x640] sm:$0xff]
        %v3382 = vld [vmem:[%s61 + $0x648] sm:$0xff]
        %v3383 = vld [vmem:[%s61 + $0x650] sm:$0xff]
        %v3384 = vld [vmem:[%s61 + $0x658] sm:$0xff]
        %v3385 = vld [vmem:[%s61 + $0x660] sm:$0xff]
        %v3386 = vld [vmem:[%s61 + $0x668] sm:$0xff]
        %v3387 = vld [vmem:[%s61 + $0x670] sm:$0xff]
        %v3388 = vld [vmem:[%s61 + $0x678] sm:$0xff]
        %v3389 = vld [vmem:[%s61 + $0x680] sm:$0xff]
        %v3390 = vld [vmem:[%s61 + $0x688] sm:$0xff]
        %v3391 = vld [vmem:[%s61 + $0x690] sm:$0xff]
        %v3392 = vld [vmem:[%s61 + $0x698] sm:$0xff]
        %v3393 = vld [vmem:[%s61 + $0x6a0] sm:$0xff]
        %v3394 = vld [vmem:[%s61 + $0x6a8] sm:$0xff]
        %v3395 = vld [vmem:[%s61 + $0x6b0] sm:$0xff]
        %v3396 = vld [vmem:[%s61 + $0x6b8] sm:$0xff]
        %v3397 = vld [vmem:[%s61 + $0x6c0] sm:$0xff]
        %v3398 = vld [vmem:[%s61 + $0x6c8] sm:$0xff]
        %v3399 = vld [vmem:[%s61 + $0x6d0] sm:$0xff]
        %v3400 = vld [vmem:[%s61 + $0x6d8] sm:$0xff]
        %v3401 = vld [vmem:[%s61 + $0x6e0] sm:$0xff]
        %v3402 = vld [vmem:[%s61 + $0x6e8] sm:$0xff]
        %v3403 = vld [vmem:[%s61 + $0x6f0] sm:$0xff]
        %v3404 = vld [vmem:[%s61 + $0x6f8] sm:$0xff]
        %v3405 = vld [vmem:[%s61 + $0x700] sm:$0xff]
        %v3406 = vld [vmem:[%s61 + $0x708] sm:$0xff]
        %v3407 = vld [vmem:[%s61 + $0x710] sm:$0xff]
        %v3408 = vld [vmem:[%s61 + $0x718] sm:$0xff]
        %v3409 = vld [vmem:[%s61 + $0x720] sm:$0xff]
        %v3410 = vld [vmem:[%s61 + $0x728] sm:$0xff]
        %v3411 = vld [vmem:[%s61 + $0x730] sm:$0xff]
        %v3412 = vld [vmem:[%s61 + $0x738] sm:$0xff]
        %v3413 = vld [vmem:[%s61 + $0x740] sm:$0xff]
        %v3414 = vld [vmem:[%s61 + $0x748] sm:$0xff]
        %v3415 = vld [vmem:[%s61 + $0x750] sm:$0xff]
        %v3416 = vld [vmem:[%s61 + $0x758] sm:$0xff]
        %v3417 = vld [vmem:[%s61 + $0x760] sm:$0xff]
        %v3418 = vld [vmem:[%s61 + $0x768] sm:$0xff]
        %v3419 = vld [vmem:[%s61 + $0x770] sm:$0xff]
        %v3420 = vld [vmem:[%s61 + $0x778] sm:$0xff]
        %v3421 = vld [vmem:[%s61 + $0x780] sm:$0xff]
        %v3422 = vld [vmem:[%s61 + $0x788] sm:$0xff]
        %v3423 = vld [vmem:[%s61 + $0x790] sm:$0xff]
        %v3424 = vld [vmem:[%s61 + $0x798] sm:$0xff]
        %v3425 = vld [vmem:[%s61 + $0x7a0] sm:$0xff]
        %v3426 = vld [vmem:[%s61 + $0x7a8] sm:$0xff]
        %v3427 = vld [vmem:[%s61 + $0x7b0] sm:$0xff]
        %v3428 = vld [vmem:[%s61 + $0x7b8] sm:$0xff]
        %v3429 = vld [vmem:[%s61 + $0x7c0] sm:$0xff]
        %v3430 = vld [vmem:[%s61 + $0x7c8] sm:$0xff]
        %v3431 = vld [vmem:[%s61 + $0x7d0] sm:$0xff]
        %v3432 = vld [vmem:[%s61 + $0x7d8] sm:$0xff]
        %v3433 = vld [vmem:[%s61 + $0x7e0] sm:$0xff]
        %v3434 = vld [vmem:[%s61 + $0x7e8] sm:$0xff]
        %v3435 = vld [vmem:[%s61 + $0x7f0] sm:$0xff]
        %v3436 = vld [vmem:[%s61 + $0x7f8] sm:$0xff]
        %v3437 = vld [vmem:[%s45] sm:$0x1]
        %v3439 = vlaneseq
        %v3440 = vshrl.u32 %v3439, 7
        %v3441 = vsub.s32 0, %v3440
        %v3442 = vrot.slane %v3437, %v3441
        %3444 = vmatprep.subr.mxu0 0.0
        %3445 = vmatpush1.msra.mxu0 %v3196
        %3446 = vmatprep.subr.mxu0 0.0
        %3447 = vmatpush1.msra.mxu0 %v3195
        %3448 = vmatprep.subr.mxu0 0.0
        %3449 = vmatpush1.msra.mxu0 %v3194
        %3450 = vmatprep.subr.mxu0 0.0
        %3451 = vmatpush1.msra.mxu0 %v3193
        %3452 = vmatprep.subr.mxu0 0.0
        %3453 = vmatpush1.msra.mxu0 %v3192
        %3454 = vmatprep.subr.mxu0 0.0
        %3455 = vmatpush1.msra.mxu0 %v3191
        %3456 = vmatprep.subr.mxu0 0.0
        %3457 = vmatpush1.msra.mxu0 %v3190
        %3458 = vmatprep.subr.mxu0 0.0
        %3459 = vmatpush1.msra.mxu0 %v3189
        %3460 = vmatprep.subr.mxu0 0.0
        %3461 = vmatpush1.msra.mxu0 %v3188
        %3462 = vmatprep.subr.mxu0 0.0
        %3463 = vmatpush1.msra.mxu0 %v3187
        %3464 = vmatprep.subr.mxu0 0.0
        %3465 = vmatpush1.msra.mxu0 %v3186
        %3466 = vmatprep.subr.mxu0 0.0
        %3467 = vmatpush1.msra.mxu0 %v3185
        %3468 = vmatprep.subr.mxu0 0.0
        %3469 = vmatpush1.msra.mxu0 %v3184
        %3470 = vmatprep.subr.mxu0 0.0
        %3471 = vmatpush1.msra.mxu0 %v3183
        %3472 = vmatprep.subr.mxu0 0.0
        %3473 = vmatpush1.msra.mxu0 %v3182
        %3474 = vmatprep.subr.mxu0 0.0
        %3475 = vmatpush1.msra.mxu0 %v3181
        %3476 = vmatprep.subr.mxu0 0.0
        %3477 = vmatpush2.msra.mxu0 %v3212
        %3478 = vmatprep.subr.mxu0 0.0
        %3479 = vmatpush2.msra.mxu0 %v3211
        %3480 = vmatprep.subr.mxu0 0.0
        %3481 = vmatpush2.msra.mxu0 %v3210
        %3482 = vmatprep.subr.mxu0 0.0
        %3483 = vmatpush2.msra.mxu0 %v3209
        %3484 = vmatprep.subr.mxu0 0.0
        %3485 = vmatpush2.msra.mxu0 %v3208
        %3486 = vmatprep.subr.mxu0 0.0
        %3487 = vmatpush2.msra.mxu0 %v3207
        %3488 = vmatprep.subr.mxu0 0.0
        %3489 = vmatpush2.msra.mxu0 %v3206
        %3490 = vmatprep.subr.mxu0 0.0
        %3491 = vmatpush2.msra.mxu0 %v3205
        %3492 = vmatprep.subr.mxu0 0.0
        %3493 = vmatpush2.msra.mxu0 %v3204
        %3494 = vmatprep.subr.mxu0 0.0
        %3495 = vmatpush2.msra.mxu0 %v3203
        %3496 = vmatprep.subr.mxu0 0.0
        %3497 = vmatpush2.msra.mxu0 %v3202
        %3498 = vmatprep.subr.mxu0 0.0
        %3499 = vmatpush2.msra.mxu0 %v3201
        %3500 = vmatprep.subr.mxu0 0.0
        %3501 = vmatpush2.msra.mxu0 %v3200
        %3502 = vmatprep.subr.mxu0 0.0
        %3503 = vmatpush2.msra.mxu0 %v3199
        %3504 = vmatprep.subr.mxu0 0.0
        %3505 = vmatpush2.msra.mxu0 %v3198
        %3506 = vmatprep.subr.mxu0 0.0
        %3507 = vmatpush2.msra.mxu0 %v3197
        %3508 = vmatprep.mubr.f32.mxu0 %v3166
        %3509 = vmatmul.mubr.f32.gmra.mxu0 %v3165
        %v3510 = vpop.f32.mrf.mxu0
        %v3511 = vadd.f32 %v3442, %v3510
        %v3512 = vpop.f32.mrf.mxu0
        %3513 = vdwg.mxu0
        %3514 = vmatprep.subr.mxu0 0.0
        %3515 = vmatpush1.msra.mxu0 %v3228
        %3516 = vmatprep.subr.mxu0 0.0
        %3517 = vmatpush1.msra.mxu0 %v3227
        %3518 = vmatprep.subr.mxu0 0.0
        %3519 = vmatpush1.msra.mxu0 %v3226
        %3520 = vmatprep.subr.mxu0 0.0
        %3521 = vmatpush1.msra.mxu0 %v3225
        %3522 = vmatprep.subr.mxu0 0.0
        %3523 = vmatpush1.msra.mxu0 %v3224
        %3524 = vmatprep.subr.mxu0 0.0
        %3525 = vmatpush1.msra.mxu0 %v3223
        %3526 = vmatprep.subr.mxu0 0.0
        %3527 = vmatpush1.msra.mxu0 %v3222
        %3528 = vmatprep.subr.mxu0 0.0
        %3529 = vmatpush1.msra.mxu0 %v3221
        %3530 = vmatprep.subr.mxu0 0.0
        %3531 = vmatpush1.msra.mxu0 %v3220
        %3532 = vmatprep.subr.mxu0 0.0
        %3533 = vmatpush1.msra.mxu0 %v3219
        %3534 = vmatprep.subr.mxu0 0.0
        %3535 = vmatpush1.msra.mxu0 %v3218
        %3536 = vmatprep.subr.mxu0 0.0
        %3537 = vmatpush1.msra.mxu0 %v3217
        %3538 = vmatprep.subr.mxu0 0.0
        %3539 = vmatpush1.msra.mxu0 %v3216
        %3540 = vmatprep.subr.mxu0 0.0
        %3541 = vmatpush1.msra.mxu0 %v3215
        %3542 = vmatprep.subr.mxu0 0.0
        %3543 = vmatpush1.msra.mxu0 %v3214
        %3544 = vmatprep.subr.mxu0 0.0
        %3545 = vmatpush1.msra.mxu0 %v3213
        %3546 = vmatprep.subr.mxu0 0.0
        %3547 = vmatpush2.msra.mxu0 %v3244
        %3548 = vmatprep.subr.mxu0 0.0
        %3549 = vmatpush2.msra.mxu0 %v3243
        %3550 = vmatprep.subr.mxu0 0.0
        %3551 = vmatpush2.msra.mxu0 %v3242
        %3552 = vmatprep.subr.mxu0 0.0
        %3553 = vmatpush2.msra.mxu0 %v3241
        %3554 = vmatprep.subr.mxu0 0.0
        %3555 = vmatpush2.msra.mxu0 %v3240
        %3556 = vmatprep.subr.mxu0 0.0
        %3557 = vmatpush2.msra.mxu0 %v3239
        %3558 = vmatprep.subr.mxu0 0.0
        %3559 = vmatpush2.msra.mxu0 %v3238
        %3560 = vmatprep.subr.mxu0 0.0
        %3561 = vmatpush2.msra.mxu0 %v3237
        %3562 = vmatprep.subr.mxu0 0.0
        %3563 = vmatpush2.msra.mxu0 %v3236
        %3564 = vmatprep.subr.mxu0 0.0
        %3565 = vmatpush2.msra.mxu0 %v3235
        %3566 = vmatprep.subr.mxu0 0.0
        %3567 = vmatpush2.msra.mxu0 %v3234
        %3568 = vmatprep.subr.mxu0 0.0
        %3569 = vmatpush2.msra.mxu0 %v3233
        %3570 = vmatprep.subr.mxu0 0.0
        %3571 = vmatpush2.msra.mxu0 %v3232
        %3572 = vmatprep.subr.mxu0 0.0
        %3573 = vmatpush2.msra.mxu0 %v3231
        %3574 = vmatprep.subr.mxu0 0.0
        %3575 = vmatpush2.msra.mxu0 %v3230
        %3576 = vmatprep.subr.mxu0 0.0
        %3577 = vmatpush2.msra.mxu0 %v3229
        %3578 = vmatprep.mubr.f32.mxu0 %v3168
        %3579 = vmatmul.mubr.f32.gmra.mxu0 %v3167
        %v3580 = vpop.f32.mrf.mxu0
        %v3581 = vadd.f32 %v3511, %v3580
        %v3582 = vpop.f32.mrf.mxu0
        %3583 = vdwg.mxu0
        %3584 = vmatprep.subr.mxu0 0.0
        %3585 = vmatpush1.msra.mxu0 %v3260
        %3586 = vmatprep.subr.mxu0 0.0
        %3587 = vmatpush1.msra.mxu0 %v3259
        %3588 = vmatprep.subr.mxu0 0.0
        %3589 = vmatpush1.msra.mxu0 %v3258
        %3590 = vmatprep.subr.mxu0 0.0
        %3591 = vmatpush1.msra.mxu0 %v3257
        %3592 = vmatprep.subr.mxu0 0.0
        %3593 = vmatpush1.msra.mxu0 %v3256
        %3594 = vmatprep.subr.mxu0 0.0
        %3595 = vmatpush1.msra.mxu0 %v3255
        %3596 = vmatprep.subr.mxu0 0.0
        %3597 = vmatpush1.msra.mxu0 %v3254
        %3598 = vmatprep.subr.mxu0 0.0
        %3599 = vmatpush1.msra.mxu0 %v3253
        %3600 = vmatprep.subr.mxu0 0.0
        %3601 = vmatpush1.msra.mxu0 %v3252
        %3602 = vmatprep.subr.mxu0 0.0
        %3603 = vmatpush1.msra.mxu0 %v3251
        %3604 = vmatprep.subr.mxu0 0.0
        %3605 = vmatpush1.msra.mxu0 %v3250
        %3606 = vmatprep.subr.mxu0 0.0
        %3607 = vmatpush1.msra.mxu0 %v3249
        %3608 = vmatprep.subr.mxu0 0.0
        %3609 = vmatpush1.msra.mxu0 %v3248
        %3610 = vmatprep.subr.mxu0 0.0
        %3611 = vmatpush1.msra.mxu0 %v3247
        %3612 = vmatprep.subr.mxu0 0.0
        %3613 = vmatpush1.msra.mxu0 %v3246
        %3614 = vmatprep.subr.mxu0 0.0
        %3615 = vmatpush1.msra.mxu0 %v3245
        %3616 = vmatprep.subr.mxu0 0.0
        %3617 = vmatpush2.msra.mxu0 %v3276
        %3618 = vmatprep.subr.mxu0 0.0
        %3619 = vmatpush2.msra.mxu0 %v3275
        %3620 = vmatprep.subr.mxu0 0.0
        %3621 = vmatpush2.msra.mxu0 %v3274
        %3622 = vmatprep.subr.mxu0 0.0
        %3623 = vmatpush2.msra.mxu0 %v3273
        %3624 = vmatprep.subr.mxu0 0.0
        %3625 = vmatpush2.msra.mxu0 %v3272
        %3626 = vmatprep.subr.mxu0 0.0
        %3627 = vmatpush2.msra.mxu0 %v3271
        %3628 = vmatprep.subr.mxu0 0.0
        %3629 = vmatpush2.msra.mxu0 %v3270
        %3630 = vmatprep.subr.mxu0 0.0
        %3631 = vmatpush2.msra.mxu0 %v3269
        %3632 = vmatprep.subr.mxu0 0.0
        %3633 = vmatpush2.msra.mxu0 %v3268
        %3634 = vmatprep.subr.mxu0 0.0
        %3635 = vmatpush2.msra.mxu0 %v3267
        %3636 = vmatprep.subr.mxu0 0.0
        %3637 = vmatpush2.msra.mxu0 %v3266
        %3638 = vmatprep.subr.mxu0 0.0
        %3639 = vmatpush2.msra.mxu0 %v3265
        %3640 = vmatprep.subr.mxu0 0.0
        %3641 = vmatpush2.msra.mxu0 %v3264
        %3642 = vmatprep.subr.mxu0 0.0
        %3643 = vmatpush2.msra.mxu0 %v3263
        %3644 = vmatprep.subr.mxu0 0.0
        %3645 = vmatpush2.msra.mxu0 %v3262
        %3646 = vmatprep.subr.mxu0 0.0
        %3647 = vmatpush2.msra.mxu0 %v3261
        %3648 = vmatprep.mubr.f32.mxu0 %v3170
        %3649 = vmatmul.mubr.f32.gmra.mxu0 %v3169
        %v3650 = vpop.f32.mrf.mxu0
        %v3651 = vadd.f32 %v3581, %v3650
        %v3652 = vpop.f32.mrf.mxu0
        %3653 = vdwg.mxu0
        %3654 = vmatprep.subr.mxu0 0.0
        %3655 = vmatpush1.msra.mxu0 %v3292
        %3656 = vmatprep.subr.mxu0 0.0
        %3657 = vmatpush1.msra.mxu0 %v3291
        %3658 = vmatprep.subr.mxu0 0.0
        %3659 = vmatpush1.msra.mxu0 %v3290
        %3660 = vmatprep.subr.mxu0 0.0
        %3661 = vmatpush1.msra.mxu0 %v3289
        %3662 = vmatprep.subr.mxu0 0.0
        %3663 = vmatpush1.msra.mxu0 %v3288
        %3664 = vmatprep.subr.mxu0 0.0
        %3665 = vmatpush1.msra.mxu0 %v3287
        %3666 = vmatprep.subr.mxu0 0.0
        %3667 = vmatpush1.msra.mxu0 %v3286
        %3668 = vmatprep.subr.mxu0 0.0
        %3669 = vmatpush1.msra.mxu0 %v3285
        %3670 = vmatprep.subr.mxu0 0.0
        %3671 = vmatpush1.msra.mxu0 %v3284
        %3672 = vmatprep.subr.mxu0 0.0
        %3673 = vmatpush1.msra.mxu0 %v3283
        %3674 = vmatprep.subr.mxu0 0.0
        %3675 = vmatpush1.msra.mxu0 %v3282
        %3676 = vmatprep.subr.mxu0 0.0
        %3677 = vmatpush1.msra.mxu0 %v3281
        %3678 = vmatprep.subr.mxu0 0.0
        %3679 = vmatpush1.msra.mxu0 %v3280
        %3680 = vmatprep.subr.mxu0 0.0
        %3681 = vmatpush1.msra.mxu0 %v3279
        %3682 = vmatprep.subr.mxu0 0.0
        %3683 = vmatpush1.msra.mxu0 %v3278
        %3684 = vmatprep.subr.mxu0 0.0
        %3685 = vmatpush1.msra.mxu0 %v3277
        %3686 = vmatprep.subr.mxu0 0.0
        %3687 = vmatpush2.msra.mxu0 %v3308
        %3688 = vmatprep.subr.mxu0 0.0
        %3689 = vmatpush2.msra.mxu0 %v3307
        %3690 = vmatprep.subr.mxu0 0.0
        %3691 = vmatpush2.msra.mxu0 %v3306
        %3692 = vmatprep.subr.mxu0 0.0
        %3693 = vmatpush2.msra.mxu0 %v3305
        %3694 = vmatprep.subr.mxu0 0.0
        %3695 = vmatpush2.msra.mxu0 %v3304
        %3696 = vmatprep.subr.mxu0 0.0
        %3697 = vmatpush2.msra.mxu0 %v3303
        %3698 = vmatprep.subr.mxu0 0.0
        %3699 = vmatpush2.msra.mxu0 %v3302
        %3700 = vmatprep.subr.mxu0 0.0
        %3701 = vmatpush2.msra.mxu0 %v3301
        %3702 = vmatprep.subr.mxu0 0.0
        %3703 = vmatpush2.msra.mxu0 %v3300
        %3704 = vmatprep.subr.mxu0 0.0
        %3705 = vmatpush2.msra.mxu0 %v3299
        %3706 = vmatprep.subr.mxu0 0.0
        %3707 = vmatpush2.msra.mxu0 %v3298
        %3708 = vmatprep.subr.mxu0 0.0
        %3709 = vmatpush2.msra.mxu0 %v3297
        %3710 = vmatprep.subr.mxu0 0.0
        %3711 = vmatpush2.msra.mxu0 %v3296
        %3712 = vmatprep.subr.mxu0 0.0
        %3713 = vmatpush2.msra.mxu0 %v3295
        %3714 = vmatprep.subr.mxu0 0.0
        %3715 = vmatpush2.msra.mxu0 %v3294
        %3716 = vmatprep.subr.mxu0 0.0
        %3717 = vmatpush2.msra.mxu0 %v3293
        %3718 = vmatprep.mubr.f32.mxu0 %v3172
        %3719 = vmatmul.mubr.f32.gmra.mxu0 %v3171
        %v3720 = vpop.f32.mrf.mxu0
        %v3721 = vadd.f32 %v3651, %v3720
        %v3722 = vpop.f32.mrf.mxu0
        %3723 = vdwg.mxu0
        %3724 = vmatprep.subr.mxu0 0.0
        %3725 = vmatpush1.msra.mxu0 %v3324
        %3726 = vmatprep.subr.mxu0 0.0
        %3727 = vmatpush1.msra.mxu0 %v3323
        %3728 = vmatprep.subr.mxu0 0.0
        %3729 = vmatpush1.msra.mxu0 %v3322
        %3730 = vmatprep.subr.mxu0 0.0
        %3731 = vmatpush1.msra.mxu0 %v3321
        %3732 = vmatprep.subr.mxu0 0.0
        %3733 = vmatpush1.msra.mxu0 %v3320
        %3734 = vmatprep.subr.mxu0 0.0
        %3735 = vmatpush1.msra.mxu0 %v3319
        %3736 = vmatprep.subr.mxu0 0.0
        %3737 = vmatpush1.msra.mxu0 %v3318
        %3738 = vmatprep.subr.mxu0 0.0
        %3739 = vmatpush1.msra.mxu0 %v3317
        %3740 = vmatprep.subr.mxu0 0.0
        %3741 = vmatpush1.msra.mxu0 %v3316
        %3742 = vmatprep.subr.mxu0 0.0
        %3743 = vmatpush1.msra.mxu0 %v3315
        %3744 = vmatprep.subr.mxu0 0.0
        %3745 = vmatpush1.msra.mxu0 %v3314
        %3746 = vmatprep.subr.mxu0 0.0
        %3747 = vmatpush1.msra.mxu0 %v3313
        %3748 = vmatprep.subr.mxu0 0.0
        %3749 = vmatpush1.msra.mxu0 %v3312
        %3750 = vmatprep.subr.mxu0 0.0
        %3751 = vmatpush1.msra.mxu0 %v3311
        %3752 = vmatprep.subr.mxu0 0.0
        %3753 = vmatpush1.msra.mxu0 %v3310
        %3754 = vmatprep.subr.mxu0 0.0
        %3755 = vmatpush1.msra.mxu0 %v3309
        %3756 = vmatprep.subr.mxu0 0.0
        %3757 = vmatpush2.msra.mxu0 %v3340
        %3758 = vmatprep.subr.mxu0 0.0
        %3759 = vmatpush2.msra.mxu0 %v3339
        %3760 = vmatprep.subr.mxu0 0.0
        %3761 = vmatpush2.msra.mxu0 %v3338
        %3762 = vmatprep.subr.mxu0 0.0
        %3763 = vmatpush2.msra.mxu0 %v3337
        %3764 = vmatprep.subr.mxu0 0.0
        %3765 = vmatpush2.msra.mxu0 %v3336
        %3766 = vmatprep.subr.mxu0 0.0
        %3767 = vmatpush2.msra.mxu0 %v3335
        %3768 = vmatprep.subr.mxu0 0.0
        %3769 = vmatpush2.msra.mxu0 %v3334
        %3770 = vmatprep.subr.mxu0 0.0
        %3771 = vmatpush2.msra.mxu0 %v3333
        %3772 = vmatprep.subr.mxu0 0.0
        %3773 = vmatpush2.msra.mxu0 %v3332
        %3774 = vmatprep.subr.mxu0 0.0
        %3775 = vmatpush2.msra.mxu0 %v3331
        %3776 = vmatprep.subr.mxu0 0.0
        %3777 = vmatpush2.msra.mxu0 %v3330
        %3778 = vmatprep.subr.mxu0 0.0
        %3779 = vmatpush2.msra.mxu0 %v3329
        %3780 = vmatprep.subr.mxu0 0.0
        %3781 = vmatpush2.msra.mxu0 %v3328
        %3782 = vmatprep.subr.mxu0 0.0
        %3783 = vmatpush2.msra.mxu0 %v3327
        %3784 = vmatprep.subr.mxu0 0.0
        %3785 = vmatpush2.msra.mxu0 %v3326
        %3786 = vmatprep.subr.mxu0 0.0
        %3787 = vmatpush2.msra.mxu0 %v3325
        %3788 = vmatprep.mubr.f32.mxu0 %v3174
        %3789 = vmatmul.mubr.f32.gmra.mxu0 %v3173
        %v3790 = vpop.f32.mrf.mxu0
        %v3791 = vadd.f32 %v3721, %v3790
        %v3792 = vpop.f32.mrf.mxu0
        %3793 = vdwg.mxu0
        %3794 = vmatprep.subr.mxu0 0.0
        %3795 = vmatpush1.msra.mxu0 %v3356
        %3796 = vmatprep.subr.mxu0 0.0
        %3797 = vmatpush1.msra.mxu0 %v3355
        %3798 = vmatprep.subr.mxu0 0.0
        %3799 = vmatpush1.msra.mxu0 %v3354
        %3800 = vmatprep.subr.mxu0 0.0
        %3801 = vmatpush1.msra.mxu0 %v3353
        %3802 = vmatprep.subr.mxu0 0.0
        %3803 = vmatpush1.msra.mxu0 %v3352
        %3804 = vmatprep.subr.mxu0 0.0
        %3805 = vmatpush1.msra.mxu0 %v3351
        %3806 = vmatprep.subr.mxu0 0.0
        %3807 = vmatpush1.msra.mxu0 %v3350
        %3808 = vmatprep.subr.mxu0 0.0
        %3809 = vmatpush1.msra.mxu0 %v3349
        %3810 = vmatprep.subr.mxu0 0.0
        %3811 = vmatpush1.msra.mxu0 %v3348
        %3812 = vmatprep.subr.mxu0 0.0
        %3813 = vmatpush1.msra.mxu0 %v3347
        %3814 = vmatprep.subr.mxu0 0.0
        %3815 = vmatpush1.msra.mxu0 %v3346
        %3816 = vmatprep.subr.mxu0 0.0
        %3817 = vmatpush1.msra.mxu0 %v3345
        %3818 = vmatprep.subr.mxu0 0.0
        %3819 = vmatpush1.msra.mxu0 %v3344
        %3820 = vmatprep.subr.mxu0 0.0
        %3821 = vmatpush1.msra.mxu0 %v3343
        %3822 = vmatprep.subr.mxu0 0.0
        %3823 = vmatpush1.msra.mxu0 %v3342
        %3824 = vmatprep.subr.mxu0 0.0
        %3825 = vmatpush1.msra.mxu0 %v3341
        %3826 = vmatprep.subr.mxu0 0.0
        %3827 = vmatpush2.msra.mxu0 %v3372
        %3828 = vmatprep.subr.mxu0 0.0
        %3829 = vmatpush2.msra.mxu0 %v3371
        %3830 = vmatprep.subr.mxu0 0.0
        %3831 = vmatpush2.msra.mxu0 %v3370
        %3832 = vmatprep.subr.mxu0 0.0
        %3833 = vmatpush2.msra.mxu0 %v3369
        %3834 = vmatprep.subr.mxu0 0.0
        %3835 = vmatpush2.msra.mxu0 %v3368
        %3836 = vmatprep.subr.mxu0 0.0
        %3837 = vmatpush2.msra.mxu0 %v3367
        %3838 = vmatprep.subr.mxu0 0.0
        %3839 = vmatpush2.msra.mxu0 %v3366
        %3840 = vmatprep.subr.mxu0 0.0
        %3841 = vmatpush2.msra.mxu0 %v3365
        %3842 = vmatprep.subr.mxu0 0.0
        %3843 = vmatpush2.msra.mxu0 %v3364
        %3844 = vmatprep.subr.mxu0 0.0
        %3845 = vmatpush2.msra.mxu0 %v3363
        %3846 = vmatprep.subr.mxu0 0.0
        %3847 = vmatpush2.msra.mxu0 %v3362
        %3848 = vmatprep.subr.mxu0 0.0
        %3849 = vmatpush2.msra.mxu0 %v3361
        %3850 = vmatprep.subr.mxu0 0.0
        %3851 = vmatpush2.msra.mxu0 %v3360
        %3852 = vmatprep.subr.mxu0 0.0
        %3853 = vmatpush2.msra.mxu0 %v3359
        %3854 = vmatprep.subr.mxu0 0.0
        %3855 = vmatpush2.msra.mxu0 %v3358
        %3856 = vmatprep.subr.mxu0 0.0
        %3857 = vmatpush2.msra.mxu0 %v3357
        %3858 = vmatprep.mubr.f32.mxu0 %v3176
        %3859 = vmatmul.mubr.f32.gmra.mxu0 %v3175
        %v3860 = vpop.f32.mrf.mxu0
        %v3861 = vadd.f32 %v3791, %v3860
        %v3862 = vpop.f32.mrf.mxu0
        %3863 = vdwg.mxu0
        %3864 = vmatprep.subr.mxu0 0.0
        %3865 = vmatpush1.msra.mxu0 %v3388
        %3866 = vmatprep.subr.mxu0 0.0
        %3867 = vmatpush1.msra.mxu0 %v3387
        %3868 = vmatprep.subr.mxu0 0.0
        %3869 = vmatpush1.msra.mxu0 %v3386
        %3870 = vmatprep.subr.mxu0 0.0
        %3871 = vmatpush1.msra.mxu0 %v3385
        %3872 = vmatprep.subr.mxu0 0.0
        %3873 = vmatpush1.msra.mxu0 %v3384
        %3874 = vmatprep.subr.mxu0 0.0
        %3875 = vmatpush1.msra.mxu0 %v3383
        %3876 = vmatprep.subr.mxu0 0.0
        %3877 = vmatpush1.msra.mxu0 %v3382
        %3878 = vmatprep.subr.mxu0 0.0
        %3879 = vmatpush1.msra.mxu0 %v3381
        %3880 = vmatprep.subr.mxu0 0.0
        %3881 = vmatpush1.msra.mxu0 %v3380
        %3882 = vmatprep.subr.mxu0 0.0
        %3883 = vmatpush1.msra.mxu0 %v3379
        %3884 = vmatprep.subr.mxu0 0.0
        %3885 = vmatpush1.msra.mxu0 %v3378
        %3886 = vmatprep.subr.mxu0 0.0
        %3887 = vmatpush1.msra.mxu0 %v3377
        %3888 = vmatprep.subr.mxu0 0.0
        %3889 = vmatpush1.msra.mxu0 %v3376
        %3890 = vmatprep.subr.mxu0 0.0
        %3891 = vmatpush1.msra.mxu0 %v3375
        %3892 = vmatprep.subr.mxu0 0.0
        %3893 = vmatpush1.msra.mxu0 %v3374
        %3894 = vmatprep.subr.mxu0 0.0
        %3895 = vmatpush1.msra.mxu0 %v3373
        %3896 = vmatprep.subr.mxu0 0.0
        %3897 = vmatpush2.msra.mxu0 %v3404
        %3898 = vmatprep.subr.mxu0 0.0
        %3899 = vmatpush2.msra.mxu0 %v3403
        %3900 = vmatprep.subr.mxu0 0.0
        %3901 = vmatpush2.msra.mxu0 %v3402
        %3902 = vmatprep.subr.mxu0 0.0
        %3903 = vmatpush2.msra.mxu0 %v3401
        %3904 = vmatprep.subr.mxu0 0.0
        %3905 = vmatpush2.msra.mxu0 %v3400
        %3906 = vmatprep.subr.mxu0 0.0
        %3907 = vmatpush2.msra.mxu0 %v3399
        %3908 = vmatprep.subr.mxu0 0.0
        %3909 = vmatpush2.msra.mxu0 %v3398
        %3910 = vmatprep.subr.mxu0 0.0
        %3911 = vmatpush2.msra.mxu0 %v3397
        %3912 = vmatprep.subr.mxu0 0.0
        %3913 = vmatpush2.msra.mxu0 %v3396
        %3914 = vmatprep.subr.mxu0 0.0
        %3915 = vmatpush2.msra.mxu0 %v3395
        %3916 = vmatprep.subr.mxu0 0.0
        %3917 = vmatpush2.msra.mxu0 %v3394
        %3918 = vmatprep.subr.mxu0 0.0
        %3919 = vmatpush2.msra.mxu0 %v3393
        %3920 = vmatprep.subr.mxu0 0.0
        %3921 = vmatpush2.msra.mxu0 %v3392
        %3922 = vmatprep.subr.mxu0 0.0
        %3923 = vmatpush2.msra.mxu0 %v3391
        %3924 = vmatprep.subr.mxu0 0.0
        %3925 = vmatpush2.msra.mxu0 %v3390
        %3926 = vmatprep.subr.mxu0 0.0
        %3927 = vmatpush2.msra.mxu0 %v3389
        %3928 = vmatprep.mubr.f32.mxu0 %v3178
        %3929 = vmatmul.mubr.f32.gmra.mxu0 %v3177
        %v3930 = vpop.f32.mrf.mxu0
        %v3931 = vadd.f32 %v3861, %v3930
        %v3932 = vpop.f32.mrf.mxu0
        %3933 = vdwg.mxu0
        %3934 = vmatprep.subr.mxu0 0.0
        %3935 = vmatpush1.msra.mxu0 %v3420
        %3936 = vmatprep.subr.mxu0 0.0
        %3937 = vmatpush1.msra.mxu0 %v3419
        %3938 = vmatprep.subr.mxu0 0.0
        %3939 = vmatpush1.msra.mxu0 %v3418
        %3940 = vmatprep.subr.mxu0 0.0
        %3941 = vmatpush1.msra.mxu0 %v3417
        %3942 = vmatprep.subr.mxu0 0.0
        %3943 = vmatpush1.msra.mxu0 %v3416
        %3944 = vmatprep.subr.mxu0 0.0
        %3945 = vmatpush1.msra.mxu0 %v3415
        %3946 = vmatprep.subr.mxu0 0.0
        %3947 = vmatpush1.msra.mxu0 %v3414
        %3948 = vmatprep.subr.mxu0 0.0
        %3949 = vmatpush1.msra.mxu0 %v3413
        %3950 = vmatprep.subr.mxu0 0.0
        %3951 = vmatpush1.msra.mxu0 %v3412
        %3952 = vmatprep.subr.mxu0 0.0
        %3953 = vmatpush1.msra.mxu0 %v3411
        %3954 = vmatprep.subr.mxu0 0.0
        %3955 = vmatpush1.msra.mxu0 %v3410
        %3956 = vmatprep.subr.mxu0 0.0
        %3957 = vmatpush1.msra.mxu0 %v3409
        %3958 = vmatprep.subr.mxu0 0.0
        %3959 = vmatpush1.msra.mxu0 %v3408
        %3960 = vmatprep.subr.mxu0 0.0
        %3961 = vmatpush1.msra.mxu0 %v3407
        %3962 = vmatprep.subr.mxu0 0.0
        %3963 = vmatpush1.msra.mxu0 %v3406
        %3964 = vmatprep.subr.mxu0 0.0
        %3965 = vmatpush1.msra.mxu0 %v3405
        %3966 = vmatprep.subr.mxu0 0.0
        %3967 = vmatpush2.msra.mxu0 %v3436
        %3968 = vmatprep.subr.mxu0 0.0
        %3969 = vmatpush2.msra.mxu0 %v3435
        %3970 = vmatprep.subr.mxu0 0.0
        %3971 = vmatpush2.msra.mxu0 %v3434
        %3972 = vmatprep.subr.mxu0 0.0
        %3973 = vmatpush2.msra.mxu0 %v3433
        %3974 = vmatprep.subr.mxu0 0.0
        %3975 = vmatpush2.msra.mxu0 %v3432
        %3976 = vmatprep.subr.mxu0 0.0
        %3977 = vmatpush2.msra.mxu0 %v3431
        %3978 = vmatprep.subr.mxu0 0.0
        %3979 = vmatpush2.msra.mxu0 %v3430
        %3980 = vmatprep.subr.mxu0 0.0
        %3981 = vmatpush2.msra.mxu0 %v3429
        %3982 = vmatprep.subr.mxu0 0.0
        %3983 = vmatpush2.msra.mxu0 %v3428
        %3984 = vmatprep.subr.mxu0 0.0
        %3985 = vmatpush2.msra.mxu0 %v3427
        %3986 = vmatprep.subr.mxu0 0.0
        %3987 = vmatpush2.msra.mxu0 %v3426
        %3988 = vmatprep.subr.mxu0 0.0
        %3989 = vmatpush2.msra.mxu0 %v3425
        %3990 = vmatprep.subr.mxu0 0.0
        %3991 = vmatpush2.msra.mxu0 %v3424
        %3992 = vmatprep.subr.mxu0 0.0
        %3993 = vmatpush2.msra.mxu0 %v3423
        %3994 = vmatprep.subr.mxu0 0.0
        %3995 = vmatpush2.msra.mxu0 %v3422
        %3996 = vmatprep.subr.mxu0 0.0
        %3997 = vmatpush2.msra.mxu0 %v3421
        %3998 = vmatprep.mubr.f32.mxu0 %v3180
        %3999 = vmatmul.mubr.f32.gmra.mxu0 %v3179
        %v4000 = vpop.f32.mrf.mxu0
        %v4001 = vadd.f32 %v3931, %v4000
        %v4002 = vpop.f32.mrf.mxu0
        %4003 = vdwg.mxu0
        %v4004 = vadd.f32 %v2445, %v4001
        %v4005 = vld [vmem:[%s57] sm:$0x1]
        %v4006 = vld [vmem:[%s55] sm:$0x1]
        %v4007 = vsel %vm1577, %v4004, 0.0
        %4008 = vadd.xlane.f32.xlu0 %v4007
        %v4009 = vpop.xlane.xlu0 %4008
        %v4010 = vmul.f32 %v4009, %v2421
        %v4011 = vsub.f32 %v4004, %v4010
        %v4012 = vmul.f32 %v4011, %v4011
        %v4013 = vsel %vm1577, %v4012, 0.0
        %4014 = vadd.xlane.f32.xlu0 %v4013
        %v4015 = vpop.xlane.xlu0 %4014
        %v4016 = vmul.f32 %v4015, %v2421
        %v4017 = vadd.f32 %v4016, 1e-05
        %v4018 = vrsqrt.pop %v4017
        %v4019 = vmul.f32 %v4011, %v4018
        %v4021 = vlaneseq
        %v4022 = vshrl.u32 %v4021, 7
        %v4023 = vsub.s32 0, %v4022
        %v4024 = vrot.slane %v4005, %v4023
        %v4026 = vmul.f32 %v4019, %v4024
        %v4028 = vlaneseq
        %v4029 = vshrl.u32 %v4028, 7
        %v4030 = vsub.s32 0, %v4029
        %v4031 = vrot.slane %v4006, %v4030
        %v4033 = vadd.f32 %v4026, %v4031
        %v4034 = vld [vmem:[%s89] sm:$0xff]
        %v4035 = vld [vmem:[%s89 + $0x8] sm:$0xff]
        %v4036 = vld [vmem:[%s89 + $0x10] sm:$0xff]
        %v4037 = vld [vmem:[%s89 + $0x18] sm:$0xff]
        %v4038 = vld [vmem:[#allocation2] sm:$0x1]
        %v4040 = vlaneseq
        %v4041 = vshrl.u32 %v4040, 7
        %v4042 = vsub.s32 0, %v4041
        %v4043 = vrot.slane %v4038, %v4042
        %v4046 = vsel %vm1577, %v4033, 0
        %4048 = vmatprep.subr.mxu0 0.0
        %4049 = vmatpush1.msra.mxu0 0.0
        %4050 = vmatprep.subr.mxu0 0.0
        %4051 = vmatpush1.msra.mxu0 0.0
        %4052 = vmatprep.subr.mxu0 0.0
        %4053 = vmatpush1.msra.mxu0 0.0
        %4054 = vmatprep.subr.mxu0 0.0
        %4055 = vmatpush1.msra.mxu0 0.0
        %4056 = vmatprep.subr.mxu0 0.0
        %4057 = vmatpush1.msra.mxu0 0.0
        %4058 = vmatprep.subr.mxu0 0.0
        %4059 = vmatpush1.msra.mxu0 0.0
        %4060 = vmatprep.subr.mxu0 0.0
        %4061 = vmatpush1.msra.mxu0 0.0
        %4062 = vmatprep.subr.mxu0 0.0
        %4063 = vmatpush1.msra.mxu0 0.0
        %4064 = vmatprep.subr.mxu0 0.0
        %4065 = vmatpush1.msra.mxu0 0.0
        %4066 = vmatprep.subr.mxu0 0.0
        %4067 = vmatpush1.msra.mxu0 0.0
        %4068 = vmatprep.subr.mxu0 0.0
        %4069 = vmatpush1.msra.mxu0 0.0
        %4070 = vmatprep.subr.mxu0 0.0
        %4071 = vmatpush1.msra.mxu0 0.0
        %4072 = vmatprep.subr.mxu0 0.0
        %4073 = vmatpush1.msra.mxu0 %v4037
        %4074 = vmatprep.subr.mxu0 0.0
        %4075 = vmatpush1.msra.mxu0 %v4036
        %4076 = vmatprep.subr.mxu0 0.0
        %4077 = vmatpush1.msra.mxu0 %v4035
        %4078 = vmatprep.subr.mxu0 0.0
        %4079 = vmatpush1.msra.mxu0 %v4034
        %4080 = vmatprep.subr.mxu0 0.0
        %4081 = vmatpush2.msra.mxu0 0.0
        %4082 = vmatprep.subr.mxu0 0.0
        %4083 = vmatpush2.msra.mxu0 0.0
        %4084 = vmatprep.subr.mxu0 0.0
        %4085 = vmatpush2.msra.mxu0 0.0
        %4086 = vmatprep.subr.mxu0 0.0
        %4087 = vmatpush2.msra.mxu0 0.0
        %4088 = vmatprep.subr.mxu0 0.0
        %4089 = vmatpush2.msra.mxu0 0.0
        %4090 = vmatprep.subr.mxu0 0.0
        %4091 = vmatpush2.msra.mxu0 0.0
        %4092 = vmatprep.subr.mxu0 0.0
        %4093 = vmatpush2.msra.mxu0 0.0
        %4094 = vmatprep.subr.mxu0 0.0
        %4095 = vmatpush2.msra.mxu0 0.0
        %4096 = vmatprep.subr.mxu0 0.0
        %4097 = vmatpush2.msra.mxu0 0.0
        %4098 = vmatprep.subr.mxu0 0.0
        %4099 = vmatpush2.msra.mxu0 0.0
        %4100 = vmatprep.subr.mxu0 0.0
        %4101 = vmatpush2.msra.mxu0 0.0
        %4102 = vmatprep.subr.mxu0 0.0
        %4103 = vmatpush2.msra.mxu0 0.0
        %4104 = vmatprep.subr.mxu0 0.0
        %4105 = vmatpush2.msra.mxu0 0.0
        %4106 = vmatprep.subr.mxu0 0.0
        %4107 = vmatpush2.msra.mxu0 0.0
        %4108 = vmatprep.subr.mxu0 0.0
        %4109 = vmatpush2.msra.mxu0 0.0
        %4110 = vmatprep.subr.mxu0 0.0
        %4111 = vmatpush2.msra.mxu0 0.0
        %4112 = vmatprep.mubr.f32.mxu0 0.0
        %4113 = vmatmul.mubr.f32.gmra.mxu0 %v4046
        %v4114 = vpop.f32.mrf.mxu0
        %v4115 = vadd.f32 %v4043, %v4114
        %v4116 = vpop.f32.mrf.mxu0
        %4117 = vdwg.mxu0
        %4119 = vrot.lane.b32.xlu0 %v4115, 96
        %v4120 = vpop.permute.xlu0 %4119
        %v4121 = vsel %vm1654, %v4115, 0
        %v4123 = vsel %vm1654, %v4120, 0
        %4125 = vmatprep.subr.mxu0 0.0
        %4126 = vmatpush1.xpose.msra.mxu0 0.0
        %4127 = vmatprep.subr.mxu0 0.0
        %4128 = vmatpush1.xpose.msra.mxu0 0.0
        %4129 = vmatprep.subr.mxu0 0.0
        %4130 = vmatpush1.xpose.msra.mxu0 0.0
        %4131 = vmatprep.subr.mxu0 0.0
        %4132 = vmatpush1.xpose.msra.mxu0 0.0
        %4133 = vmatprep.subr.mxu0 0.0
        %4134 = vmatpush1.xpose.msra.mxu0 0.0
        %4135 = vmatprep.subr.mxu0 0.0
        %4136 = vmatpush1.xpose.msra.mxu0 0.0
        %4137 = vmatprep.subr.mxu0 0.0
        %4138 = vmatpush1.xpose.msra.mxu0 0.0
        %4139 = vmatprep.subr.mxu0 0.0
        %4140 = vmatpush1.xpose.msra.mxu0 0.0
        %4141 = vmatprep.subr.mxu0 0.0
        %4142 = vmatpush1.xpose.msra.mxu0 0.0
        %4143 = vmatprep.subr.mxu0 0.0
        %4144 = vmatpush1.xpose.msra.mxu0 0.0
        %4145 = vmatprep.subr.mxu0 0.0
        %4146 = vmatpush1.xpose.msra.mxu0 0.0
        %4147 = vmatprep.subr.mxu0 0.0
        %4148 = vmatpush1.xpose.msra.mxu0 0.0
        %4149 = vmatprep.subr.mxu0 0.0
        %4150 = vmatpush1.xpose.msra.mxu0 0.0
        %4151 = vmatprep.subr.mxu0 0.0
        %4152 = vmatpush1.xpose.msra.mxu0 0.0
        %4153 = vmatprep.subr.mxu0 0.0
        %4154 = vmatpush1.xpose.msra.mxu0 0.0
        %4155 = vmatprep.subr.mxu0 0.0
        %4156 = vmatpush1.xpose.msra.mxu0 %v4123
        %4157 = vmatprep.subr.mxu0 0.0
        %4158 = vmatpush2.xpose.msra.mxu0 0.0
        %4159 = vmatprep.subr.mxu0 0.0
        %4160 = vmatpush2.xpose.msra.mxu0 0.0
        %4161 = vmatprep.subr.mxu0 0.0
        %4162 = vmatpush2.xpose.msra.mxu0 0.0
        %4163 = vmatprep.subr.mxu0 0.0
        %4164 = vmatpush2.xpose.msra.mxu0 0.0
        %4165 = vmatprep.subr.mxu0 0.0
        %4166 = vmatpush2.xpose.msra.mxu0 0.0
        %4167 = vmatprep.subr.mxu0 0.0
        %4168 = vmatpush2.xpose.msra.mxu0 0.0
        %4169 = vmatprep.subr.mxu0 0.0
        %4170 = vmatpush2.xpose.msra.mxu0 0.0
        %4171 = vmatprep.subr.mxu0 0.0
        %4172 = vmatpush2.xpose.msra.mxu0 0.0
        %4173 = vmatprep.subr.mxu0 0.0
        %4174 = vmatpush2.xpose.msra.mxu0 0.0
        %4175 = vmatprep.subr.mxu0 0.0
        %4176 = vmatpush2.xpose.msra.mxu0 0.0
        %4177 = vmatprep.subr.mxu0 0.0
        %4178 = vmatpush2.xpose.msra.mxu0 0.0
        %4179 = vmatprep.subr.mxu0 0.0
        %4180 = vmatpush2.xpose.msra.mxu0 0.0
        %4181 = vmatprep.subr.mxu0 0.0
        %4182 = vmatpush2.xpose.msra.mxu0 0.0
        %4183 = vmatprep.subr.mxu0 0.0
        %4184 = vmatpush2.xpose.msra.mxu0 0.0
        %4185 = vmatprep.subr.mxu0 0.0
        %4186 = vmatpush2.xpose.msra.mxu0 0.0
        %4187 = vmatprep.subr.mxu0 0.0
        %4188 = vmatpush2.xpose.msra.mxu0 0.0
        %4189 = vmatprep.mubr.f32.mxu0 0.0
        %4190 = vmatmul.mubr.f32.gmra.mxu0 %v4121
        %v4191 = vpop.f32.mrf.mxu0
        %v4192 = vadd.f32 0.0, %v4191
        %v4193 = vpop.f32.mrf.mxu0
        %4194 = vdwg.mxu0
        %v4195 = vmul.f32 %v4192, 0.35355338
        %v4196 = vsel %vm1654, %v4195, -inf
        %4197 = vmax.xlane.f32.xlu0 %v4196
        %v4198 = vpop.xlane.xlu0 %4197
        %v4199 = vsub.f32 %v4195, %v4198
        %v4200 = vmul.f32 %v4199, 1.442695
        %v4201 = vpow.pop %v4200
        %v4202 = vsel %vm1654, %v4201, 0.0
        %4203 = vadd.xlane.f32.xlu0 %v4202
        %v4204 = vpop.xlane.xlu0 %4203
        %v4205 = vrcp.pop %v4204
        %v4206 = vmul.f32 %v4201, %v4205
        %4207 = vrot.lane.b32.xlu0 %v4115, 64
        %v4208 = vpop.permute.xlu0 %4207
        %v4211 = vsel %vm1654, %v4206, 0
        %4213 = vmatprep.subr.mxu0 0.0
        %4214 = vmatpush1.msra.mxu0 0.0
        %4215 = vmatprep.subr.mxu0 0.0
        %4216 = vmatpush1.msra.mxu0 0.0
        %4217 = vmatprep.subr.mxu0 0.0
        %4218 = vmatpush1.msra.mxu0 0.0
        %4219 = vmatprep.subr.mxu0 0.0
        %4220 = vmatpush1.msra.mxu0 0.0
        %4221 = vmatprep.subr.mxu0 0.0
        %4222 = vmatpush1.msra.mxu0 0.0
        %4223 = vmatprep.subr.mxu0 0.0
        %4224 = vmatpush1.msra.mxu0 0.0
        %4225 = vmatprep.subr.mxu0 0.0
        %4226 = vmatpush1.msra.mxu0 0.0
        %4227 = vmatprep.subr.mxu0 0.0
        %4228 = vmatpush1.msra.mxu0 0.0
        %4229 = vmatprep.subr.mxu0 0.0
        %4230 = vmatpush1.msra.mxu0 0.0
        %4231 = vmatprep.subr.mxu0 0.0
        %4232 = vmatpush1.msra.mxu0 0.0
        %4233 = vmatprep.subr.mxu0 0.0
        %4234 = vmatpush1.msra.mxu0 0.0
        %4235 = vmatprep.subr.mxu0 0.0
        %4236 = vmatpush1.msra.mxu0 0.0
        %4237 = vmatprep.subr.mxu0 0.0
        %4238 = vmatpush1.msra.mxu0 0.0
        %4239 = vmatprep.subr.mxu0 0.0
        %4240 = vmatpush1.msra.mxu0 0.0
        %4241 = vmatprep.subr.mxu0 0.0
        %4242 = vmatpush1.msra.mxu0 0.0
        %4243 = vmatprep.subr.mxu0 0.0
        %4244 = vmatpush1.msra.mxu0 %v4208
        %4245 = vmatprep.subr.mxu0 0.0
        %4246 = vmatpush2.msra.mxu0 0.0
        %4247 = vmatprep.subr.mxu0 0.0
        %4248 = vmatpush2.msra.mxu0 0.0
        %4249 = vmatprep.subr.mxu0 0.0
        %4250 = vmatpush2.msra.mxu0 0.0
        %4251 = vmatprep.subr.mxu0 0.0
        %4252 = vmatpush2.msra.mxu0 0.0
        %4253 = vmatprep.subr.mxu0 0.0
        %4254 = vmatpush2.msra.mxu0 0.0
        %4255 = vmatprep.subr.mxu0 0.0
        %4256 = vmatpush2.msra.mxu0 0.0
        %4257 = vmatprep.subr.mxu0 0.0
        %4258 = vmatpush2.msra.mxu0 0.0
        %4259 = vmatprep.subr.mxu0 0.0
        %4260 = vmatpush2.msra.mxu0 0.0
        %4261 = vmatprep.subr.mxu0 0.0
        %4262 = vmatpush2.msra.mxu0 0.0
        %4263 = vmatprep.subr.mxu0 0.0
        %4264 = vmatpush2.msra.mxu0 0.0
        %4265 = vmatprep.subr.mxu0 0.0
        %4266 = vmatpush2.msra.mxu0 0.0
        %4267 = vmatprep.subr.mxu0 0.0
        %4268 = vmatpush2.msra.mxu0 0.0
        %4269 = vmatprep.subr.mxu0 0.0
        %4270 = vmatpush2.msra.mxu0 0.0
        %4271 = vmatprep.subr.mxu0 0.0
        %4272 = vmatpush2.msra.mxu0 0.0
        %4273 = vmatprep.subr.mxu0 0.0
        %4274 = vmatpush2.msra.mxu0 0.0
        %4275 = vmatprep.subr.mxu0 0.0
        %4276 = vmatpush2.msra.mxu0 0.0
        %4277 = vmatprep.mubr.f32.mxu0 0.0
        %4278 = vmatmul.mubr.f32.gmra.mxu0 %v4211
        %v4279 = vpop.f32.mrf.mxu0
        %v4280 = vadd.f32 0.0, %v4279
        %v4281 = vpop.f32.mrf.mxu0
        %4282 = vdwg.mxu0
        %4283 = vrot.lane.b32.xlu0 %v4115, 120
        %v4284 = vpop.permute.xlu0 %4283
        %4285 = vrot.lane.b32.xlu0 %v4115, 88
        %v4286 = vpop.permute.xlu0 %4285
        %v4287 = vsel %vm1654, %v4284, 0
        %v4289 = vsel %vm1654, %v4286, 0
        %4291 = vmatprep.subr.mxu0 0.0
        %4292 = vmatpush1.xpose.msra.mxu0 0.0
        %4293 = vmatprep.subr.mxu0 0.0
        %4294 = vmatpush1.xpose.msra.mxu0 0.0
        %4295 = vmatprep.subr.mxu0 0.0
        %4296 = vmatpush1.xpose.msra.mxu0 0.0
        %4297 = vmatprep.subr.mxu0 0.0
        %4298 = vmatpush1.xpose.msra.mxu0 0.0
        %4299 = vmatprep.subr.mxu0 0.0
        %4300 = vmatpush1.xpose.msra.mxu0 0.0
        %4301 = vmatprep.subr.mxu0 0.0
        %4302 = vmatpush1.xpose.msra.mxu0 0.0
        %4303 = vmatprep.subr.mxu0 0.0
        %4304 = vmatpush1.xpose.msra.mxu0 0.0
        %4305 = vmatprep.subr.mxu0 0.0
        %4306 = vmatpush1.xpose.msra.mxu0 0.0
        %4307 = vmatprep.subr.mxu0 0.0
        %4308 = vmatpush1.xpose.msra.mxu0 0.0
        %4309 = vmatprep.subr.mxu0 0.0
        %4310 = vmatpush1.xpose.msra.mxu0 0.0
        %4311 = vmatprep.subr.mxu0 0.0
        %4312 = vmatpush1.xpose.msra.mxu0 0.0
        %4313 = vmatprep.subr.mxu0 0.0
        %4314 = vmatpush1.xpose.msra.mxu0 0.0
        %4315 = vmatprep.subr.mxu0 0.0
        %4316 = vmatpush1.xpose.msra.mxu0 0.0
        %4317 = vmatprep.subr.mxu0 0.0
        %4318 = vmatpush1.xpose.msra.mxu0 0.0
        %4319 = vmatprep.subr.mxu0 0.0
        %4320 = vmatpush1.xpose.msra.mxu0 0.0
        %4321 = vmatprep.subr.mxu0 0.0
        %4322 = vmatpush1.xpose.msra.mxu0 %v4289
        %4323 = vmatprep.subr.mxu0 0.0
        %4324 = vmatpush2.xpose.msra.mxu0 0.0
        %4325 = vmatprep.subr.mxu0 0.0
        %4326 = vmatpush2.xpose.msra.mxu0 0.0
        %4327 = vmatprep.subr.mxu0 0.0
        %4328 = vmatpush2.xpose.msra.mxu0 0.0
        %4329 = vmatprep.subr.mxu0 0.0
        %4330 = vmatpush2.xpose.msra.mxu0 0.0
        %4331 = vmatprep.subr.mxu0 0.0
        %4332 = vmatpush2.xpose.msra.mxu0 0.0
        %4333 = vmatprep.subr.mxu0 0.0
        %4334 = vmatpush2.xpose.msra.mxu0 0.0
        %4335 = vmatprep.subr.mxu0 0.0
        %4336 = vmatpush2.xpose.msra.mxu0 0.0
        %4337 = vmatprep.subr.mxu0 0.0
        %4338 = vmatpush2.xpose.msra.mxu0 0.0
        %4339 = vmatprep.subr.mxu0 0.0
        %4340 = vmatpush2.xpose.msra.mxu0 0.0
        %4341 = vmatprep.subr.mxu0 0.0
        %4342 = vmatpush2.xpose.msra.mxu0 0.0
        %4343 = vmatprep.subr.mxu0 0.0
        %4344 = vmatpush2.xpose.msra.mxu0 0.0
        %4345 = vmatprep.subr.mxu0 0.0
        %4346 = vmatpush2.xpose.msra.mxu0 0.0
        %4347 = vmatprep.subr.mxu0 0.0
        %4348 = vmatpush2.xpose.msra.mxu0 0.0
        %4349 = vmatprep.subr.mxu0 0.0
        %4350 = vmatpush2.xpose.msra.mxu0 0.0
        %4351 = vmatprep.subr.mxu0 0.0
        %4352 = vmatpush2.xpose.msra.mxu0 0.0
        %4353 = vmatprep.subr.mxu0 0.0
        %4354 = vmatpush2.xpose.msra.mxu0 0.0
        %4355 = vmatprep.mubr.f32.mxu0 0.0
        %4356 = vmatmul.mubr.f32.gmra.mxu0 %v4287
        %v4357 = vpop.f32.mrf.mxu0
        %v4358 = vadd.f32 0.0, %v4357
        %v4359 = vpop.f32.mrf.mxu0
        %4360 = vdwg.mxu0
        %v4361 = vmul.f32 %v4358, 0.35355338
        %v4362 = vsel %vm1654, %v4361, -inf
        %4363 = vmax.xlane.f32.xlu0 %v4362
        %v4364 = vpop.xlane.xlu0 %4363
        %v4365 = vsub.f32 %v4361, %v4364
        %v4366 = vmul.f32 %v4365, 1.442695
        %v4367 = vpow.pop %v4366
        %v4368 = vsel %vm1654, %v4367, 0.0
        %4369 = vadd.xlane.f32.xlu0 %v4368
        %v4370 = vpop.xlane.xlu0 %4369
        %v4371 = vrcp.pop %v4370
        %v4372 = vmul.f32 %v4367, %v4371
        %4373 = vrot.lane.b32.xlu0 %v4115, 56
        %v4374 = vpop.permute.xlu0 %4373
        %v4377 = vsel %vm1654, %v4372, 0
        %4379 = vmatprep.subr.mxu0 0.0
        %4380 = vmatpush1.msra.mxu0 0.0
        %4381 = vmatprep.subr.mxu0 0.0
        %4382 = vmatpush1.msra.mxu0 0.0
        %4383 = vmatprep.subr.mxu0 0.0
        %4384 = vmatpush1.msra.mxu0 0.0
        %4385 = vmatprep.subr.mxu0 0.0
        %4386 = vmatpush1.msra.mxu0 0.0
        %4387 = vmatprep.subr.mxu0 0.0
        %4388 = vmatpush1.msra.mxu0 0.0
        %4389 = vmatprep.subr.mxu0 0.0
        %4390 = vmatpush1.msra.mxu0 0.0
        %4391 = vmatprep.subr.mxu0 0.0
        %4392 = vmatpush1.msra.mxu0 0.0
        %4393 = vmatprep.subr.mxu0 0.0
        %4394 = vmatpush1.msra.mxu0 0.0
        %4395 = vmatprep.subr.mxu0 0.0
        %4396 = vmatpush1.msra.mxu0 0.0
        %4397 = vmatprep.subr.mxu0 0.0
        %4398 = vmatpush1.msra.mxu0 0.0
        %4399 = vmatprep.subr.mxu0 0.0
        %4400 = vmatpush1.msra.mxu0 0.0
        %4401 = vmatprep.subr.mxu0 0.0
        %4402 = vmatpush1.msra.mxu0 0.0
        %4403 = vmatprep.subr.mxu0 0.0
        %4404 = vmatpush1.msra.mxu0 0.0
        %4405 = vmatprep.subr.mxu0 0.0
        %4406 = vmatpush1.msra.mxu0 0.0
        %4407 = vmatprep.subr.mxu0 0.0
        %4408 = vmatpush1.msra.mxu0 0.0
        %4409 = vmatprep.subr.mxu0 0.0
        %4410 = vmatpush1.msra.mxu0 %v4374
        %4411 = vmatprep.subr.mxu0 0.0
        %4412 = vmatpush2.msra.mxu0 0.0
        %4413 = vmatprep.subr.mxu0 0.0
        %4414 = vmatpush2.msra.mxu0 0.0
        %4415 = vmatprep.subr.mxu0 0.0
        %4416 = vmatpush2.msra.mxu0 0.0
        %4417 = vmatprep.subr.mxu0 0.0
        %4418 = vmatpush2.msra.mxu0 0.0
        %4419 = vmatprep.subr.mxu0 0.0
        %4420 = vmatpush2.msra.mxu0 0.0
        %4421 = vmatprep.subr.mxu0 0.0
        %4422 = vmatpush2.msra.mxu0 0.0
        %4423 = vmatprep.subr.mxu0 0.0
        %4424 = vmatpush2.msra.mxu0 0.0
        %4425 = vmatprep.subr.mxu0 0.0
        %4426 = vmatpush2.msra.mxu0 0.0
        %4427 = vmatprep.subr.mxu0 0.0
        %4428 = vmatpush2.msra.mxu0 0.0
        %4429 = vmatprep.subr.mxu0 0.0
        %4430 = vmatpush2.msra.mxu0 0.0
        %4431 = vmatprep.subr.mxu0 0.0
        %4432 = vmatpush2.msra.mxu0 0.0
        %4433 = vmatprep.subr.mxu0 0.0
        %4434 = vmatpush2.msra.mxu0 0.0
        %4435 = vmatprep.subr.mxu0 0.0
        %4436 = vmatpush2.msra.mxu0 0.0
        %4437 = vmatprep.subr.mxu0 0.0
        %4438 = vmatpush2.msra.mxu0 0.0
        %4439 = vmatprep.subr.mxu0 0.0
        %4440 = vmatpush2.msra.mxu0 0.0
        %4441 = vmatprep.subr.mxu0 0.0
        %4442 = vmatpush2.msra.mxu0 0.0
        %4443 = vmatprep.mubr.f32.mxu0 0.0
        %4444 = vmatmul.mubr.f32.gmra.mxu0 %v4377
        %v4445 = vpop.f32.mrf.mxu0
        %v4446 = vadd.f32 0.0, %v4445
        %v4447 = vpop.f32.mrf.mxu0
        %4448 = vdwg.mxu0
        %4449 = vrot.lane.b32.xlu0 %v4115, 112
        %v4450 = vpop.permute.xlu0 %4449
        %4451 = vrot.lane.b32.xlu0 %v4115, 80
        %v4452 = vpop.permute.xlu0 %4451
        %v4453 = vsel %vm1654, %v4450, 0
        %v4455 = vsel %vm1654, %v4452, 0
        %4457 = vmatprep.subr.mxu0 0.0
        %4458 = vmatpush1.xpose.msra.mxu0 0.0
        %4459 = vmatprep.subr.mxu0 0.0
        %4460 = vmatpush1.xpose.msra.mxu0 0.0
        %4461 = vmatprep.subr.mxu0 0.0
        %4462 = vmatpush1.xpose.msra.mxu0 0.0
        %4463 = vmatprep.subr.mxu0 0.0
        %4464 = vmatpush1.xpose.msra.mxu0 0.0
        %4465 = vmatprep.subr.mxu0 0.0
        %4466 = vmatpush1.xpose.msra.mxu0 0.0
        %4467 = vmatprep.subr.mxu0 0.0
        %4468 = vmatpush1.xpose.msra.mxu0 0.0
        %4469 = vmatprep.subr.mxu0 0.0
        %4470 = vmatpush1.xpose.msra.mxu0 0.0
        %4471 = vmatprep.subr.mxu0 0.0
        %4472 = vmatpush1.xpose.msra.mxu0 0.0
        %4473 = vmatprep.subr.mxu0 0.0
        %4474 = vmatpush1.xpose.msra.mxu0 0.0
        %4475 = vmatprep.subr.mxu0 0.0
        %4476 = vmatpush1.xpose.msra.mxu0 0.0
        %4477 = vmatprep.subr.mxu0 0.0
        %4478 = vmatpush1.xpose.msra.mxu0 0.0
        %4479 = vmatprep.subr.mxu0 0.0
        %4480 = vmatpush1.xpose.msra.mxu0 0.0
        %4481 = vmatprep.subr.mxu0 0.0
        %4482 = vmatpush1.xpose.msra.mxu0 0.0
        %4483 = vmatprep.subr.mxu0 0.0
        %4484 = vmatpush1.xpose.msra.mxu0 0.0
        %4485 = vmatprep.subr.mxu0 0.0
        %4486 = vmatpush1.xpose.msra.mxu0 0.0
        %4487 = vmatprep.subr.mxu0 0.0
        %4488 = vmatpush1.xpose.msra.mxu0 %v4455
        %4489 = vmatprep.subr.mxu0 0.0
        %4490 = vmatpush2.xpose.msra.mxu0 0.0
        %4491 = vmatprep.subr.mxu0 0.0
        %4492 = vmatpush2.xpose.msra.mxu0 0.0
        %4493 = vmatprep.subr.mxu0 0.0
        %4494 = vmatpush2.xpose.msra.mxu0 0.0
        %4495 = vmatprep.subr.mxu0 0.0
        %4496 = vmatpush2.xpose.msra.mxu0 0.0
        %4497 = vmatprep.subr.mxu0 0.0
        %4498 = vmatpush2.xpose.msra.mxu0 0.0
        %4499 = vmatprep.subr.mxu0 0.0
        %4500 = vmatpush2.xpose.msra.mxu0 0.0
        %4501 = vmatprep.subr.mxu0 0.0
        %4502 = vmatpush2.xpose.msra.mxu0 0.0
        %4503 = vmatprep.subr.mxu0 0.0
        %4504 = vmatpush2.xpose.msra.mxu0 0.0
        %4505 = vmatprep.subr.mxu0 0.0
        %4506 = vmatpush2.xpose.msra.mxu0 0.0
        %4507 = vmatprep.subr.mxu0 0.0
        %4508 = vmatpush2.xpose.msra.mxu0 0.0
        %4509 = vmatprep.subr.mxu0 0.0
        %4510 = vmatpush2.xpose.msra.mxu0 0.0
        %4511 = vmatprep.subr.mxu0 0.0
        %4512 = vmatpush2.xpose.msra.mxu0 0.0
        %4513 = vmatprep.subr.mxu0 0.0
        %4514 = vmatpush2.xpose.msra.mxu0 0.0
        %4515 = vmatprep.subr.mxu0 0.0
        %4516 = vmatpush2.xpose.msra.mxu0 0.0
        %4517 = vmatprep.subr.mxu0 0.0
        %4518 = vmatpush2.xpose.msra.mxu0 0.0
        %4519 = vmatprep.subr.mxu0 0.0
        %4520 = vmatpush2.xpose.msra.mxu0 0.0
        %4521 = vmatprep.mubr.f32.mxu0 0.0
        %4522 = vmatmul.mubr.f32.gmra.mxu0 %v4453
        %v4523 = vpop.f32.mrf.mxu0
        %v4524 = vadd.f32 0.0, %v4523
        %v4525 = vpop.f32.mrf.mxu0
        %4526 = vdwg.mxu0
        %v4527 = vmul.f32 %v4524, 0.35355338
        %v4528 = vsel %vm1654, %v4527, -inf
        %4529 = vmax.xlane.f32.xlu0 %v4528
        %v4530 = vpop.xlane.xlu0 %4529
        %v4531 = vsub.f32 %v4527, %v4530
        %v4532 = vmul.f32 %v4531, 1.442695
        %v4533 = vpow.pop %v4532
        %v4534 = vsel %vm1654, %v4533, 0.0
        %4535 = vadd.xlane.f32.xlu0 %v4534
        %v4536 = vpop.xlane.xlu0 %4535
        %v4537 = vrcp.pop %v4536
        %v4538 = vmul.f32 %v4533, %v4537
        %4539 = vrot.lane.b32.xlu0 %v4115, 48
        %v4540 = vpop.permute.xlu0 %4539
        %v4543 = vsel %vm1654, %v4538, 0
        %4545 = vmatprep.subr.mxu0 0.0
        %4546 = vmatpush1.msra.mxu0 0.0
        %4547 = vmatprep.subr.mxu0 0.0
        %4548 = vmatpush1.msra.mxu0 0.0
        %4549 = vmatprep.subr.mxu0 0.0
        %4550 = vmatpush1.msra.mxu0 0.0
        %4551 = vmatprep.subr.mxu0 0.0
        %4552 = vmatpush1.msra.mxu0 0.0
        %4553 = vmatprep.subr.mxu0 0.0
        %4554 = vmatpush1.msra.mxu0 0.0
        %4555 = vmatprep.subr.mxu0 0.0
        %4556 = vmatpush1.msra.mxu0 0.0
        %4557 = vmatprep.subr.mxu0 0.0
        %4558 = vmatpush1.msra.mxu0 0.0
        %4559 = vmatprep.subr.mxu0 0.0
        %4560 = vmatpush1.msra.mxu0 0.0
        %4561 = vmatprep.subr.mxu0 0.0
        %4562 = vmatpush1.msra.mxu0 0.0
        %4563 = vmatprep.subr.mxu0 0.0
        %4564 = vmatpush1.msra.mxu0 0.0
        %4565 = vmatprep.subr.mxu0 0.0
        %4566 = vmatpush1.msra.mxu0 0.0
        %4567 = vmatprep.subr.mxu0 0.0
        %4568 = vmatpush1.msra.mxu0 0.0
        %4569 = vmatprep.subr.mxu0 0.0
        %4570 = vmatpush1.msra.mxu0 0.0
        %4571 = vmatprep.subr.mxu0 0.0
        %4572 = vmatpush1.msra.mxu0 0.0
        %4573 = vmatprep.subr.mxu0 0.0
        %4574 = vmatpush1.msra.mxu0 0.0
        %4575 = vmatprep.subr.mxu0 0.0
        %4576 = vmatpush1.msra.mxu0 %v4540
        %4577 = vmatprep.subr.mxu0 0.0
        %4578 = vmatpush2.msra.mxu0 0.0
        %4579 = vmatprep.subr.mxu0 0.0
        %4580 = vmatpush2.msra.mxu0 0.0
        %4581 = vmatprep.subr.mxu0 0.0
        %4582 = vmatpush2.msra.mxu0 0.0
        %4583 = vmatprep.subr.mxu0 0.0
        %4584 = vmatpush2.msra.mxu0 0.0
        %4585 = vmatprep.subr.mxu0 0.0
        %4586 = vmatpush2.msra.mxu0 0.0
        %4587 = vmatprep.subr.mxu0 0.0
        %4588 = vmatpush2.msra.mxu0 0.0
        %4589 = vmatprep.subr.mxu0 0.0
        %4590 = vmatpush2.msra.mxu0 0.0
        %4591 = vmatprep.subr.mxu0 0.0
        %4592 = vmatpush2.msra.mxu0 0.0
        %4593 = vmatprep.subr.mxu0 0.0
        %4594 = vmatpush2.msra.mxu0 0.0
        %4595 = vmatprep.subr.mxu0 0.0
        %4596 = vmatpush2.msra.mxu0 0.0
        %4597 = vmatprep.subr.mxu0 0.0
        %4598 = vmatpush2.msra.mxu0 0.0
        %4599 = vmatprep.subr.mxu0 0.0
        %4600 = vmatpush2.msra.mxu0 0.0
        %4601 = vmatprep.subr.mxu0 0.0
        %4602 = vmatpush2.msra.mxu0 0.0
        %4603 = vmatprep.subr.mxu0 0.0
        %4604 = vmatpush2.msra.mxu0 0.0
        %4605 = vmatprep.subr.mxu0 0.0
        %4606 = vmatpush2.msra.mxu0 0.0
        %4607 = vmatprep.subr.mxu0 0.0
        %4608 = vmatpush2.msra.mxu0 0.0
        %4609 = vmatprep.mubr.f32.mxu0 0.0
        %4610 = vmatmul.mubr.f32.gmra.mxu0 %v4543
        %v4611 = vpop.f32.mrf.mxu0
        %v4612 = vadd.f32 0.0, %v4611
        %v4613 = vpop.f32.mrf.mxu0
        %4614 = vdwg.mxu0
        %4615 = vrot.lane.b32.xlu0 %v4115, 104
        %v4616 = vpop.permute.xlu0 %4615
        %4617 = vrot.lane.b32.xlu0 %v4115, 72
        %v4618 = vpop.permute.xlu0 %4617
        %v4619 = vsel %vm1654, %v4616, 0
        %v4621 = vsel %vm1654, %v4618, 0
        %4623 = vmatprep.subr.mxu0 0.0
        %4624 = vmatpush1.xpose.msra.mxu0 0.0
        %4625 = vmatprep.subr.mxu0 0.0
        %4626 = vmatpush1.xpose.msra.mxu0 0.0
        %4627 = vmatprep.subr.mxu0 0.0
        %4628 = vmatpush1.xpose.msra.mxu0 0.0
        %4629 = vmatprep.subr.mxu0 0.0
        %4630 = vmatpush1.xpose.msra.mxu0 0.0
        %4631 = vmatprep.subr.mxu0 0.0
        %4632 = vmatpush1.xpose.msra.mxu0 0.0
        %4633 = vmatprep.subr.mxu0 0.0
        %4634 = vmatpush1.xpose.msra.mxu0 0.0
        %4635 = vmatprep.subr.mxu0 0.0
        %4636 = vmatpush1.xpose.msra.mxu0 0.0
        %4637 = vmatprep.subr.mxu0 0.0
        %4638 = vmatpush1.xpose.msra.mxu0 0.0
        %4639 = vmatprep.subr.mxu0 0.0
        %4640 = vmatpush1.xpose.msra.mxu0 0.0
        %4641 = vmatprep.subr.mxu0 0.0
        %4642 = vmatpush1.xpose.msra.mxu0 0.0
        %4643 = vmatprep.subr.mxu0 0.0
        %4644 = vmatpush1.xpose.msra.mxu0 0.0
        %4645 = vmatprep.subr.mxu0 0.0
        %4646 = vmatpush1.xpose.msra.mxu0 0.0
        %4647 = vmatprep.subr.mxu0 0.0
        %4648 = vmatpush1.xpose.msra.mxu0 0.0
        %4649 = vmatprep.subr.mxu0 0.0
        %4650 = vmatpush1.xpose.msra.mxu0 0.0
        %4651 = vmatprep.subr.mxu0 0.0
        %4652 = vmatpush1.xpose.msra.mxu0 0.0
        %4653 = vmatprep.subr.mxu0 0.0
        %4654 = vmatpush1.xpose.msra.mxu0 %v4621
        %4655 = vmatprep.subr.mxu0 0.0
        %4656 = vmatpush2.xpose.msra.mxu0 0.0
        %4657 = vmatprep.subr.mxu0 0.0
        %4658 = vmatpush2.xpose.msra.mxu0 0.0
        %4659 = vmatprep.subr.mxu0 0.0
        %4660 = vmatpush2.xpose.msra.mxu0 0.0
        %4661 = vmatprep.subr.mxu0 0.0
        %4662 = vmatpush2.xpose.msra.mxu0 0.0
        %4663 = vmatprep.subr.mxu0 0.0
        %4664 = vmatpush2.xpose.msra.mxu0 0.0
        %4665 = vmatprep.subr.mxu0 0.0
        %4666 = vmatpush2.xpose.msra.mxu0 0.0
        %4667 = vmatprep.subr.mxu0 0.0
        %4668 = vmatpush2.xpose.msra.mxu0 0.0
        %4669 = vmatprep.subr.mxu0 0.0
        %4670 = vmatpush2.xpose.msra.mxu0 0.0
        %4671 = vmatprep.subr.mxu0 0.0
        %4672 = vmatpush2.xpose.msra.mxu0 0.0
        %4673 = vmatprep.subr.mxu0 0.0
        %4674 = vmatpush2.xpose.msra.mxu0 0.0
        %4675 = vmatprep.subr.mxu0 0.0
        %4676 = vmatpush2.xpose.msra.mxu0 0.0
        %4677 = vmatprep.subr.mxu0 0.0
        %4678 = vmatpush2.xpose.msra.mxu0 0.0
        %4679 = vmatprep.subr.mxu0 0.0
        %4680 = vmatpush2.xpose.msra.mxu0 0.0
        %4681 = vmatprep.subr.mxu0 0.0
        %4682 = vmatpush2.xpose.msra.mxu0 0.0
        %4683 = vmatprep.subr.mxu0 0.0
        %4684 = vmatpush2.xpose.msra.mxu0 0.0
        %4685 = vmatprep.subr.mxu0 0.0
        %4686 = vmatpush2.xpose.msra.mxu0 0.0
        %4687 = vmatprep.mubr.f32.mxu0 0.0
        %4688 = vmatmul.mubr.f32.gmra.mxu0 %v4619
        %v4689 = vpop.f32.mrf.mxu0
        %v4690 = vadd.f32 0.0, %v4689
        %v4691 = vpop.f32.mrf.mxu0
        %4692 = vdwg.mxu0
        %v4693 = vmul.f32 %v4690, 0.35355338
        %v4694 = vsel %vm1654, %v4693, -inf
        %4695 = vmax.xlane.f32.xlu0 %v4694
        %v4696 = vpop.xlane.xlu0 %4695
        %v4697 = vsub.f32 %v4693, %v4696
        %v4698 = vmul.f32 %v4697, 1.442695
        %v4699 = vpow.pop %v4698
        %v4700 = vsel %vm1654, %v4699, 0.0
        %4701 = vadd.xlane.f32.xlu0 %v4700
        %v4702 = vpop.xlane.xlu0 %4701
        %v4703 = vrcp.pop %v4702
        %v4704 = vmul.f32 %v4699, %v4703
        %4705 = vrot.lane.b32.xlu0 %v4115, 40
        %v4706 = vpop.permute.xlu0 %4705
        %v4709 = vsel %vm1654, %v4704, 0
        %4711 = vmatprep.subr.mxu0 0.0
        %4712 = vmatpush1.msra.mxu0 0.0
        %4713 = vmatprep.subr.mxu0 0.0
        %4714 = vmatpush1.msra.mxu0 0.0
        %4715 = vmatprep.subr.mxu0 0.0
        %4716 = vmatpush1.msra.mxu0 0.0
        %4717 = vmatprep.subr.mxu0 0.0
        %4718 = vmatpush1.msra.mxu0 0.0
        %4719 = vmatprep.subr.mxu0 0.0
        %4720 = vmatpush1.msra.mxu0 0.0
        %4721 = vmatprep.subr.mxu0 0.0
        %4722 = vmatpush1.msra.mxu0 0.0
        %4723 = vmatprep.subr.mxu0 0.0
        %4724 = vmatpush1.msra.mxu0 0.0
        %4725 = vmatprep.subr.mxu0 0.0
        %4726 = vmatpush1.msra.mxu0 0.0
        %4727 = vmatprep.subr.mxu0 0.0
        %4728 = vmatpush1.msra.mxu0 0.0
        %4729 = vmatprep.subr.mxu0 0.0
        %4730 = vmatpush1.msra.mxu0 0.0
        %4731 = vmatprep.subr.mxu0 0.0
        %4732 = vmatpush1.msra.mxu0 0.0
        %4733 = vmatprep.subr.mxu0 0.0
        %4734 = vmatpush1.msra.mxu0 0.0
        %4735 = vmatprep.subr.mxu0 0.0
        %4736 = vmatpush1.msra.mxu0 0.0
        %4737 = vmatprep.subr.mxu0 0.0
        %4738 = vmatpush1.msra.mxu0 0.0
        %4739 = vmatprep.subr.mxu0 0.0
        %4740 = vmatpush1.msra.mxu0 0.0
        %4741 = vmatprep.subr.mxu0 0.0
        %4742 = vmatpush1.msra.mxu0 %v4706
        %4743 = vmatprep.subr.mxu0 0.0
        %4744 = vmatpush2.msra.mxu0 0.0
        %4745 = vmatprep.subr.mxu0 0.0
        %4746 = vmatpush2.msra.mxu0 0.0
        %4747 = vmatprep.subr.mxu0 0.0
        %4748 = vmatpush2.msra.mxu0 0.0
        %4749 = vmatprep.subr.mxu0 0.0
        %4750 = vmatpush2.msra.mxu0 0.0
        %4751 = vmatprep.subr.mxu0 0.0
        %4752 = vmatpush2.msra.mxu0 0.0
        %4753 = vmatprep.subr.mxu0 0.0
        %4754 = vmatpush2.msra.mxu0 0.0
        %4755 = vmatprep.subr.mxu0 0.0
        %4756 = vmatpush2.msra.mxu0 0.0
        %4757 = vmatprep.subr.mxu0 0.0
        %4758 = vmatpush2.msra.mxu0 0.0
        %4759 = vmatprep.subr.mxu0 0.0
        %4760 = vmatpush2.msra.mxu0 0.0
        %4761 = vmatprep.subr.mxu0 0.0
        %4762 = vmatpush2.msra.mxu0 0.0
        %4763 = vmatprep.subr.mxu0 0.0
        %4764 = vmatpush2.msra.mxu0 0.0
        %4765 = vmatprep.subr.mxu0 0.0
        %4766 = vmatpush2.msra.mxu0 0.0
        %4767 = vmatprep.subr.mxu0 0.0
        %4768 = vmatpush2.msra.mxu0 0.0
        %4769 = vmatprep.subr.mxu0 0.0
        %4770 = vmatpush2.msra.mxu0 0.0
        %4771 = vmatprep.subr.mxu0 0.0
        %4772 = vmatpush2.msra.mxu0 0.0
        %4773 = vmatprep.subr.mxu0 0.0
        %4774 = vmatpush2.msra.mxu0 0.0
        %4775 = vmatprep.mubr.f32.mxu0 0.0
        %4776 = vmatmul.mubr.f32.gmra.mxu0 %v4709
        %v4777 = vpop.f32.mrf.mxu0
        %v4778 = vadd.f32 0.0, %v4777
        %v4779 = vpop.f32.mrf.mxu0
        %4780 = vdwg.mxu0
        %4782 = vrot.lane.b32.xlu0 %v4446, 8
        %v4783 = vpop.permute.xlu0 %4782
        %4786 = vrot.lane.b32.xlu0 %v4612, 16
        %v4787 = vpop.permute.xlu0 %4786
        %4790 = vrot.lane.b32.xlu0 %v4778, 24
        %v4791 = vpop.permute.xlu0 %4790
        %v4793 = vsel %vm1654, %v4280, %v4783
        %v4794 = vsel %vm1487, %v4793, %v4787
        %v4795 = vsel %vm2329, %v4794, %v4791
        %v4796 = vld [vmem:[%s87] sm:$0xff]
        %v4797 = vld [vmem:[%s87 + $0x8] sm:$0xff]
        %v4798 = vld [vmem:[%s87 + $0x10] sm:$0xff]
        %v4799 = vld [vmem:[%s87 + $0x18] sm:$0xff]
        %v4800 = vld [vmem:[%s71] sm:$0x1]
        %v4802 = vlaneseq
        %v4803 = vshrl.u32 %v4802, 7
        %v4804 = vsub.s32 0, %v4803
        %v4805 = vrot.slane %v4800, %v4804
        %v4808 = vsel %vm1577, %v4795, 0
        %4810 = vmatprep.subr.mxu0 0.0
        %4811 = vmatpush1.msra.mxu0 0.0
        %4812 = vmatprep.subr.mxu0 0.0
        %4813 = vmatpush1.msra.mxu0 0.0
        %4814 = vmatprep.subr.mxu0 0.0
        %4815 = vmatpush1.msra.mxu0 0.0
        %4816 = vmatprep.subr.mxu0 0.0
        %4817 = vmatpush1.msra.mxu0 0.0
        %4818 = vmatprep.subr.mxu0 0.0
        %4819 = vmatpush1.msra.mxu0 0.0
        %4820 = vmatprep.subr.mxu0 0.0
        %4821 = vmatpush1.msra.mxu0 0.0
        %4822 = vmatprep.subr.mxu0 0.0
        %4823 = vmatpush1.msra.mxu0 0.0
        %4824 = vmatprep.subr.mxu0 0.0
        %4825 = vmatpush1.msra.mxu0 0.0
        %4826 = vmatprep.subr.mxu0 0.0
        %4827 = vmatpush1.msra.mxu0 0.0
        %4828 = vmatprep.subr.mxu0 0.0
        %4829 = vmatpush1.msra.mxu0 0.0
        %4830 = vmatprep.subr.mxu0 0.0
        %4831 = vmatpush1.msra.mxu0 0.0
        %4832 = vmatprep.subr.mxu0 0.0
        %4833 = vmatpush1.msra.mxu0 0.0
        %4834 = vmatprep.subr.mxu0 0.0
        %4835 = vmatpush1.msra.mxu0 %v4799
        %4836 = vmatprep.subr.mxu0 0.0
        %4837 = vmatpush1.msra.mxu0 %v4798
        %4838 = vmatprep.subr.mxu0 0.0
        %4839 = vmatpush1.msra.mxu0 %v4797
        %4840 = vmatprep.subr.mxu0 0.0
        %4841 = vmatpush1.msra.mxu0 %v4796
        %4842 = vmatprep.subr.mxu0 0.0
        %4843 = vmatpush2.msra.mxu0 0.0
        %4844 = vmatprep.subr.mxu0 0.0
        %4845 = vmatpush2.msra.mxu0 0.0
        %4846 = vmatprep.subr.mxu0 0.0
        %4847 = vmatpush2.msra.mxu0 0.0
        %4848 = vmatprep.subr.mxu0 0.0
        %4849 = vmatpush2.msra.mxu0 0.0
        %4850 = vmatprep.subr.mxu0 0.0
        %4851 = vmatpush2.msra.mxu0 0.0
        %4852 = vmatprep.subr.mxu0 0.0
        %4853 = vmatpush2.msra.mxu0 0.0
        %4854 = vmatprep.subr.mxu0 0.0
        %4855 = vmatpush2.msra.mxu0 0.0
        %4856 = vmatprep.subr.mxu0 0.0
        %4857 = vmatpush2.msra.mxu0 0.0
        %4858 = vmatprep.subr.mxu0 0.0
        %4859 = vmatpush2.msra.mxu0 0.0
        %4860 = vmatprep.subr.mxu0 0.0
        %4861 = vmatpush2.msra.mxu0 0.0
        %4862 = vmatprep.subr.mxu0 0.0
        %4863 = vmatpush2.msra.mxu0 0.0
        %4864 = vmatprep.subr.mxu0 0.0
        %4865 = vmatpush2.msra.mxu0 0.0
        %4866 = vmatprep.subr.mxu0 0.0
        %4867 = vmatpush2.msra.mxu0 0.0
        %4868 = vmatprep.subr.mxu0 0.0
        %4869 = vmatpush2.msra.mxu0 0.0
        %4870 = vmatprep.subr.mxu0 0.0
        %4871 = vmatpush2.msra.mxu0 0.0
        %4872 = vmatprep.subr.mxu0 0.0
        %4873 = vmatpush2.msra.mxu0 0.0
        %4874 = vmatprep.mubr.f32.mxu0 0.0
        %4875 = vmatmul.mubr.f32.gmra.mxu0 %v4808
        %v4876 = vpop.f32.mrf.mxu0
        %v4877 = vadd.f32 %v4805, %v4876
        %v4878 = vpop.f32.mrf.mxu0
        %4879 = vdwg.mxu0
        %v4880 = vadd.f32 %v4033, %v4877
        %v4881 = vld [vmem:[#allocation7] sm:$0x1]
        %v4882 = vld [vmem:[#allocation5] sm:$0x1]
        %v4883 = vsel %vm1577, %v4880, 0.0
        %4884 = vadd.xlane.f32.xlu0 %v4883
        %v4885 = vpop.xlane.xlu0 %4884
        %v4886 = vmul.f32 %v4885, %v2421
        %v4887 = vsub.f32 %v4880, %v4886
        %v4888 = vmul.f32 %v4887, %v4887
        %v4889 = vsel %vm1577, %v4888, 0.0
        %4890 = vadd.xlane.f32.xlu0 %v4889
        %v4891 = vpop.xlane.xlu0 %4890
        %v4892 = vmul.f32 %v4891, %v2421
        %v4893 = vadd.f32 %v4892, 1e-05
        %v4894 = vrsqrt.pop %v4893
        %v4895 = vmul.f32 %v4887, %v4894
        %v4897 = vlaneseq
        %v4898 = vshrl.u32 %v4897, 7
        %v4899 = vsub.s32 0, %v4898
        %v4900 = vrot.slane %v4881, %v4899
        %v4902 = vmul.f32 %v4895, %v4900
        %v4904 = vlaneseq
        %v4905 = vshrl.u32 %v4904, 7
        %v4906 = vsub.s32 0, %v4905
        %v4907 = vrot.slane %v4882, %v4906
        %v4909 = vadd.f32 %v4902, %v4907
        %v4910 = vld [vmem:[%s83] sm:$0xff]
        %v4911 = vld [vmem:[%s83 + $0x8] sm:$0xff]
        %v4912 = vld [vmem:[%s83 + $0x10] sm:$0xff]
        %v4913 = vld [vmem:[%s83 + $0x18] sm:$0xff]
        %v4914 = vld [vmem:[%s83 + $0x20] sm:$0xff]
        %v4915 = vld [vmem:[%s83 + $0x28] sm:$0xff]
        %v4916 = vld [vmem:[%s83 + $0x30] sm:$0xff]
        %v4917 = vld [vmem:[%s83 + $0x38] sm:$0xff]
        %v4918 = vld [vmem:[%s83 + $0x40] sm:$0xff]
        %v4919 = vld [vmem:[%s83 + $0x48] sm:$0xff]
        %v4920 = vld [vmem:[%s83 + $0x50] sm:$0xff]
        %v4921 = vld [vmem:[%s83 + $0x58] sm:$0xff]
        %v4922 = vld [vmem:[%s83 + $0x60] sm:$0xff]
        %v4923 = vld [vmem:[%s83 + $0x68] sm:$0xff]
        %v4924 = vld [vmem:[%s83 + $0x70] sm:$0xff]
        %v4925 = vld [vmem:[%s83 + $0x78] sm:$0xff]
        %v4926 = vld [vmem:[%s83 + $0x80] sm:$0xff]
        %v4927 = vld [vmem:[%s83 + $0x88] sm:$0xff]
        %v4928 = vld [vmem:[%s83 + $0x90] sm:$0xff]
        %v4929 = vld [vmem:[%s83 + $0x98] sm:$0xff]
        %v4930 = vld [vmem:[%s83 + $0xa0] sm:$0xff]
        %v4931 = vld [vmem:[%s83 + $0xa8] sm:$0xff]
        %v4932 = vld [vmem:[%s83 + $0xb0] sm:$0xff]
        %v4933 = vld [vmem:[%s83 + $0xb8] sm:$0xff]
        %v4934 = vld [vmem:[%s83 + $0xc0] sm:$0xff]
        %v4935 = vld [vmem:[%s83 + $0xc8] sm:$0xff]
        %v4936 = vld [vmem:[%s83 + $0xd0] sm:$0xff]
        %v4937 = vld [vmem:[%s83 + $0xd8] sm:$0xff]
        %v4938 = vld [vmem:[%s83 + $0xe0] sm:$0xff]
        %v4939 = vld [vmem:[%s83 + $0xe8] sm:$0xff]
        %v4940 = vld [vmem:[%s83 + $0xf0] sm:$0xff]
        %v4941 = vld [vmem:[%s83 + $0xf8] sm:$0xff]
        %v4942 = vld [vmem:[%s83 + $0x100] sm:$0xff]
        %v4943 = vld [vmem:[%s83 + $0x108] sm:$0xff]
        %v4944 = vld [vmem:[%s83 + $0x110] sm:$0xff]
        %v4945 = vld [vmem:[%s83 + $0x118] sm:$0xff]
        %v4946 = vld [vmem:[%s83 + $0x120] sm:$0xff]
        %v4947 = vld [vmem:[%s83 + $0x128] sm:$0xff]
        %v4948 = vld [vmem:[%s83 + $0x130] sm:$0xff]
        %v4949 = vld [vmem:[%s83 + $0x138] sm:$0xff]
        %v4950 = vld [vmem:[%s83 + $0x140] sm:$0xff]
        %v4951 = vld [vmem:[%s83 + $0x148] sm:$0xff]
        %v4952 = vld [vmem:[%s83 + $0x150] sm:$0xff]
        %v4953 = vld [vmem:[%s83 + $0x158] sm:$0xff]
        %v4954 = vld [vmem:[%s83 + $0x160] sm:$0xff]
        %v4955 = vld [vmem:[%s83 + $0x168] sm:$0xff]
        %v4956 = vld [vmem:[%s83 + $0x170] sm:$0xff]
        %v4957 = vld [vmem:[%s83 + $0x178] sm:$0xff]
        %v4958 = vld [vmem:[%s83 + $0x180] sm:$0xff]
        %v4959 = vld [vmem:[%s83 + $0x188] sm:$0xff]
        %v4960 = vld [vmem:[%s83 + $0x190] sm:$0xff]
        %v4961 = vld [vmem:[%s83 + $0x198] sm:$0xff]
        %v4962 = vld [vmem:[%s83 + $0x1a0] sm:$0xff]
        %v4963 = vld [vmem:[%s83 + $0x1a8] sm:$0xff]
        %v4964 = vld [vmem:[%s83 + $0x1b0] sm:$0xff]
        %v4965 = vld [vmem:[%s83 + $0x1b8] sm:$0xff]
        %v4966 = vld [vmem:[%s83 + $0x1c0] sm:$0xff]
        %v4967 = vld [vmem:[%s83 + $0x1c8] sm:$0xff]
        %v4968 = vld [vmem:[%s83 + $0x1d0] sm:$0xff]
        %v4969 = vld [vmem:[%s83 + $0x1d8] sm:$0xff]
        %v4970 = vld [vmem:[%s83 + $0x1e0] sm:$0xff]
        %v4971 = vld [vmem:[%s83 + $0x1e8] sm:$0xff]
        %v4972 = vld [vmem:[%s83 + $0x1f0] sm:$0xff]
        %v4973 = vld [vmem:[%s83 + $0x1f8] sm:$0xff]
        %v4974 = vld [vmem:[%s67] sm:$0xff]
        %v4975 = vld [vmem:[%s67 + $0x8] sm:$0xff]
        %v4978 = vlaneseq
        %v4979 = vshrl.u32 %v4978, 7
        %v4980 = vsub.s32 0, %v4979
        %v4981 = vrot.slane %v4974, %v4980
        %v4982 = vlaneseq
        %v4983 = vshrl.u32 %v4982, 7
        %v4984 = vsub.s32 1, %v4983
        %v4985 = vrot.slane %v4974, %v4984
        %v4986 = vlaneseq
        %v4987 = vshrl.u32 %v4986, 7
        %v4988 = vsub.s32 2, %v4987
        %v4989 = vrot.slane %v4974, %v4988
        %v4990 = vlaneseq
        %v4991 = vshrl.u32 %v4990, 7
        %v4992 = vsub.s32 3, %v4991
        %v4993 = vrot.slane %v4974, %v4992
        %v4994 = vlaneseq
        %v4995 = vshrl.u32 %v4994, 7
        %v4996 = vsub.s32 4, %v4995
        %v4997 = vrot.slane %v4974, %v4996
        %v4998 = vlaneseq
        %v4999 = vshrl.u32 %v4998, 7
        %v5000 = vsub.s32 5, %v4999
        %v5001 = vrot.slane %v4974, %v5000
        %v5002 = vlaneseq
        %v5003 = vshrl.u32 %v5002, 7
        %v5004 = vsub.s32 6, %v5003
        %v5005 = vrot.slane %v4974, %v5004
        %v5006 = vlaneseq
        %v5007 = vshrl.u32 %v5006, 7
        %v5008 = vsub.s32 7, %v5007
        %v5009 = vrot.slane %v4974, %v5008
        %v5010 = vlaneseq
        %v5011 = vshrl.u32 %v5010, 7
        %v5012 = vsub.s32 0, %v5011
        %v5013 = vrot.slane %v4975, %v5012
        %v5014 = vlaneseq
        %v5015 = vshrl.u32 %v5014, 7
        %v5016 = vsub.s32 1, %v5015
        %v5017 = vrot.slane %v4975, %v5016
        %v5018 = vlaneseq
        %v5019 = vshrl.u32 %v5018, 7
        %v5020 = vsub.s32 2, %v5019
        %v5021 = vrot.slane %v4975, %v5020
        %v5022 = vlaneseq
        %v5023 = vshrl.u32 %v5022, 7
        %v5024 = vsub.s32 3, %v5023
        %v5025 = vrot.slane %v4975, %v5024
        %v5026 = vlaneseq
        %v5027 = vshrl.u32 %v5026, 7
        %v5028 = vsub.s32 4, %v5027
        %v5029 = vrot.slane %v4975, %v5028
        %v5030 = vlaneseq
        %v5031 = vshrl.u32 %v5030, 7
        %v5032 = vsub.s32 5, %v5031
        %v5033 = vrot.slane %v4975, %v5032
        %v5034 = vlaneseq
        %v5035 = vshrl.u32 %v5034, 7
        %v5036 = vsub.s32 6, %v5035
        %v5037 = vrot.slane %v4975, %v5036
        %v5038 = vlaneseq
        %v5039 = vshrl.u32 %v5038, 7
        %v5040 = vsub.s32 7, %v5039
        %v5041 = vrot.slane %v4975, %v5040
        %v5059 = vsel %vm1577, %v4909, 0
        %5061 = vmatprep.subr.mxu0 0.0
        %5062 = vmatpush1.msra.mxu0 0.0
        %5063 = vmatprep.subr.mxu0 0.0
        %5064 = vmatpush1.msra.mxu0 0.0
        %5065 = vmatprep.subr.mxu0 0.0
        %5066 = vmatpush1.msra.mxu0 0.0
        %5067 = vmatprep.subr.mxu0 0.0
        %5068 = vmatpush1.msra.mxu0 0.0
        %5069 = vmatprep.subr.mxu0 0.0
        %5070 = vmatpush1.msra.mxu0 0.0
        %5071 = vmatprep.subr.mxu0 0.0
        %5072 = vmatpush1.msra.mxu0 0.0
        %5073 = vmatprep.subr.mxu0 0.0
        %5074 = vmatpush1.msra.mxu0 0.0
        %5075 = vmatprep.subr.mxu0 0.0
        %5076 = vmatpush1.msra.mxu0 0.0
        %5077 = vmatprep.subr.mxu0 0.0
        %5078 = vmatpush1.msra.mxu0 0.0
        %5079 = vmatprep.subr.mxu0 0.0
        %5080 = vmatpush1.msra.mxu0 0.0
        %5081 = vmatprep.subr.mxu0 0.0
        %5082 = vmatpush1.msra.mxu0 0.0
        %5083 = vmatprep.subr.mxu0 0.0
        %5084 = vmatpush1.msra.mxu0 0.0
        %5085 = vmatprep.subr.mxu0 %v4959
        %5086 = vmatpush1.msra.mxu0 %v4958
        %5087 = vmatprep.subr.mxu0 %v4943
        %5088 = vmatpush1.msra.mxu0 %v4942
        %5089 = vmatprep.subr.mxu0 %v4927
        %5090 = vmatpush1.msra.mxu0 %v4926
        %5091 = vmatprep.subr.mxu0 %v4911
        %5092 = vmatpush1.msra.mxu0 %v4910
        %5093 = vmatprep.subr.mxu0 0.0
        %5094 = vmatpush2.msra.mxu0 0.0
        %5095 = vmatprep.subr.mxu0 0.0
        %5096 = vmatpush2.msra.mxu0 0.0
        %5097 = vmatprep.subr.mxu0 0.0
        %5098 = vmatpush2.msra.mxu0 0.0
        %5099 = vmatprep.subr.mxu0 0.0
        %5100 = vmatpush2.msra.mxu0 0.0
        %5101 = vmatprep.subr.mxu0 0.0
        %5102 = vmatpush2.msra.mxu0 0.0
        %5103 = vmatprep.subr.mxu0 0.0
        %5104 = vmatpush2.msra.mxu0 0.0
        %5105 = vmatprep.subr.mxu0 0.0
        %5106 = vmatpush2.msra.mxu0 0.0
        %5107 = vmatprep.subr.mxu0 0.0
        %5108 = vmatpush2.msra.mxu0 0.0
        %5109 = vmatprep.subr.mxu0 0.0
        %5110 = vmatpush2.msra.mxu0 0.0
        %5111 = vmatprep.subr.mxu0 0.0
        %5112 = vmatpush2.msra.mxu0 0.0
        %5113 = vmatprep.subr.mxu0 0.0
        %5114 = vmatpush2.msra.mxu0 0.0
        %5115 = vmatprep.subr.mxu0 0.0
        %5116 = vmatpush2.msra.mxu0 0.0
        %5117 = vmatprep.subr.mxu0 0.0
        %5118 = vmatpush2.msra.mxu0 0.0
        %5119 = vmatprep.subr.mxu0 0.0
        %5120 = vmatpush2.msra.mxu0 0.0
        %5121 = vmatprep.subr.mxu0 0.0
        %5122 = vmatpush2.msra.mxu0 0.0
        %5123 = vmatprep.subr.mxu0 0.0
        %5124 = vmatpush2.msra.mxu0 0.0
        %5125 = vmatprep.mubr.f32.mxu0 0.0
        %5126 = vmatmul.mubr.f32.gmra.mxu0 %v5059
        %v5127 = vpop.f32.mrf.mxu0
        %v5128 = vadd.f32 %v4981, %v5127
        %v5129 = vpop.f32.mrf.mxu0
        %v5130 = vadd.f32 %v4985, %v5129
        %5131 = vdwg.mxu0
        %5132 = vmatprep.subr.mxu0 0.0
        %5133 = vmatpush1.msra.mxu0 0.0
        %5134 = vmatprep.subr.mxu0 0.0
        %5135 = vmatpush1.msra.mxu0 0.0
        %5136 = vmatprep.subr.mxu0 0.0
        %5137 = vmatpush1.msra.mxu0 0.0
        %5138 = vmatprep.subr.mxu0 0.0
        %5139 = vmatpush1.msra.mxu0 0.0
        %5140 = vmatprep.subr.mxu0 0.0
        %5141 = vmatpush1.msra.mxu0 0.0
        %5142 = vmatprep.subr.mxu0 0.0
        %5143 = vmatpush1.msra.mxu0 0.0
        %5144 = vmatprep.subr.mxu0 0.0
        %5145 = vmatpush1.msra.mxu0 0.0
        %5146 = vmatprep.subr.mxu0 0.0
        %5147 = vmatpush1.msra.mxu0 0.0
        %5148 = vmatprep.subr.mxu0 0.0
        %5149 = vmatpush1.msra.mxu0 0.0
        %5150 = vmatprep.subr.mxu0 0.0
        %5151 = vmatpush1.msra.mxu0 0.0
        %5152 = vmatprep.subr.mxu0 0.0
        %5153 = vmatpush1.msra.mxu0 0.0
        %5154 = vmatprep.subr.mxu0 0.0
        %5155 = vmatpush1.msra.mxu0 0.0
        %5156 = vmatprep.subr.mxu0 %v4961
        %5157 = vmatpush1.msra.mxu0 %v4960
        %5158 = vmatprep.subr.mxu0 %v4945
        %5159 = vmatpush1.msra.mxu0 %v4944
        %5160 = vmatprep.subr.mxu0 %v4929
        %5161 = vmatpush1.msra.mxu0 %v4928
        %5162 = vmatprep.subr.mxu0 %v4913
        %5163 = vmatpush1.msra.mxu0 %v4912
        %5164 = vmatprep.subr.mxu0 0.0
        %5165 = vmatpush2.msra.mxu0 0.0
        %5166 = vmatprep.subr.mxu0 0.0
        %5167 = vmatpush2.msra.mxu0 0.0
        %5168 = vmatprep.subr.mxu0 0.0
        %5169 = vmatpush2.msra.mxu0 0.0
        %5170 = vmatprep.subr.mxu0 0.0
        %5171 = vmatpush2.msra.mxu0 0.0
        %5172 = vmatprep.subr.mxu0 0.0
        %5173 = vmatpush2.msra.mxu0 0.0
        %5174 = vmatprep.subr.mxu0 0.0
        %5175 = vmatpush2.msra.mxu0 0.0
        %5176 = vmatprep.subr.mxu0 0.0
        %5177 = vmatpush2.msra.mxu0 0.0
        %5178 = vmatprep.subr.mxu0 0.0
        %5179 = vmatpush2.msra.mxu0 0.0
        %5180 = vmatprep.subr.mxu0 0.0
        %5181 = vmatpush2.msra.mxu0 0.0
        %5182 = vmatprep.subr.mxu0 0.0
        %5183 = vmatpush2.msra.mxu0 0.0
        %5184 = vmatprep.subr.mxu0 0.0
        %5185 = vmatpush2.msra.mxu0 0.0
        %5186 = vmatprep.subr.mxu0 0.0
        %5187 = vmatpush2.msra.mxu0 0.0
        %5188 = vmatprep.subr.mxu0 0.0
        %5189 = vmatpush2.msra.mxu0 0.0
        %5190 = vmatprep.subr.mxu0 0.0
        %5191 = vmatpush2.msra.mxu0 0.0
        %5192 = vmatprep.subr.mxu0 0.0
        %5193 = vmatpush2.msra.mxu0 0.0
        %5194 = vmatprep.subr.mxu0 0.0
        %5195 = vmatpush2.msra.mxu0 0.0
        %5196 = vmatprep.mubr.f32.mxu0 0.0
        %5197 = vmatmul.mubr.f32.gmra.mxu0 %v5059
        %v5198 = vpop.f32.mrf.mxu0
        %v5199 = vadd.f32 %v4989, %v5198
        %v5200 = vpop.f32.mrf.mxu0
        %v5201 = vadd.f32 %v4993, %v5200
        %5202 = vdwg.mxu0
        %5203 = vmatprep.subr.mxu0 0.0
        %5204 = vmatpush1.msra.mxu0 0.0
        %5205 = vmatprep.subr.mxu0 0.0
        %5206 = vmatpush1.msra.mxu0 0.0
        %5207 = vmatprep.subr.mxu0 0.0
        %5208 = vmatpush1.msra.mxu0 0.0
        %5209 = vmatprep.subr.mxu0 0.0
        %5210 = vmatpush1.msra.mxu0 0.0
        %5211 = vmatprep.subr.mxu0 0.0
        %5212 = vmatpush1.msra.mxu0 0.0
        %5213 = vmatprep.subr.mxu0 0.0
        %5214 = vmatpush1.msra.mxu0 0.0
        %5215 = vmatprep.subr.mxu0 0.0
        %5216 = vmatpush1.msra.mxu0 0.0
        %5217 = vmatprep.subr.mxu0 0.0
        %5218 = vmatpush1.msra.mxu0 0.0
        %5219 = vmatprep.subr.mxu0 0.0
        %5220 = vmatpush1.msra.mxu0 0.0
        %5221 = vmatprep.subr.mxu0 0.0
        %5222 = vmatpush1.msra.mxu0 0.0
        %5223 = vmatprep.subr.mxu0 0.0
        %5224 = vmatpush1.msra.mxu0 0.0
        %5225 = vmatprep.subr.mxu0 0.0
        %5226 = vmatpush1.msra.mxu0 0.0
        %5227 = vmatprep.subr.mxu0 %v4963
        %5228 = vmatpush1.msra.mxu0 %v4962
        %5229 = vmatprep.subr.mxu0 %v4947
        %5230 = vmatpush1.msra.mxu0 %v4946
        %5231 = vmatprep.subr.mxu0 %v4931
        %5232 = vmatpush1.msra.mxu0 %v4930
        %5233 = vmatprep.subr.mxu0 %v4915
        %5234 = vmatpush1.msra.mxu0 %v4914
        %5235 = vmatprep.subr.mxu0 0.0
        %5236 = vmatpush2.msra.mxu0 0.0
        %5237 = vmatprep.subr.mxu0 0.0
        %5238 = vmatpush2.msra.mxu0 0.0
        %5239 = vmatprep.subr.mxu0 0.0
        %5240 = vmatpush2.msra.mxu0 0.0
        %5241 = vmatprep.subr.mxu0 0.0
        %5242 = vmatpush2.msra.mxu0 0.0
        %5243 = vmatprep.subr.mxu0 0.0
        %5244 = vmatpush2.msra.mxu0 0.0
        %5245 = vmatprep.subr.mxu0 0.0
        %5246 = vmatpush2.msra.mxu0 0.0
        %5247 = vmatprep.subr.mxu0 0.0
        %5248 = vmatpush2.msra.mxu0 0.0
        %5249 = vmatprep.subr.mxu0 0.0
        %5250 = vmatpush2.msra.mxu0 0.0
        %5251 = vmatprep.subr.mxu0 0.0
        %5252 = vmatpush2.msra.mxu0 0.0
        %5253 = vmatprep.subr.mxu0 0.0
        %5254 = vmatpush2.msra.mxu0 0.0
        %5255 = vmatprep.subr.mxu0 0.0
        %5256 = vmatpush2.msra.mxu0 0.0
        %5257 = vmatprep.subr.mxu0 0.0
        %5258 = vmatpush2.msra.mxu0 0.0
        %5259 = vmatprep.subr.mxu0 0.0
        %5260 = vmatpush2.msra.mxu0 0.0
        %5261 = vmatprep.subr.mxu0 0.0
        %5262 = vmatpush2.msra.mxu0 0.0
        %5263 = vmatprep.subr.mxu0 0.0
        %5264 = vmatpush2.msra.mxu0 0.0
        %5265 = vmatprep.subr.mxu0 0.0
        %5266 = vmatpush2.msra.mxu0 0.0
        %5267 = vmatprep.mubr.f32.mxu0 0.0
        %5268 = vmatmul.mubr.f32.gmra.mxu0 %v5059
        %v5269 = vpop.f32.mrf.mxu0
        %v5270 = vadd.f32 %v4997, %v5269
        %v5271 = vpop.f32.mrf.mxu0
        %v5272 = vadd.f32 %v5001, %v5271
        %5273 = vdwg.mxu0
        %5274 = vmatprep.subr.mxu0 0.0
        %5275 = vmatpush1.msra.mxu0 0.0
        %5276 = vmatprep.subr.mxu0 0.0
        %5277 = vmatpush1.msra.mxu0 0.0
        %5278 = vmatprep.subr.mxu0 0.0
        %5279 = vmatpush1.msra.mxu0 0.0
        %5280 = vmatprep.subr.mxu0 0.0
        %5281 = vmatpush1.msra.mxu0 0.0
        %5282 = vmatprep.subr.mxu0 0.0
        %5283 = vmatpush1.msra.mxu0 0.0
        %5284 = vmatprep.subr.mxu0 0.0
        %5285 = vmatpush1.msra.mxu0 0.0
        %5286 = vmatprep.subr.mxu0 0.0
        %5287 = vmatpush1.msra.mxu0 0.0
        %5288 = vmatprep.subr.mxu0 0.0
        %5289 = vmatpush1.msra.mxu0 0.0
        %5290 = vmatprep.subr.mxu0 0.0
        %5291 = vmatpush1.msra.mxu0 0.0
        %5292 = vmatprep.subr.mxu0 0.0
        %5293 = vmatpush1.msra.mxu0 0.0
        %5294 = vmatprep.subr.mxu0 0.0
        %5295 = vmatpush1.msra.mxu0 0.0
        %5296 = vmatprep.subr.mxu0 0.0
        %5297 = vmatpush1.msra.mxu0 0.0
        %5298 = vmatprep.subr.mxu0 %v4965
        %5299 = vmatpush1.msra.mxu0 %v4964
        %5300 = vmatprep.subr.mxu0 %v4949
        %5301 = vmatpush1.msra.mxu0 %v4948
        %5302 = vmatprep.subr.mxu0 %v4933
        %5303 = vmatpush1.msra.mxu0 %v4932
        %5304 = vmatprep.subr.mxu0 %v4917
        %5305 = vmatpush1.msra.mxu0 %v4916
        %5306 = vmatprep.subr.mxu0 0.0
        %5307 = vmatpush2.msra.mxu0 0.0
        %5308 = vmatprep.subr.mxu0 0.0
        %5309 = vmatpush2.msra.mxu0 0.0
        %5310 = vmatprep.subr.mxu0 0.0
        %5311 = vmatpush2.msra.mxu0 0.0
        %5312 = vmatprep.subr.mxu0 0.0
        %5313 = vmatpush2.msra.mxu0 0.0
        %5314 = vmatprep.subr.mxu0 0.0
        %5315 = vmatpush2.msra.mxu0 0.0
        %5316 = vmatprep.subr.mxu0 0.0
        %5317 = vmatpush2.msra.mxu0 0.0
        %5318 = vmatprep.subr.mxu0 0.0
        %5319 = vmatpush2.msra.mxu0 0.0
        %5320 = vmatprep.subr.mxu0 0.0
        %5321 = vmatpush2.msra.mxu0 0.0
        %5322 = vmatprep.subr.mxu0 0.0
        %5323 = vmatpush2.msra.mxu0 0.0
        %5324 = vmatprep.subr.mxu0 0.0
        %5325 = vmatpush2.msra.mxu0 0.0
        %5326 = vmatprep.subr.mxu0 0.0
        %5327 = vmatpush2.msra.mxu0 0.0
        %5328 = vmatprep.subr.mxu0 0.0
        %5329 = vmatpush2.msra.mxu0 0.0
        %5330 = vmatprep.subr.mxu0 0.0
        %5331 = vmatpush2.msra.mxu0 0.0
        %5332 = vmatprep.subr.mxu0 0.0
        %5333 = vmatpush2.msra.mxu0 0.0
        %5334 = vmatprep.subr.mxu0 0.0
        %5335 = vmatpush2.msra.mxu0 0.0
        %5336 = vmatprep.subr.mxu0 0.0
        %5337 = vmatpush2.msra.mxu0 0.0
        %5338 = vmatprep.mubr.f32.mxu0 0.0
        %5339 = vmatmul.mubr.f32.gmra.mxu0 %v5059
        %v5340 = vpop.f32.mrf.mxu0
        %v5341 = vadd.f32 %v5005, %v5340
        %v5342 = vpop.f32.mrf.mxu0
        %v5343 = vadd.f32 %v5009, %v5342
        %5344 = vdwg.mxu0
        %5345 = vmatprep.subr.mxu0 0.0
        %5346 = vmatpush1.msra.mxu0 0.0
        %5347 = vmatprep.subr.mxu0 0.0
        %5348 = vmatpush1.msra.mxu0 0.0
        %5349 = vmatprep.subr.mxu0 0.0
        %5350 = vmatpush1.msra.mxu0 0.0
        %5351 = vmatprep.subr.mxu0 0.0
        %5352 = vmatpush1.msra.mxu0 0.0
        %5353 = vmatprep.subr.mxu0 0.0
        %5354 = vmatpush1.msra.mxu0 0.0
        %5355 = vmatprep.subr.mxu0 0.0
        %5356 = vmatpush1.msra.mxu0 0.0
        %5357 = vmatprep.subr.mxu0 0.0
        %5358 = vmatpush1.msra.mxu0 0.0
        %5359 = vmatprep.subr.mxu0 0.0
        %5360 = vmatpush1.msra.mxu0 0.0
        %5361 = vmatprep.subr.mxu0 0.0
        %5362 = vmatpush1.msra.mxu0 0.0
        %5363 = vmatprep.subr.mxu0 0.0
        %5364 = vmatpush1.msra.mxu0 0.0
        %5365 = vmatprep.subr.mxu0 0.0
        %5366 = vmatpush1.msra.mxu0 0.0
        %5367 = vmatprep.subr.mxu0 0.0
        %5368 = vmatpush1.msra.mxu0 0.0
        %5369 = vmatprep.subr.mxu0 %v4967
        %5370 = vmatpush1.msra.mxu0 %v4966
        %5371 = vmatprep.subr.mxu0 %v4951
        %5372 = vmatpush1.msra.mxu0 %v4950
        %5373 = vmatprep.subr.mxu0 %v4935
        %5374 = vmatpush1.msra.mxu0 %v4934
        %5375 = vmatprep.subr.mxu0 %v4919
        %5376 = vmatpush1.msra.mxu0 %v4918
        %5377 = vmatprep.subr.mxu0 0.0
        %5378 = vmatpush2.msra.mxu0 0.0
        %5379 = vmatprep.subr.mxu0 0.0
        %5380 = vmatpush2.msra.mxu0 0.0
        %5381 = vmatprep.subr.mxu0 0.0
        %5382 = vmatpush2.msra.mxu0 0.0
        %5383 = vmatprep.subr.mxu0 0.0
        %5384 = vmatpush2.msra.mxu0 0.0
        %5385 = vmatprep.subr.mxu0 0.0
        %5386 = vmatpush2.msra.mxu0 0.0
        %5387 = vmatprep.subr.mxu0 0.0
        %5388 = vmatpush2.msra.mxu0 0.0
        %5389 = vmatprep.subr.mxu0 0.0
        %5390 = vmatpush2.msra.mxu0 0.0
        %5391 = vmatprep.subr.mxu0 0.0
        %5392 = vmatpush2.msra.mxu0 0.0
        %5393 = vmatprep.subr.mxu0 0.0
        %5394 = vmatpush2.msra.mxu0 0.0
        %5395 = vmatprep.subr.mxu0 0.0
        %5396 = vmatpush2.msra.mxu0 0.0
        %5397 = vmatprep.subr.mxu0 0.0
        %5398 = vmatpush2.msra.mxu0 0.0
        %5399 = vmatprep.subr.mxu0 0.0
        %5400 = vmatpush2.msra.mxu0 0.0
        %5401 = vmatprep.subr.mxu0 0.0
        %5402 = vmatpush2.msra.mxu0 0.0
        %5403 = vmatprep.subr.mxu0 0.0
        %5404 = vmatpush2.msra.mxu0 0.0
        %5405 = vmatprep.subr.mxu0 0.0
        %5406 = vmatpush2.msra.mxu0 0.0
        %5407 = vmatprep.subr.mxu0 0.0
        %5408 = vmatpush2.msra.mxu0 0.0
        %5409 = vmatprep.mubr.f32.mxu0 0.0
        %5410 = vmatmul.mubr.f32.gmra.mxu0 %v5059
        %v5411 = vpop.f32.mrf.mxu0
        %v5412 = vadd.f32 %v5013, %v5411
        %v5413 = vpop.f32.mrf.mxu0
        %v5414 = vadd.f32 %v5017, %v5413
        %5415 = vdwg.mxu0
        %5416 = vmatprep.subr.mxu0 0.0
        %5417 = vmatpush1.msra.mxu0 0.0
        %5418 = vmatprep.subr.mxu0 0.0
        %5419 = vmatpush1.msra.mxu0 0.0
        %5420 = vmatprep.subr.mxu0 0.0
        %5421 = vmatpush1.msra.mxu0 0.0
        %5422 = vmatprep.subr.mxu0 0.0
        %5423 = vmatpush1.msra.mxu0 0.0
        %5424 = vmatprep.subr.mxu0 0.0
        %5425 = vmatpush1.msra.mxu0 0.0
        %5426 = vmatprep.subr.mxu0 0.0
        %5427 = vmatpush1.msra.mxu0 0.0
        %5428 = vmatprep.subr.mxu0 0.0
        %5429 = vmatpush1.msra.mxu0 0.0
        %5430 = vmatprep.subr.mxu0 0.0
        %5431 = vmatpush1.msra.mxu0 0.0
        %5432 = vmatprep.subr.mxu0 0.0
        %5433 = vmatpush1.msra.mxu0 0.0
        %5434 = vmatprep.subr.mxu0 0.0
        %5435 = vmatpush1.msra.mxu0 0.0
        %5436 = vmatprep.subr.mxu0 0.0
        %5437 = vmatpush1.msra.mxu0 0.0
        %5438 = vmatprep.subr.mxu0 0.0
        %5439 = vmatpush1.msra.mxu0 0.0
        %5440 = vmatprep.subr.mxu0 %v4969
        %5441 = vmatpush1.msra.mxu0 %v4968
        %5442 = vmatprep.subr.mxu0 %v4953
        %5443 = vmatpush1.msra.mxu0 %v4952
        %5444 = vmatprep.subr.mxu0 %v4937
        %5445 = vmatpush1.msra.mxu0 %v4936
        %5446 = vmatprep.subr.mxu0 %v4921
        %5447 = vmatpush1.msra.mxu0 %v4920
        %5448 = vmatprep.subr.mxu0 0.0
        %5449 = vmatpush2.msra.mxu0 0.0
        %5450 = vmatprep.subr.mxu0 0.0
        %5451 = vmatpush2.msra.mxu0 0.0
        %5452 = vmatprep.subr.mxu0 0.0
        %5453 = vmatpush2.msra.mxu0 0.0
        %5454 = vmatprep.subr.mxu0 0.0
        %5455 = vmatpush2.msra.mxu0 0.0
        %5456 = vmatprep.subr.mxu0 0.0
        %5457 = vmatpush2.msra.mxu0 0.0
        %5458 = vmatprep.subr.mxu0 0.0
        %5459 = vmatpush2.msra.mxu0 0.0
        %5460 = vmatprep.subr.mxu0 0.0
        %5461 = vmatpush2.msra.mxu0 0.0
        %5462 = vmatprep.subr.mxu0 0.0
        %5463 = vmatpush2.msra.mxu0 0.0
        %5464 = vmatprep.subr.mxu0 0.0
        %5465 = vmatpush2.msra.mxu0 0.0
        %5466 = vmatprep.subr.mxu0 0.0
        %5467 = vmatpush2.msra.mxu0 0.0
        %5468 = vmatprep.subr.mxu0 0.0
        %5469 = vmatpush2.msra.mxu0 0.0
        %5470 = vmatprep.subr.mxu0 0.0
        %5471 = vmatpush2.msra.mxu0 0.0
        %5472 = vmatprep.subr.mxu0 0.0
        %5473 = vmatpush2.msra.mxu0 0.0
        %5474 = vmatprep.subr.mxu0 0.0
        %5475 = vmatpush2.msra.mxu0 0.0
        %5476 = vmatprep.subr.mxu0 0.0
        %5477 = vmatpush2.msra.mxu0 0.0
        %5478 = vmatprep.subr.mxu0 0.0
        %5479 = vmatpush2.msra.mxu0 0.0
        %5480 = vmatprep.mubr.f32.mxu0 0.0
        %5481 = vmatmul.mubr.f32.gmra.mxu0 %v5059
        %v5482 = vpop.f32.mrf.mxu0
        %v5483 = vadd.f32 %v5021, %v5482
        %v5484 = vpop.f32.mrf.mxu0
        %v5485 = vadd.f32 %v5025, %v5484
        %5486 = vdwg.mxu0
        %5487 = vmatprep.subr.mxu0 0.0
        %5488 = vmatpush1.msra.mxu0 0.0
        %5489 = vmatprep.subr.mxu0 0.0
        %5490 = vmatpush1.msra.mxu0 0.0
        %5491 = vmatprep.subr.mxu0 0.0
        %5492 = vmatpush1.msra.mxu0 0.0
        %5493 = vmatprep.subr.mxu0 0.0
        %5494 = vmatpush1.msra.mxu0 0.0
        %5495 = vmatprep.subr.mxu0 0.0
        %5496 = vmatpush1.msra.mxu0 0.0
        %5497 = vmatprep.subr.mxu0 0.0
        %5498 = vmatpush1.msra.mxu0 0.0
        %5499 = vmatprep.subr.mxu0 0.0
        %5500 = vmatpush1.msra.mxu0 0.0
        %5501 = vmatprep.subr.mxu0 0.0
        %5502 = vmatpush1.msra.mxu0 0.0
        %5503 = vmatprep.subr.mxu0 0.0
        %5504 = vmatpush1.msra.mxu0 0.0
        %5505 = vmatprep.subr.mxu0 0.0
        %5506 = vmatpush1.msra.mxu0 0.0
        %5507 = vmatprep.subr.mxu0 0.0
        %5508 = vmatpush1.msra.mxu0 0.0
        %5509 = vmatprep.subr.mxu0 0.0
        %5510 = vmatpush1.msra.mxu0 0.0
        %5511 = vmatprep.subr.mxu0 %v4971
        %5512 = vmatpush1.msra.mxu0 %v4970
        %5513 = vmatprep.subr.mxu0 %v4955
        %5514 = vmatpush1.msra.mxu0 %v4954
        %5515 = vmatprep.subr.mxu0 %v4939
        %5516 = vmatpush1.msra.mxu0 %v4938
        %5517 = vmatprep.subr.mxu0 %v4923
        %5518 = vmatpush1.msra.mxu0 %v4922
        %5519 = vmatprep.subr.mxu0 0.0
        %5520 = vmatpush2.msra.mxu0 0.0
        %5521 = vmatprep.subr.mxu0 0.0
        %5522 = vmatpush2.msra.mxu0 0.0
        %5523 = vmatprep.subr.mxu0 0.0
        %5524 = vmatpush2.msra.mxu0 0.0
        %5525 = vmatprep.subr.mxu0 0.0
        %5526 = vmatpush2.msra.mxu0 0.0
        %5527 = vmatprep.subr.mxu0 0.0
        %5528 = vmatpush2.msra.mxu0 0.0
        %5529 = vmatprep.subr.mxu0 0.0
        %5530 = vmatpush2.msra.mxu0 0.0
        %5531 = vmatprep.subr.mxu0 0.0
        %5532 = vmatpush2.msra.mxu0 0.0
        %5533 = vmatprep.subr.mxu0 0.0
        %5534 = vmatpush2.msra.mxu0 0.0
        %5535 = vmatprep.subr.mxu0 0.0
        %5536 = vmatpush2.msra.mxu0 0.0
        %5537 = vmatprep.subr.mxu0 0.0
        %5538 = vmatpush2.msra.mxu0 0.0
        %5539 = vmatprep.subr.mxu0 0.0
        %5540 = vmatpush2.msra.mxu0 0.0
        %5541 = vmatprep.subr.mxu0 0.0
        %5542 = vmatpush2.msra.mxu0 0.0
        %5543 = vmatprep.subr.mxu0 0.0
        %5544 = vmatpush2.msra.mxu0 0.0
        %5545 = vmatprep.subr.mxu0 0.0
        %5546 = vmatpush2.msra.mxu0 0.0
        %5547 = vmatprep.subr.mxu0 0.0
        %5548 = vmatpush2.msra.mxu0 0.0
        %5549 = vmatprep.subr.mxu0 0.0
        %5550 = vmatpush2.msra.mxu0 0.0
        %5551 = vmatprep.mubr.f32.mxu0 0.0
        %5552 = vmatmul.mubr.f32.gmra.mxu0 %v5059
        %v5553 = vpop.f32.mrf.mxu0
        %v5554 = vadd.f32 %v5029, %v5553
        %v5555 = vpop.f32.mrf.mxu0
        %v5556 = vadd.f32 %v5033, %v5555
        %5557 = vdwg.mxu0
        %5558 = vmatprep.subr.mxu0 0.0
        %5559 = vmatpush1.msra.mxu0 0.0
        %5560 = vmatprep.subr.mxu0 0.0
        %5561 = vmatpush1.msra.mxu0 0.0
        %5562 = vmatprep.subr.mxu0 0.0
        %5563 = vmatpush1.msra.mxu0 0.0
        %5564 = vmatprep.subr.mxu0 0.0
        %5565 = vmatpush1.msra.mxu0 0.0
        %5566 = vmatprep.subr.mxu0 0.0
        %5567 = vmatpush1.msra.mxu0 0.0
        %5568 = vmatprep.subr.mxu0 0.0
        %5569 = vmatpush1.msra.mxu0 0.0
        %5570 = vmatprep.subr.mxu0 0.0
        %5571 = vmatpush1.msra.mxu0 0.0
        %5572 = vmatprep.subr.mxu0 0.0
        %5573 = vmatpush1.msra.mxu0 0.0
        %5574 = vmatprep.subr.mxu0 0.0
        %5575 = vmatpush1.msra.mxu0 0.0
        %5576 = vmatprep.subr.mxu0 0.0
        %5577 = vmatpush1.msra.mxu0 0.0
        %5578 = vmatprep.subr.mxu0 0.0
        %5579 = vmatpush1.msra.mxu0 0.0
        %5580 = vmatprep.subr.mxu0 0.0
        %5581 = vmatpush1.msra.mxu0 0.0
        %5582 = vmatprep.subr.mxu0 %v4973
        %5583 = vmatpush1.msra.mxu0 %v4972
        %5584 = vmatprep.subr.mxu0 %v4957
        %5585 = vmatpush1.msra.mxu0 %v4956
        %5586 = vmatprep.subr.mxu0 %v4941
        %5587 = vmatpush1.msra.mxu0 %v4940
        %5588 = vmatprep.subr.mxu0 %v4925
        %5589 = vmatpush1.msra.mxu0 %v4924
        %5590 = vmatprep.subr.mxu0 0.0
        %5591 = vmatpush2.msra.mxu0 0.0
        %5592 = vmatprep.subr.mxu0 0.0
        %5593 = vmatpush2.msra.mxu0 0.0
        %5594 = vmatprep.subr.mxu0 0.0
        %5595 = vmatpush2.msra.mxu0 0.0
        %5596 = vmatprep.subr.mxu0 0.0
        %5597 = vmatpush2.msra.mxu0 0.0
        %5598 = vmatprep.subr.mxu0 0.0
        %5599 = vmatpush2.msra.mxu0 0.0
        %5600 = vmatprep.subr.mxu0 0.0
        %5601 = vmatpush2.msra.mxu0 0.0
        %5602 = vmatprep.subr.mxu0 0.0
        %5603 = vmatpush2.msra.mxu0 0.0
        %5604 = vmatprep.subr.mxu0 0.0
        %5605 = vmatpush2.msra.mxu0 0.0
        %5606 = vmatprep.subr.mxu0 0.0
        %5607 = vmatpush2.msra.mxu0 0.0
        %5608 = vmatprep.subr.mxu0 0.0
        %5609 = vmatpush2.msra.mxu0 0.0
        %5610 = vmatprep.subr.mxu0 0.0
        %5611 = vmatpush2.msra.mxu0 0.0
        %5612 = vmatprep.subr.mxu0 0.0
        %5613 = vmatpush2.msra.mxu0 0.0
        %5614 = vmatprep.subr.mxu0 0.0
        %5615 = vmatpush2.msra.mxu0 0.0
        %5616 = vmatprep.subr.mxu0 0.0
        %5617 = vmatpush2.msra.mxu0 0.0
        %5618 = vmatprep.subr.mxu0 0.0
        %5619 = vmatpush2.msra.mxu0 0.0
        %5620 = vmatprep.subr.mxu0 0.0
        %5621 = vmatpush2.msra.mxu0 0.0
        %5622 = vmatprep.mubr.f32.mxu0 0.0
        %5623 = vmatmul.mubr.f32.gmra.mxu0 %v5059
        %v5624 = vpop.f32.mrf.mxu0
        %v5625 = vadd.f32 %v5037, %v5624
        %v5626 = vpop.f32.mrf.mxu0
        %v5627 = vadd.f32 %v5041, %v5626
        %5628 = vdwg.mxu0
        %v5629 = vmax.f32 %v5128, 0.0
        %v5630 = vmax.f32 %v5130, 0.0
        %v5631 = vmax.f32 %v5199, 0.0
        %v5632 = vmax.f32 %v5201, 0.0
        %v5633 = vmax.f32 %v5270, 0.0
        %v5634 = vmax.f32 %v5272, 0.0
        %v5635 = vmax.f32 %v5341, 0.0
        %v5636 = vmax.f32 %v5343, 0.0
        %v5637 = vmax.f32 %v5412, 0.0
        %v5638 = vmax.f32 %v5414, 0.0
        %v5639 = vmax.f32 %v5483, 0.0
        %v5640 = vmax.f32 %v5485, 0.0
        %v5641 = vmax.f32 %v5554, 0.0
        %v5642 = vmax.f32 %v5556, 0.0
        %v5643 = vmax.f32 %v5625, 0.0
        %v5644 = vmax.f32 %v5627, 0.0
        %v5645 = vld [vmem:[%s85] sm:$0xff]
        %v5646 = vld [vmem:[%s85 + $0x8] sm:$0xff]
        %v5647 = vld [vmem:[%s85 + $0x10] sm:$0xff]
        %v5648 = vld [vmem:[%s85 + $0x18] sm:$0xff]
        %v5649 = vld [vmem:[%s85 + $0x20] sm:$0xff]
        %v5650 = vld [vmem:[%s85 + $0x28] sm:$0xff]
        %v5651 = vld [vmem:[%s85 + $0x30] sm:$0xff]
        %v5652 = vld [vmem:[%s85 + $0x38] sm:$0xff]
        %v5653 = vld [vmem:[%s85 + $0x40] sm:$0xff]
        %v5654 = vld [vmem:[%s85 + $0x48] sm:$0xff]
        %v5655 = vld [vmem:[%s85 + $0x50] sm:$0xff]
        %v5656 = vld [vmem:[%s85 + $0x58] sm:$0xff]
        %v5657 = vld [vmem:[%s85 + $0x60] sm:$0xff]
        %v5658 = vld [vmem:[%s85 + $0x68] sm:$0xff]
        %v5659 = vld [vmem:[%s85 + $0x70] sm:$0xff]
        %v5660 = vld [vmem:[%s85 + $0x78] sm:$0xff]
        %v5661 = vld [vmem:[%s85 + $0x80] sm:$0xff]
        %v5662 = vld [vmem:[%s85 + $0x88] sm:$0xff]
        %v5663 = vld [vmem:[%s85 + $0x90] sm:$0xff]
        %v5664 = vld [vmem:[%s85 + $0x98] sm:$0xff]
        %v5665 = vld [vmem:[%s85 + $0xa0] sm:$0xff]
        %v5666 = vld [vmem:[%s85 + $0xa8] sm:$0xff]
        %v5667 = vld [vmem:[%s85 + $0xb0] sm:$0xff]
        %v5668 = vld [vmem:[%s85 + $0xb8] sm:$0xff]
        %v5669 = vld [vmem:[%s85 + $0xc0] sm:$0xff]
        %v5670 = vld [vmem:[%s85 + $0xc8] sm:$0xff]
        %v5671 = vld [vmem:[%s85 + $0xd0] sm:$0xff]
        %v5672 = vld [vmem:[%s85 + $0xd8] sm:$0xff]
        %v5673 = vld [vmem:[%s85 + $0xe0] sm:$0xff]
        %v5674 = vld [vmem:[%s85 + $0xe8] sm:$0xff]
        %v5675 = vld [vmem:[%s85 + $0xf0] sm:$0xff]
        %v5676 = vld [vmem:[%s85 + $0xf8] sm:$0xff]
        %v5677 = vld [vmem:[%s85 + $0x100] sm:$0xff]
        %v5678 = vld [vmem:[%s85 + $0x108] sm:$0xff]
        %v5679 = vld [vmem:[%s85 + $0x110] sm:$0xff]
        %v5680 = vld [vmem:[%s85 + $0x118] sm:$0xff]
        %v5681 = vld [vmem:[%s85 + $0x120] sm:$0xff]
        %v5682 = vld [vmem:[%s85 + $0x128] sm:$0xff]
        %v5683 = vld [vmem:[%s85 + $0x130] sm:$0xff]
        %v5684 = vld [vmem:[%s85 + $0x138] sm:$0xff]
        %v5685 = vld [vmem:[%s85 + $0x140] sm:$0xff]
        %v5686 = vld [vmem:[%s85 + $0x148] sm:$0xff]
        %v5687 = vld [vmem:[%s85 + $0x150] sm:$0xff]
        %v5688 = vld [vmem:[%s85 + $0x158] sm:$0xff]
        %v5689 = vld [vmem:[%s85 + $0x160] sm:$0xff]
        %v5690 = vld [vmem:[%s85 + $0x168] sm:$0xff]
        %v5691 = vld [vmem:[%s85 + $0x170] sm:$0xff]
        %v5692 = vld [vmem:[%s85 + $0x178] sm:$0xff]
        %v5693 = vld [vmem:[%s85 + $0x180] sm:$0xff]
        %v5694 = vld [vmem:[%s85 + $0x188] sm:$0xff]
        %v5695 = vld [vmem:[%s85 + $0x190] sm:$0xff]
        %v5696 = vld [vmem:[%s85 + $0x198] sm:$0xff]
        %v5697 = vld [vmem:[%s85 + $0x1a0] sm:$0xff]
        %v5698 = vld [vmem:[%s85 + $0x1a8] sm:$0xff]
        %v5699 = vld [vmem:[%s85 + $0x1b0] sm:$0xff]
        %v5700 = vld [vmem:[%s85 + $0x1b8] sm:$0xff]
        %v5701 = vld [vmem:[%s85 + $0x1c0] sm:$0xff]
        %v5702 = vld [vmem:[%s85 + $0x1c8] sm:$0xff]
        %v5703 = vld [vmem:[%s85 + $0x1d0] sm:$0xff]
        %v5704 = vld [vmem:[%s85 + $0x1d8] sm:$0xff]
        %v5705 = vld [vmem:[%s85 + $0x1e0] sm:$0xff]
        %v5706 = vld [vmem:[%s85 + $0x1e8] sm:$0xff]
        %v5707 = vld [vmem:[%s85 + $0x1f0] sm:$0xff]
        %v5708 = vld [vmem:[%s85 + $0x1f8] sm:$0xff]
        %v5709 = vld [vmem:[%s85 + $0x200] sm:$0xff]
        %v5710 = vld [vmem:[%s85 + $0x208] sm:$0xff]
        %v5711 = vld [vmem:[%s85 + $0x210] sm:$0xff]
        %v5712 = vld [vmem:[%s85 + $0x218] sm:$0xff]
        %v5713 = vld [vmem:[%s85 + $0x220] sm:$0xff]
        %v5714 = vld [vmem:[%s85 + $0x228] sm:$0xff]
        %v5715 = vld [vmem:[%s85 + $0x230] sm:$0xff]
        %v5716 = vld [vmem:[%s85 + $0x238] sm:$0xff]
        %v5717 = vld [vmem:[%s85 + $0x240] sm:$0xff]
        %v5718 = vld [vmem:[%s85 + $0x248] sm:$0xff]
        %v5719 = vld [vmem:[%s85 + $0x250] sm:$0xff]
        %v5720 = vld [vmem:[%s85 + $0x258] sm:$0xff]
        %v5721 = vld [vmem:[%s85 + $0x260] sm:$0xff]
        %v5722 = vld [vmem:[%s85 + $0x268] sm:$0xff]
        %v5723 = vld [vmem:[%s85 + $0x270] sm:$0xff]
        %v5724 = vld [vmem:[%s85 + $0x278] sm:$0xff]
        %v5725 = vld [vmem:[%s85 + $0x280] sm:$0xff]
        %v5726 = vld [vmem:[%s85 + $0x288] sm:$0xff]
        %v5727 = vld [vmem:[%s85 + $0x290] sm:$0xff]
        %v5728 = vld [vmem:[%s85 + $0x298] sm:$0xff]
        %v5729 = vld [vmem:[%s85 + $0x2a0] sm:$0xff]
        %v5730 = vld [vmem:[%s85 + $0x2a8] sm:$0xff]
        %v5731 = vld [vmem:[%s85 + $0x2b0] sm:$0xff]
        %v5732 = vld [vmem:[%s85 + $0x2b8] sm:$0xff]
        %v5733 = vld [vmem:[%s85 + $0x2c0] sm:$0xff]
        %v5734 = vld [vmem:[%s85 + $0x2c8] sm:$0xff]
        %v5735 = vld [vmem:[%s85 + $0x2d0] sm:$0xff]
        %v5736 = vld [vmem:[%s85 + $0x2d8] sm:$0xff]
        %v5737 = vld [vmem:[%s85 + $0x2e0] sm:$0xff]
        %v5738 = vld [vmem:[%s85 + $0x2e8] sm:$0xff]
        %v5739 = vld [vmem:[%s85 + $0x2f0] sm:$0xff]
        %v5740 = vld [vmem:[%s85 + $0x2f8] sm:$0xff]
        %v5741 = vld [vmem:[%s85 + $0x300] sm:$0xff]
        %v5742 = vld [vmem:[%s85 + $0x308] sm:$0xff]
        %v5743 = vld [vmem:[%s85 + $0x310] sm:$0xff]
        %v5744 = vld [vmem:[%s85 + $0x318] sm:$0xff]
        %v5745 = vld [vmem:[%s85 + $0x320] sm:$0xff]
        %v5746 = vld [vmem:[%s85 + $0x328] sm:$0xff]
        %v5747 = vld [vmem:[%s85 + $0x330] sm:$0xff]
        %v5748 = vld [vmem:[%s85 + $0x338] sm:$0xff]
        %v5749 = vld [vmem:[%s85 + $0x340] sm:$0xff]
        %v5750 = vld [vmem:[%s85 + $0x348] sm:$0xff]
        %v5751 = vld [vmem:[%s85 + $0x350] sm:$0xff]
        %v5752 = vld [vmem:[%s85 + $0x358] sm:$0xff]
        %v5753 = vld [vmem:[%s85 + $0x360] sm:$0xff]
        %v5754 = vld [vmem:[%s85 + $0x368] sm:$0xff]
        %v5755 = vld [vmem:[%s85 + $0x370] sm:$0xff]
        %v5756 = vld [vmem:[%s85 + $0x378] sm:$0xff]
        %v5757 = vld [vmem:[%s85 + $0x380] sm:$0xff]
        %v5758 = vld [vmem:[%s85 + $0x388] sm:$0xff]
        %v5759 = vld [vmem:[%s85 + $0x390] sm:$0xff]
        %v5760 = vld [vmem:[%s85 + $0x398] sm:$0xff]
        %v5761 = vld [vmem:[%s85 + $0x3a0] sm:$0xff]
        %v5762 = vld [vmem:[%s85 + $0x3a8] sm:$0xff]
        %v5763 = vld [vmem:[%s85 + $0x3b0] sm:$0xff]
        %v5764 = vld [vmem:[%s85 + $0x3b8] sm:$0xff]
        %v5765 = vld [vmem:[%s85 + $0x3c0] sm:$0xff]
        %v5766 = vld [vmem:[%s85 + $0x3c8] sm:$0xff]
        %v5767 = vld [vmem:[%s85 + $0x3d0] sm:$0xff]
        %v5768 = vld [vmem:[%s85 + $0x3d8] sm:$0xff]
        %v5769 = vld [vmem:[%s85 + $0x3e0] sm:$0xff]
        %v5770 = vld [vmem:[%s85 + $0x3e8] sm:$0xff]
        %v5771 = vld [vmem:[%s85 + $0x3f0] sm:$0xff]
        %v5772 = vld [vmem:[%s85 + $0x3f8] sm:$0xff]
        %v5773 = vld [vmem:[%s85 + $0x400] sm:$0xff]
        %v5774 = vld [vmem:[%s85 + $0x408] sm:$0xff]
        %v5775 = vld [vmem:[%s85 + $0x410] sm:$0xff]
        %v5776 = vld [vmem:[%s85 + $0x418] sm:$0xff]
        %v5777 = vld [vmem:[%s85 + $0x420] sm:$0xff]
        %v5778 = vld [vmem:[%s85 + $0x428] sm:$0xff]
        %v5779 = vld [vmem:[%s85 + $0x430] sm:$0xff]
        %v5780 = vld [vmem:[%s85 + $0x438] sm:$0xff]
        %v5781 = vld [vmem:[%s85 + $0x440] sm:$0xff]
        %v5782 = vld [vmem:[%s85 + $0x448] sm:$0xff]
        %v5783 = vld [vmem:[%s85 + $0x450] sm:$0xff]
        %v5784 = vld [vmem:[%s85 + $0x458] sm:$0xff]
        %v5785 = vld [vmem:[%s85 + $0x460] sm:$0xff]
        %v5786 = vld [vmem:[%s85 + $0x468] sm:$0xff]
        %v5787 = vld [vmem:[%s85 + $0x470] sm:$0xff]
        %v5788 = vld [vmem:[%s85 + $0x478] sm:$0xff]
        %v5789 = vld [vmem:[%s85 + $0x480] sm:$0xff]
        %v5790 = vld [vmem:[%s85 + $0x488] sm:$0xff]
        %v5791 = vld [vmem:[%s85 + $0x490] sm:$0xff]
        %v5792 = vld [vmem:[%s85 + $0x498] sm:$0xff]
        %v5793 = vld [vmem:[%s85 + $0x4a0] sm:$0xff]
        %v5794 = vld [vmem:[%s85 + $0x4a8] sm:$0xff]
        %v5795 = vld [vmem:[%s85 + $0x4b0] sm:$0xff]
        %v5796 = vld [vmem:[%s85 + $0x4b8] sm:$0xff]
        %v5797 = vld [vmem:[%s85 + $0x4c0] sm:$0xff]
        %v5798 = vld [vmem:[%s85 + $0x4c8] sm:$0xff]
        %v5799 = vld [vmem:[%s85 + $0x4d0] sm:$0xff]
        %v5800 = vld [vmem:[%s85 + $0x4d8] sm:$0xff]
        %v5801 = vld [vmem:[%s85 + $0x4e0] sm:$0xff]
        %v5802 = vld [vmem:[%s85 + $0x4e8] sm:$0xff]
        %v5803 = vld [vmem:[%s85 + $0x4f0] sm:$0xff]
        %v5804 = vld [vmem:[%s85 + $0x4f8] sm:$0xff]
        %v5805 = vld [vmem:[%s85 + $0x500] sm:$0xff]
        %v5806 = vld [vmem:[%s85 + $0x508] sm:$0xff]
        %v5807 = vld [vmem:[%s85 + $0x510] sm:$0xff]
        %v5808 = vld [vmem:[%s85 + $0x518] sm:$0xff]
        %v5809 = vld [vmem:[%s85 + $0x520] sm:$0xff]
        %v5810 = vld [vmem:[%s85 + $0x528] sm:$0xff]
        %v5811 = vld [vmem:[%s85 + $0x530] sm:$0xff]
        %v5812 = vld [vmem:[%s85 + $0x538] sm:$0xff]
        %v5813 = vld [vmem:[%s85 + $0x540] sm:$0xff]
        %v5814 = vld [vmem:[%s85 + $0x548] sm:$0xff]
        %v5815 = vld [vmem:[%s85 + $0x550] sm:$0xff]
        %v5816 = vld [vmem:[%s85 + $0x558] sm:$0xff]
        %v5817 = vld [vmem:[%s85 + $0x560] sm:$0xff]
        %v5818 = vld [vmem:[%s85 + $0x568] sm:$0xff]
        %v5819 = vld [vmem:[%s85 + $0x570] sm:$0xff]
        %v5820 = vld [vmem:[%s85 + $0x578] sm:$0xff]
        %v5821 = vld [vmem:[%s85 + $0x580] sm:$0xff]
        %v5822 = vld [vmem:[%s85 + $0x588] sm:$0xff]
        %v5823 = vld [vmem:[%s85 + $0x590] sm:$0xff]
        %v5824 = vld [vmem:[%s85 + $0x598] sm:$0xff]
        %v5825 = vld [vmem:[%s85 + $0x5a0] sm:$0xff]
        %v5826 = vld [vmem:[%s85 + $0x5a8] sm:$0xff]
        %v5827 = vld [vmem:[%s85 + $0x5b0] sm:$0xff]
        %v5828 = vld [vmem:[%s85 + $0x5b8] sm:$0xff]
        %v5829 = vld [vmem:[%s85 + $0x5c0] sm:$0xff]
        %v5830 = vld [vmem:[%s85 + $0x5c8] sm:$0xff]
        %v5831 = vld [vmem:[%s85 + $0x5d0] sm:$0xff]
        %v5832 = vld [vmem:[%s85 + $0x5d8] sm:$0xff]
        %v5833 = vld [vmem:[%s85 + $0x5e0] sm:$0xff]
        %v5834 = vld [vmem:[%s85 + $0x5e8] sm:$0xff]
        %v5835 = vld [vmem:[%s85 + $0x5f0] sm:$0xff]
        %v5836 = vld [vmem:[%s85 + $0x5f8] sm:$0xff]
        %v5837 = vld [vmem:[%s85 + $0x600] sm:$0xff]
        %v5838 = vld [vmem:[%s85 + $0x608] sm:$0xff]
        %v5839 = vld [vmem:[%s85 + $0x610] sm:$0xff]
        %v5840 = vld [vmem:[%s85 + $0x618] sm:$0xff]
        %v5841 = vld [vmem:[%s85 + $0x620] sm:$0xff]
        %v5842 = vld [vmem:[%s85 + $0x628] sm:$0xff]
        %v5843 = vld [vmem:[%s85 + $0x630] sm:$0xff]
        %v5844 = vld [vmem:[%s85 + $0x638] sm:$0xff]
        %v5845 = vld [vmem:[%s85 + $0x640] sm:$0xff]
        %v5846 = vld [vmem:[%s85 + $0x648] sm:$0xff]
        %v5847 = vld [vmem:[%s85 + $0x650] sm:$0xff]
        %v5848 = vld [vmem:[%s85 + $0x658] sm:$0xff]
        %v5849 = vld [vmem:[%s85 + $0x660] sm:$0xff]
        %v5850 = vld [vmem:[%s85 + $0x668] sm:$0xff]
        %v5851 = vld [vmem:[%s85 + $0x670] sm:$0xff]
        %v5852 = vld [vmem:[%s85 + $0x678] sm:$0xff]
        %v5853 = vld [vmem:[%s85 + $0x680] sm:$0xff]
        %v5854 = vld [vmem:[%s85 + $0x688] sm:$0xff]
        %v5855 = vld [vmem:[%s85 + $0x690] sm:$0xff]
        %v5856 = vld [vmem:[%s85 + $0x698] sm:$0xff]
        %v5857 = vld [vmem:[%s85 + $0x6a0] sm:$0xff]
        %v5858 = vld [vmem:[%s85 + $0x6a8] sm:$0xff]
        %v5859 = vld [vmem:[%s85 + $0x6b0] sm:$0xff]
        %v5860 = vld [vmem:[%s85 + $0x6b8] sm:$0xff]
        %v5861 = vld [vmem:[%s85 + $0x6c0] sm:$0xff]
        %v5862 = vld [vmem:[%s85 + $0x6c8] sm:$0xff]
        %v5863 = vld [vmem:[%s85 + $0x6d0] sm:$0xff]
        %v5864 = vld [vmem:[%s85 + $0x6d8] sm:$0xff]
        %v5865 = vld [vmem:[%s85 + $0x6e0] sm:$0xff]
        %v5866 = vld [vmem:[%s85 + $0x6e8] sm:$0xff]
        %v5867 = vld [vmem:[%s85 + $0x6f0] sm:$0xff]
        %v5868 = vld [vmem:[%s85 + $0x6f8] sm:$0xff]
        %v5869 = vld [vmem:[%s85 + $0x700] sm:$0xff]
        %v5870 = vld [vmem:[%s85 + $0x708] sm:$0xff]
        %v5871 = vld [vmem:[%s85 + $0x710] sm:$0xff]
        %v5872 = vld [vmem:[%s85 + $0x718] sm:$0xff]
        %v5873 = vld [vmem:[%s85 + $0x720] sm:$0xff]
        %v5874 = vld [vmem:[%s85 + $0x728] sm:$0xff]
        %v5875 = vld [vmem:[%s85 + $0x730] sm:$0xff]
        %v5876 = vld [vmem:[%s85 + $0x738] sm:$0xff]
        %v5877 = vld [vmem:[%s85 + $0x740] sm:$0xff]
        %v5878 = vld [vmem:[%s85 + $0x748] sm:$0xff]
        %v5879 = vld [vmem:[%s85 + $0x750] sm:$0xff]
        %v5880 = vld [vmem:[%s85 + $0x758] sm:$0xff]
        %v5881 = vld [vmem:[%s85 + $0x760] sm:$0xff]
        %v5882 = vld [vmem:[%s85 + $0x768] sm:$0xff]
        %v5883 = vld [vmem:[%s85 + $0x770] sm:$0xff]
        %v5884 = vld [vmem:[%s85 + $0x778] sm:$0xff]
        %v5885 = vld [vmem:[%s85 + $0x780] sm:$0xff]
        %v5886 = vld [vmem:[%s85 + $0x788] sm:$0xff]
        %v5887 = vld [vmem:[%s85 + $0x790] sm:$0xff]
        %v5888 = vld [vmem:[%s85 + $0x798] sm:$0xff]
        %v5889 = vld [vmem:[%s85 + $0x7a0] sm:$0xff]
        %v5890 = vld [vmem:[%s85 + $0x7a8] sm:$0xff]
        %v5891 = vld [vmem:[%s85 + $0x7b0] sm:$0xff]
        %v5892 = vld [vmem:[%s85 + $0x7b8] sm:$0xff]
        %v5893 = vld [vmem:[%s85 + $0x7c0] sm:$0xff]
        %v5894 = vld [vmem:[%s85 + $0x7c8] sm:$0xff]
        %v5895 = vld [vmem:[%s85 + $0x7d0] sm:$0xff]
        %v5896 = vld [vmem:[%s85 + $0x7d8] sm:$0xff]
        %v5897 = vld [vmem:[%s85 + $0x7e0] sm:$0xff]
        %v5898 = vld [vmem:[%s85 + $0x7e8] sm:$0xff]
        %v5899 = vld [vmem:[%s85 + $0x7f0] sm:$0xff]
        %v5900 = vld [vmem:[%s85 + $0x7f8] sm:$0xff]
        %v5901 = vld [vmem:[%s69] sm:$0x1]
        %v5903 = vlaneseq
        %v5904 = vshrl.u32 %v5903, 7
        %v5905 = vsub.s32 0, %v5904
        %v5906 = vrot.slane %v5901, %v5905
        %5908 = vmatprep.subr.mxu0 0.0
        %5909 = vmatpush1.msra.mxu0 %v5660
        %5910 = vmatprep.subr.mxu0 0.0
        %5911 = vmatpush1.msra.mxu0 %v5659
        %5912 = vmatprep.subr.mxu0 0.0
        %5913 = vmatpush1.msra.mxu0 %v5658
        %5914 = vmatprep.subr.mxu0 0.0
        %5915 = vmatpush1.msra.mxu0 %v5657
        %5916 = vmatprep.subr.mxu0 0.0
        %5917 = vmatpush1.msra.mxu0 %v5656
        %5918 = vmatprep.subr.mxu0 0.0
        %5919 = vmatpush1.msra.mxu0 %v5655
        %5920 = vmatprep.subr.mxu0 0.0
        %5921 = vmatpush1.msra.mxu0 %v5654
        %5922 = vmatprep.subr.mxu0 0.0
        %5923 = vmatpush1.msra.mxu0 %v5653
        %5924 = vmatprep.subr.mxu0 0.0
        %5925 = vmatpush1.msra.mxu0 %v5652
        %5926 = vmatprep.subr.mxu0 0.0
        %5927 = vmatpush1.msra.mxu0 %v5651
        %5928 = vmatprep.subr.mxu0 0.0
        %5929 = vmatpush1.msra.mxu0 %v5650
        %5930 = vmatprep.subr.mxu0 0.0
        %5931 = vmatpush1.msra.mxu0 %v5649
        %5932 = vmatprep.subr.mxu0 0.0
        %5933 = vmatpush1.msra.mxu0 %v5648
        %5934 = vmatprep.subr.mxu0 0.0
        %5935 = vmatpush1.msra.mxu0 %v5647
        %5936 = vmatprep.subr.mxu0 0.0
        %5937 = vmatpush1.msra.mxu0 %v5646
        %5938 = vmatprep.subr.mxu0 0.0
        %5939 = vmatpush1.msra.mxu0 %v5645
        %5940 = vmatprep.subr.mxu0 0.0
        %5941 = vmatpush2.msra.mxu0 %v5676
        %5942 = vmatprep.subr.mxu0 0.0
        %5943 = vmatpush2.msra.mxu0 %v5675
        %5944 = vmatprep.subr.mxu0 0.0
        %5945 = vmatpush2.msra.mxu0 %v5674
        %5946 = vmatprep.subr.mxu0 0.0
        %5947 = vmatpush2.msra.mxu0 %v5673
        %5948 = vmatprep.subr.mxu0 0.0
        %5949 = vmatpush2.msra.mxu0 %v5672
        %5950 = vmatprep.subr.mxu0 0.0
        %5951 = vmatpush2.msra.mxu0 %v5671
        %5952 = vmatprep.subr.mxu0 0.0
        %5953 = vmatpush2.msra.mxu0 %v5670
        %5954 = vmatprep.subr.mxu0 0.0
        %5955 = vmatpush2.msra.mxu0 %v5669
        %5956 = vmatprep.subr.mxu0 0.0
        %5957 = vmatpush2.msra.mxu0 %v5668
        %5958 = vmatprep.subr.mxu0 0.0
        %5959 = vmatpush2.msra.mxu0 %v5667
        %5960 = vmatprep.subr.mxu0 0.0
        %5961 = vmatpush2.msra.mxu0 %v5666
        %5962 = vmatprep.subr.mxu0 0.0
        %5963 = vmatpush2.msra.mxu0 %v5665
        %5964 = vmatprep.subr.mxu0 0.0
        %5965 = vmatpush2.msra.mxu0 %v5664
        %5966 = vmatprep.subr.mxu0 0.0
        %5967 = vmatpush2.msra.mxu0 %v5663
        %5968 = vmatprep.subr.mxu0 0.0
        %5969 = vmatpush2.msra.mxu0 %v5662
        %5970 = vmatprep.subr.mxu0 0.0
        %5971 = vmatpush2.msra.mxu0 %v5661
        %5972 = vmatprep.mubr.f32.mxu0 %v5630
        %5973 = vmatmul.mubr.f32.gmra.mxu0 %v5629
        %v5974 = vpop.f32.mrf.mxu0
        %v5975 = vadd.f32 %v5906, %v5974
        %v5976 = vpop.f32.mrf.mxu0
        %5977 = vdwg.mxu0
        %5978 = vmatprep.subr.mxu0 0.0
        %5979 = vmatpush1.msra.mxu0 %v5692
        %5980 = vmatprep.subr.mxu0 0.0
        %5981 = vmatpush1.msra.mxu0 %v5691
        %5982 = vmatprep.subr.mxu0 0.0
        %5983 = vmatpush1.msra.mxu0 %v5690
        %5984 = vmatprep.subr.mxu0 0.0
        %5985 = vmatpush1.msra.mxu0 %v5689
        %5986 = vmatprep.subr.mxu0 0.0
        %5987 = vmatpush1.msra.mxu0 %v5688
        %5988 = vmatprep.subr.mxu0 0.0
        %5989 = vmatpush1.msra.mxu0 %v5687
        %5990 = vmatprep.subr.mxu0 0.0
        %5991 = vmatpush1.msra.mxu0 %v5686
        %5992 = vmatprep.subr.mxu0 0.0
        %5993 = vmatpush1.msra.mxu0 %v5685
        %5994 = vmatprep.subr.mxu0 0.0
        %5995 = vmatpush1.msra.mxu0 %v5684
        %5996 = vmatprep.subr.mxu0 0.0
        %5997 = vmatpush1.msra.mxu0 %v5683
        %5998 = vmatprep.subr.mxu0 0.0
        %5999 = vmatpush1.msra.mxu0 %v5682
        %6000 = vmatprep.subr.mxu0 0.0
        %6001 = vmatpush1.msra.mxu0 %v5681
        %6002 = vmatprep.subr.mxu0 0.0
        %6003 = vmatpush1.msra.mxu0 %v5680
        %6004 = vmatprep.subr.mxu0 0.0
        %6005 = vmatpush1.msra.mxu0 %v5679
        %6006 = vmatprep.subr.mxu0 0.0
        %6007 = vmatpush1.msra.mxu0 %v5678
        %6008 = vmatprep.subr.mxu0 0.0
        %6009 = vmatpush1.msra.mxu0 %v5677
        %6010 = vmatprep.subr.mxu0 0.0
        %6011 = vmatpush2.msra.mxu0 %v5708
        %6012 = vmatprep.subr.mxu0 0.0
        %6013 = vmatpush2.msra.mxu0 %v5707
        %6014 = vmatprep.subr.mxu0 0.0
        %6015 = vmatpush2.msra.mxu0 %v5706
        %6016 = vmatprep.subr.mxu0 0.0
        %6017 = vmatpush2.msra.mxu0 %v5705
        %6018 = vmatprep.subr.mxu0 0.0
        %6019 = vmatpush2.msra.mxu0 %v5704
        %6020 = vmatprep.subr.mxu0 0.0
        %6021 = vmatpush2.msra.mxu0 %v5703
        %6022 = vmatprep.subr.mxu0 0.0
        %6023 = vmatpush2.msra.mxu0 %v5702
        %6024 = vmatprep.subr.mxu0 0.0
        %6025 = vmatpush2.msra.mxu0 %v5701
        %6026 = vmatprep.subr.mxu0 0.0
        %6027 = vmatpush2.msra.mxu0 %v5700
        %6028 = vmatprep.subr.mxu0 0.0
        %6029 = vmatpush2.msra.mxu0 %v5699
        %6030 = vmatprep.subr.mxu0 0.0
        %6031 = vmatpush2.msra.mxu0 %v5698
        %6032 = vmatprep.subr.mxu0 0.0
        %6033 = vmatpush2.msra.mxu0 %v5697
        %6034 = vmatprep.subr.mxu0 0.0
        %6035 = vmatpush2.msra.mxu0 %v5696
        %6036 = vmatprep.subr.mxu0 0.0
        %6037 = vmatpush2.msra.mxu0 %v5695
        %6038 = vmatprep.subr.mxu0 0.0
        %6039 = vmatpush2.msra.mxu0 %v5694
        %6040 = vmatprep.subr.mxu0 0.0
        %6041 = vmatpush2.msra.mxu0 %v5693
        %6042 = vmatprep.mubr.f32.mxu0 %v5632
        %6043 = vmatmul.mubr.f32.gmra.mxu0 %v5631
        %v6044 = vpop.f32.mrf.mxu0
        %v6045 = vadd.f32 %v5975, %v6044
        %v6046 = vpop.f32.mrf.mxu0
        %6047 = vdwg.mxu0
        %6048 = vmatprep.subr.mxu0 0.0
        %6049 = vmatpush1.msra.mxu0 %v5724
        %6050 = vmatprep.subr.mxu0 0.0
        %6051 = vmatpush1.msra.mxu0 %v5723
        %6052 = vmatprep.subr.mxu0 0.0
        %6053 = vmatpush1.msra.mxu0 %v5722
        %6054 = vmatprep.subr.mxu0 0.0
        %6055 = vmatpush1.msra.mxu0 %v5721
        %6056 = vmatprep.subr.mxu0 0.0
        %6057 = vmatpush1.msra.mxu0 %v5720
        %6058 = vmatprep.subr.mxu0 0.0
        %6059 = vmatpush1.msra.mxu0 %v5719
        %6060 = vmatprep.subr.mxu0 0.0
        %6061 = vmatpush1.msra.mxu0 %v5718
        %6062 = vmatprep.subr.mxu0 0.0
        %6063 = vmatpush1.msra.mxu0 %v5717
        %6064 = vmatprep.subr.mxu0 0.0
        %6065 = vmatpush1.msra.mxu0 %v5716
        %6066 = vmatprep.subr.mxu0 0.0
        %6067 = vmatpush1.msra.mxu0 %v5715
        %6068 = vmatprep.subr.mxu0 0.0
        %6069 = vmatpush1.msra.mxu0 %v5714
        %6070 = vmatprep.subr.mxu0 0.0
        %6071 = vmatpush1.msra.mxu0 %v5713
        %6072 = vmatprep.subr.mxu0 0.0
        %6073 = vmatpush1.msra.mxu0 %v5712
        %6074 = vmatprep.subr.mxu0 0.0
        %6075 = vmatpush1.msra.mxu0 %v5711
        %6076 = vmatprep.subr.mxu0 0.0
        %6077 = vmatpush1.msra.mxu0 %v5710
        %6078 = vmatprep.subr.mxu0 0.0
        %6079 = vmatpush1.msra.mxu0 %v5709
        %6080 = vmatprep.subr.mxu0 0.0
        %6081 = vmatpush2.msra.mxu0 %v5740
        %6082 = vmatprep.subr.mxu0 0.0
        %6083 = vmatpush2.msra.mxu0 %v5739
        %6084 = vmatprep.subr.mxu0 0.0
        %6085 = vmatpush2.msra.mxu0 %v5738
        %6086 = vmatprep.subr.mxu0 0.0
        %6087 = vmatpush2.msra.mxu0 %v5737
        %6088 = vmatprep.subr.mxu0 0.0
        %6089 = vmatpush2.msra.mxu0 %v5736
        %6090 = vmatprep.subr.mxu0 0.0
        %6091 = vmatpush2.msra.mxu0 %v5735
        %6092 = vmatprep.subr.mxu0 0.0
        %6093 = vmatpush2.msra.mxu0 %v5734
        %6094 = vmatprep.subr.mxu0 0.0
        %6095 = vmatpush2.msra.mxu0 %v5733
        %6096 = vmatprep.subr.mxu0 0.0
        %6097 = vmatpush2.msra.mxu0 %v5732
        %6098 = vmatprep.subr.mxu0 0.0
        %6099 = vmatpush2.msra.mxu0 %v5731
        %6100 = vmatprep.subr.mxu0 0.0
        %6101 = vmatpush2.msra.mxu0 %v5730
        %6102 = vmatprep.subr.mxu0 0.0
        %6103 = vmatpush2.msra.mxu0 %v5729
        %6104 = vmatprep.subr.mxu0 0.0
        %6105 = vmatpush2.msra.mxu0 %v5728
        %6106 = vmatprep.subr.mxu0 0.0
        %6107 = vmatpush2.msra.mxu0 %v5727
        %6108 = vmatprep.subr.mxu0 0.0
        %6109 = vmatpush2.msra.mxu0 %v5726
        %6110 = vmatprep.subr.mxu0 0.0
        %6111 = vmatpush2.msra.mxu0 %v5725
        %6112 = vmatprep.mubr.f32.mxu0 %v5634
        %6113 = vmatmul.mubr.f32.gmra.mxu0 %v5633
        %v6114 = vpop.f32.mrf.mxu0
        %v6115 = vadd.f32 %v6045, %v6114
        %v6116 = vpop.f32.mrf.mxu0
        %6117 = vdwg.mxu0
        %6118 = vmatprep.subr.mxu0 0.0
        %6119 = vmatpush1.msra.mxu0 %v5756
        %6120 = vmatprep.subr.mxu0 0.0
        %6121 = vmatpush1.msra.mxu0 %v5755
        %6122 = vmatprep.subr.mxu0 0.0
        %6123 = vmatpush1.msra.mxu0 %v5754
        %6124 = vmatprep.subr.mxu0 0.0
        %6125 = vmatpush1.msra.mxu0 %v5753
        %6126 = vmatprep.subr.mxu0 0.0
        %6127 = vmatpush1.msra.mxu0 %v5752
        %6128 = vmatprep.subr.mxu0 0.0
        %6129 = vmatpush1.msra.mxu0 %v5751
        %6130 = vmatprep.subr.mxu0 0.0
        %6131 = vmatpush1.msra.mxu0 %v5750
        %6132 = vmatprep.subr.mxu0 0.0
        %6133 = vmatpush1.msra.mxu0 %v5749
        %6134 = vmatprep.subr.mxu0 0.0
        %6135 = vmatpush1.msra.mxu0 %v5748
        %6136 = vmatprep.subr.mxu0 0.0
        %6137 = vmatpush1.msra.mxu0 %v5747
        %6138 = vmatprep.subr.mxu0 0.0
        %6139 = vmatpush1.msra.mxu0 %v5746
        %6140 = vmatprep.subr.mxu0 0.0
        %6141 = vmatpush1.msra.mxu0 %v5745
        %6142 = vmatprep.subr.mxu0 0.0
        %6143 = vmatpush1.msra.mxu0 %v5744
        %6144 = vmatprep.subr.mxu0 0.0
        %6145 = vmatpush1.msra.mxu0 %v5743
        %6146 = vmatprep.subr.mxu0 0.0
        %6147 = vmatpush1.msra.mxu0 %v5742
        %6148 = vmatprep.subr.mxu0 0.0
        %6149 = vmatpush1.msra.mxu0 %v5741
        %6150 = vmatprep.subr.mxu0 0.0
        %6151 = vmatpush2.msra.mxu0 %v5772
        %6152 = vmatprep.subr.mxu0 0.0
        %6153 = vmatpush2.msra.mxu0 %v5771
        %6154 = vmatprep.subr.mxu0 0.0
        %6155 = vmatpush2.msra.mxu0 %v5770
        %6156 = vmatprep.subr.mxu0 0.0
        %6157 = vmatpush2.msra.mxu0 %v5769
        %6158 = vmatprep.subr.mxu0 0.0
        %6159 = vmatpush2.msra.mxu0 %v5768
        %6160 = vmatprep.subr.mxu0 0.0
        %6161 = vmatpush2.msra.mxu0 %v5767
        %6162 = vmatprep.subr.mxu0 0.0
        %6163 = vmatpush2.msra.mxu0 %v5766
        %6164 = vmatprep.subr.mxu0 0.0
        %6165 = vmatpush2.msra.mxu0 %v5765
        %6166 = vmatprep.subr.mxu0 0.0
        %6167 = vmatpush2.msra.mxu0 %v5764
        %6168 = vmatprep.subr.mxu0 0.0
        %6169 = vmatpush2.msra.mxu0 %v5763
        %6170 = vmatprep.subr.mxu0 0.0
        %6171 = vmatpush2.msra.mxu0 %v5762
        %6172 = vmatprep.subr.mxu0 0.0
        %6173 = vmatpush2.msra.mxu0 %v5761
        %6174 = vmatprep.subr.mxu0 0.0
        %6175 = vmatpush2.msra.mxu0 %v5760
        %6176 = vmatprep.subr.mxu0 0.0
        %6177 = vmatpush2.msra.mxu0 %v5759
        %6178 = vmatprep.subr.mxu0 0.0
        %6179 = vmatpush2.msra.mxu0 %v5758
        %6180 = vmatprep.subr.mxu0 0.0
        %6181 = vmatpush2.msra.mxu0 %v5757
        %6182 = vmatprep.mubr.f32.mxu0 %v5636
        %6183 = vmatmul.mubr.f32.gmra.mxu0 %v5635
        %v6184 = vpop.f32.mrf.mxu0
        %v6185 = vadd.f32 %v6115, %v6184
        %v6186 = vpop.f32.mrf.mxu0
        %6187 = vdwg.mxu0
        %6188 = vmatprep.subr.mxu0 0.0
        %6189 = vmatpush1.msra.mxu0 %v5788
        %6190 = vmatprep.subr.mxu0 0.0
        %6191 = vmatpush1.msra.mxu0 %v5787
        %6192 = vmatprep.subr.mxu0 0.0
        %6193 = vmatpush1.msra.mxu0 %v5786
        %6194 = vmatprep.subr.mxu0 0.0
        %6195 = vmatpush1.msra.mxu0 %v5785
        %6196 = vmatprep.subr.mxu0 0.0
        %6197 = vmatpush1.msra.mxu0 %v5784
        %6198 = vmatprep.subr.mxu0 0.0
        %6199 = vmatpush1.msra.mxu0 %v5783
        %6200 = vmatprep.subr.mxu0 0.0
        %6201 = vmatpush1.msra.mxu0 %v5782
        %6202 = vmatprep.subr.mxu0 0.0
        %6203 = vmatpush1.msra.mxu0 %v5781
        %6204 = vmatprep.subr.mxu0 0.0
        %6205 = vmatpush1.msra.mxu0 %v5780
        %6206 = vmatprep.subr.mxu0 0.0
        %6207 = vmatpush1.msra.mxu0 %v5779
        %6208 = vmatprep.subr.mxu0 0.0
        %6209 = vmatpush1.msra.mxu0 %v5778
        %6210 = vmatprep.subr.mxu0 0.0
        %6211 = vmatpush1.msra.mxu0 %v5777
        %6212 = vmatprep.subr.mxu0 0.0
        %6213 = vmatpush1.msra.mxu0 %v5776
        %6214 = vmatprep.subr.mxu0 0.0
        %6215 = vmatpush1.msra.mxu0 %v5775
        %6216 = vmatprep.subr.mxu0 0.0
        %6217 = vmatpush1.msra.mxu0 %v5774
        %6218 = vmatprep.subr.mxu0 0.0
        %6219 = vmatpush1.msra.mxu0 %v5773
        %6220 = vmatprep.subr.mxu0 0.0
        %6221 = vmatpush2.msra.mxu0 %v5804
        %6222 = vmatprep.subr.mxu0 0.0
        %6223 = vmatpush2.msra.mxu0 %v5803
        %6224 = vmatprep.subr.mxu0 0.0
        %6225 = vmatpush2.msra.mxu0 %v5802
        %6226 = vmatprep.subr.mxu0 0.0
        %6227 = vmatpush2.msra.mxu0 %v5801
        %6228 = vmatprep.subr.mxu0 0.0
        %6229 = vmatpush2.msra.mxu0 %v5800
        %6230 = vmatprep.subr.mxu0 0.0
        %6231 = vmatpush2.msra.mxu0 %v5799
        %6232 = vmatprep.subr.mxu0 0.0
        %6233 = vmatpush2.msra.mxu0 %v5798
        %6234 = vmatprep.subr.mxu0 0.0
        %6235 = vmatpush2.msra.mxu0 %v5797
        %6236 = vmatprep.subr.mxu0 0.0
        %6237 = vmatpush2.msra.mxu0 %v5796
        %6238 = vmatprep.subr.mxu0 0.0
        %6239 = vmatpush2.msra.mxu0 %v5795
        %6240 = vmatprep.subr.mxu0 0.0
        %6241 = vmatpush2.msra.mxu0 %v5794
        %6242 = vmatprep.subr.mxu0 0.0
        %6243 = vmatpush2.msra.mxu0 %v5793
        %6244 = vmatprep.subr.mxu0 0.0
        %6245 = vmatpush2.msra.mxu0 %v5792
        %6246 = vmatprep.subr.mxu0 0.0
        %6247 = vmatpush2.msra.mxu0 %v5791
        %6248 = vmatprep.subr.mxu0 0.0
        %6249 = vmatpush2.msra.mxu0 %v5790
        %6250 = vmatprep.subr.mxu0 0.0
        %6251 = vmatpush2.msra.mxu0 %v5789
        %6252 = vmatprep.mubr.f32.mxu0 %v5638
        %6253 = vmatmul.mubr.f32.gmra.mxu0 %v5637
        %v6254 = vpop.f32.mrf.mxu0
        %v6255 = vadd.f32 %v6185, %v6254
        %v6256 = vpop.f32.mrf.mxu0
        %6257 = vdwg.mxu0
        %6258 = vmatprep.subr.mxu0 0.0
        %6259 = vmatpush1.msra.mxu0 %v5820
        %6260 = vmatprep.subr.mxu0 0.0
        %6261 = vmatpush1.msra.mxu0 %v5819
        %6262 = vmatprep.subr.mxu0 0.0
        %6263 = vmatpush1.msra.mxu0 %v5818
        %6264 = vmatprep.subr.mxu0 0.0
        %6265 = vmatpush1.msra.mxu0 %v5817
        %6266 = vmatprep.subr.mxu0 0.0
        %6267 = vmatpush1.msra.mxu0 %v5816
        %6268 = vmatprep.subr.mxu0 0.0
        %6269 = vmatpush1.msra.mxu0 %v5815
        %6270 = vmatprep.subr.mxu0 0.0
        %6271 = vmatpush1.msra.mxu0 %v5814
        %6272 = vmatprep.subr.mxu0 0.0
        %6273 = vmatpush1.msra.mxu0 %v5813
        %6274 = vmatprep.subr.mxu0 0.0
        %6275 = vmatpush1.msra.mxu0 %v5812
        %6276 = vmatprep.subr.mxu0 0.0
        %6277 = vmatpush1.msra.mxu0 %v5811
        %6278 = vmatprep.subr.mxu0 0.0
        %6279 = vmatpush1.msra.mxu0 %v5810
        %6280 = vmatprep.subr.mxu0 0.0
        %6281 = vmatpush1.msra.mxu0 %v5809
        %6282 = vmatprep.subr.mxu0 0.0
        %6283 = vmatpush1.msra.mxu0 %v5808
        %6284 = vmatprep.subr.mxu0 0.0
        %6285 = vmatpush1.msra.mxu0 %v5807
        %6286 = vmatprep.subr.mxu0 0.0
        %6287 = vmatpush1.msra.mxu0 %v5806
        %6288 = vmatprep.subr.mxu0 0.0
        %6289 = vmatpush1.msra.mxu0 %v5805
        %6290 = vmatprep.subr.mxu0 0.0
        %6291 = vmatpush2.msra.mxu0 %v5836
        %6292 = vmatprep.subr.mxu0 0.0
        %6293 = vmatpush2.msra.mxu0 %v5835
        %6294 = vmatprep.subr.mxu0 0.0
        %6295 = vmatpush2.msra.mxu0 %v5834
        %6296 = vmatprep.subr.mxu0 0.0
        %6297 = vmatpush2.msra.mxu0 %v5833
        %6298 = vmatprep.subr.mxu0 0.0
        %6299 = vmatpush2.msra.mxu0 %v5832
        %6300 = vmatprep.subr.mxu0 0.0
        %6301 = vmatpush2.msra.mxu0 %v5831
        %6302 = vmatprep.subr.mxu0 0.0
        %6303 = vmatpush2.msra.mxu0 %v5830
        %6304 = vmatprep.subr.mxu0 0.0
        %6305 = vmatpush2.msra.mxu0 %v5829
        %6306 = vmatprep.subr.mxu0 0.0
        %6307 = vmatpush2.msra.mxu0 %v5828
        %6308 = vmatprep.subr.mxu0 0.0
        %6309 = vmatpush2.msra.mxu0 %v5827
        %6310 = vmatprep.subr.mxu0 0.0
        %6311 = vmatpush2.msra.mxu0 %v5826
        %6312 = vmatprep.subr.mxu0 0.0
        %6313 = vmatpush2.msra.mxu0 %v5825
        %6314 = vmatprep.subr.mxu0 0.0
        %6315 = vmatpush2.msra.mxu0 %v5824
        %6316 = vmatprep.subr.mxu0 0.0
        %6317 = vmatpush2.msra.mxu0 %v5823
        %6318 = vmatprep.subr.mxu0 0.0
        %6319 = vmatpush2.msra.mxu0 %v5822
        %6320 = vmatprep.subr.mxu0 0.0
        %6321 = vmatpush2.msra.mxu0 %v5821
        %6322 = vmatprep.mubr.f32.mxu0 %v5640
        %6323 = vmatmul.mubr.f32.gmra.mxu0 %v5639
        %v6324 = vpop.f32.mrf.mxu0
        %v6325 = vadd.f32 %v6255, %v6324
        %v6326 = vpop.f32.mrf.mxu0
        %6327 = vdwg.mxu0
        %6328 = vmatprep.subr.mxu0 0.0
        %6329 = vmatpush1.msra.mxu0 %v5852
        %6330 = vmatprep.subr.mxu0 0.0
        %6331 = vmatpush1.msra.mxu0 %v5851
        %6332 = vmatprep.subr.mxu0 0.0
        %6333 = vmatpush1.msra.mxu0 %v5850
        %6334 = vmatprep.subr.mxu0 0.0
        %6335 = vmatpush1.msra.mxu0 %v5849
        %6336 = vmatprep.subr.mxu0 0.0
        %6337 = vmatpush1.msra.mxu0 %v5848
        %6338 = vmatprep.subr.mxu0 0.0
        %6339 = vmatpush1.msra.mxu0 %v5847
        %6340 = vmatprep.subr.mxu0 0.0
        %6341 = vmatpush1.msra.mxu0 %v5846
        %6342 = vmatprep.subr.mxu0 0.0
        %6343 = vmatpush1.msra.mxu0 %v5845
        %6344 = vmatprep.subr.mxu0 0.0
        %6345 = vmatpush1.msra.mxu0 %v5844
        %6346 = vmatprep.subr.mxu0 0.0
        %6347 = vmatpush1.msra.mxu0 %v5843
        %6348 = vmatprep.subr.mxu0 0.0
        %6349 = vmatpush1.msra.mxu0 %v5842
        %6350 = vmatprep.subr.mxu0 0.0
        %6351 = vmatpush1.msra.mxu0 %v5841
        %6352 = vmatprep.subr.mxu0 0.0
        %6353 = vmatpush1.msra.mxu0 %v5840
        %6354 = vmatprep.subr.mxu0 0.0
        %6355 = vmatpush1.msra.mxu0 %v5839
        %6356 = vmatprep.subr.mxu0 0.0
        %6357 = vmatpush1.msra.mxu0 %v5838
        %6358 = vmatprep.subr.mxu0 0.0
        %6359 = vmatpush1.msra.mxu0 %v5837
        %6360 = vmatprep.subr.mxu0 0.0
        %6361 = vmatpush2.msra.mxu0 %v5868
        %6362 = vmatprep.subr.mxu0 0.0
        %6363 = vmatpush2.msra.mxu0 %v5867
        %6364 = vmatprep.subr.mxu0 0.0
        %6365 = vmatpush2.msra.mxu0 %v5866
        %6366 = vmatprep.subr.mxu0 0.0
        %6367 = vmatpush2.msra.mxu0 %v5865
        %6368 = vmatprep.subr.mxu0 0.0
        %6369 = vmatpush2.msra.mxu0 %v5864
        %6370 = vmatprep.subr.mxu0 0.0
        %6371 = vmatpush2.msra.mxu0 %v5863
        %6372 = vmatprep.subr.mxu0 0.0
        %6373 = vmatpush2.msra.mxu0 %v5862
        %6374 = vmatprep.subr.mxu0 0.0
        %6375 = vmatpush2.msra.mxu0 %v5861
        %6376 = vmatprep.subr.mxu0 0.0
        %6377 = vmatpush2.msra.mxu0 %v5860
        %6378 = vmatprep.subr.mxu0 0.0
        %6379 = vmatpush2.msra.mxu0 %v5859
        %6380 = vmatprep.subr.mxu0 0.0
        %6381 = vmatpush2.msra.mxu0 %v5858
        %6382 = vmatprep.subr.mxu0 0.0
        %6383 = vmatpush2.msra.mxu0 %v5857
        %6384 = vmatprep.subr.mxu0 0.0
        %6385 = vmatpush2.msra.mxu0 %v5856
        %6386 = vmatprep.subr.mxu0 0.0
        %6387 = vmatpush2.msra.mxu0 %v5855
        %6388 = vmatprep.subr.mxu0 0.0
        %6389 = vmatpush2.msra.mxu0 %v5854
        %6390 = vmatprep.subr.mxu0 0.0
        %6391 = vmatpush2.msra.mxu0 %v5853
        %6392 = vmatprep.mubr.f32.mxu0 %v5642
        %6393 = vmatmul.mubr.f32.gmra.mxu0 %v5641
        %v6394 = vpop.f32.mrf.mxu0
        %v6395 = vadd.f32 %v6325, %v6394
        %v6396 = vpop.f32.mrf.mxu0
        %6397 = vdwg.mxu0
        %6398 = vmatprep.subr.mxu0 0.0
        %6399 = vmatpush1.msra.mxu0 %v5884
        %6400 = vmatprep.subr.mxu0 0.0
        %6401 = vmatpush1.msra.mxu0 %v5883
        %6402 = vmatprep.subr.mxu0 0.0
        %6403 = vmatpush1.msra.mxu0 %v5882
        %6404 = vmatprep.subr.mxu0 0.0
        %6405 = vmatpush1.msra.mxu0 %v5881
        %6406 = vmatprep.subr.mxu0 0.0
        %6407 = vmatpush1.msra.mxu0 %v5880
        %6408 = vmatprep.subr.mxu0 0.0
        %6409 = vmatpush1.msra.mxu0 %v5879
        %6410 = vmatprep.subr.mxu0 0.0
        %6411 = vmatpush1.msra.mxu0 %v5878
        %6412 = vmatprep.subr.mxu0 0.0
        %6413 = vmatpush1.msra.mxu0 %v5877
        %6414 = vmatprep.subr.mxu0 0.0
        %6415 = vmatpush1.msra.mxu0 %v5876
        %6416 = vmatprep.subr.mxu0 0.0
        %6417 = vmatpush1.msra.mxu0 %v5875
        %6418 = vmatprep.subr.mxu0 0.0
        %6419 = vmatpush1.msra.mxu0 %v5874
        %6420 = vmatprep.subr.mxu0 0.0
        %6421 = vmatpush1.msra.mxu0 %v5873
        %6422 = vmatprep.subr.mxu0 0.0
        %6423 = vmatpush1.msra.mxu0 %v5872
        %6424 = vmatprep.subr.mxu0 0.0
        %6425 = vmatpush1.msra.mxu0 %v5871
        %6426 = vmatprep.subr.mxu0 0.0
        %6427 = vmatpush1.msra.mxu0 %v5870
        %6428 = vmatprep.subr.mxu0 0.0
        %6429 = vmatpush1.msra.mxu0 %v5869
        %6430 = vmatprep.subr.mxu0 0.0
        %6431 = vmatpush2.msra.mxu0 %v5900
        %6432 = vmatprep.subr.mxu0 0.0
        %6433 = vmatpush2.msra.mxu0 %v5899
        %6434 = vmatprep.subr.mxu0 0.0
        %6435 = vmatpush2.msra.mxu0 %v5898
        %6436 = vmatprep.subr.mxu0 0.0
        %6437 = vmatpush2.msra.mxu0 %v5897
        %6438 = vmatprep.subr.mxu0 0.0
        %6439 = vmatpush2.msra.mxu0 %v5896
        %6440 = vmatprep.subr.mxu0 0.0
        %6441 = vmatpush2.msra.mxu0 %v5895
        %6442 = vmatprep.subr.mxu0 0.0
        %6443 = vmatpush2.msra.mxu0 %v5894
        %6444 = vmatprep.subr.mxu0 0.0
        %6445 = vmatpush2.msra.mxu0 %v5893
        %6446 = vmatprep.subr.mxu0 0.0
        %6447 = vmatpush2.msra.mxu0 %v5892
        %6448 = vmatprep.subr.mxu0 0.0
        %6449 = vmatpush2.msra.mxu0 %v5891
        %6450 = vmatprep.subr.mxu0 0.0
        %6451 = vmatpush2.msra.mxu0 %v5890
        %6452 = vmatprep.subr.mxu0 0.0
        %6453 = vmatpush2.msra.mxu0 %v5889
        %6454 = vmatprep.subr.mxu0 0.0
        %6455 = vmatpush2.msra.mxu0 %v5888
        %6456 = vmatprep.subr.mxu0 0.0
        %6457 = vmatpush2.msra.mxu0 %v5887
        %6458 = vmatprep.subr.mxu0 0.0
        %6459 = vmatpush2.msra.mxu0 %v5886
        %6460 = vmatprep.subr.mxu0 0.0
        %6461 = vmatpush2.msra.mxu0 %v5885
        %6462 = vmatprep.mubr.f32.mxu0 %v5644
        %6463 = vmatmul.mubr.f32.gmra.mxu0 %v5643
        %v6464 = vpop.f32.mrf.mxu0
        %v6465 = vadd.f32 %v6395, %v6464
        %v6466 = vpop.f32.mrf.mxu0
        %6467 = vdwg.mxu0
        %v6468 = vadd.f32 %v4909, %v6465
        %v6469 = vld [vmem:[#allocation10] sm:$0x1]
        %v6470 = vld [vmem:[#allocation8] sm:$0x1]
        %v6471 = vsel %vm1577, %v6468, 0.0
        %6472 = vadd.xlane.f32.xlu0 %v6471
        %v6473 = vpop.xlane.xlu0 %6472
        %v6474 = vmul.f32 %v6473, %v2421
        %v6475 = vsub.f32 %v6468, %v6474
        %v6476 = vmul.f32 %v6475, %v6475
        %v6477 = vsel %vm1577, %v6476, 0.0
        %6478 = vadd.xlane.f32.xlu0 %v6477
        %v6479 = vpop.xlane.xlu0 %6478
        %v6480 = vmul.f32 %v6479, %v2421
        %v6481 = vadd.f32 %v6480, 1e-05
        %v6482 = vrsqrt.pop %v6481
        %v6483 = vmul.f32 %v6475, %v6482
        %v6485 = vlaneseq
        %v6486 = vshrl.u32 %v6485, 7
        %v6487 = vsub.s32 0, %v6486
        %v6488 = vrot.slane %v6469, %v6487
        %v6490 = vmul.f32 %v6483, %v6488
        %v6492 = vlaneseq
        %v6493 = vshrl.u32 %v6492, 7
        %v6494 = vsub.s32 0, %v6493
        %v6495 = vrot.slane %v6470, %v6494
        %v6497 = vadd.f32 %v6490, %v6495
        %v6498 = vld [vmem:[%s37] sm:$0xff]
        %v6499 = vld [vmem:[%s37 + $0x8] sm:$0xff]
        %v6500 = vld [vmem:[%s37 + $0x10] sm:$0xff]
        %v6501 = vld [vmem:[%s37 + $0x18] sm:$0xff]
        %v6502 = vld [vmem:[%s33] sm:$0x1]
        %v6504 = vsel %vm1577, 0.0, 0
        %6506 = vmatprep.subr.mxu0 0.0
        %6507 = vmatpush1.msra.mxu0 0.0
        %6508 = vmatprep.subr.mxu0 0.0
        %6509 = vmatpush1.msra.mxu0 0.0
        %6510 = vmatprep.subr.mxu0 0.0
        %6511 = vmatpush1.msra.mxu0 0.0
        %6512 = vmatprep.subr.mxu0 0.0
        %6513 = vmatpush1.msra.mxu0 0.0
        %6514 = vmatprep.subr.mxu0 0.0
        %6515 = vmatpush1.msra.mxu0 0.0
        %6516 = vmatprep.subr.mxu0 0.0
        %6517 = vmatpush1.msra.mxu0 0.0
        %6518 = vmatprep.subr.mxu0 0.0
        %6519 = vmatpush1.msra.mxu0 0.0
        %6520 = vmatprep.subr.mxu0 0.0
        %6521 = vmatpush1.msra.mxu0 0.0
        %6522 = vmatprep.subr.mxu0 0.0
        %6523 = vmatpush1.msra.mxu0 0.0
        %6524 = vmatprep.subr.mxu0 0.0
        %6525 = vmatpush1.msra.mxu0 0.0
        %6526 = vmatprep.subr.mxu0 0.0
        %6527 = vmatpush1.msra.mxu0 0.0
        %6528 = vmatprep.subr.mxu0 0.0
        %6529 = vmatpush1.msra.mxu0 0.0
        %6530 = vmatprep.subr.mxu0 0.0
        %6531 = vmatpush1.msra.mxu0 %v6501
        %6532 = vmatprep.subr.mxu0 0.0
        %6533 = vmatpush1.msra.mxu0 %v6500
        %6534 = vmatprep.subr.mxu0 0.0
        %6535 = vmatpush1.msra.mxu0 %v6499
        %6536 = vmatprep.subr.mxu0 0.0
        %6537 = vmatpush1.msra.mxu0 %v6498
        %6538 = vmatprep.subr.mxu0 0.0
        %6539 = vmatpush2.msra.mxu0 0.0
        %6540 = vmatprep.subr.mxu0 0.0
        %6541 = vmatpush2.msra.mxu0 0.0
        %6542 = vmatprep.subr.mxu0 0.0
        %6543 = vmatpush2.msra.mxu0 0.0
        %6544 = vmatprep.subr.mxu0 0.0
        %6545 = vmatpush2.msra.mxu0 0.0
        %6546 = vmatprep.subr.mxu0 0.0
        %6547 = vmatpush2.msra.mxu0 0.0
        %6548 = vmatprep.subr.mxu0 0.0
        %6549 = vmatpush2.msra.mxu0 0.0
        %6550 = vmatprep.subr.mxu0 0.0
        %6551 = vmatpush2.msra.mxu0 0.0
        %6552 = vmatprep.subr.mxu0 0.0
        %6553 = vmatpush2.msra.mxu0 0.0
        %6554 = vmatprep.subr.mxu0 0.0
        %6555 = vmatpush2.msra.mxu0 0.0
        %6556 = vmatprep.subr.mxu0 0.0
        %6557 = vmatpush2.msra.mxu0 0.0
        %6558 = vmatprep.subr.mxu0 0.0
        %6559 = vmatpush2.msra.mxu0 0.0
        %6560 = vmatprep.subr.mxu0 0.0
        %6561 = vmatpush2.msra.mxu0 0.0
        %6562 = vmatprep.subr.mxu0 0.0
        %6563 = vmatpush2.msra.mxu0 0.0
        %6564 = vmatprep.subr.mxu0 0.0
        %6565 = vmatpush2.msra.mxu0 0.0
        %6566 = vmatprep.subr.mxu0 0.0
        %6567 = vmatpush2.msra.mxu0 0.0
        %6568 = vmatprep.subr.mxu0 0.0
        %6569 = vmatpush2.msra.mxu0 0.0
        %6570 = vmatprep.mubr.f32.mxu0 0.0
        %6571 = vmatmul.mubr.f32.gmra.mxu0 %v6504
        %v6572 = vpop.f32.mrf.mxu0
        %v6573 = vadd.f32 %v6502, %v6572
        %v6574 = vpop.f32.mrf.mxu0
        %6575 = vdwg.mxu0
        %6577 = vrot.lane.b32.xlu0 %v6573, 96
        %v6578 = vpop.permute.xlu0 %6577
        %v6580 = vmul.f32 %v6573, %v6578
        %vm6581 = vcmask 57344
        %v6582 = vsel %vm6581, %v6580, 0.0
        %6583 = vadd.xlane.f32.xlu0 %v6582
        %v6584 = vpop.xlane.xlu0 %6583
        %v6585 = vmul.f32 %v6584, 0.35355338
        %v6586 = vsub.f32 %v6585, %v6585
        %v6587 = vmul.f32 %v6586, 1.442695
        %v6588 = vpow.pop %v6587
        %v6589 = vadd.f32 %v6588, 0.0
        %v6590 = vrcp.pop %v6589
        %v6591 = vmul.f32 %v6588, %v6590
        %6592 = vrot.lane.b32.xlu0 %v6573, 64
        %v6593 = vpop.permute.xlu0 %6592
        %vm6594 = vcmask 7168
        %v6596 = vsel %vm6594, %v6591, 0
        %vm6598 = vcmask 1040384
        %v6599 = vsel %vm6598, %v6593, 0
        %6601 = vmatprep.subr.mxu0 0.0
        %6602 = vmatpush1.msra.mxu0 0.0
        %6603 = vmatprep.subr.mxu0 0.0
        %6604 = vmatpush1.msra.mxu0 0.0
        %6605 = vmatprep.subr.mxu0 0.0
        %6606 = vmatpush1.msra.mxu0 0.0
        %6607 = vmatprep.subr.mxu0 0.0
        %6608 = vmatpush1.msra.mxu0 0.0
        %6609 = vmatprep.subr.mxu0 0.0
        %6610 = vmatpush1.msra.mxu0 0.0
        %6611 = vmatprep.subr.mxu0 0.0
        %6612 = vmatpush1.msra.mxu0 0.0
        %6613 = vmatprep.subr.mxu0 0.0
        %6614 = vmatpush1.msra.mxu0 0.0
        %6615 = vmatprep.subr.mxu0 0.0
        %6616 = vmatpush1.msra.mxu0 0.0
        %6617 = vmatprep.subr.mxu0 0.0
        %6618 = vmatpush1.msra.mxu0 0.0
        %6619 = vmatprep.subr.mxu0 0.0
        %6620 = vmatpush1.msra.mxu0 0.0
        %6621 = vmatprep.subr.mxu0 0.0
        %6622 = vmatpush1.msra.mxu0 0.0
        %6623 = vmatprep.subr.mxu0 0.0
        %6624 = vmatpush1.msra.mxu0 0.0
        %6625 = vmatprep.subr.mxu0 0.0
        %6626 = vmatpush1.msra.mxu0 0.0
        %6627 = vmatprep.subr.mxu0 0.0
        %6628 = vmatpush1.msra.mxu0 0.0
        %6629 = vmatprep.subr.mxu0 0.0
        %6630 = vmatpush1.msra.mxu0 0.0
        %6631 = vmatprep.subr.mxu0 0.0
        %6632 = vmatpush1.msra.mxu0 %v6599
        %6633 = vmatprep.subr.mxu0 0.0
        %6634 = vmatpush2.msra.mxu0 0.0
        %6635 = vmatprep.subr.mxu0 0.0
        %6636 = vmatpush2.msra.mxu0 0.0
        %6637 = vmatprep.subr.mxu0 0.0
        %6638 = vmatpush2.msra.mxu0 0.0
        %6639 = vmatprep.subr.mxu0 0.0
        %6640 = vmatpush2.msra.mxu0 0.0
        %6641 = vmatprep.subr.mxu0 0.0
        %6642 = vmatpush2.msra.mxu0 0.0
        %6643 = vmatprep.subr.mxu0 0.0
        %6644 = vmatpush2.msra.mxu0 0.0
        %6645 = vmatprep.subr.mxu0 0.0
        %6646 = vmatpush2.msra.mxu0 0.0
        %6647 = vmatprep.subr.mxu0 0.0
        %6648 = vmatpush2.msra.mxu0 0.0
        %6649 = vmatprep.subr.mxu0 0.0
        %6650 = vmatpush2.msra.mxu0 0.0
        %6651 = vmatprep.subr.mxu0 0.0
        %6652 = vmatpush2.msra.mxu0 0.0
        %6653 = vmatprep.subr.mxu0 0.0
        %6654 = vmatpush2.msra.mxu0 0.0
        %6655 = vmatprep.subr.mxu0 0.0
        %6656 = vmatpush2.msra.mxu0 0.0
        %6657 = vmatprep.subr.mxu0 0.0
        %6658 = vmatpush2.msra.mxu0 0.0
        %6659 = vmatprep.subr.mxu0 0.0
        %6660 = vmatpush2.msra.mxu0 0.0
        %6661 = vmatprep.subr.mxu0 0.0
        %6662 = vmatpush2.msra.mxu0 0.0
        %6663 = vmatprep.subr.mxu0 0.0
        %6664 = vmatpush2.msra.mxu0 0.0
        %6665 = vmatprep.mubr.f32.mxu0 0.0
        %6666 = vmatmul.mubr.f32.gmra.mxu0 %v6596
        %v6667 = vpop.f32.mrf.mxu0
        %v6668 = vadd.f32 0.0, %v6667
        %v6669 = vpop.f32.mrf.mxu0
        %6670 = vdwg.mxu0
        %6672 = vrot.lane.b32.xlu0 %v6580, 120
        %v6673 = vpop.permute.xlu0 %6672
        %v6675 = vsel %vm6581, %v6673, 0.0
        %6676 = vadd.xlane.f32.xlu0 %v6675
        %v6677 = vpop.xlane.xlu0 %6676
        %v6678 = vmul.f32 %v6677, 0.35355338
        %v6679 = vsub.f32 %v6678, %v6678
        %v6680 = vmul.f32 %v6679, 1.442695
        %v6681 = vpow.pop %v6680
        %v6682 = vadd.f32 %v6681, 0.0
        %v6683 = vrcp.pop %v6682
        %v6684 = vmul.f32 %v6681, %v6683
        %6685 = vrot.lane.b32.xlu0 %v6573, 56
        %v6686 = vpop.permute.xlu0 %6685
        %v6688 = vsel %vm6594, %v6684, 0
        %v6690 = vsel %vm6598, %v6686, 0
        %6692 = vmatprep.subr.mxu0 0.0
        %6693 = vmatpush1.msra.mxu0 0.0
        %6694 = vmatprep.subr.mxu0 0.0
        %6695 = vmatpush1.msra.mxu0 0.0
        %6696 = vmatprep.subr.mxu0 0.0
        %6697 = vmatpush1.msra.mxu0 0.0
        %6698 = vmatprep.subr.mxu0 0.0
        %6699 = vmatpush1.msra.mxu0 0.0
        %6700 = vmatprep.subr.mxu0 0.0
        %6701 = vmatpush1.msra.mxu0 0.0
        %6702 = vmatprep.subr.mxu0 0.0
        %6703 = vmatpush1.msra.mxu0 0.0
        %6704 = vmatprep.subr.mxu0 0.0
        %6705 = vmatpush1.msra.mxu0 0.0
        %6706 = vmatprep.subr.mxu0 0.0
        %6707 = vmatpush1.msra.mxu0 0.0
        %6708 = vmatprep.subr.mxu0 0.0
        %6709 = vmatpush1.msra.mxu0 0.0
        %6710 = vmatprep.subr.mxu0 0.0
        %6711 = vmatpush1.msra.mxu0 0.0
        %6712 = vmatprep.subr.mxu0 0.0
        %6713 = vmatpush1.msra.mxu0 0.0
        %6714 = vmatprep.subr.mxu0 0.0
        %6715 = vmatpush1.msra.mxu0 0.0
        %6716 = vmatprep.subr.mxu0 0.0
        %6717 = vmatpush1.msra.mxu0 0.0
        %6718 = vmatprep.subr.mxu0 0.0
        %6719 = vmatpush1.msra.mxu0 0.0
        %6720 = vmatprep.subr.mxu0 0.0
        %6721 = vmatpush1.msra.mxu0 0.0
        %6722 = vmatprep.subr.mxu0 0.0
        %6723 = vmatpush1.msra.mxu0 %v6690
        %6724 = vmatprep.subr.mxu0 0.0
        %6725 = vmatpush2.msra.mxu0 0.0
        %6726 = vmatprep.subr.mxu0 0.0
        %6727 = vmatpush2.msra.mxu0 0.0
        %6728 = vmatprep.subr.mxu0 0.0
        %6729 = vmatpush2.msra.mxu0 0.0
        %6730 = vmatprep.subr.mxu0 0.0
        %6731 = vmatpush2.msra.mxu0 0.0
        %6732 = vmatprep.subr.mxu0 0.0
        %6733 = vmatpush2.msra.mxu0 0.0
        %6734 = vmatprep.subr.mxu0 0.0
        %6735 = vmatpush2.msra.mxu0 0.0
        %6736 = vmatprep.subr.mxu0 0.0
        %6737 = vmatpush2.msra.mxu0 0.0
        %6738 = vmatprep.subr.mxu0 0.0
        %6739 = vmatpush2.msra.mxu0 0.0
        %6740 = vmatprep.subr.mxu0 0.0
        %6741 = vmatpush2.msra.mxu0 0.0
        %6742 = vmatprep.subr.mxu0 0.0
        %6743 = vmatpush2.msra.mxu0 0.0
        %6744 = vmatprep.subr.mxu0 0.0
        %6745 = vmatpush2.msra.mxu0 0.0
        %6746 = vmatprep.subr.mxu0 0.0
        %6747 = vmatpush2.msra.mxu0 0.0
        %6748 = vmatprep.subr.mxu0 0.0
        %6749 = vmatpush2.msra.mxu0 0.0
        %6750 = vmatprep.subr.mxu0 0.0
        %6751 = vmatpush2.msra.mxu0 0.0
        %6752 = vmatprep.subr.mxu0 0.0
        %6753 = vmatpush2.msra.mxu0 0.0
        %6754 = vmatprep.subr.mxu0 0.0
        %6755 = vmatpush2.msra.mxu0 0.0
        %6756 = vmatprep.mubr.f32.mxu0 0.0
        %6757 = vmatmul.mubr.f32.gmra.mxu0 %v6688
        %v6758 = vpop.f32.mrf.mxu0
        %v6759 = vadd.f32 0.0, %v6758
        %v6760 = vpop.f32.mrf.mxu0
        %6761 = vdwg.mxu0
        %6762 = vrot.lane.b32.xlu0 %v6580, 112
        %v6763 = vpop.permute.xlu0 %6762
        %v6765 = vsel %vm6581, %v6763, 0.0
        %6766 = vadd.xlane.f32.xlu0 %v6765
        %v6767 = vpop.xlane.xlu0 %6766
        %v6768 = vmul.f32 %v6767, 0.35355338
        %v6769 = vsub.f32 %v6768, %v6768
        %v6770 = vmul.f32 %v6769, 1.442695
        %v6771 = vpow.pop %v6770
        %v6772 = vadd.f32 %v6771, 0.0
        %v6773 = vrcp.pop %v6772
        %v6774 = vmul.f32 %v6771, %v6773
        %6775 = vrot.lane.b32.xlu0 %v6573, 48
        %v6776 = vpop.permute.xlu0 %6775
        %v6778 = vsel %vm6594, %v6774, 0
        %v6780 = vsel %vm6598, %v6776, 0
        %6782 = vmatprep.subr.mxu0 0.0
        %6783 = vmatpush1.msra.mxu0 0.0
        %6784 = vmatprep.subr.mxu0 0.0
        %6785 = vmatpush1.msra.mxu0 0.0
        %6786 = vmatprep.subr.mxu0 0.0
        %6787 = vmatpush1.msra.mxu0 0.0
        %6788 = vmatprep.subr.mxu0 0.0
        %6789 = vmatpush1.msra.mxu0 0.0
        %6790 = vmatprep.subr.mxu0 0.0
        %6791 = vmatpush1.msra.mxu0 0.0
        %6792 = vmatprep.subr.mxu0 0.0
        %6793 = vmatpush1.msra.mxu0 0.0
        %6794 = vmatprep.subr.mxu0 0.0
        %6795 = vmatpush1.msra.mxu0 0.0
        %6796 = vmatprep.subr.mxu0 0.0
        %6797 = vmatpush1.msra.mxu0 0.0
        %6798 = vmatprep.subr.mxu0 0.0
        %6799 = vmatpush1.msra.mxu0 0.0
        %6800 = vmatprep.subr.mxu0 0.0
        %6801 = vmatpush1.msra.mxu0 0.0
        %6802 = vmatprep.subr.mxu0 0.0
        %6803 = vmatpush1.msra.mxu0 0.0
        %6804 = vmatprep.subr.mxu0 0.0
        %6805 = vmatpush1.msra.mxu0 0.0
        %6806 = vmatprep.subr.mxu0 0.0
        %6807 = vmatpush1.msra.mxu0 0.0
        %6808 = vmatprep.subr.mxu0 0.0
        %6809 = vmatpush1.msra.mxu0 0.0
        %6810 = vmatprep.subr.mxu0 0.0
        %6811 = vmatpush1.msra.mxu0 0.0
        %6812 = vmatprep.subr.mxu0 0.0
        %6813 = vmatpush1.msra.mxu0 %v6780
        %6814 = vmatprep.subr.mxu0 0.0
        %6815 = vmatpush2.msra.mxu0 0.0
        %6816 = vmatprep.subr.mxu0 0.0
        %6817 = vmatpush2.msra.mxu0 0.0
        %6818 = vmatprep.subr.mxu0 0.0
        %6819 = vmatpush2.msra.mxu0 0.0
        %6820 = vmatprep.subr.mxu0 0.0
        %6821 = vmatpush2.msra.mxu0 0.0
        %6822 = vmatprep.subr.mxu0 0.0
        %6823 = vmatpush2.msra.mxu0 0.0
        %6824 = vmatprep.subr.mxu0 0.0
        %6825 = vmatpush2.msra.mxu0 0.0
        %6826 = vmatprep.subr.mxu0 0.0
        %6827 = vmatpush2.msra.mxu0 0.0
        %6828 = vmatprep.subr.mxu0 0.0
        %6829 = vmatpush2.msra.mxu0 0.0
        %6830 = vmatprep.subr.mxu0 0.0
        %6831 = vmatpush2.msra.mxu0 0.0
        %6832 = vmatprep.subr.mxu0 0.0
        %6833 = vmatpush2.msra.mxu0 0.0
        %6834 = vmatprep.subr.mxu0 0.0
        %6835 = vmatpush2.msra.mxu0 0.0
        %6836 = vmatprep.subr.mxu0 0.0
        %6837 = vmatpush2.msra.mxu0 0.0
        %6838 = vmatprep.subr.mxu0 0.0
        %6839 = vmatpush2.msra.mxu0 0.0
        %6840 = vmatprep.subr.mxu0 0.0
        %6841 = vmatpush2.msra.mxu0 0.0
        %6842 = vmatprep.subr.mxu0 0.0
        %6843 = vmatpush2.msra.mxu0 0.0
        %6844 = vmatprep.subr.mxu0 0.0
        %6845 = vmatpush2.msra.mxu0 0.0
        %6846 = vmatprep.mubr.f32.mxu0 0.0
        %6847 = vmatmul.mubr.f32.gmra.mxu0 %v6778
        %v6848 = vpop.f32.mrf.mxu0
        %v6849 = vadd.f32 0.0, %v6848
        %v6850 = vpop.f32.mrf.mxu0
        %6851 = vdwg.mxu0
        %6852 = vrot.lane.b32.xlu0 %v6580, 104
        %v6853 = vpop.permute.xlu0 %6852
        %v6855 = vsel %vm6581, %v6853, 0.0
        %6856 = vadd.xlane.f32.xlu0 %v6855
        %v6857 = vpop.xlane.xlu0 %6856
        %v6858 = vmul.f32 %v6857, 0.35355338
        %v6859 = vsub.f32 %v6858, %v6858
        %v6860 = vmul.f32 %v6859, 1.442695
        %v6861 = vpow.pop %v6860
        %v6862 = vadd.f32 %v6861, 0.0
        %v6863 = vrcp.pop %v6862
        %v6864 = vmul.f32 %v6861, %v6863
        %6865 = vrot.lane.b32.xlu0 %v6573, 40
        %v6866 = vpop.permute.xlu0 %6865
        %v6868 = vsel %vm6594, %v6864, 0
        %v6870 = vsel %vm6598, %v6866, 0
        %6872 = vmatprep.subr.mxu0 0.0
        %6873 = vmatpush1.msra.mxu0 0.0
        %6874 = vmatprep.subr.mxu0 0.0
        %6875 = vmatpush1.msra.mxu0 0.0
        %6876 = vmatprep.subr.mxu0 0.0
        %6877 = vmatpush1.msra.mxu0 0.0
        %6878 = vmatprep.subr.mxu0 0.0
        %6879 = vmatpush1.msra.mxu0 0.0
        %6880 = vmatprep.subr.mxu0 0.0
        %6881 = vmatpush1.msra.mxu0 0.0
        %6882 = vmatprep.subr.mxu0 0.0
        %6883 = vmatpush1.msra.mxu0 0.0
        %6884 = vmatprep.subr.mxu0 0.0
        %6885 = vmatpush1.msra.mxu0 0.0
        %6886 = vmatprep.subr.mxu0 0.0
        %6887 = vmatpush1.msra.mxu0 0.0
        %6888 = vmatprep.subr.mxu0 0.0
        %6889 = vmatpush1.msra.mxu0 0.0
        %6890 = vmatprep.subr.mxu0 0.0
        %6891 = vmatpush1.msra.mxu0 0.0
        %6892 = vmatprep.subr.mxu0 0.0
        %6893 = vmatpush1.msra.mxu0 0.0
        %6894 = vmatprep.subr.mxu0 0.0
        %6895 = vmatpush1.msra.mxu0 0.0
        %6896 = vmatprep.subr.mxu0 0.0
        %6897 = vmatpush1.msra.mxu0 0.0
        %6898 = vmatprep.subr.mxu0 0.0
        %6899 = vmatpush1.msra.mxu0 0.0
        %6900 = vmatprep.subr.mxu0 0.0
        %6901 = vmatpush1.msra.mxu0 0.0
        %6902 = vmatprep.subr.mxu0 0.0
        %6903 = vmatpush1.msra.mxu0 %v6870
        %6904 = vmatprep.subr.mxu0 0.0
        %6905 = vmatpush2.msra.mxu0 0.0
        %6906 = vmatprep.subr.mxu0 0.0
        %6907 = vmatpush2.msra.mxu0 0.0
        %6908 = vmatprep.subr.mxu0 0.0
        %6909 = vmatpush2.msra.mxu0 0.0
        %6910 = vmatprep.subr.mxu0 0.0
        %6911 = vmatpush2.msra.mxu0 0.0
        %6912 = vmatprep.subr.mxu0 0.0
        %6913 = vmatpush2.msra.mxu0 0.0
        %6914 = vmatprep.subr.mxu0 0.0
        %6915 = vmatpush2.msra.mxu0 0.0
        %6916 = vmatprep.subr.mxu0 0.0
        %6917 = vmatpush2.msra.mxu0 0.0
        %6918 = vmatprep.subr.mxu0 0.0
        %6919 = vmatpush2.msra.mxu0 0.0
        %6920 = vmatprep.subr.mxu0 0.0
        %6921 = vmatpush2.msra.mxu0 0.0
        %6922 = vmatprep.subr.mxu0 0.0
        %6923 = vmatpush2.msra.mxu0 0.0
        %6924 = vmatprep.subr.mxu0 0.0
        %6925 = vmatpush2.msra.mxu0 0.0
        %6926 = vmatprep.subr.mxu0 0.0
        %6927 = vmatpush2.msra.mxu0 0.0
        %6928 = vmatprep.subr.mxu0 0.0
        %6929 = vmatpush2.msra.mxu0 0.0
        %6930 = vmatprep.subr.mxu0 0.0
        %6931 = vmatpush2.msra.mxu0 0.0
        %6932 = vmatprep.subr.mxu0 0.0
        %6933 = vmatpush2.msra.mxu0 0.0
        %6934 = vmatprep.subr.mxu0 0.0
        %6935 = vmatpush2.msra.mxu0 0.0
        %6936 = vmatprep.mubr.f32.mxu0 0.0
        %6937 = vmatmul.mubr.f32.gmra.mxu0 %v6868
        %v6938 = vpop.f32.mrf.mxu0
        %v6939 = vadd.f32 0.0, %v6938
        %v6940 = vpop.f32.mrf.mxu0
        %6941 = vdwg.mxu0
        %6943 = vrot.lane.b32.xlu0 %v6759, 8
        %v6944 = vpop.permute.xlu0 %6943
        %6947 = vrot.lane.b32.xlu0 %v6849, 16
        %v6948 = vpop.permute.xlu0 %6947
        %6951 = vrot.lane.b32.xlu0 %v6939, 24
        %v6952 = vpop.permute.xlu0 %6951
        %v6954 = vsel %vm1654, %v6668, %v6944
        %v6955 = vsel %vm1487, %v6954, %v6948
        %v6956 = vsel %vm2329, %v6955, %v6952
        %v6957 = vld [vmem:[%s35] sm:$0xff]
        %v6958 = vld [vmem:[%s35 + $0x8] sm:$0xff]
        %v6959 = vld [vmem:[%s35 + $0x10] sm:$0xff]
        %v6960 = vld [vmem:[%s35 + $0x18] sm:$0xff]
        %v6961 = vld [vmem:[%s31] sm:$0x1]
        %v6963 = vsel %vm1577, %v6956, 0
        %6965 = vmatprep.subr.mxu0 0.0
        %6966 = vmatpush1.msra.mxu0 0.0
        %6967 = vmatprep.subr.mxu0 0.0
        %6968 = vmatpush1.msra.mxu0 0.0
        %6969 = vmatprep.subr.mxu0 0.0
        %6970 = vmatpush1.msra.mxu0 0.0
        %6971 = vmatprep.subr.mxu0 0.0
        %6972 = vmatpush1.msra.mxu0 0.0
        %6973 = vmatprep.subr.mxu0 0.0
        %6974 = vmatpush1.msra.mxu0 0.0
        %6975 = vmatprep.subr.mxu0 0.0
        %6976 = vmatpush1.msra.mxu0 0.0
        %6977 = vmatprep.subr.mxu0 0.0
        %6978 = vmatpush1.msra.mxu0 0.0
        %6979 = vmatprep.subr.mxu0 0.0
        %6980 = vmatpush1.msra.mxu0 0.0
        %6981 = vmatprep.subr.mxu0 0.0
        %6982 = vmatpush1.msra.mxu0 0.0
        %6983 = vmatprep.subr.mxu0 0.0
        %6984 = vmatpush1.msra.mxu0 0.0
        %6985 = vmatprep.subr.mxu0 0.0
        %6986 = vmatpush1.msra.mxu0 0.0
        %6987 = vmatprep.subr.mxu0 0.0
        %6988 = vmatpush1.msra.mxu0 0.0
        %6989 = vmatprep.subr.mxu0 0.0
        %6990 = vmatpush1.msra.mxu0 %v6960
        %6991 = vmatprep.subr.mxu0 0.0
        %6992 = vmatpush1.msra.mxu0 %v6959
        %6993 = vmatprep.subr.mxu0 0.0
        %6994 = vmatpush1.msra.mxu0 %v6958
        %6995 = vmatprep.subr.mxu0 0.0
        %6996 = vmatpush1.msra.mxu0 %v6957
        %6997 = vmatprep.subr.mxu0 0.0
        %6998 = vmatpush2.msra.mxu0 0.0
        %6999 = vmatprep.subr.mxu0 0.0
        %7000 = vmatpush2.msra.mxu0 0.0
        %7001 = vmatprep.subr.mxu0 0.0
        %7002 = vmatpush2.msra.mxu0 0.0
        %7003 = vmatprep.subr.mxu0 0.0
        %7004 = vmatpush2.msra.mxu0 0.0
        %7005 = vmatprep.subr.mxu0 0.0
        %7006 = vmatpush2.msra.mxu0 0.0
        %7007 = vmatprep.subr.mxu0 0.0
        %7008 = vmatpush2.msra.mxu0 0.0
        %7009 = vmatprep.subr.mxu0 0.0
        %7010 = vmatpush2.msra.mxu0 0.0
        %7011 = vmatprep.subr.mxu0 0.0
        %7012 = vmatpush2.msra.mxu0 0.0
        %7013 = vmatprep.subr.mxu0 0.0
        %7014 = vmatpush2.msra.mxu0 0.0
        %7015 = vmatprep.subr.mxu0 0.0
        %7016 = vmatpush2.msra.mxu0 0.0
        %7017 = vmatprep.subr.mxu0 0.0
        %7018 = vmatpush2.msra.mxu0 0.0
        %7019 = vmatprep.subr.mxu0 0.0
        %7020 = vmatpush2.msra.mxu0 0.0
        %7021 = vmatprep.subr.mxu0 0.0
        %7022 = vmatpush2.msra.mxu0 0.0
        %7023 = vmatprep.subr.mxu0 0.0
        %7024 = vmatpush2.msra.mxu0 0.0
        %7025 = vmatprep.subr.mxu0 0.0
        %7026 = vmatpush2.msra.mxu0 0.0
        %7027 = vmatprep.subr.mxu0 0.0
        %7028 = vmatpush2.msra.mxu0 0.0
        %7029 = vmatprep.mubr.f32.mxu0 0.0
        %7030 = vmatmul.mubr.f32.gmra.mxu0 %v6963
        %v7031 = vpop.f32.mrf.mxu0
        %v7032 = vadd.f32 %v6961, %v7031
        %v7033 = vpop.f32.mrf.mxu0
        %7034 = vdwg.mxu0
        %v7035 = vadd.f32 %v7032, 0.0
        %v7036 = vld [vmem:[%s21] sm:$0x1]
        %v7037 = vld [vmem:[%s19] sm:$0x1]
        %vm7038 = vcmask 253952
        %v7039 = vsel %vm7038, %v7035, 0.0
        %7040 = vadd.xlane.f32.xlu0 %v7039
        %v7041 = vpop.xlane.xlu0 %7040
        %v7042 = vmul.f32 %v7041, %v2421
        %v7043 = vsub.f32 %v7035, %v7042
        %v7044 = vmul.f32 %v7043, %v7043
        %v7045 = vsel %vm7038, %v7044, 0.0
        %7046 = vadd.xlane.f32.xlu0 %v7045
        %v7047 = vpop.xlane.xlu0 %7046
        %v7048 = vmul.f32 %v7047, %v2421
        %v7049 = vadd.f32 %v7048, 1e-05
        %v7050 = vrsqrt.pop %v7049
        %v7051 = vmul.f32 %v7043, %v7050
        %v7052 = vmul.f32 %v7051, %v7036
        %v7053 = vadd.f32 %v7052, %v7037
        %v7054 = vld [vmem:[%s17] sm:$0xff]
        %v7055 = vld [vmem:[%s17 + $0x8] sm:$0xff]
        %v7056 = vld [vmem:[%s17 + $0x10] sm:$0xff]
        %v7057 = vld [vmem:[%s17 + $0x18] sm:$0xff]
        %v7058 = vld [vmem:[%s11] sm:$0x1]
        %v7060 = vsel %vm1577, %v7053, 0
        %7062 = vmatprep.subr.mxu0 0.0
        %7063 = vmatpush1.msra.mxu0 0.0
        %7064 = vmatprep.subr.mxu0 0.0
        %7065 = vmatpush1.msra.mxu0 0.0
        %7066 = vmatprep.subr.mxu0 0.0
        %7067 = vmatpush1.msra.mxu0 0.0
        %7068 = vmatprep.subr.mxu0 0.0
        %7069 = vmatpush1.msra.mxu0 0.0
        %7070 = vmatprep.subr.mxu0 0.0
        %7071 = vmatpush1.msra.mxu0 0.0
        %7072 = vmatprep.subr.mxu0 0.0
        %7073 = vmatpush1.msra.mxu0 0.0
        %7074 = vmatprep.subr.mxu0 0.0
        %7075 = vmatpush1.msra.mxu0 0.0
        %7076 = vmatprep.subr.mxu0 0.0
        %7077 = vmatpush1.msra.mxu0 0.0
        %7078 = vmatprep.subr.mxu0 0.0
        %7079 = vmatpush1.msra.mxu0 0.0
        %7080 = vmatprep.subr.mxu0 0.0
        %7081 = vmatpush1.msra.mxu0 0.0
        %7082 = vmatprep.subr.mxu0 0.0
        %7083 = vmatpush1.msra.mxu0 0.0
        %7084 = vmatprep.subr.mxu0 0.0
        %7085 = vmatpush1.msra.mxu0 0.0
        %7086 = vmatprep.subr.mxu0 0.0
        %7087 = vmatpush1.msra.mxu0 %v7057
        %7088 = vmatprep.subr.mxu0 0.0
        %7089 = vmatpush1.msra.mxu0 %v7056
        %7090 = vmatprep.subr.mxu0 0.0
        %7091 = vmatpush1.msra.mxu0 %v7055
        %7092 = vmatprep.subr.mxu0 0.0
        %7093 = vmatpush1.msra.mxu0 %v7054
        %7094 = vmatprep.subr.mxu0 0.0
        %7095 = vmatpush2.msra.mxu0 0.0
        %7096 = vmatprep.subr.mxu0 0.0
        %7097 = vmatpush2.msra.mxu0 0.0
        %7098 = vmatprep.subr.mxu0 0.0
        %7099 = vmatpush2.msra.mxu0 0.0
        %7100 = vmatprep.subr.mxu0 0.0
        %7101 = vmatpush2.msra.mxu0 0.0
        %7102 = vmatprep.subr.mxu0 0.0
        %7103 = vmatpush2.msra.mxu0 0.0
        %7104 = vmatprep.subr.mxu0 0.0
        %7105 = vmatpush2.msra.mxu0 0.0
        %7106 = vmatprep.subr.mxu0 0.0
        %7107 = vmatpush2.msra.mxu0 0.0
        %7108 = vmatprep.subr.mxu0 0.0
        %7109 = vmatpush2.msra.mxu0 0.0
        %7110 = vmatprep.subr.mxu0 0.0
        %7111 = vmatpush2.msra.mxu0 0.0
        %7112 = vmatprep.subr.mxu0 0.0
        %7113 = vmatpush2.msra.mxu0 0.0
        %7114 = vmatprep.subr.mxu0 0.0
        %7115 = vmatpush2.msra.mxu0 0.0
        %7116 = vmatprep.subr.mxu0 0.0
        %7117 = vmatpush2.msra.mxu0 0.0
        %7118 = vmatprep.subr.mxu0 0.0
        %7119 = vmatpush2.msra.mxu0 0.0
        %7120 = vmatprep.subr.mxu0 0.0
        %7121 = vmatpush2.msra.mxu0 0.0
        %7122 = vmatprep.subr.mxu0 0.0
        %7123 = vmatpush2.msra.mxu0 0.0
        %7124 = vmatprep.subr.mxu0 0.0
        %7125 = vmatpush2.msra.mxu0 0.0
        %7126 = vmatprep.mubr.f32.mxu0 0.0
        %7127 = vmatmul.mubr.f32.gmra.mxu0 %v7060
        %v7128 = vpop.f32.mrf.mxu0
        %v7129 = vadd.f32 %v7058, %v7128
        %v7130 = vpop.f32.mrf.mxu0
        %7131 = vdwg.mxu0
        %v7132 = vld [vmem:[%s13] sm:$0xff]
        %v7133 = vld [vmem:[%s13 + $0x8] sm:$0xff]
        %v7134 = vld [vmem:[%s13 + $0x10] sm:$0xff]
        %v7135 = vld [vmem:[%s13 + $0x18] sm:$0xff]
        %v7136 = vld [vmem:[%s7] sm:$0x1]
        %v7138 = vlaneseq
        %v7139 = vshrl.u32 %v7138, 7
        %v7140 = vsub.s32 0, %v7139
        %v7141 = vrot.slane %v7136, %v7140
        %v7144 = vsel %vm1577, %v6497, 0
        %7146 = vmatprep.subr.mxu0 0.0
        %7147 = vmatpush1.msra.mxu0 0.0
        %7148 = vmatprep.subr.mxu0 0.0
        %7149 = vmatpush1.msra.mxu0 0.0
        %7150 = vmatprep.subr.mxu0 0.0
        %7151 = vmatpush1.msra.mxu0 0.0
        %7152 = vmatprep.subr.mxu0 0.0
        %7153 = vmatpush1.msra.mxu0 0.0
        %7154 = vmatprep.subr.mxu0 0.0
        %7155 = vmatpush1.msra.mxu0 0.0
        %7156 = vmatprep.subr.mxu0 0.0
        %7157 = vmatpush1.msra.mxu0 0.0
        %7158 = vmatprep.subr.mxu0 0.0
        %7159 = vmatpush1.msra.mxu0 0.0
        %7160 = vmatprep.subr.mxu0 0.0
        %7161 = vmatpush1.msra.mxu0 0.0
        %7162 = vmatprep.subr.mxu0 0.0
        %7163 = vmatpush1.msra.mxu0 0.0
        %7164 = vmatprep.subr.mxu0 0.0
        %7165 = vmatpush1.msra.mxu0 0.0
        %7166 = vmatprep.subr.mxu0 0.0
        %7167 = vmatpush1.msra.mxu0 0.0
        %7168 = vmatprep.subr.mxu0 0.0
        %7169 = vmatpush1.msra.mxu0 0.0
        %7170 = vmatprep.subr.mxu0 0.0
        %7171 = vmatpush1.msra.mxu0 %v7135
        %7172 = vmatprep.subr.mxu0 0.0
        %7173 = vmatpush1.msra.mxu0 %v7134
        %7174 = vmatprep.subr.mxu0 0.0
        %7175 = vmatpush1.msra.mxu0 %v7133
        %7176 = vmatprep.subr.mxu0 0.0
        %7177 = vmatpush1.msra.mxu0 %v7132
        %7178 = vmatprep.subr.mxu0 0.0
        %7179 = vmatpush2.msra.mxu0 0.0
        %7180 = vmatprep.subr.mxu0 0.0
        %7181 = vmatpush2.msra.mxu0 0.0
        %7182 = vmatprep.subr.mxu0 0.0
        %7183 = vmatpush2.msra.mxu0 0.0
        %7184 = vmatprep.subr.mxu0 0.0
        %7185 = vmatpush2.msra.mxu0 0.0
        %7186 = vmatprep.subr.mxu0 0.0
        %7187 = vmatpush2.msra.mxu0 0.0
        %7188 = vmatprep.subr.mxu0 0.0
        %7189 = vmatpush2.msra.mxu0 0.0
        %7190 = vmatprep.subr.mxu0 0.0
        %7191 = vmatpush2.msra.mxu0 0.0
        %7192 = vmatprep.subr.mxu0 0.0
        %7193 = vmatpush2.msra.mxu0 0.0
        %7194 = vmatprep.subr.mxu0 0.0
        %7195 = vmatpush2.msra.mxu0 0.0
        %7196 = vmatprep.subr.mxu0 0.0
        %7197 = vmatpush2.msra.mxu0 0.0
        %7198 = vmatprep.subr.mxu0 0.0
        %7199 = vmatpush2.msra.mxu0 0.0
        %7200 = vmatprep.subr.mxu0 0.0
        %7201 = vmatpush2.msra.mxu0 0.0
        %7202 = vmatprep.subr.mxu0 0.0
        %7203 = vmatpush2.msra.mxu0 0.0
        %7204 = vmatprep.subr.mxu0 0.0
        %7205 = vmatpush2.msra.mxu0 0.0
        %7206 = vmatprep.subr.mxu0 0.0
        %7207 = vmatpush2.msra.mxu0 0.0
        %7208 = vmatprep.subr.mxu0 0.0
        %7209 = vmatpush2.msra.mxu0 0.0
        %7210 = vmatprep.mubr.f32.mxu0 0.0
        %7211 = vmatmul.mubr.f32.gmra.mxu0 %v7144
        %v7212 = vpop.f32.mrf.mxu0
        %v7213 = vadd.f32 %v7141, %v7212
        %v7214 = vpop.f32.mrf.mxu0
        %7215 = vdwg.mxu0
        %v7217 = vsel %vm1654, %v7129, 0
        %v7220 = vsel %vm1654, %v7213, 0
        %7222 = vmatprep.subr.mxu0 0.0
        %7223 = vmatpush1.xpose.msra.mxu0 0.0
        %7224 = vmatprep.subr.mxu0 0.0
        %7225 = vmatpush1.xpose.msra.mxu0 0.0
        %7226 = vmatprep.subr.mxu0 0.0
        %7227 = vmatpush1.xpose.msra.mxu0 0.0
        %7228 = vmatprep.subr.mxu0 0.0
        %7229 = vmatpush1.xpose.msra.mxu0 0.0
        %7230 = vmatprep.subr.mxu0 0.0
        %7231 = vmatpush1.xpose.msra.mxu0 0.0
        %7232 = vmatprep.subr.mxu0 0.0
        %7233 = vmatpush1.xpose.msra.mxu0 0.0
        %7234 = vmatprep.subr.mxu0 0.0
        %7235 = vmatpush1.xpose.msra.mxu0 0.0
        %7236 = vmatprep.subr.mxu0 0.0
        %7237 = vmatpush1.xpose.msra.mxu0 0.0
        %7238 = vmatprep.subr.mxu0 0.0
        %7239 = vmatpush1.xpose.msra.mxu0 0.0
        %7240 = vmatprep.subr.mxu0 0.0
        %7241 = vmatpush1.xpose.msra.mxu0 0.0
        %7242 = vmatprep.subr.mxu0 0.0
        %7243 = vmatpush1.xpose.msra.mxu0 0.0
        %7244 = vmatprep.subr.mxu0 0.0
        %7245 = vmatpush1.xpose.msra.mxu0 0.0
        %7246 = vmatprep.subr.mxu0 0.0
        %7247 = vmatpush1.xpose.msra.mxu0 0.0
        %7248 = vmatprep.subr.mxu0 0.0
        %7249 = vmatpush1.xpose.msra.mxu0 0.0
        %7250 = vmatprep.subr.mxu0 0.0
        %7251 = vmatpush1.xpose.msra.mxu0 0.0
        %7252 = vmatprep.subr.mxu0 0.0
        %7253 = vmatpush1.xpose.msra.mxu0 %v7220
        %7254 = vmatprep.subr.mxu0 0.0
        %7255 = vmatpush2.xpose.msra.mxu0 0.0
        %7256 = vmatprep.subr.mxu0 0.0
        %7257 = vmatpush2.xpose.msra.mxu0 0.0
        %7258 = vmatprep.subr.mxu0 0.0
        %7259 = vmatpush2.xpose.msra.mxu0 0.0
        %7260 = vmatprep.subr.mxu0 0.0
        %7261 = vmatpush2.xpose.msra.mxu0 0.0
        %7262 = vmatprep.subr.mxu0 0.0
        %7263 = vmatpush2.xpose.msra.mxu0 0.0
        %7264 = vmatprep.subr.mxu0 0.0
        %7265 = vmatpush2.xpose.msra.mxu0 0.0
        %7266 = vmatprep.subr.mxu0 0.0
        %7267 = vmatpush2.xpose.msra.mxu0 0.0
        %7268 = vmatprep.subr.mxu0 0.0
        %7269 = vmatpush2.xpose.msra.mxu0 0.0
        %7270 = vmatprep.subr.mxu0 0.0
        %7271 = vmatpush2.xpose.msra.mxu0 0.0
        %7272 = vmatprep.subr.mxu0 0.0
        %7273 = vmatpush2.xpose.msra.mxu0 0.0
        %7274 = vmatprep.subr.mxu0 0.0
        %7275 = vmatpush2.xpose.msra.mxu0 0.0
        %7276 = vmatprep.subr.mxu0 0.0
        %7277 = vmatpush2.xpose.msra.mxu0 0.0
        %7278 = vmatprep.subr.mxu0 0.0
        %7279 = vmatpush2.xpose.msra.mxu0 0.0
        %7280 = vmatprep.subr.mxu0 0.0
        %7281 = vmatpush2.xpose.msra.mxu0 0.0
        %7282 = vmatprep.subr.mxu0 0.0
        %7283 = vmatpush2.xpose.msra.mxu0 0.0
        %7284 = vmatprep.subr.mxu0 0.0
        %7285 = vmatpush2.xpose.msra.mxu0 0.0
        %7286 = vmatprep.mubr.f32.mxu0 0.0
        %7287 = vmatmul.mubr.f32.gmra.mxu0 %v7217
        %v7288 = vpop.f32.mrf.mxu0
        %v7289 = vadd.f32 0.0, %v7288
        %v7290 = vpop.f32.mrf.mxu0
        %7291 = vdwg.mxu0
        %v7292 = vmul.f32 %v7289, 0.35355338
        %v7293 = vsel %vm6581, %v7292, -inf
        %7294 = vmax.xlane.f32.xlu0 %v7293
        %v7295 = vpop.xlane.xlu0 %7294
        %v7296 = vsub.f32 %v7292, %v7295
        %v7297 = vmul.f32 %v7296, 1.442695
        %v7298 = vpow.pop %v7297
        %v7299 = vsel %vm6581, %v7298, 0.0
        %7300 = vadd.xlane.f32.xlu0 %v7299
        %v7301 = vpop.xlane.xlu0 %7300
        %v7302 = vrcp.pop %v7301
        %v7303 = vmul.f32 %v7298, %v7302
        %7304 = vrot.lane.b32.xlu0 %v7213, 96
        %v7305 = vpop.permute.xlu0 %7304
        %v7308 = vsel %vm1654, %v7303, 0
        %7310 = vmatprep.subr.mxu0 0.0
        %7311 = vmatpush1.msra.mxu0 0.0
        %7312 = vmatprep.subr.mxu0 0.0
        %7313 = vmatpush1.msra.mxu0 0.0
        %7314 = vmatprep.subr.mxu0 0.0
        %7315 = vmatpush1.msra.mxu0 0.0
        %7316 = vmatprep.subr.mxu0 0.0
        %7317 = vmatpush1.msra.mxu0 0.0
        %7318 = vmatprep.subr.mxu0 0.0
        %7319 = vmatpush1.msra.mxu0 0.0
        %7320 = vmatprep.subr.mxu0 0.0
        %7321 = vmatpush1.msra.mxu0 0.0
        %7322 = vmatprep.subr.mxu0 0.0
        %7323 = vmatpush1.msra.mxu0 0.0
        %7324 = vmatprep.subr.mxu0 0.0
        %7325 = vmatpush1.msra.mxu0 0.0
        %7326 = vmatprep.subr.mxu0 0.0
        %7327 = vmatpush1.msra.mxu0 0.0
        %7328 = vmatprep.subr.mxu0 0.0
        %7329 = vmatpush1.msra.mxu0 0.0
        %7330 = vmatprep.subr.mxu0 0.0
        %7331 = vmatpush1.msra.mxu0 0.0
        %7332 = vmatprep.subr.mxu0 0.0
        %7333 = vmatpush1.msra.mxu0 0.0
        %7334 = vmatprep.subr.mxu0 0.0
        %7335 = vmatpush1.msra.mxu0 0.0
        %7336 = vmatprep.subr.mxu0 0.0
        %7337 = vmatpush1.msra.mxu0 0.0
        %7338 = vmatprep.subr.mxu0 0.0
        %7339 = vmatpush1.msra.mxu0 0.0
        %7340 = vmatprep.subr.mxu0 0.0
        %7341 = vmatpush1.msra.mxu0 %v7305
        %7342 = vmatprep.subr.mxu0 0.0
        %7343 = vmatpush2.msra.mxu0 0.0
        %7344 = vmatprep.subr.mxu0 0.0
        %7345 = vmatpush2.msra.mxu0 0.0
        %7346 = vmatprep.subr.mxu0 0.0
        %7347 = vmatpush2.msra.mxu0 0.0
        %7348 = vmatprep.subr.mxu0 0.0
        %7349 = vmatpush2.msra.mxu0 0.0
        %7350 = vmatprep.subr.mxu0 0.0
        %7351 = vmatpush2.msra.mxu0 0.0
        %7352 = vmatprep.subr.mxu0 0.0
        %7353 = vmatpush2.msra.mxu0 0.0
        %7354 = vmatprep.subr.mxu0 0.0
        %7355 = vmatpush2.msra.mxu0 0.0
        %7356 = vmatprep.subr.mxu0 0.0
        %7357 = vmatpush2.msra.mxu0 0.0
        %7358 = vmatprep.subr.mxu0 0.0
        %7359 = vmatpush2.msra.mxu0 0.0
        %7360 = vmatprep.subr.mxu0 0.0
        %7361 = vmatpush2.msra.mxu0 0.0
        %7362 = vmatprep.subr.mxu0 0.0
        %7363 = vmatpush2.msra.mxu0 0.0
        %7364 = vmatprep.subr.mxu0 0.0
        %7365 = vmatpush2.msra.mxu0 0.0
        %7366 = vmatprep.subr.mxu0 0.0
        %7367 = vmatpush2.msra.mxu0 0.0
        %7368 = vmatprep.subr.mxu0 0.0
        %7369 = vmatpush2.msra.mxu0 0.0
        %7370 = vmatprep.subr.mxu0 0.0
        %7371 = vmatpush2.msra.mxu0 0.0
        %7372 = vmatprep.subr.mxu0 0.0
        %7373 = vmatpush2.msra.mxu0 0.0
        %7374 = vmatprep.mubr.f32.mxu0 0.0
        %7375 = vmatmul.mubr.f32.gmra.mxu0 %v7308
        %v7376 = vpop.f32.mrf.mxu0
        %v7377 = vadd.f32 0.0, %v7376
        %v7378 = vpop.f32.mrf.mxu0
        %7379 = vdwg.mxu0
        %7380 = vrot.lane.b32.xlu0 %v7129, 120
        %v7381 = vpop.permute.xlu0 %7380
        %7382 = vrot.lane.b32.xlu0 %v7213, 120
        %v7383 = vpop.permute.xlu0 %7382
        %v7384 = vsel %vm1654, %v7381, 0
        %v7386 = vsel %vm1654, %v7383, 0
        %7388 = vmatprep.subr.mxu0 0.0
        %7389 = vmatpush1.xpose.msra.mxu0 0.0
        %7390 = vmatprep.subr.mxu0 0.0
        %7391 = vmatpush1.xpose.msra.mxu0 0.0
        %7392 = vmatprep.subr.mxu0 0.0
        %7393 = vmatpush1.xpose.msra.mxu0 0.0
        %7394 = vmatprep.subr.mxu0 0.0
        %7395 = vmatpush1.xpose.msra.mxu0 0.0
        %7396 = vmatprep.subr.mxu0 0.0
        %7397 = vmatpush1.xpose.msra.mxu0 0.0
        %7398 = vmatprep.subr.mxu0 0.0
        %7399 = vmatpush1.xpose.msra.mxu0 0.0
        %7400 = vmatprep.subr.mxu0 0.0
        %7401 = vmatpush1.xpose.msra.mxu0 0.0
        %7402 = vmatprep.subr.mxu0 0.0
        %7403 = vmatpush1.xpose.msra.mxu0 0.0
        %7404 = vmatprep.subr.mxu0 0.0
        %7405 = vmatpush1.xpose.msra.mxu0 0.0
        %7406 = vmatprep.subr.mxu0 0.0
        %7407 = vmatpush1.xpose.msra.mxu0 0.0
        %7408 = vmatprep.subr.mxu0 0.0
        %7409 = vmatpush1.xpose.msra.mxu0 0.0
        %7410 = vmatprep.subr.mxu0 0.0
        %7411 = vmatpush1.xpose.msra.mxu0 0.0
        %7412 = vmatprep.subr.mxu0 0.0
        %7413 = vmatpush1.xpose.msra.mxu0 0.0
        %7414 = vmatprep.subr.mxu0 0.0
        %7415 = vmatpush1.xpose.msra.mxu0 0.0
        %7416 = vmatprep.subr.mxu0 0.0
        %7417 = vmatpush1.xpose.msra.mxu0 0.0
        %7418 = vmatprep.subr.mxu0 0.0
        %7419 = vmatpush1.xpose.msra.mxu0 %v7386
        %7420 = vmatprep.subr.mxu0 0.0
        %7421 = vmatpush2.xpose.msra.mxu0 0.0
        %7422 = vmatprep.subr.mxu0 0.0
        %7423 = vmatpush2.xpose.msra.mxu0 0.0
        %7424 = vmatprep.subr.mxu0 0.0
        %7425 = vmatpush2.xpose.msra.mxu0 0.0
        %7426 = vmatprep.subr.mxu0 0.0
        %7427 = vmatpush2.xpose.msra.mxu0 0.0
        %7428 = vmatprep.subr.mxu0 0.0
        %7429 = vmatpush2.xpose.msra.mxu0 0.0
        %7430 = vmatprep.subr.mxu0 0.0
        %7431 = vmatpush2.xpose.msra.mxu0 0.0
        %7432 = vmatprep.subr.mxu0 0.0
        %7433 = vmatpush2.xpose.msra.mxu0 0.0
        %7434 = vmatprep.subr.mxu0 0.0
        %7435 = vmatpush2.xpose.msra.mxu0 0.0
        %7436 = vmatprep.subr.mxu0 0.0
        %7437 = vmatpush2.xpose.msra.mxu0 0.0
        %7438 = vmatprep.subr.mxu0 0.0
        %7439 = vmatpush2.xpose.msra.mxu0 0.0
        %7440 = vmatprep.subr.mxu0 0.0
        %7441 = vmatpush2.xpose.msra.mxu0 0.0
        %7442 = vmatprep.subr.mxu0 0.0
        %7443 = vmatpush2.xpose.msra.mxu0 0.0
        %7444 = vmatprep.subr.mxu0 0.0
        %7445 = vmatpush2.xpose.msra.mxu0 0.0
        %7446 = vmatprep.subr.mxu0 0.0
        %7447 = vmatpush2.xpose.msra.mxu0 0.0
        %7448 = vmatprep.subr.mxu0 0.0
        %7449 = vmatpush2.xpose.msra.mxu0 0.0
        %7450 = vmatprep.subr.mxu0 0.0
        %7451 = vmatpush2.xpose.msra.mxu0 0.0
        %7452 = vmatprep.mubr.f32.mxu0 0.0
        %7453 = vmatmul.mubr.f32.gmra.mxu0 %v7384
        %v7454 = vpop.f32.mrf.mxu0
        %v7455 = vadd.f32 0.0, %v7454
        %v7456 = vpop.f32.mrf.mxu0
        %7457 = vdwg.mxu0
        %v7458 = vmul.f32 %v7455, 0.35355338
        %v7459 = vsel %vm6581, %v7458, -inf
        %7460 = vmax.xlane.f32.xlu0 %v7459
        %v7461 = vpop.xlane.xlu0 %7460
        %v7462 = vsub.f32 %v7458, %v7461
        %v7463 = vmul.f32 %v7462, 1.442695
        %v7464 = vpow.pop %v7463
        %v7465 = vsel %vm6581, %v7464, 0.0
        %7466 = vadd.xlane.f32.xlu0 %v7465
        %v7467 = vpop.xlane.xlu0 %7466
        %v7468 = vrcp.pop %v7467
        %v7469 = vmul.f32 %v7464, %v7468
        %7470 = vrot.lane.b32.xlu0 %v7213, 88
        %v7471 = vpop.permute.xlu0 %7470
        %v7474 = vsel %vm1654, %v7469, 0
        %7476 = vmatprep.subr.mxu0 0.0
        %7477 = vmatpush1.msra.mxu0 0.0
        %7478 = vmatprep.subr.mxu0 0.0
        %7479 = vmatpush1.msra.mxu0 0.0
        %7480 = vmatprep.subr.mxu0 0.0
        %7481 = vmatpush1.msra.mxu0 0.0
        %7482 = vmatprep.subr.mxu0 0.0
        %7483 = vmatpush1.msra.mxu0 0.0
        %7484 = vmatprep.subr.mxu0 0.0
        %7485 = vmatpush1.msra.mxu0 0.0
        %7486 = vmatprep.subr.mxu0 0.0
        %7487 = vmatpush1.msra.mxu0 0.0
        %7488 = vmatprep.subr.mxu0 0.0
        %7489 = vmatpush1.msra.mxu0 0.0
        %7490 = vmatprep.subr.mxu0 0.0
        %7491 = vmatpush1.msra.mxu0 0.0
        %7492 = vmatprep.subr.mxu0 0.0
        %7493 = vmatpush1.msra.mxu0 0.0
        %7494 = vmatprep.subr.mxu0 0.0
        %7495 = vmatpush1.msra.mxu0 0.0
        %7496 = vmatprep.subr.mxu0 0.0
        %7497 = vmatpush1.msra.mxu0 0.0
        %7498 = vmatprep.subr.mxu0 0.0
        %7499 = vmatpush1.msra.mxu0 0.0
        %7500 = vmatprep.subr.mxu0 0.0
        %7501 = vmatpush1.msra.mxu0 0.0
        %7502 = vmatprep.subr.mxu0 0.0
        %7503 = vmatpush1.msra.mxu0 0.0
        %7504 = vmatprep.subr.mxu0 0.0
        %7505 = vmatpush1.msra.mxu0 0.0
        %7506 = vmatprep.subr.mxu0 0.0
        %7507 = vmatpush1.msra.mxu0 %v7471
        %7508 = vmatprep.subr.mxu0 0.0
        %7509 = vmatpush2.msra.mxu0 0.0
        %7510 = vmatprep.subr.mxu0 0.0
        %7511 = vmatpush2.msra.mxu0 0.0
        %7512 = vmatprep.subr.mxu0 0.0
        %7513 = vmatpush2.msra.mxu0 0.0
        %7514 = vmatprep.subr.mxu0 0.0
        %7515 = vmatpush2.msra.mxu0 0.0
        %7516 = vmatprep.subr.mxu0 0.0
        %7517 = vmatpush2.msra.mxu0 0.0
        %7518 = vmatprep.subr.mxu0 0.0
        %7519 = vmatpush2.msra.mxu0 0.0
        %7520 = vmatprep.subr.mxu0 0.0
        %7521 = vmatpush2.msra.mxu0 0.0
        %7522 = vmatprep.subr.mxu0 0.0
        %7523 = vmatpush2.msra.mxu0 0.0
        %7524 = vmatprep.subr.mxu0 0.0
        %7525 = vmatpush2.msra.mxu0 0.0
        %7526 = vmatprep.subr.mxu0 0.0
        %7527 = vmatpush2.msra.mxu0 0.0
        %7528 = vmatprep.subr.mxu0 0.0
        %7529 = vmatpush2.msra.mxu0 0.0
        %7530 = vmatprep.subr.mxu0 0.0
        %7531 = vmatpush2.msra.mxu0 0.0
        %7532 = vmatprep.subr.mxu0 0.0
        %7533 = vmatpush2.msra.mxu0 0.0
        %7534 = vmatprep.subr.mxu0 0.0
        %7535 = vmatpush2.msra.mxu0 0.0
        %7536 = vmatprep.subr.mxu0 0.0
        %7537 = vmatpush2.msra.mxu0 0.0
        %7538 = vmatprep.subr.mxu0 0.0
        %7539 = vmatpush2.msra.mxu0 0.0
        %7540 = vmatprep.mubr.f32.mxu0 0.0
        %7541 = vmatmul.mubr.f32.gmra.mxu0 %v7474
        %v7542 = vpop.f32.mrf.mxu0
        %v7543 = vadd.f32 0.0, %v7542
        %v7544 = vpop.f32.mrf.mxu0
        %7545 = vdwg.mxu0
        %7546 = vrot.lane.b32.xlu0 %v7129, 112
        %v7547 = vpop.permute.xlu0 %7546
        %7548 = vrot.lane.b32.xlu0 %v7213, 112
        %v7549 = vpop.permute.xlu0 %7548
        %v7550 = vsel %vm1654, %v7547, 0
        %v7552 = vsel %vm1654, %v7549, 0
        %7554 = vmatprep.subr.mxu0 0.0
        %7555 = vmatpush1.xpose.msra.mxu0 0.0
        %7556 = vmatprep.subr.mxu0 0.0
        %7557 = vmatpush1.xpose.msra.mxu0 0.0
        %7558 = vmatprep.subr.mxu0 0.0
        %7559 = vmatpush1.xpose.msra.mxu0 0.0
        %7560 = vmatprep.subr.mxu0 0.0
        %7561 = vmatpush1.xpose.msra.mxu0 0.0
        %7562 = vmatprep.subr.mxu0 0.0
        %7563 = vmatpush1.xpose.msra.mxu0 0.0
        %7564 = vmatprep.subr.mxu0 0.0
        %7565 = vmatpush1.xpose.msra.mxu0 0.0
        %7566 = vmatprep.subr.mxu0 0.0
        %7567 = vmatpush1.xpose.msra.mxu0 0.0
        %7568 = vmatprep.subr.mxu0 0.0
        %7569 = vmatpush1.xpose.msra.mxu0 0.0
        %7570 = vmatprep.subr.mxu0 0.0
        %7571 = vmatpush1.xpose.msra.mxu0 0.0
        %7572 = vmatprep.subr.mxu0 0.0
        %7573 = vmatpush1.xpose.msra.mxu0 0.0
        %7574 = vmatprep.subr.mxu0 0.0
        %7575 = vmatpush1.xpose.msra.mxu0 0.0
        %7576 = vmatprep.subr.mxu0 0.0
        %7577 = vmatpush1.xpose.msra.mxu0 0.0
        %7578 = vmatprep.subr.mxu0 0.0
        %7579 = vmatpush1.xpose.msra.mxu0 0.0
        %7580 = vmatprep.subr.mxu0 0.0
        %7581 = vmatpush1.xpose.msra.mxu0 0.0
        %7582 = vmatprep.subr.mxu0 0.0
        %7583 = vmatpush1.xpose.msra.mxu0 0.0
        %7584 = vmatprep.subr.mxu0 0.0
        %7585 = vmatpush1.xpose.msra.mxu0 %v7552
        %7586 = vmatprep.subr.mxu0 0.0
        %7587 = vmatpush2.xpose.msra.mxu0 0.0
        %7588 = vmatprep.subr.mxu0 0.0
        %7589 = vmatpush2.xpose.msra.mxu0 0.0
        %7590 = vmatprep.subr.mxu0 0.0
        %7591 = vmatpush2.xpose.msra.mxu0 0.0
        %7592 = vmatprep.subr.mxu0 0.0
        %7593 = vmatpush2.xpose.msra.mxu0 0.0
        %7594 = vmatprep.subr.mxu0 0.0
        %7595 = vmatpush2.xpose.msra.mxu0 0.0
        %7596 = vmatprep.subr.mxu0 0.0
        %7597 = vmatpush2.xpose.msra.mxu0 0.0
        %7598 = vmatprep.subr.mxu0 0.0
        %7599 = vmatpush2.xpose.msra.mxu0 0.0
        %7600 = vmatprep.subr.mxu0 0.0
        %7601 = vmatpush2.xpose.msra.mxu0 0.0
        %7602 = vmatprep.subr.mxu0 0.0
        %7603 = vmatpush2.xpose.msra.mxu0 0.0
        %7604 = vmatprep.subr.mxu0 0.0
        %7605 = vmatpush2.xpose.msra.mxu0 0.0
        %7606 = vmatprep.subr.mxu0 0.0
        %7607 = vmatpush2.xpose.msra.mxu0 0.0
        %7608 = vmatprep.subr.mxu0 0.0
        %7609 = vmatpush2.xpose.msra.mxu0 0.0
        %7610 = vmatprep.subr.mxu0 0.0
        %7611 = vmatpush2.xpose.msra.mxu0 0.0
        %7612 = vmatprep.subr.mxu0 0.0
        %7613 = vmatpush2.xpose.msra.mxu0 0.0
        %7614 = vmatprep.subr.mxu0 0.0
        %7615 = vmatpush2.xpose.msra.mxu0 0.0
        %7616 = vmatprep.subr.mxu0 0.0
        %7617 = vmatpush2.xpose.msra.mxu0 0.0
        %7618 = vmatprep.mubr.f32.mxu0 0.0
        %7619 = vmatmul.mubr.f32.gmra.mxu0 %v7550
        %v7620 = vpop.f32.mrf.mxu0
        %v7621 = vadd.f32 0.0, %v7620
        %v7622 = vpop.f32.mrf.mxu0
        %7623 = vdwg.mxu0
        %v7624 = vmul.f32 %v7621, 0.35355338
        %v7625 = vsel %vm6581, %v7624, -inf
        %7626 = vmax.xlane.f32.xlu0 %v7625
        %v7627 = vpop.xlane.xlu0 %7626
        %v7628 = vsub.f32 %v7624, %v7627
        %v7629 = vmul.f32 %v7628, 1.442695
        %v7630 = vpow.pop %v7629
        %v7631 = vsel %vm6581, %v7630, 0.0
        %7632 = vadd.xlane.f32.xlu0 %v7631
        %v7633 = vpop.xlane.xlu0 %7632
        %v7634 = vrcp.pop %v7633
        %v7635 = vmul.f32 %v7630, %v7634
        %7636 = vrot.lane.b32.xlu0 %v7213, 80
        %v7637 = vpop.permute.xlu0 %7636
        %v7640 = vsel %vm1654, %v7635, 0
        %7642 = vmatprep.subr.mxu0 0.0
        %7643 = vmatpush1.msra.mxu0 0.0
        %7644 = vmatprep.subr.mxu0 0.0
        %7645 = vmatpush1.msra.mxu0 0.0
        %7646 = vmatprep.subr.mxu0 0.0
        %7647 = vmatpush1.msra.mxu0 0.0
        %7648 = vmatprep.subr.mxu0 0.0
        %7649 = vmatpush1.msra.mxu0 0.0
        %7650 = vmatprep.subr.mxu0 0.0
        %7651 = vmatpush1.msra.mxu0 0.0
        %7652 = vmatprep.subr.mxu0 0.0
        %7653 = vmatpush1.msra.mxu0 0.0
        %7654 = vmatprep.subr.mxu0 0.0
        %7655 = vmatpush1.msra.mxu0 0.0
        %7656 = vmatprep.subr.mxu0 0.0
        %7657 = vmatpush1.msra.mxu0 0.0
        %7658 = vmatprep.subr.mxu0 0.0
        %7659 = vmatpush1.msra.mxu0 0.0
        %7660 = vmatprep.subr.mxu0 0.0
        %7661 = vmatpush1.msra.mxu0 0.0
        %7662 = vmatprep.subr.mxu0 0.0
        %7663 = vmatpush1.msra.mxu0 0.0
        %7664 = vmatprep.subr.mxu0 0.0
        %7665 = vmatpush1.msra.mxu0 0.0
        %7666 = vmatprep.subr.mxu0 0.0
        %7667 = vmatpush1.msra.mxu0 0.0
        %7668 = vmatprep.subr.mxu0 0.0
        %7669 = vmatpush1.msra.mxu0 0.0
        %7670 = vmatprep.subr.mxu0 0.0
        %7671 = vmatpush1.msra.mxu0 0.0
        %7672 = vmatprep.subr.mxu0 0.0
        %7673 = vmatpush1.msra.mxu0 %v7637
        %7674 = vmatprep.subr.mxu0 0.0
        %7675 = vmatpush2.msra.mxu0 0.0
        %7676 = vmatprep.subr.mxu0 0.0
        %7677 = vmatpush2.msra.mxu0 0.0
        %7678 = vmatprep.subr.mxu0 0.0
        %7679 = vmatpush2.msra.mxu0 0.0
        %7680 = vmatprep.subr.mxu0 0.0
        %7681 = vmatpush2.msra.mxu0 0.0
        %7682 = vmatprep.subr.mxu0 0.0
        %7683 = vmatpush2.msra.mxu0 0.0
        %7684 = vmatprep.subr.mxu0 0.0
        %7685 = vmatpush2.msra.mxu0 0.0
        %7686 = vmatprep.subr.mxu0 0.0
        %7687 = vmatpush2.msra.mxu0 0.0
        %7688 = vmatprep.subr.mxu0 0.0
        %7689 = vmatpush2.msra.mxu0 0.0
        %7690 = vmatprep.subr.mxu0 0.0
        %7691 = vmatpush2.msra.mxu0 0.0
        %7692 = vmatprep.subr.mxu0 0.0
        %7693 = vmatpush2.msra.mxu0 0.0
        %7694 = vmatprep.subr.mxu0 0.0
        %7695 = vmatpush2.msra.mxu0 0.0
        %7696 = vmatprep.subr.mxu0 0.0
        %7697 = vmatpush2.msra.mxu0 0.0
        %7698 = vmatprep.subr.mxu0 0.0
        %7699 = vmatpush2.msra.mxu0 0.0
        %7700 = vmatprep.subr.mxu0 0.0
        %7701 = vmatpush2.msra.mxu0 0.0
        %7702 = vmatprep.subr.mxu0 0.0
        %7703 = vmatpush2.msra.mxu0 0.0
        %7704 = vmatprep.subr.mxu0 0.0
        %7705 = vmatpush2.msra.mxu0 0.0
        %7706 = vmatprep.mubr.f32.mxu0 0.0
        %7707 = vmatmul.mubr.f32.gmra.mxu0 %v7640
        %v7708 = vpop.f32.mrf.mxu0
        %v7709 = vadd.f32 0.0, %v7708
        %v7710 = vpop.f32.mrf.mxu0
        %7711 = vdwg.mxu0
        %7712 = vrot.lane.b32.xlu0 %v7129, 104
        %v7713 = vpop.permute.xlu0 %7712
        %7714 = vrot.lane.b32.xlu0 %v7213, 104
        %v7715 = vpop.permute.xlu0 %7714
        %v7716 = vsel %vm1654, %v7713, 0
        %v7718 = vsel %vm1654, %v7715, 0
        %7720 = vmatprep.subr.mxu0 0.0
        %7721 = vmatpush1.xpose.msra.mxu0 0.0
        %7722 = vmatprep.subr.mxu0 0.0
        %7723 = vmatpush1.xpose.msra.mxu0 0.0
        %7724 = vmatprep.subr.mxu0 0.0
        %7725 = vmatpush1.xpose.msra.mxu0 0.0
        %7726 = vmatprep.subr.mxu0 0.0
        %7727 = vmatpush1.xpose.msra.mxu0 0.0
        %7728 = vmatprep.subr.mxu0 0.0
        %7729 = vmatpush1.xpose.msra.mxu0 0.0
        %7730 = vmatprep.subr.mxu0 0.0
        %7731 = vmatpush1.xpose.msra.mxu0 0.0
        %7732 = vmatprep.subr.mxu0 0.0
        %7733 = vmatpush1.xpose.msra.mxu0 0.0
        %7734 = vmatprep.subr.mxu0 0.0
        %7735 = vmatpush1.xpose.msra.mxu0 0.0
        %7736 = vmatprep.subr.mxu0 0.0
        %7737 = vmatpush1.xpose.msra.mxu0 0.0
        %7738 = vmatprep.subr.mxu0 0.0
        %7739 = vmatpush1.xpose.msra.mxu0 0.0
        %7740 = vmatprep.subr.mxu0 0.0
        %7741 = vmatpush1.xpose.msra.mxu0 0.0
        %7742 = vmatprep.subr.mxu0 0.0
        %7743 = vmatpush1.xpose.msra.mxu0 0.0
        %7744 = vmatprep.subr.mxu0 0.0
        %7745 = vmatpush1.xpose.msra.mxu0 0.0
        %7746 = vmatprep.subr.mxu0 0.0
        %7747 = vmatpush1.xpose.msra.mxu0 0.0
        %7748 = vmatprep.subr.mxu0 0.0
        %7749 = vmatpush1.xpose.msra.mxu0 0.0
        %7750 = vmatprep.subr.mxu0 0.0
        %7751 = vmatpush1.xpose.msra.mxu0 %v7718
        %7752 = vmatprep.subr.mxu0 0.0
        %7753 = vmatpush2.xpose.msra.mxu0 0.0
        %7754 = vmatprep.subr.mxu0 0.0
        %7755 = vmatpush2.xpose.msra.mxu0 0.0
        %7756 = vmatprep.subr.mxu0 0.0
        %7757 = vmatpush2.xpose.msra.mxu0 0.0
        %7758 = vmatprep.subr.mxu0 0.0
        %7759 = vmatpush2.xpose.msra.mxu0 0.0
        %7760 = vmatprep.subr.mxu0 0.0
        %7761 = vmatpush2.xpose.msra.mxu0 0.0
        %7762 = vmatprep.subr.mxu0 0.0
        %7763 = vmatpush2.xpose.msra.mxu0 0.0
        %7764 = vmatprep.subr.mxu0 0.0
        %7765 = vmatpush2.xpose.msra.mxu0 0.0
        %7766 = vmatprep.subr.mxu0 0.0
        %7767 = vmatpush2.xpose.msra.mxu0 0.0
        %7768 = vmatprep.subr.mxu0 0.0
        %7769 = vmatpush2.xpose.msra.mxu0 0.0
        %7770 = vmatprep.subr.mxu0 0.0
        %7771 = vmatpush2.xpose.msra.mxu0 0.0
        %7772 = vmatprep.subr.mxu0 0.0
        %7773 = vmatpush2.xpose.msra.mxu0 0.0
        %7774 = vmatprep.subr.mxu0 0.0
        %7775 = vmatpush2.xpose.msra.mxu0 0.0
        %7776 = vmatprep.subr.mxu0 0.0
        %7777 = vmatpush2.xpose.msra.mxu0 0.0
        %7778 = vmatprep.subr.mxu0 0.0
        %7779 = vmatpush2.xpose.msra.mxu0 0.0
        %7780 = vmatprep.subr.mxu0 0.0
        %7781 = vmatpush2.xpose.msra.mxu0 0.0
        %7782 = vmatprep.subr.mxu0 0.0
        %7783 = vmatpush2.xpose.msra.mxu0 0.0
        %7784 = vmatprep.mubr.f32.mxu0 0.0
        %7785 = vmatmul.mubr.f32.gmra.mxu0 %v7716
        %v7786 = vpop.f32.mrf.mxu0
        %v7787 = vadd.f32 0.0, %v7786
        %v7788 = vpop.f32.mrf.mxu0
        %7789 = vdwg.mxu0
        %v7790 = vmul.f32 %v7787, 0.35355338
        %v7791 = vsel %vm6581, %v7790, -inf
        %7792 = vmax.xlane.f32.xlu0 %v7791
        %v7793 = vpop.xlane.xlu0 %7792
        %v7794 = vsub.f32 %v7790, %v7793
        %v7795 = vmul.f32 %v7794, 1.442695
        %v7796 = vpow.pop %v7795
        %v7797 = vsel %vm6581, %v7796, 0.0
        %7798 = vadd.xlane.f32.xlu0 %v7797
        %v7799 = vpop.xlane.xlu0 %7798
        %v7800 = vrcp.pop %v7799
        %v7801 = vmul.f32 %v7796, %v7800
        %7802 = vrot.lane.b32.xlu0 %v7213, 72
        %v7803 = vpop.permute.xlu0 %7802
        %v7806 = vsel %vm1654, %v7801, 0
        %7808 = vmatprep.subr.mxu0 0.0
        %7809 = vmatpush1.msra.mxu0 0.0
        %7810 = vmatprep.subr.mxu0 0.0
        %7811 = vmatpush1.msra.mxu0 0.0
        %7812 = vmatprep.subr.mxu0 0.0
        %7813 = vmatpush1.msra.mxu0 0.0
        %7814 = vmatprep.subr.mxu0 0.0
        %7815 = vmatpush1.msra.mxu0 0.0
        %7816 = vmatprep.subr.mxu0 0.0
        %7817 = vmatpush1.msra.mxu0 0.0
        %7818 = vmatprep.subr.mxu0 0.0
        %7819 = vmatpush1.msra.mxu0 0.0
        %7820 = vmatprep.subr.mxu0 0.0
        %7821 = vmatpush1.msra.mxu0 0.0
        %7822 = vmatprep.subr.mxu0 0.0
        %7823 = vmatpush1.msra.mxu0 0.0
        %7824 = vmatprep.subr.mxu0 0.0
        %7825 = vmatpush1.msra.mxu0 0.0
        %7826 = vmatprep.subr.mxu0 0.0
        %7827 = vmatpush1.msra.mxu0 0.0
        %7828 = vmatprep.subr.mxu0 0.0
        %7829 = vmatpush1.msra.mxu0 0.0
        %7830 = vmatprep.subr.mxu0 0.0
        %7831 = vmatpush1.msra.mxu0 0.0
        %7832 = vmatprep.subr.mxu0 0.0
        %7833 = vmatpush1.msra.mxu0 0.0
        %7834 = vmatprep.subr.mxu0 0.0
        %7835 = vmatpush1.msra.mxu0 0.0
        %7836 = vmatprep.subr.mxu0 0.0
        %7837 = vmatpush1.msra.mxu0 0.0
        %7838 = vmatprep.subr.mxu0 0.0
        %7839 = vmatpush1.msra.mxu0 %v7803
        %7840 = vmatprep.subr.mxu0 0.0
        %7841 = vmatpush2.msra.mxu0 0.0
        %7842 = vmatprep.subr.mxu0 0.0
        %7843 = vmatpush2.msra.mxu0 0.0
        %7844 = vmatprep.subr.mxu0 0.0
        %7845 = vmatpush2.msra.mxu0 0.0
        %7846 = vmatprep.subr.mxu0 0.0
        %7847 = vmatpush2.msra.mxu0 0.0
        %7848 = vmatprep.subr.mxu0 0.0
        %7849 = vmatpush2.msra.mxu0 0.0
        %7850 = vmatprep.subr.mxu0 0.0
        %7851 = vmatpush2.msra.mxu0 0.0
        %7852 = vmatprep.subr.mxu0 0.0
        %7853 = vmatpush2.msra.mxu0 0.0
        %7854 = vmatprep.subr.mxu0 0.0
        %7855 = vmatpush2.msra.mxu0 0.0
        %7856 = vmatprep.subr.mxu0 0.0
        %7857 = vmatpush2.msra.mxu0 0.0
        %7858 = vmatprep.subr.mxu0 0.0
        %7859 = vmatpush2.msra.mxu0 0.0
        %7860 = vmatprep.subr.mxu0 0.0
        %7861 = vmatpush2.msra.mxu0 0.0
        %7862 = vmatprep.subr.mxu0 0.0
        %7863 = vmatpush2.msra.mxu0 0.0
        %7864 = vmatprep.subr.mxu0 0.0
        %7865 = vmatpush2.msra.mxu0 0.0
        %7866 = vmatprep.subr.mxu0 0.0
        %7867 = vmatpush2.msra.mxu0 0.0
        %7868 = vmatprep.subr.mxu0 0.0
        %7869 = vmatpush2.msra.mxu0 0.0
        %7870 = vmatprep.subr.mxu0 0.0
        %7871 = vmatpush2.msra.mxu0 0.0
        %7872 = vmatprep.mubr.f32.mxu0 0.0
        %7873 = vmatmul.mubr.f32.gmra.mxu0 %v7806
        %v7874 = vpop.f32.mrf.mxu0
        %v7875 = vadd.f32 0.0, %v7874
        %v7876 = vpop.f32.mrf.mxu0
        %7877 = vdwg.mxu0
        %7879 = vrot.lane.b32.xlu0 %v7543, 8
        %v7880 = vpop.permute.xlu0 %7879
        %7883 = vrot.lane.b32.xlu0 %v7709, 16
        %v7884 = vpop.permute.xlu0 %7883
        %7887 = vrot.lane.b32.xlu0 %v7875, 24
        %v7888 = vpop.permute.xlu0 %7887
        %v7890 = vsel %vm1654, %v7377, %v7880
        %v7891 = vsel %vm1487, %v7890, %v7884
        %v7892 = vsel %vm2329, %v7891, %v7888
        %v7893 = vld [vmem:[%s15] sm:$0xff]
        %v7894 = vld [vmem:[%s15 + $0x8] sm:$0xff]
        %v7895 = vld [vmem:[%s15 + $0x10] sm:$0xff]
        %v7896 = vld [vmem:[%s15 + $0x18] sm:$0xff]
        %v7897 = vld [vmem:[%s9] sm:$0x1]
        %v7899 = vsel %vm1577, %v7892, 0
        %7901 = vmatprep.subr.mxu0 0.0
        %7902 = vmatpush1.msra.mxu0 0.0
        %7903 = vmatprep.subr.mxu0 0.0
        %7904 = vmatpush1.msra.mxu0 0.0
        %7905 = vmatprep.subr.mxu0 0.0
        %7906 = vmatpush1.msra.mxu0 0.0
        %7907 = vmatprep.subr.mxu0 0.0
        %7908 = vmatpush1.msra.mxu0 0.0
        %7909 = vmatprep.subr.mxu0 0.0
        %7910 = vmatpush1.msra.mxu0 0.0
        %7911 = vmatprep.subr.mxu0 0.0
        %7912 = vmatpush1.msra.mxu0 0.0
        %7913 = vmatprep.subr.mxu0 0.0
        %7914 = vmatpush1.msra.mxu0 0.0
        %7915 = vmatprep.subr.mxu0 0.0
        %7916 = vmatpush1.msra.mxu0 0.0
        %7917 = vmatprep.subr.mxu0 0.0
        %7918 = vmatpush1.msra.mxu0 0.0
        %7919 = vmatprep.subr.mxu0 0.0
        %7920 = vmatpush1.msra.mxu0 0.0
        %7921 = vmatprep.subr.mxu0 0.0
        %7922 = vmatpush1.msra.mxu0 0.0
        %7923 = vmatprep.subr.mxu0 0.0
        %7924 = vmatpush1.msra.mxu0 0.0
        %7925 = vmatprep.subr.mxu0 0.0
        %7926 = vmatpush1.msra.mxu0 %v7896
        %7927 = vmatprep.subr.mxu0 0.0
        %7928 = vmatpush1.msra.mxu0 %v7895
        %7929 = vmatprep.subr.mxu0 0.0
        %7930 = vmatpush1.msra.mxu0 %v7894
        %7931 = vmatprep.subr.mxu0 0.0
        %7932 = vmatpush1.msra.mxu0 %v7893
        %7933 = vmatprep.subr.mxu0 0.0
        %7934 = vmatpush2.msra.mxu0 0.0
        %7935 = vmatprep.subr.mxu0 0.0
        %7936 = vmatpush2.msra.mxu0 0.0
        %7937 = vmatprep.subr.mxu0 0.0
        %7938 = vmatpush2.msra.mxu0 0.0
        %7939 = vmatprep.subr.mxu0 0.0
        %7940 = vmatpush2.msra.mxu0 0.0
        %7941 = vmatprep.subr.mxu0 0.0
        %7942 = vmatpush2.msra.mxu0 0.0
        %7943 = vmatprep.subr.mxu0 0.0
        %7944 = vmatpush2.msra.mxu0 0.0
        %7945 = vmatprep.subr.mxu0 0.0
        %7946 = vmatpush2.msra.mxu0 0.0
        %7947 = vmatprep.subr.mxu0 0.0
        %7948 = vmatpush2.msra.mxu0 0.0
        %7949 = vmatprep.subr.mxu0 0.0
        %7950 = vmatpush2.msra.mxu0 0.0
        %7951 = vmatprep.subr.mxu0 0.0
        %7952 = vmatpush2.msra.mxu0 0.0
        %7953 = vmatprep.subr.mxu0 0.0
        %7954 = vmatpush2.msra.mxu0 0.0
        %7955 = vmatprep.subr.mxu0 0.0
        %7956 = vmatpush2.msra.mxu0 0.0
        %7957 = vmatprep.subr.mxu0 0.0
        %7958 = vmatpush2.msra.mxu0 0.0
        %7959 = vmatprep.subr.mxu0 0.0
        %7960 = vmatpush2.msra.mxu0 0.0
        %7961 = vmatprep.subr.mxu0 0.0
        %7962 = vmatpush2.msra.mxu0 0.0
        %7963 = vmatprep.subr.mxu0 0.0
        %7964 = vmatpush2.msra.mxu0 0.0
        %7965 = vmatprep.mubr.f32.mxu0 0.0
        %7966 = vmatmul.mubr.f32.gmra.mxu0 %v7899
        %v7967 = vpop.f32.mrf.mxu0
        %v7968 = vadd.f32 %v7897, %v7967
        %v7969 = vpop.f32.mrf.mxu0
        %7970 = vdwg.mxu0
        %v7971 = vadd.f32 %v7053, %v7968
        %v7972 = vld [vmem:[%s25] sm:$0x1]
        %v7973 = vld [vmem:[%s23] sm:$0x1]
        %v7974 = vsel %vm7038, %v7971, 0.0
        %7975 = vadd.xlane.f32.xlu0 %v7974
        %v7976 = vpop.xlane.xlu0 %7975
        %v7977 = vmul.f32 %v7976, %v2421
        %v7978 = vsub.f32 %v7971, %v7977
        %v7979 = vmul.f32 %v7978, %v7978
        %v7980 = vsel %vm7038, %v7979, 0.0
        %7981 = vadd.xlane.f32.xlu0 %v7980
        %v7982 = vpop.xlane.xlu0 %7981
        %v7983 = vmul.f32 %v7982, %v2421
        %v7984 = vadd.f32 %v7983, 1e-05
        %v7985 = vrsqrt.pop %v7984
        %v7986 = vmul.f32 %v7978, %v7985
        %v7987 = vmul.f32 %v7986, %v7972
        %v7988 = vadd.f32 %v7987, %v7973
        %v7989 = vld [vmem:[%s39] sm:$0xff]
        %v7990 = vld [vmem:[%s39 + $0x8] sm:$0xff]
        %v7991 = vld [vmem:[%s39 + $0x10] sm:$0xff]
        %v7992 = vld [vmem:[%s39 + $0x18] sm:$0xff]
        %v7993 = vld [vmem:[%s39 + $0x20] sm:$0xff]
        %v7994 = vld [vmem:[%s39 + $0x28] sm:$0xff]
        %v7995 = vld [vmem:[%s39 + $0x30] sm:$0xff]
        %v7996 = vld [vmem:[%s39 + $0x38] sm:$0xff]
        %v7997 = vld [vmem:[%s39 + $0x40] sm:$0xff]
        %v7998 = vld [vmem:[%s39 + $0x48] sm:$0xff]
        %v7999 = vld [vmem:[%s39 + $0x50] sm:$0xff]
        %v8000 = vld [vmem:[%s39 + $0x58] sm:$0xff]
        %v8001 = vld [vmem:[%s39 + $0x60] sm:$0xff]
        %v8002 = vld [vmem:[%s39 + $0x68] sm:$0xff]
        %v8003 = vld [vmem:[%s39 + $0x70] sm:$0xff]
        %v8004 = vld [vmem:[%s39 + $0x78] sm:$0xff]
        %v8005 = vld [vmem:[%s39 + $0x80] sm:$0xff]
        %v8006 = vld [vmem:[%s39 + $0x88] sm:$0xff]
        %v8007 = vld [vmem:[%s39 + $0x90] sm:$0xff]
        %v8008 = vld [vmem:[%s39 + $0x98] sm:$0xff]
        %v8009 = vld [vmem:[%s39 + $0xa0] sm:$0xff]
        %v8010 = vld [vmem:[%s39 + $0xa8] sm:$0xff]
        %v8011 = vld [vmem:[%s39 + $0xb0] sm:$0xff]
        %v8012 = vld [vmem:[%s39 + $0xb8] sm:$0xff]
        %v8013 = vld [vmem:[%s39 + $0xc0] sm:$0xff]
        %v8014 = vld [vmem:[%s39 + $0xc8] sm:$0xff]
        %v8015 = vld [vmem:[%s39 + $0xd0] sm:$0xff]
        %v8016 = vld [vmem:[%s39 + $0xd8] sm:$0xff]
        %v8017 = vld [vmem:[%s39 + $0xe0] sm:$0xff]
        %v8018 = vld [vmem:[%s39 + $0xe8] sm:$0xff]
        %v8019 = vld [vmem:[%s39 + $0xf0] sm:$0xff]
        %v8020 = vld [vmem:[%s39 + $0xf8] sm:$0xff]
        %v8021 = vld [vmem:[%s39 + $0x100] sm:$0xff]
        %v8022 = vld [vmem:[%s39 + $0x108] sm:$0xff]
        %v8023 = vld [vmem:[%s39 + $0x110] sm:$0xff]
        %v8024 = vld [vmem:[%s39 + $0x118] sm:$0xff]
        %v8025 = vld [vmem:[%s39 + $0x120] sm:$0xff]
        %v8026 = vld [vmem:[%s39 + $0x128] sm:$0xff]
        %v8027 = vld [vmem:[%s39 + $0x130] sm:$0xff]
        %v8028 = vld [vmem:[%s39 + $0x138] sm:$0xff]
        %v8029 = vld [vmem:[%s39 + $0x140] sm:$0xff]
        %v8030 = vld [vmem:[%s39 + $0x148] sm:$0xff]
        %v8031 = vld [vmem:[%s39 + $0x150] sm:$0xff]
        %v8032 = vld [vmem:[%s39 + $0x158] sm:$0xff]
        %v8033 = vld [vmem:[%s39 + $0x160] sm:$0xff]
        %v8034 = vld [vmem:[%s39 + $0x168] sm:$0xff]
        %v8035 = vld [vmem:[%s39 + $0x170] sm:$0xff]
        %v8036 = vld [vmem:[%s39 + $0x178] sm:$0xff]
        %v8037 = vld [vmem:[%s39 + $0x180] sm:$0xff]
        %v8038 = vld [vmem:[%s39 + $0x188] sm:$0xff]
        %v8039 = vld [vmem:[%s39 + $0x190] sm:$0xff]
        %v8040 = vld [vmem:[%s39 + $0x198] sm:$0xff]
        %v8041 = vld [vmem:[%s39 + $0x1a0] sm:$0xff]
        %v8042 = vld [vmem:[%s39 + $0x1a8] sm:$0xff]
        %v8043 = vld [vmem:[%s39 + $0x1b0] sm:$0xff]
        %v8044 = vld [vmem:[%s39 + $0x1b8] sm:$0xff]
        %v8045 = vld [vmem:[%s39 + $0x1c0] sm:$0xff]
        %v8046 = vld [vmem:[%s39 + $0x1c8] sm:$0xff]
        %v8047 = vld [vmem:[%s39 + $0x1d0] sm:$0xff]
        %v8048 = vld [vmem:[%s39 + $0x1d8] sm:$0xff]
        %v8049 = vld [vmem:[%s39 + $0x1e0] sm:$0xff]
        %v8050 = vld [vmem:[%s39 + $0x1e8] sm:$0xff]
        %v8051 = vld [vmem:[%s39 + $0x1f0] sm:$0xff]
        %v8052 = vld [vmem:[%s39 + $0x1f8] sm:$0xff]
        %v8053 = vld [vmem:[%s3] sm:$0xff]
        %v8054 = vld [vmem:[%s3 + $0x8] sm:$0xff]
        %v8057 = vlaneseq
        %v8058 = vshrl.u32 %v8057, 7
        %v8059 = vsub.s32 0, %v8058
        %v8060 = vrot.slane %v8053, %v8059
        %v8061 = vlaneseq
        %v8062 = vshrl.u32 %v8061, 7
        %v8063 = vsub.s32 1, %v8062
        %v8064 = vrot.slane %v8053, %v8063
        %v8065 = vlaneseq
        %v8066 = vshrl.u32 %v8065, 7
        %v8067 = vsub.s32 2, %v8066
        %v8068 = vrot.slane %v8053, %v8067
        %v8069 = vlaneseq
        %v8070 = vshrl.u32 %v8069, 7
        %v8071 = vsub.s32 3, %v8070
        %v8072 = vrot.slane %v8053, %v8071
        %v8073 = vlaneseq
        %v8074 = vshrl.u32 %v8073, 7
        %v8075 = vsub.s32 4, %v8074
        %v8076 = vrot.slane %v8053, %v8075
        %v8077 = vlaneseq
        %v8078 = vshrl.u32 %v8077, 7
        %v8079 = vsub.s32 5, %v8078
        %v8080 = vrot.slane %v8053, %v8079
        %v8081 = vlaneseq
        %v8082 = vshrl.u32 %v8081, 7
        %v8083 = vsub.s32 6, %v8082
        %v8084 = vrot.slane %v8053, %v8083
        %v8085 = vlaneseq
        %v8086 = vshrl.u32 %v8085, 7
        %v8087 = vsub.s32 7, %v8086
        %v8088 = vrot.slane %v8053, %v8087
        %v8089 = vlaneseq
        %v8090 = vshrl.u32 %v8089, 7
        %v8091 = vsub.s32 0, %v8090
        %v8092 = vrot.slane %v8054, %v8091
        %v8093 = vlaneseq
        %v8094 = vshrl.u32 %v8093, 7
        %v8095 = vsub.s32 1, %v8094
        %v8096 = vrot.slane %v8054, %v8095
        %v8097 = vlaneseq
        %v8098 = vshrl.u32 %v8097, 7
        %v8099 = vsub.s32 2, %v8098
        %v8100 = vrot.slane %v8054, %v8099
        %v8101 = vlaneseq
        %v8102 = vshrl.u32 %v8101, 7
        %v8103 = vsub.s32 3, %v8102
        %v8104 = vrot.slane %v8054, %v8103
        %v8105 = vlaneseq
        %v8106 = vshrl.u32 %v8105, 7
        %v8107 = vsub.s32 4, %v8106
        %v8108 = vrot.slane %v8054, %v8107
        %v8109 = vlaneseq
        %v8110 = vshrl.u32 %v8109, 7
        %v8111 = vsub.s32 5, %v8110
        %v8112 = vrot.slane %v8054, %v8111
        %v8113 = vlaneseq
        %v8114 = vshrl.u32 %v8113, 7
        %v8115 = vsub.s32 6, %v8114
        %v8116 = vrot.slane %v8054, %v8115
        %v8117 = vlaneseq
        %v8118 = vshrl.u32 %v8117, 7
        %v8119 = vsub.s32 7, %v8118
        %v8120 = vrot.slane %v8054, %v8119
        %v8138 = vsel %vm1577, %v7988, 0
        %8140 = vmatprep.subr.mxu0 0.0
        %8141 = vmatpush1.msra.mxu0 0.0
        %8142 = vmatprep.subr.mxu0 0.0
        %8143 = vmatpush1.msra.mxu0 0.0
        %8144 = vmatprep.subr.mxu0 0.0
        %8145 = vmatpush1.msra.mxu0 0.0
        %8146 = vmatprep.subr.mxu0 0.0
        %8147 = vmatpush1.msra.mxu0 0.0
        %8148 = vmatprep.subr.mxu0 0.0
        %8149 = vmatpush1.msra.mxu0 0.0
        %8150 = vmatprep.subr.mxu0 0.0
        %8151 = vmatpush1.msra.mxu0 0.0
        %8152 = vmatprep.subr.mxu0 0.0
        %8153 = vmatpush1.msra.mxu0 0.0
        %8154 = vmatprep.subr.mxu0 0.0
        %8155 = vmatpush1.msra.mxu0 0.0
        %8156 = vmatprep.subr.mxu0 0.0
        %8157 = vmatpush1.msra.mxu0 0.0
        %8158 = vmatprep.subr.mxu0 0.0
        %8159 = vmatpush1.msra.mxu0 0.0
        %8160 = vmatprep.subr.mxu0 0.0
        %8161 = vmatpush1.msra.mxu0 0.0
        %8162 = vmatprep.subr.mxu0 0.0
        %8163 = vmatpush1.msra.mxu0 0.0
        %8164 = vmatprep.subr.mxu0 %v8038
        %8165 = vmatpush1.msra.mxu0 %v8037
        %8166 = vmatprep.subr.mxu0 %v8022
        %8167 = vmatpush1.msra.mxu0 %v8021
        %8168 = vmatprep.subr.mxu0 %v8006
        %8169 = vmatpush1.msra.mxu0 %v8005
        %8170 = vmatprep.subr.mxu0 %v7990
        %8171 = vmatpush1.msra.mxu0 %v7989
        %8172 = vmatprep.subr.mxu0 0.0
        %8173 = vmatpush2.msra.mxu0 0.0
        %8174 = vmatprep.subr.mxu0 0.0
        %8175 = vmatpush2.msra.mxu0 0.0
        %8176 = vmatprep.subr.mxu0 0.0
        %8177 = vmatpush2.msra.mxu0 0.0
        %8178 = vmatprep.subr.mxu0 0.0
        %8179 = vmatpush2.msra.mxu0 0.0
        %8180 = vmatprep.subr.mxu0 0.0
        %8181 = vmatpush2.msra.mxu0 0.0
        %8182 = vmatprep.subr.mxu0 0.0
        %8183 = vmatpush2.msra.mxu0 0.0
        %8184 = vmatprep.subr.mxu0 0.0
        %8185 = vmatpush2.msra.mxu0 0.0
        %8186 = vmatprep.subr.mxu0 0.0
        %8187 = vmatpush2.msra.mxu0 0.0
        %8188 = vmatprep.subr.mxu0 0.0
        %8189 = vmatpush2.msra.mxu0 0.0
        %8190 = vmatprep.subr.mxu0 0.0
        %8191 = vmatpush2.msra.mxu0 0.0
        %8192 = vmatprep.subr.mxu0 0.0
        %8193 = vmatpush2.msra.mxu0 0.0
        %8194 = vmatprep.subr.mxu0 0.0
        %8195 = vmatpush2.msra.mxu0 0.0
        %8196 = vmatprep.subr.mxu0 0.0
        %8197 = vmatpush2.msra.mxu0 0.0
        %8198 = vmatprep.subr.mxu0 0.0
        %8199 = vmatpush2.msra.mxu0 0.0
        %8200 = vmatprep.subr.mxu0 0.0
        %8201 = vmatpush2.msra.mxu0 0.0
        %8202 = vmatprep.subr.mxu0 0.0
        %8203 = vmatpush2.msra.mxu0 0.0
        %8204 = vmatprep.mubr.f32.mxu0 0.0
        %8205 = vmatmul.mubr.f32.gmra.mxu0 %v8138
        %v8206 = vpop.f32.mrf.mxu0
        %v8207 = vadd.f32 %v8060, %v8206
        %v8208 = vpop.f32.mrf.mxu0
        %v8209 = vadd.f32 %v8064, %v8208
        %8210 = vdwg.mxu0
        %8211 = vmatprep.subr.mxu0 0.0
        %8212 = vmatpush1.msra.mxu0 0.0
        %8213 = vmatprep.subr.mxu0 0.0
        %8214 = vmatpush1.msra.mxu0 0.0
        %8215 = vmatprep.subr.mxu0 0.0
        %8216 = vmatpush1.msra.mxu0 0.0
        %8217 = vmatprep.subr.mxu0 0.0
        %8218 = vmatpush1.msra.mxu0 0.0
        %8219 = vmatprep.subr.mxu0 0.0
        %8220 = vmatpush1.msra.mxu0 0.0
        %8221 = vmatprep.subr.mxu0 0.0
        %8222 = vmatpush1.msra.mxu0 0.0
        %8223 = vmatprep.subr.mxu0 0.0
        %8224 = vmatpush1.msra.mxu0 0.0
        %8225 = vmatprep.subr.mxu0 0.0
        %8226 = vmatpush1.msra.mxu0 0.0
        %8227 = vmatprep.subr.mxu0 0.0
        %8228 = vmatpush1.msra.mxu0 0.0
        %8229 = vmatprep.subr.mxu0 0.0
        %8230 = vmatpush1.msra.mxu0 0.0
        %8231 = vmatprep.subr.mxu0 0.0
        %8232 = vmatpush1.msra.mxu0 0.0
        %8233 = vmatprep.subr.mxu0 0.0
        %8234 = vmatpush1.msra.mxu0 0.0
        %8235 = vmatprep.subr.mxu0 %v8040
        %8236 = vmatpush1.msra.mxu0 %v8039
        %8237 = vmatprep.subr.mxu0 %v8024
        %8238 = vmatpush1.msra.mxu0 %v8023
        %8239 = vmatprep.subr.mxu0 %v8008
        %8240 = vmatpush1.msra.mxu0 %v8007
        %8241 = vmatprep.subr.mxu0 %v7992
        %8242 = vmatpush1.msra.mxu0 %v7991
        %8243 = vmatprep.subr.mxu0 0.0
        %8244 = vmatpush2.msra.mxu0 0.0
        %8245 = vmatprep.subr.mxu0 0.0
        %8246 = vmatpush2.msra.mxu0 0.0
        %8247 = vmatprep.subr.mxu0 0.0
        %8248 = vmatpush2.msra.mxu0 0.0
        %8249 = vmatprep.subr.mxu0 0.0
        %8250 = vmatpush2.msra.mxu0 0.0
        %8251 = vmatprep.subr.mxu0 0.0
        %8252 = vmatpush2.msra.mxu0 0.0
        %8253 = vmatprep.subr.mxu0 0.0
        %8254 = vmatpush2.msra.mxu0 0.0
        %8255 = vmatprep.subr.mxu0 0.0
        %8256 = vmatpush2.msra.mxu0 0.0
        %8257 = vmatprep.subr.mxu0 0.0
        %8258 = vmatpush2.msra.mxu0 0.0
        %8259 = vmatprep.subr.mxu0 0.0
        %8260 = vmatpush2.msra.mxu0 0.0
        %8261 = vmatprep.subr.mxu0 0.0
        %8262 = vmatpush2.msra.mxu0 0.0
        %8263 = vmatprep.subr.mxu0 0.0
        %8264 = vmatpush2.msra.mxu0 0.0
        %8265 = vmatprep.subr.mxu0 0.0
        %8266 = vmatpush2.msra.mxu0 0.0
        %8267 = vmatprep.subr.mxu0 0.0
        %8268 = vmatpush2.msra.mxu0 0.0
        %8269 = vmatprep.subr.mxu0 0.0
        %8270 = vmatpush2.msra.mxu0 0.0
        %8271 = vmatprep.subr.mxu0 0.0
        %8272 = vmatpush2.msra.mxu0 0.0
        %8273 = vmatprep.subr.mxu0 0.0
        %8274 = vmatpush2.msra.mxu0 0.0
        %8275 = vmatprep.mubr.f32.mxu0 0.0
        %8276 = vmatmul.mubr.f32.gmra.mxu0 %v8138
        %v8277 = vpop.f32.mrf.mxu0
        %v8278 = vadd.f32 %v8068, %v8277
        %v8279 = vpop.f32.mrf.mxu0
        %v8280 = vadd.f32 %v8072, %v8279
        %8281 = vdwg.mxu0
        %8282 = vmatprep.subr.mxu0 0.0
        %8283 = vmatpush1.msra.mxu0 0.0
        %8284 = vmatprep.subr.mxu0 0.0
        %8285 = vmatpush1.msra.mxu0 0.0
        %8286 = vmatprep.subr.mxu0 0.0
        %8287 = vmatpush1.msra.mxu0 0.0
        %8288 = vmatprep.subr.mxu0 0.0
        %8289 = vmatpush1.msra.mxu0 0.0
        %8290 = vmatprep.subr.mxu0 0.0
        %8291 = vmatpush1.msra.mxu0 0.0
        %8292 = vmatprep.subr.mxu0 0.0
        %8293 = vmatpush1.msra.mxu0 0.0
        %8294 = vmatprep.subr.mxu0 0.0
        %8295 = vmatpush1.msra.mxu0 0.0
        %8296 = vmatprep.subr.mxu0 0.0
        %8297 = vmatpush1.msra.mxu0 0.0
        %8298 = vmatprep.subr.mxu0 0.0
        %8299 = vmatpush1.msra.mxu0 0.0
        %8300 = vmatprep.subr.mxu0 0.0
        %8301 = vmatpush1.msra.mxu0 0.0
        %8302 = vmatprep.subr.mxu0 0.0
        %8303 = vmatpush1.msra.mxu0 0.0
        %8304 = vmatprep.subr.mxu0 0.0
        %8305 = vmatpush1.msra.mxu0 0.0
        %8306 = vmatprep.subr.mxu0 %v8042
        %8307 = vmatpush1.msra.mxu0 %v8041
        %8308 = vmatprep.subr.mxu0 %v8026
        %8309 = vmatpush1.msra.mxu0 %v8025
        %8310 = vmatprep.subr.mxu0 %v8010
        %8311 = vmatpush1.msra.mxu0 %v8009
        %8312 = vmatprep.subr.mxu0 %v7994
        %8313 = vmatpush1.msra.mxu0 %v7993
        %8314 = vmatprep.subr.mxu0 0.0
        %8315 = vmatpush2.msra.mxu0 0.0
        %8316 = vmatprep.subr.mxu0 0.0
        %8317 = vmatpush2.msra.mxu0 0.0
        %8318 = vmatprep.subr.mxu0 0.0
        %8319 = vmatpush2.msra.mxu0 0.0
        %8320 = vmatprep.subr.mxu0 0.0
        %8321 = vmatpush2.msra.mxu0 0.0
        %8322 = vmatprep.subr.mxu0 0.0
        %8323 = vmatpush2.msra.mxu0 0.0
        %8324 = vmatprep.subr.mxu0 0.0
        %8325 = vmatpush2.msra.mxu0 0.0
        %8326 = vmatprep.subr.mxu0 0.0
        %8327 = vmatpush2.msra.mxu0 0.0
        %8328 = vmatprep.subr.mxu0 0.0
        %8329 = vmatpush2.msra.mxu0 0.0
        %8330 = vmatprep.subr.mxu0 0.0
        %8331 = vmatpush2.msra.mxu0 0.0
        %8332 = vmatprep.subr.mxu0 0.0
        %8333 = vmatpush2.msra.mxu0 0.0
        %8334 = vmatprep.subr.mxu0 0.0
        %8335 = vmatpush2.msra.mxu0 0.0
        %8336 = vmatprep.subr.mxu0 0.0
        %8337 = vmatpush2.msra.mxu0 0.0
        %8338 = vmatprep.subr.mxu0 0.0
        %8339 = vmatpush2.msra.mxu0 0.0
        %8340 = vmatprep.subr.mxu0 0.0
        %8341 = vmatpush2.msra.mxu0 0.0
        %8342 = vmatprep.subr.mxu0 0.0
        %8343 = vmatpush2.msra.mxu0 0.0
        %8344 = vmatprep.subr.mxu0 0.0
        %8345 = vmatpush2.msra.mxu0 0.0
        %8346 = vmatprep.mubr.f32.mxu0 0.0
        %8347 = vmatmul.mubr.f32.gmra.mxu0 %v8138
        %v8348 = vpop.f32.mrf.mxu0
        %v8349 = vadd.f32 %v8076, %v8348
        %v8350 = vpop.f32.mrf.mxu0
        %v8351 = vadd.f32 %v8080, %v8350
        %8352 = vdwg.mxu0
        %8353 = vmatprep.subr.mxu0 0.0
        %8354 = vmatpush1.msra.mxu0 0.0
        %8355 = vmatprep.subr.mxu0 0.0
        %8356 = vmatpush1.msra.mxu0 0.0
        %8357 = vmatprep.subr.mxu0 0.0
        %8358 = vmatpush1.msra.mxu0 0.0
        %8359 = vmatprep.subr.mxu0 0.0
        %8360 = vmatpush1.msra.mxu0 0.0
        %8361 = vmatprep.subr.mxu0 0.0
        %8362 = vmatpush1.msra.mxu0 0.0
        %8363 = vmatprep.subr.mxu0 0.0
        %8364 = vmatpush1.msra.mxu0 0.0
        %8365 = vmatprep.subr.mxu0 0.0
        %8366 = vmatpush1.msra.mxu0 0.0
        %8367 = vmatprep.subr.mxu0 0.0
        %8368 = vmatpush1.msra.mxu0 0.0
        %8369 = vmatprep.subr.mxu0 0.0
        %8370 = vmatpush1.msra.mxu0 0.0
        %8371 = vmatprep.subr.mxu0 0.0
        %8372 = vmatpush1.msra.mxu0 0.0
        %8373 = vmatprep.subr.mxu0 0.0
        %8374 = vmatpush1.msra.mxu0 0.0
        %8375 = vmatprep.subr.mxu0 0.0
        %8376 = vmatpush1.msra.mxu0 0.0
        %8377 = vmatprep.subr.mxu0 %v8044
        %8378 = vmatpush1.msra.mxu0 %v8043
        %8379 = vmatprep.subr.mxu0 %v8028
        %8380 = vmatpush1.msra.mxu0 %v8027
        %8381 = vmatprep.subr.mxu0 %v8012
        %8382 = vmatpush1.msra.mxu0 %v8011
        %8383 = vmatprep.subr.mxu0 %v7996
        %8384 = vmatpush1.msra.mxu0 %v7995
        %8385 = vmatprep.subr.mxu0 0.0
        %8386 = vmatpush2.msra.mxu0 0.0
        %8387 = vmatprep.subr.mxu0 0.0
        %8388 = vmatpush2.msra.mxu0 0.0
        %8389 = vmatprep.subr.mxu0 0.0
        %8390 = vmatpush2.msra.mxu0 0.0
        %8391 = vmatprep.subr.mxu0 0.0
        %8392 = vmatpush2.msra.mxu0 0.0
        %8393 = vmatprep.subr.mxu0 0.0
        %8394 = vmatpush2.msra.mxu0 0.0
        %8395 = vmatprep.subr.mxu0 0.0
        %8396 = vmatpush2.msra.mxu0 0.0
        %8397 = vmatprep.subr.mxu0 0.0
        %8398 = vmatpush2.msra.mxu0 0.0
        %8399 = vmatprep.subr.mxu0 0.0
        %8400 = vmatpush2.msra.mxu0 0.0
        %8401 = vmatprep.subr.mxu0 0.0
        %8402 = vmatpush2.msra.mxu0 0.0
        %8403 = vmatprep.subr.mxu0 0.0
        %8404 = vmatpush2.msra.mxu0 0.0
        %8405 = vmatprep.subr.mxu0 0.0
        %8406 = vmatpush2.msra.mxu0 0.0
        %8407 = vmatprep.subr.mxu0 0.0
        %8408 = vmatpush2.msra.mxu0 0.0
        %8409 = vmatprep.subr.mxu0 0.0
        %8410 = vmatpush2.msra.mxu0 0.0
        %8411 = vmatprep.subr.mxu0 0.0
        %8412 = vmatpush2.msra.mxu0 0.0
        %8413 = vmatprep.subr.mxu0 0.0
        %8414 = vmatpush2.msra.mxu0 0.0
        %8415 = vmatprep.subr.mxu0 0.0
        %8416 = vmatpush2.msra.mxu0 0.0
        %8417 = vmatprep.mubr.f32.mxu0 0.0
        %8418 = vmatmul.mubr.f32.gmra.mxu0 %v8138
        %v8419 = vpop.f32.mrf.mxu0
        %v8420 = vadd.f32 %v8084, %v8419
        %v8421 = vpop.f32.mrf.mxu0
        %v8422 = vadd.f32 %v8088, %v8421
        %8423 = vdwg.mxu0
        %8424 = vmatprep.subr.mxu0 0.0
        %8425 = vmatpush1.msra.mxu0 0.0
        %8426 = vmatprep.subr.mxu0 0.0
        %8427 = vmatpush1.msra.mxu0 0.0
        %8428 = vmatprep.subr.mxu0 0.0
        %8429 = vmatpush1.msra.mxu0 0.0
        %8430 = vmatprep.subr.mxu0 0.0
        %8431 = vmatpush1.msra.mxu0 0.0
        %8432 = vmatprep.subr.mxu0 0.0
        %8433 = vmatpush1.msra.mxu0 0.0
        %8434 = vmatprep.subr.mxu0 0.0
        %8435 = vmatpush1.msra.mxu0 0.0
        %8436 = vmatprep.subr.mxu0 0.0
        %8437 = vmatpush1.msra.mxu0 0.0
        %8438 = vmatprep.subr.mxu0 0.0
        %8439 = vmatpush1.msra.mxu0 0.0
        %8440 = vmatprep.subr.mxu0 0.0
        %8441 = vmatpush1.msra.mxu0 0.0
        %8442 = vmatprep.subr.mxu0 0.0
        %8443 = vmatpush1.msra.mxu0 0.0
        %8444 = vmatprep.subr.mxu0 0.0
        %8445 = vmatpush1.msra.mxu0 0.0
        %8446 = vmatprep.subr.mxu0 0.0
        %8447 = vmatpush1.msra.mxu0 0.0
        %8448 = vmatprep.subr.mxu0 %v8046
        %8449 = vmatpush1.msra.mxu0 %v8045
        %8450 = vmatprep.subr.mxu0 %v8030
        %8451 = vmatpush1.msra.mxu0 %v8029
        %8452 = vmatprep.subr.mxu0 %v8014
        %8453 = vmatpush1.msra.mxu0 %v8013
        %8454 = vmatprep.subr.mxu0 %v7998
        %8455 = vmatpush1.msra.mxu0 %v7997
        %8456 = vmatprep.subr.mxu0 0.0
        %8457 = vmatpush2.msra.mxu0 0.0
        %8458 = vmatprep.subr.mxu0 0.0
        %8459 = vmatpush2.msra.mxu0 0.0
        %8460 = vmatprep.subr.mxu0 0.0
        %8461 = vmatpush2.msra.mxu0 0.0
        %8462 = vmatprep.subr.mxu0 0.0
        %8463 = vmatpush2.msra.mxu0 0.0
        %8464 = vmatprep.subr.mxu0 0.0
        %8465 = vmatpush2.msra.mxu0 0.0
        %8466 = vmatprep.subr.mxu0 0.0
        %8467 = vmatpush2.msra.mxu0 0.0
        %8468 = vmatprep.subr.mxu0 0.0
        %8469 = vmatpush2.msra.mxu0 0.0
        %8470 = vmatprep.subr.mxu0 0.0
        %8471 = vmatpush2.msra.mxu0 0.0
        %8472 = vmatprep.subr.mxu0 0.0
        %8473 = vmatpush2.msra.mxu0 0.0
        %8474 = vmatprep.subr.mxu0 0.0
        %8475 = vmatpush2.msra.mxu0 0.0
        %8476 = vmatprep.subr.mxu0 0.0
        %8477 = vmatpush2.msra.mxu0 0.0
        %8478 = vmatprep.subr.mxu0 0.0
        %8479 = vmatpush2.msra.mxu0 0.0
        %8480 = vmatprep.subr.mxu0 0.0
        %8481 = vmatpush2.msra.mxu0 0.0
        %8482 = vmatprep.subr.mxu0 0.0
        %8483 = vmatpush2.msra.mxu0 0.0
        %8484 = vmatprep.subr.mxu0 0.0
        %8485 = vmatpush2.msra.mxu0 0.0
        %8486 = vmatprep.subr.mxu0 0.0
        %8487 = vmatpush2.msra.mxu0 0.0
        %8488 = vmatprep.mubr.f32.mxu0 0.0
        %8489 = vmatmul.mubr.f32.gmra.mxu0 %v8138
        %v8490 = vpop.f32.mrf.mxu0
        %v8491 = vadd.f32 %v8092, %v8490
        %v8492 = vpop.f32.mrf.mxu0
        %v8493 = vadd.f32 %v8096, %v8492
        %8494 = vdwg.mxu0
        %8495 = vmatprep.subr.mxu0 0.0
        %8496 = vmatpush1.msra.mxu0 0.0
        %8497 = vmatprep.subr.mxu0 0.0
        %8498 = vmatpush1.msra.mxu0 0.0
        %8499 = vmatprep.subr.mxu0 0.0
        %8500 = vmatpush1.msra.mxu0 0.0
        %8501 = vmatprep.subr.mxu0 0.0
        %8502 = vmatpush1.msra.mxu0 0.0
        %8503 = vmatprep.subr.mxu0 0.0
        %8504 = vmatpush1.msra.mxu0 0.0
        %8505 = vmatprep.subr.mxu0 0.0
        %8506 = vmatpush1.msra.mxu0 0.0
        %8507 = vmatprep.subr.mxu0 0.0
        %8508 = vmatpush1.msra.mxu0 0.0
        %8509 = vmatprep.subr.mxu0 0.0
        %8510 = vmatpush1.msra.mxu0 0.0
        %8511 = vmatprep.subr.mxu0 0.0
        %8512 = vmatpush1.msra.mxu0 0.0
        %8513 = vmatprep.subr.mxu0 0.0
        %8514 = vmatpush1.msra.mxu0 0.0
        %8515 = vmatprep.subr.mxu0 0.0
        %8516 = vmatpush1.msra.mxu0 0.0
        %8517 = vmatprep.subr.mxu0 0.0
        %8518 = vmatpush1.msra.mxu0 0.0
        %8519 = vmatprep.subr.mxu0 %v8048
        %8520 = vmatpush1.msra.mxu0 %v8047
        %8521 = vmatprep.subr.mxu0 %v8032
        %8522 = vmatpush1.msra.mxu0 %v8031
        %8523 = vmatprep.subr.mxu0 %v8016
        %8524 = vmatpush1.msra.mxu0 %v8015
        %8525 = vmatprep.subr.mxu0 %v8000
        %8526 = vmatpush1.msra.mxu0 %v7999
        %8527 = vmatprep.subr.mxu0 0.0
        %8528 = vmatpush2.msra.mxu0 0.0
        %8529 = vmatprep.subr.mxu0 0.0
        %8530 = vmatpush2.msra.mxu0 0.0
        %8531 = vmatprep.subr.mxu0 0.0
        %8532 = vmatpush2.msra.mxu0 0.0
        %8533 = vmatprep.subr.mxu0 0.0
        %8534 = vmatpush2.msra.mxu0 0.0
        %8535 = vmatprep.subr.mxu0 0.0
        %8536 = vmatpush2.msra.mxu0 0.0
        %8537 = vmatprep.subr.mxu0 0.0
        %8538 = vmatpush2.msra.mxu0 0.0
        %8539 = vmatprep.subr.mxu0 0.0
        %8540 = vmatpush2.msra.mxu0 0.0
        %8541 = vmatprep.subr.mxu0 0.0
        %8542 = vmatpush2.msra.mxu0 0.0
        %8543 = vmatprep.subr.mxu0 0.0
        %8544 = vmatpush2.msra.mxu0 0.0
        %8545 = vmatprep.subr.mxu0 0.0
        %8546 = vmatpush2.msra.mxu0 0.0
        %8547 = vmatprep.subr.mxu0 0.0
        %8548 = vmatpush2.msra.mxu0 0.0
        %8549 = vmatprep.subr.mxu0 0.0
        %8550 = vmatpush2.msra.mxu0 0.0
        %8551 = vmatprep.subr.mxu0 0.0
        %8552 = vmatpush2.msra.mxu0 0.0
        %8553 = vmatprep.subr.mxu0 0.0
        %8554 = vmatpush2.msra.mxu0 0.0
        %8555 = vmatprep.subr.mxu0 0.0
        %8556 = vmatpush2.msra.mxu0 0.0
        %8557 = vmatprep.subr.mxu0 0.0
        %8558 = vmatpush2.msra.mxu0 0.0
        %8559 = vmatprep.mubr.f32.mxu0 0.0
        %8560 = vmatmul.mubr.f32.gmra.mxu0 %v8138
        %v8561 = vpop.f32.mrf.mxu0
        %v8562 = vadd.f32 %v8100, %v8561
        %v8563 = vpop.f32.mrf.mxu0
        %v8564 = vadd.f32 %v8104, %v8563
        %8565 = vdwg.mxu0
        %8566 = vmatprep.subr.mxu0 0.0
        %8567 = vmatpush1.msra.mxu0 0.0
        %8568 = vmatprep.subr.mxu0 0.0
        %8569 = vmatpush1.msra.mxu0 0.0
        %8570 = vmatprep.subr.mxu0 0.0
        %8571 = vmatpush1.msra.mxu0 0.0
        %8572 = vmatprep.subr.mxu0 0.0
        %8573 = vmatpush1.msra.mxu0 0.0
        %8574 = vmatprep.subr.mxu0 0.0
        %8575 = vmatpush1.msra.mxu0 0.0
        %8576 = vmatprep.subr.mxu0 0.0
        %8577 = vmatpush1.msra.mxu0 0.0
        %8578 = vmatprep.subr.mxu0 0.0
        %8579 = vmatpush1.msra.mxu0 0.0
        %8580 = vmatprep.subr.mxu0 0.0
        %8581 = vmatpush1.msra.mxu0 0.0
        %8582 = vmatprep.subr.mxu0 0.0
        %8583 = vmatpush1.msra.mxu0 0.0
        %8584 = vmatprep.subr.mxu0 0.0
        %8585 = vmatpush1.msra.mxu0 0.0
        %8586 = vmatprep.subr.mxu0 0.0
        %8587 = vmatpush1.msra.mxu0 0.0
        %8588 = vmatprep.subr.mxu0 0.0
        %8589 = vmatpush1.msra.mxu0 0.0
        %8590 = vmatprep.subr.mxu0 %v8050
        %8591 = vmatpush1.msra.mxu0 %v8049
        %8592 = vmatprep.subr.mxu0 %v8034
        %8593 = vmatpush1.msra.mxu0 %v8033
        %8594 = vmatprep.subr.mxu0 %v8018
        %8595 = vmatpush1.msra.mxu0 %v8017
        %8596 = vmatprep.subr.mxu0 %v8002
        %8597 = vmatpush1.msra.mxu0 %v8001
        %8598 = vmatprep.subr.mxu0 0.0
        %8599 = vmatpush2.msra.mxu0 0.0
        %8600 = vmatprep.subr.mxu0 0.0
        %8601 = vmatpush2.msra.mxu0 0.0
        %8602 = vmatprep.subr.mxu0 0.0
        %8603 = vmatpush2.msra.mxu0 0.0
        %8604 = vmatprep.subr.mxu0 0.0
        %8605 = vmatpush2.msra.mxu0 0.0
        %8606 = vmatprep.subr.mxu0 0.0
        %8607 = vmatpush2.msra.mxu0 0.0
        %8608 = vmatprep.subr.mxu0 0.0
        %8609 = vmatpush2.msra.mxu0 0.0
        %8610 = vmatprep.subr.mxu0 0.0
        %8611 = vmatpush2.msra.mxu0 0.0
        %8612 = vmatprep.subr.mxu0 0.0
        %8613 = vmatpush2.msra.mxu0 0.0
        %8614 = vmatprep.subr.mxu0 0.0
        %8615 = vmatpush2.msra.mxu0 0.0
        %8616 = vmatprep.subr.mxu0 0.0
        %8617 = vmatpush2.msra.mxu0 0.0
        %8618 = vmatprep.subr.mxu0 0.0
        %8619 = vmatpush2.msra.mxu0 0.0
        %8620 = vmatprep.subr.mxu0 0.0
        %8621 = vmatpush2.msra.mxu0 0.0
        %8622 = vmatprep.subr.mxu0 0.0
        %8623 = vmatpush2.msra.mxu0 0.0
        %8624 = vmatprep.subr.mxu0 0.0
        %8625 = vmatpush2.msra.mxu0 0.0
        %8626 = vmatprep.subr.mxu0 0.0
        %8627 = vmatpush2.msra.mxu0 0.0
        %8628 = vmatprep.subr.mxu0 0.0
        %8629 = vmatpush2.msra.mxu0 0.0
        %8630 = vmatprep.mubr.f32.mxu0 0.0
        %8631 = vmatmul.mubr.f32.gmra.mxu0 %v8138
        %v8632 = vpop.f32.mrf.mxu0
        %v8633 = vadd.f32 %v8108, %v8632
        %v8634 = vpop.f32.mrf.mxu0
        %v8635 = vadd.f32 %v8112, %v8634
        %8636 = vdwg.mxu0
        %8637 = vmatprep.subr.mxu0 0.0
        %8638 = vmatpush1.msra.mxu0 0.0
        %8639 = vmatprep.subr.mxu0 0.0
        %8640 = vmatpush1.msra.mxu0 0.0
        %8641 = vmatprep.subr.mxu0 0.0
        %8642 = vmatpush1.msra.mxu0 0.0
        %8643 = vmatprep.subr.mxu0 0.0
        %8644 = vmatpush1.msra.mxu0 0.0
        %8645 = vmatprep.subr.mxu0 0.0
        %8646 = vmatpush1.msra.mxu0 0.0
        %8647 = vmatprep.subr.mxu0 0.0
        %8648 = vmatpush1.msra.mxu0 0.0
        %8649 = vmatprep.subr.mxu0 0.0
        %8650 = vmatpush1.msra.mxu0 0.0
        %8651 = vmatprep.subr.mxu0 0.0
        %8652 = vmatpush1.msra.mxu0 0.0
        %8653 = vmatprep.subr.mxu0 0.0
        %8654 = vmatpush1.msra.mxu0 0.0
        %8655 = vmatprep.subr.mxu0 0.0
        %8656 = vmatpush1.msra.mxu0 0.0
        %8657 = vmatprep.subr.mxu0 0.0
        %8658 = vmatpush1.msra.mxu0 0.0
        %8659 = vmatprep.subr.mxu0 0.0
        %8660 = vmatpush1.msra.mxu0 0.0
        %8661 = vmatprep.subr.mxu0 %v8052
        %8662 = vmatpush1.msra.mxu0 %v8051
        %8663 = vmatprep.subr.mxu0 %v8036
        %8664 = vmatpush1.msra.mxu0 %v8035
        %8665 = vmatprep.subr.mxu0 %v8020
        %8666 = vmatpush1.msra.mxu0 %v8019
        %8667 = vmatprep.subr.mxu0 %v8004
        %8668 = vmatpush1.msra.mxu0 %v8003
        %8669 = vmatprep.subr.mxu0 0.0
        %8670 = vmatpush2.msra.mxu0 0.0
        %8671 = vmatprep.subr.mxu0 0.0
        %8672 = vmatpush2.msra.mxu0 0.0
        %8673 = vmatprep.subr.mxu0 0.0
        %8674 = vmatpush2.msra.mxu0 0.0
        %8675 = vmatprep.subr.mxu0 0.0
        %8676 = vmatpush2.msra.mxu0 0.0
        %8677 = vmatprep.subr.mxu0 0.0
        %8678 = vmatpush2.msra.mxu0 0.0
        %8679 = vmatprep.subr.mxu0 0.0
        %8680 = vmatpush2.msra.mxu0 0.0
        %8681 = vmatprep.subr.mxu0 0.0
        %8682 = vmatpush2.msra.mxu0 0.0
        %8683 = vmatprep.subr.mxu0 0.0
        %8684 = vmatpush2.msra.mxu0 0.0
        %8685 = vmatprep.subr.mxu0 0.0
        %8686 = vmatpush2.msra.mxu0 0.0
        %8687 = vmatprep.subr.mxu0 0.0
        %8688 = vmatpush2.msra.mxu0 0.0
        %8689 = vmatprep.subr.mxu0 0.0
        %8690 = vmatpush2.msra.mxu0 0.0
        %8691 = vmatprep.subr.mxu0 0.0
        %8692 = vmatpush2.msra.mxu0 0.0
        %8693 = vmatprep.subr.mxu0 0.0
        %8694 = vmatpush2.msra.mxu0 0.0
        %8695 = vmatprep.subr.mxu0 0.0
        %8696 = vmatpush2.msra.mxu0 0.0
        %8697 = vmatprep.subr.mxu0 0.0
        %8698 = vmatpush2.msra.mxu0 0.0
        %8699 = vmatprep.subr.mxu0 0.0
        %8700 = vmatpush2.msra.mxu0 0.0
        %8701 = vmatprep.mubr.f32.mxu0 0.0
        %8702 = vmatmul.mubr.f32.gmra.mxu0 %v8138
        %v8703 = vpop.f32.mrf.mxu0
        %v8704 = vadd.f32 %v8116, %v8703
        %v8705 = vpop.f32.mrf.mxu0
        %v8706 = vadd.f32 %v8120, %v8705
        %8707 = vdwg.mxu0
        %v8708 = vmax.f32 %v8207, 0.0
        %v8709 = vmax.f32 %v8209, 0.0
        %v8710 = vmax.f32 %v8278, 0.0
        %v8711 = vmax.f32 %v8280, 0.0
        %v8712 = vmax.f32 %v8349, 0.0
        %v8713 = vmax.f32 %v8351, 0.0
        %v8714 = vmax.f32 %v8420, 0.0
        %v8715 = vmax.f32 %v8422, 0.0
        %v8716 = vmax.f32 %v8491, 0.0
        %v8717 = vmax.f32 %v8493, 0.0
        %v8718 = vmax.f32 %v8562, 0.0
        %v8719 = vmax.f32 %v8564, 0.0
        %v8720 = vmax.f32 %v8633, 0.0
        %v8721 = vmax.f32 %v8635, 0.0
        %v8722 = vmax.f32 %v8704, 0.0
        %v8723 = vmax.f32 %v8706, 0.0
        %v8724 = vld [vmem:[%s41] sm:$0xff]
        %v8725 = vld [vmem:[%s41 + $0x8] sm:$0xff]
        %v8726 = vld [vmem:[%s41 + $0x10] sm:$0xff]
        %v8727 = vld [vmem:[%s41 + $0x18] sm:$0xff]
        %v8728 = vld [vmem:[%s41 + $0x20] sm:$0xff]
        %v8729 = vld [vmem:[%s41 + $0x28] sm:$0xff]
        %v8730 = vld [vmem:[%s41 + $0x30] sm:$0xff]
        %v8731 = vld [vmem:[%s41 + $0x38] sm:$0xff]
        %v8732 = vld [vmem:[%s41 + $0x40] sm:$0xff]
        %v8733 = vld [vmem:[%s41 + $0x48] sm:$0xff]
        %v8734 = vld [vmem:[%s41 + $0x50] sm:$0xff]
        %v8735 = vld [vmem:[%s41 + $0x58] sm:$0xff]
        %v8736 = vld [vmem:[%s41 + $0x60] sm:$0xff]
        %v8737 = vld [vmem:[%s41 + $0x68] sm:$0xff]
        %v8738 = vld [vmem:[%s41 + $0x70] sm:$0xff]
        %v8739 = vld [vmem:[%s41 + $0x78] sm:$0xff]
        %v8740 = vld [vmem:[%s41 + $0x80] sm:$0xff]
        %v8741 = vld [vmem:[%s41 + $0x88] sm:$0xff]
        %v8742 = vld [vmem:[%s41 + $0x90] sm:$0xff]
        %v8743 = vld [vmem:[%s41 + $0x98] sm:$0xff]
        %v8744 = vld [vmem:[%s41 + $0xa0] sm:$0xff]
        %v8745 = vld [vmem:[%s41 + $0xa8] sm:$0xff]
        %v8746 = vld [vmem:[%s41 + $0xb0] sm:$0xff]
        %v8747 = vld [vmem:[%s41 + $0xb8] sm:$0xff]
        %v8748 = vld [vmem:[%s41 + $0xc0] sm:$0xff]
        %v8749 = vld [vmem:[%s41 + $0xc8] sm:$0xff]
        %v8750 = vld [vmem:[%s41 + $0xd0] sm:$0xff]
        %v8751 = vld [vmem:[%s41 + $0xd8] sm:$0xff]
        %v8752 = vld [vmem:[%s41 + $0xe0] sm:$0xff]
        %v8753 = vld [vmem:[%s41 + $0xe8] sm:$0xff]
        %v8754 = vld [vmem:[%s41 + $0xf0] sm:$0xff]
        %v8755 = vld [vmem:[%s41 + $0xf8] sm:$0xff]
        %v8756 = vld [vmem:[%s41 + $0x100] sm:$0xff]
        %v8757 = vld [vmem:[%s41 + $0x108] sm:$0xff]
        %v8758 = vld [vmem:[%s41 + $0x110] sm:$0xff]
        %v8759 = vld [vmem:[%s41 + $0x118] sm:$0xff]
        %v8760 = vld [vmem:[%s41 + $0x120] sm:$0xff]
        %v8761 = vld [vmem:[%s41 + $0x128] sm:$0xff]
        %v8762 = vld [vmem:[%s41 + $0x130] sm:$0xff]
        %v8763 = vld [vmem:[%s41 + $0x138] sm:$0xff]
        %v8764 = vld [vmem:[%s41 + $0x140] sm:$0xff]
        %v8765 = vld [vmem:[%s41 + $0x148] sm:$0xff]
        %v8766 = vld [vmem:[%s41 + $0x150] sm:$0xff]
        %v8767 = vld [vmem:[%s41 + $0x158] sm:$0xff]
        %v8768 = vld [vmem:[%s41 + $0x160] sm:$0xff]
        %v8769 = vld [vmem:[%s41 + $0x168] sm:$0xff]
        %v8770 = vld [vmem:[%s41 + $0x170] sm:$0xff]
        %v8771 = vld [vmem:[%s41 + $0x178] sm:$0xff]
        %v8772 = vld [vmem:[%s41 + $0x180] sm:$0xff]
        %v8773 = vld [vmem:[%s41 + $0x188] sm:$0xff]
        %v8774 = vld [vmem:[%s41 + $0x190] sm:$0xff]
        %v8775 = vld [vmem:[%s41 + $0x198] sm:$0xff]
        %v8776 = vld [vmem:[%s41 + $0x1a0] sm:$0xff]
        %v8777 = vld [vmem:[%s41 + $0x1a8] sm:$0xff]
        %v8778 = vld [vmem:[%s41 + $0x1b0] sm:$0xff]
        %v8779 = vld [vmem:[%s41 + $0x1b8] sm:$0xff]
        %v8780 = vld [vmem:[%s41 + $0x1c0] sm:$0xff]
        %v8781 = vld [vmem:[%s41 + $0x1c8] sm:$0xff]
        %v8782 = vld [vmem:[%s41 + $0x1d0] sm:$0xff]
        %v8783 = vld [vmem:[%s41 + $0x1d8] sm:$0xff]
        %v8784 = vld [vmem:[%s41 + $0x1e0] sm:$0xff]
        %v8785 = vld [vmem:[%s41 + $0x1e8] sm:$0xff]
        %v8786 = vld [vmem:[%s41 + $0x1f0] sm:$0xff]
        %v8787 = vld [vmem:[%s41 + $0x1f8] sm:$0xff]
        %v8788 = vld [vmem:[%s41 + $0x200] sm:$0xff]
        %v8789 = vld [vmem:[%s41 + $0x208] sm:$0xff]
        %v8790 = vld [vmem:[%s41 + $0x210] sm:$0xff]
        %v8791 = vld [vmem:[%s41 + $0x218] sm:$0xff]
        %v8792 = vld [vmem:[%s41 + $0x220] sm:$0xff]
        %v8793 = vld [vmem:[%s41 + $0x228] sm:$0xff]
        %v8794 = vld [vmem:[%s41 + $0x230] sm:$0xff]
        %v8795 = vld [vmem:[%s41 + $0x238] sm:$0xff]
        %v8796 = vld [vmem:[%s41 + $0x240] sm:$0xff]
        %v8797 = vld [vmem:[%s41 + $0x248] sm:$0xff]
        %v8798 = vld [vmem:[%s41 + $0x250] sm:$0xff]
        %v8799 = vld [vmem:[%s41 + $0x258] sm:$0xff]
        %v8800 = vld [vmem:[%s41 + $0x260] sm:$0xff]
        %v8801 = vld [vmem:[%s41 + $0x268] sm:$0xff]
        %v8802 = vld [vmem:[%s41 + $0x270] sm:$0xff]
        %v8803 = vld [vmem:[%s41 + $0x278] sm:$0xff]
        %v8804 = vld [vmem:[%s41 + $0x280] sm:$0xff]
        %v8805 = vld [vmem:[%s41 + $0x288] sm:$0xff]
        %v8806 = vld [vmem:[%s41 + $0x290] sm:$0xff]
        %v8807 = vld [vmem:[%s41 + $0x298] sm:$0xff]
        %v8808 = vld [vmem:[%s41 + $0x2a0] sm:$0xff]
        %v8809 = vld [vmem:[%s41 + $0x2a8] sm:$0xff]
        %v8810 = vld [vmem:[%s41 + $0x2b0] sm:$0xff]
        %v8811 = vld [vmem:[%s41 + $0x2b8] sm:$0xff]
        %v8812 = vld [vmem:[%s41 + $0x2c0] sm:$0xff]
        %v8813 = vld [vmem:[%s41 + $0x2c8] sm:$0xff]
        %v8814 = vld [vmem:[%s41 + $0x2d0] sm:$0xff]
        %v8815 = vld [vmem:[%s41 + $0x2d8] sm:$0xff]
        %v8816 = vld [vmem:[%s41 + $0x2e0] sm:$0xff]
        %v8817 = vld [vmem:[%s41 + $0x2e8] sm:$0xff]
        %v8818 = vld [vmem:[%s41 + $0x2f0] sm:$0xff]
        %v8819 = vld [vmem:[%s41 + $0x2f8] sm:$0xff]
        %v8820 = vld [vmem:[%s41 + $0x300] sm:$0xff]
        %v8821 = vld [vmem:[%s41 + $0x308] sm:$0xff]
        %v8822 = vld [vmem:[%s41 + $0x310] sm:$0xff]
        %v8823 = vld [vmem:[%s41 + $0x318] sm:$0xff]
        %v8824 = vld [vmem:[%s41 + $0x320] sm:$0xff]
        %v8825 = vld [vmem:[%s41 + $0x328] sm:$0xff]
        %v8826 = vld [vmem:[%s41 + $0x330] sm:$0xff]
        %v8827 = vld [vmem:[%s41 + $0x338] sm:$0xff]
        %v8828 = vld [vmem:[%s41 + $0x340] sm:$0xff]
        %v8829 = vld [vmem:[%s41 + $0x348] sm:$0xff]
        %v8830 = vld [vmem:[%s41 + $0x350] sm:$0xff]
        %v8831 = vld [vmem:[%s41 + $0x358] sm:$0xff]
        %v8832 = vld [vmem:[%s41 + $0x360] sm:$0xff]
        %v8833 = vld [vmem:[%s41 + $0x368] sm:$0xff]
        %v8834 = vld [vmem:[%s41 + $0x370] sm:$0xff]
        %v8835 = vld [vmem:[%s41 + $0x378] sm:$0xff]
        %v8836 = vld [vmem:[%s41 + $0x380] sm:$0xff]
        %v8837 = vld [vmem:[%s41 + $0x388] sm:$0xff]
        %v8838 = vld [vmem:[%s41 + $0x390] sm:$0xff]
        %v8839 = vld [vmem:[%s41 + $0x398] sm:$0xff]
        %v8840 = vld [vmem:[%s41 + $0x3a0] sm:$0xff]
        %v8841 = vld [vmem:[%s41 + $0x3a8] sm:$0xff]
        %v8842 = vld [vmem:[%s41 + $0x3b0] sm:$0xff]
        %v8843 = vld [vmem:[%s41 + $0x3b8] sm:$0xff]
        %v8844 = vld [vmem:[%s41 + $0x3c0] sm:$0xff]
        %v8845 = vld [vmem:[%s41 + $0x3c8] sm:$0xff]
        %v8846 = vld [vmem:[%s41 + $0x3d0] sm:$0xff]
        %v8847 = vld [vmem:[%s41 + $0x3d8] sm:$0xff]
        %v8848 = vld [vmem:[%s41 + $0x3e0] sm:$0xff]
        %v8849 = vld [vmem:[%s41 + $0x3e8] sm:$0xff]
        %v8850 = vld [vmem:[%s41 + $0x3f0] sm:$0xff]
        %v8851 = vld [vmem:[%s41 + $0x3f8] sm:$0xff]
        %v8852 = vld [vmem:[%s41 + $0x400] sm:$0xff]
        %v8853 = vld [vmem:[%s41 + $0x408] sm:$0xff]
        %v8854 = vld [vmem:[%s41 + $0x410] sm:$0xff]
        %v8855 = vld [vmem:[%s41 + $0x418] sm:$0xff]
        %v8856 = vld [vmem:[%s41 + $0x420] sm:$0xff]
        %v8857 = vld [vmem:[%s41 + $0x428] sm:$0xff]
        %v8858 = vld [vmem:[%s41 + $0x430] sm:$0xff]
        %v8859 = vld [vmem:[%s41 + $0x438] sm:$0xff]
        %v8860 = vld [vmem:[%s41 + $0x440] sm:$0xff]
        %v8861 = vld [vmem:[%s41 + $0x448] sm:$0xff]
        %v8862 = vld [vmem:[%s41 + $0x450] sm:$0xff]
        %v8863 = vld [vmem:[%s41 + $0x458] sm:$0xff]
        %v8864 = vld [vmem:[%s41 + $0x460] sm:$0xff]
        %v8865 = vld [vmem:[%s41 + $0x468] sm:$0xff]
        %v8866 = vld [vmem:[%s41 + $0x470] sm:$0xff]
        %v8867 = vld [vmem:[%s41 + $0x478] sm:$0xff]
        %v8868 = vld [vmem:[%s41 + $0x480] sm:$0xff]
        %v8869 = vld [vmem:[%s41 + $0x488] sm:$0xff]
        %v8870 = vld [vmem:[%s41 + $0x490] sm:$0xff]
        %v8871 = vld [vmem:[%s41 + $0x498] sm:$0xff]
        %v8872 = vld [vmem:[%s41 + $0x4a0] sm:$0xff]
        %v8873 = vld [vmem:[%s41 + $0x4a8] sm:$0xff]
        %v8874 = vld [vmem:[%s41 + $0x4b0] sm:$0xff]
        %v8875 = vld [vmem:[%s41 + $0x4b8] sm:$0xff]
        %v8876 = vld [vmem:[%s41 + $0x4c0] sm:$0xff]
        %v8877 = vld [vmem:[%s41 + $0x4c8] sm:$0xff]
        %v8878 = vld [vmem:[%s41 + $0x4d0] sm:$0xff]
        %v8879 = vld [vmem:[%s41 + $0x4d8] sm:$0xff]
        %v8880 = vld [vmem:[%s41 + $0x4e0] sm:$0xff]
        %v8881 = vld [vmem:[%s41 + $0x4e8] sm:$0xff]
        %v8882 = vld [vmem:[%s41 + $0x4f0] sm:$0xff]
        %v8883 = vld [vmem:[%s41 + $0x4f8] sm:$0xff]
        %v8884 = vld [vmem:[%s41 + $0x500] sm:$0xff]
        %v8885 = vld [vmem:[%s41 + $0x508] sm:$0xff]
        %v8886 = vld [vmem:[%s41 + $0x510] sm:$0xff]
        %v8887 = vld [vmem:[%s41 + $0x518] sm:$0xff]
        %v8888 = vld [vmem:[%s41 + $0x520] sm:$0xff]
        %v8889 = vld [vmem:[%s41 + $0x528] sm:$0xff]
        %v8890 = vld [vmem:[%s41 + $0x530] sm:$0xff]
        %v8891 = vld [vmem:[%s41 + $0x538] sm:$0xff]
        %v8892 = vld [vmem:[%s41 + $0x540] sm:$0xff]
        %v8893 = vld [vmem:[%s41 + $0x548] sm:$0xff]
        %v8894 = vld [vmem:[%s41 + $0x550] sm:$0xff]
        %v8895 = vld [vmem:[%s41 + $0x558] sm:$0xff]
        %v8896 = vld [vmem:[%s41 + $0x560] sm:$0xff]
        %v8897 = vld [vmem:[%s41 + $0x568] sm:$0xff]
        %v8898 = vld [vmem:[%s41 + $0x570] sm:$0xff]
        %v8899 = vld [vmem:[%s41 + $0x578] sm:$0xff]
        %v8900 = vld [vmem:[%s41 + $0x580] sm:$0xff]
        %v8901 = vld [vmem:[%s41 + $0x588] sm:$0xff]
        %v8902 = vld [vmem:[%s41 + $0x590] sm:$0xff]
        %v8903 = vld [vmem:[%s41 + $0x598] sm:$0xff]
        %v8904 = vld [vmem:[%s41 + $0x5a0] sm:$0xff]
        %v8905 = vld [vmem:[%s41 + $0x5a8] sm:$0xff]
        %v8906 = vld [vmem:[%s41 + $0x5b0] sm:$0xff]
        %v8907 = vld [vmem:[%s41 + $0x5b8] sm:$0xff]
        %v8908 = vld [vmem:[%s41 + $0x5c0] sm:$0xff]
        %v8909 = vld [vmem:[%s41 + $0x5c8] sm:$0xff]
        %v8910 = vld [vmem:[%s41 + $0x5d0] sm:$0xff]
        %v8911 = vld [vmem:[%s41 + $0x5d8] sm:$0xff]
        %v8912 = vld [vmem:[%s41 + $0x5e0] sm:$0xff]
        %v8913 = vld [vmem:[%s41 + $0x5e8] sm:$0xff]
        %v8914 = vld [vmem:[%s41 + $0x5f0] sm:$0xff]
        %v8915 = vld [vmem:[%s41 + $0x5f8] sm:$0xff]
        %v8916 = vld [vmem:[%s41 + $0x600] sm:$0xff]
        %v8917 = vld [vmem:[%s41 + $0x608] sm:$0xff]
        %v8918 = vld [vmem:[%s41 + $0x610] sm:$0xff]
        %v8919 = vld [vmem:[%s41 + $0x618] sm:$0xff]
        %v8920 = vld [vmem:[%s41 + $0x620] sm:$0xff]
        %v8921 = vld [vmem:[%s41 + $0x628] sm:$0xff]
        %v8922 = vld [vmem:[%s41 + $0x630] sm:$0xff]
        %v8923 = vld [vmem:[%s41 + $0x638] sm:$0xff]
        %v8924 = vld [vmem:[%s41 + $0x640] sm:$0xff]
        %v8925 = vld [vmem:[%s41 + $0x648] sm:$0xff]
        %v8926 = vld [vmem:[%s41 + $0x650] sm:$0xff]
        %v8927 = vld [vmem:[%s41 + $0x658] sm:$0xff]
        %v8928 = vld [vmem:[%s41 + $0x660] sm:$0xff]
        %v8929 = vld [vmem:[%s41 + $0x668] sm:$0xff]
        %v8930 = vld [vmem:[%s41 + $0x670] sm:$0xff]
        %v8931 = vld [vmem:[%s41 + $0x678] sm:$0xff]
        %v8932 = vld [vmem:[%s41 + $0x680] sm:$0xff]
        %v8933 = vld [vmem:[%s41 + $0x688] sm:$0xff]
        %v8934 = vld [vmem:[%s41 + $0x690] sm:$0xff]
        %v8935 = vld [vmem:[%s41 + $0x698] sm:$0xff]
        %v8936 = vld [vmem:[%s41 + $0x6a0] sm:$0xff]
        %v8937 = vld [vmem:[%s41 + $0x6a8] sm:$0xff]
        %v8938 = vld [vmem:[%s41 + $0x6b0] sm:$0xff]
        %v8939 = vld [vmem:[%s41 + $0x6b8] sm:$0xff]
        %v8940 = vld [vmem:[%s41 + $0x6c0] sm:$0xff]
        %v8941 = vld [vmem:[%s41 + $0x6c8] sm:$0xff]
        %v8942 = vld [vmem:[%s41 + $0x6d0] sm:$0xff]
        %v8943 = vld [vmem:[%s41 + $0x6d8] sm:$0xff]
        %v8944 = vld [vmem:[%s41 + $0x6e0] sm:$0xff]
        %v8945 = vld [vmem:[%s41 + $0x6e8] sm:$0xff]
        %v8946 = vld [vmem:[%s41 + $0x6f0] sm:$0xff]
        %v8947 = vld [vmem:[%s41 + $0x6f8] sm:$0xff]
        %v8948 = vld [vmem:[%s41 + $0x700] sm:$0xff]
        %v8949 = vld [vmem:[%s41 + $0x708] sm:$0xff]
        %v8950 = vld [vmem:[%s41 + $0x710] sm:$0xff]
        %v8951 = vld [vmem:[%s41 + $0x718] sm:$0xff]
        %v8952 = vld [vmem:[%s41 + $0x720] sm:$0xff]
        %v8953 = vld [vmem:[%s41 + $0x728] sm:$0xff]
        %v8954 = vld [vmem:[%s41 + $0x730] sm:$0xff]
        %v8955 = vld [vmem:[%s41 + $0x738] sm:$0xff]
        %v8956 = vld [vmem:[%s41 + $0x740] sm:$0xff]
        %v8957 = vld [vmem:[%s41 + $0x748] sm:$0xff]
        %v8958 = vld [vmem:[%s41 + $0x750] sm:$0xff]
        %v8959 = vld [vmem:[%s41 + $0x758] sm:$0xff]
        %v8960 = vld [vmem:[%s41 + $0x760] sm:$0xff]
        %v8961 = vld [vmem:[%s41 + $0x768] sm:$0xff]
        %v8962 = vld [vmem:[%s41 + $0x770] sm:$0xff]
        %v8963 = vld [vmem:[%s41 + $0x778] sm:$0xff]
        %v8964 = vld [vmem:[%s41 + $0x780] sm:$0xff]
        %v8965 = vld [vmem:[%s41 + $0x788] sm:$0xff]
        %v8966 = vld [vmem:[%s41 + $0x790] sm:$0xff]
        %v8967 = vld [vmem:[%s41 + $0x798] sm:$0xff]
        %v8968 = vld [vmem:[%s41 + $0x7a0] sm:$0xff]
        %v8969 = vld [vmem:[%s41 + $0x7a8] sm:$0xff]
        %v8970 = vld [vmem:[%s41 + $0x7b0] sm:$0xff]
        %v8971 = vld [vmem:[%s41 + $0x7b8] sm:$0xff]
        %v8972 = vld [vmem:[%s41 + $0x7c0] sm:$0xff]
        %v8973 = vld [vmem:[%s41 + $0x7c8] sm:$0xff]
        %v8974 = vld [vmem:[%s41 + $0x7d0] sm:$0xff]
        %v8975 = vld [vmem:[%s41 + $0x7d8] sm:$0xff]
        %v8976 = vld [vmem:[%s41 + $0x7e0] sm:$0xff]
        %v8977 = vld [vmem:[%s41 + $0x7e8] sm:$0xff]
        %v8978 = vld [vmem:[%s41 + $0x7f0] sm:$0xff]
        %v8979 = vld [vmem:[%s41 + $0x7f8] sm:$0xff]
        %v8980 = vld [vmem:[%s5] sm:$0x1]
        %8981 = vmatprep.subr.mxu0 0.0
        %8982 = vmatpush1.msra.mxu0 %v8739
        %8983 = vmatprep.subr.mxu0 0.0
        %8984 = vmatpush1.msra.mxu0 %v8738
        %8985 = vmatprep.subr.mxu0 0.0
        %8986 = vmatpush1.msra.mxu0 %v8737
        %8987 = vmatprep.subr.mxu0 0.0
        %8988 = vmatpush1.msra.mxu0 %v8736
        %8989 = vmatprep.subr.mxu0 0.0
        %8990 = vmatpush1.msra.mxu0 %v8735
        %8991 = vmatprep.subr.mxu0 0.0
        %8992 = vmatpush1.msra.mxu0 %v8734
        %8993 = vmatprep.subr.mxu0 0.0
        %8994 = vmatpush1.msra.mxu0 %v8733
        %8995 = vmatprep.subr.mxu0 0.0
        %8996 = vmatpush1.msra.mxu0 %v8732
        %8997 = vmatprep.subr.mxu0 0.0
        %8998 = vmatpush1.msra.mxu0 %v8731
        %8999 = vmatprep.subr.mxu0 0.0
        %9000 = vmatpush1.msra.mxu0 %v8730
        %9001 = vmatprep.subr.mxu0 0.0
        %9002 = vmatpush1.msra.mxu0 %v8729
        %9003 = vmatprep.subr.mxu0 0.0
        %9004 = vmatpush1.msra.mxu0 %v8728
        %9005 = vmatprep.subr.mxu0 0.0
        %9006 = vmatpush1.msra.mxu0 %v8727
        %9007 = vmatprep.subr.mxu0 0.0
        %9008 = vmatpush1.msra.mxu0 %v8726
        %9009 = vmatprep.subr.mxu0 0.0
        %9010 = vmatpush1.msra.mxu0 %v8725
        %9011 = vmatprep.subr.mxu0 0.0
        %9012 = vmatpush1.msra.mxu0 %v8724
        %9013 = vmatprep.subr.mxu0 0.0
        %9014 = vmatpush2.msra.mxu0 %v8755
        %9015 = vmatprep.subr.mxu0 0.0
        %9016 = vmatpush2.msra.mxu0 %v8754
        %9017 = vmatprep.subr.mxu0 0.0
        %9018 = vmatpush2.msra.mxu0 %v8753
        %9019 = vmatprep.subr.mxu0 0.0
        %9020 = vmatpush2.msra.mxu0 %v8752
        %9021 = vmatprep.subr.mxu0 0.0
        %9022 = vmatpush2.msra.mxu0 %v8751
        %9023 = vmatprep.subr.mxu0 0.0
        %9024 = vmatpush2.msra.mxu0 %v8750
        %9025 = vmatprep.subr.mxu0 0.0
        %9026 = vmatpush2.msra.mxu0 %v8749
        %9027 = vmatprep.subr.mxu0 0.0
        %9028 = vmatpush2.msra.mxu0 %v8748
        %9029 = vmatprep.subr.mxu0 0.0
        %9030 = vmatpush2.msra.mxu0 %v8747
        %9031 = vmatprep.subr.mxu0 0.0
        %9032 = vmatpush2.msra.mxu0 %v8746
        %9033 = vmatprep.subr.mxu0 0.0
        %9034 = vmatpush2.msra.mxu0 %v8745
        %9035 = vmatprep.subr.mxu0 0.0
        %9036 = vmatpush2.msra.mxu0 %v8744
        %9037 = vmatprep.subr.mxu0 0.0
        %9038 = vmatpush2.msra.mxu0 %v8743
        %9039 = vmatprep.subr.mxu0 0.0
        %9040 = vmatpush2.msra.mxu0 %v8742
        %9041 = vmatprep.subr.mxu0 0.0
        %9042 = vmatpush2.msra.mxu0 %v8741
        %9043 = vmatprep.subr.mxu0 0.0
        %9044 = vmatpush2.msra.mxu0 %v8740
        %9045 = vmatprep.mubr.f32.mxu0 %v8709
        %9046 = vmatmul.mubr.f32.gmra.mxu0 %v8708
        %v9047 = vpop.f32.mrf.mxu0
        %v9048 = vadd.f32 %v8980, %v9047
        %v9049 = vpop.f32.mrf.mxu0
        %9050 = vdwg.mxu0
        %9051 = vmatprep.subr.mxu0 0.0
        %9052 = vmatpush1.msra.mxu0 %v8771
        %9053 = vmatprep.subr.mxu0 0.0
        %9054 = vmatpush1.msra.mxu0 %v8770
        %9055 = vmatprep.subr.mxu0 0.0
        %9056 = vmatpush1.msra.mxu0 %v8769
        %9057 = vmatprep.subr.mxu0 0.0
        %9058 = vmatpush1.msra.mxu0 %v8768
        %9059 = vmatprep.subr.mxu0 0.0
        %9060 = vmatpush1.msra.mxu0 %v8767
        %9061 = vmatprep.subr.mxu0 0.0
        %9062 = vmatpush1.msra.mxu0 %v8766
        %9063 = vmatprep.subr.mxu0 0.0
        %9064 = vmatpush1.msra.mxu0 %v8765
        %9065 = vmatprep.subr.mxu0 0.0
        %9066 = vmatpush1.msra.mxu0 %v8764
        %9067 = vmatprep.subr.mxu0 0.0
        %9068 = vmatpush1.msra.mxu0 %v8763
        %9069 = vmatprep.subr.mxu0 0.0
        %9070 = vmatpush1.msra.mxu0 %v8762
        %9071 = vmatprep.subr.mxu0 0.0
        %9072 = vmatpush1.msra.mxu0 %v8761
        %9073 = vmatprep.subr.mxu0 0.0
        %9074 = vmatpush1.msra.mxu0 %v8760
        %9075 = vmatprep.subr.mxu0 0.0
        %9076 = vmatpush1.msra.mxu0 %v8759
        %9077 = vmatprep.subr.mxu0 0.0
        %9078 = vmatpush1.msra.mxu0 %v8758
        %9079 = vmatprep.subr.mxu0 0.0
        %9080 = vmatpush1.msra.mxu0 %v8757
        %9081 = vmatprep.subr.mxu0 0.0
        %9082 = vmatpush1.msra.mxu0 %v8756
        %9083 = vmatprep.subr.mxu0 0.0
        %9084 = vmatpush2.msra.mxu0 %v8787
        %9085 = vmatprep.subr.mxu0 0.0
        %9086 = vmatpush2.msra.mxu0 %v8786
        %9087 = vmatprep.subr.mxu0 0.0
        %9088 = vmatpush2.msra.mxu0 %v8785
        %9089 = vmatprep.subr.mxu0 0.0
        %9090 = vmatpush2.msra.mxu0 %v8784
        %9091 = vmatprep.subr.mxu0 0.0
        %9092 = vmatpush2.msra.mxu0 %v8783
        %9093 = vmatprep.subr.mxu0 0.0
        %9094 = vmatpush2.msra.mxu0 %v8782
        %9095 = vmatprep.subr.mxu0 0.0
        %9096 = vmatpush2.msra.mxu0 %v8781
        %9097 = vmatprep.subr.mxu0 0.0
        %9098 = vmatpush2.msra.mxu0 %v8780
        %9099 = vmatprep.subr.mxu0 0.0
        %9100 = vmatpush2.msra.mxu0 %v8779
        %9101 = vmatprep.subr.mxu0 0.0
        %9102 = vmatpush2.msra.mxu0 %v8778
        %9103 = vmatprep.subr.mxu0 0.0
        %9104 = vmatpush2.msra.mxu0 %v8777
        %9105 = vmatprep.subr.mxu0 0.0
        %9106 = vmatpush2.msra.mxu0 %v8776
        %9107 = vmatprep.subr.mxu0 0.0
        %9108 = vmatpush2.msra.mxu0 %v8775
        %9109 = vmatprep.subr.mxu0 0.0
        %9110 = vmatpush2.msra.mxu0 %v8774
        %9111 = vmatprep.subr.mxu0 0.0
        %9112 = vmatpush2.msra.mxu0 %v8773
        %9113 = vmatprep.subr.mxu0 0.0
        %9114 = vmatpush2.msra.mxu0 %v8772
        %9115 = vmatprep.mubr.f32.mxu0 %v8711
        %9116 = vmatmul.mubr.f32.gmra.mxu0 %v8710
        %v9117 = vpop.f32.mrf.mxu0
        %v9118 = vadd.f32 %v9048, %v9117
        %v9119 = vpop.f32.mrf.mxu0
        %9120 = vdwg.mxu0
        %9121 = vmatprep.subr.mxu0 0.0
        %9122 = vmatpush1.msra.mxu0 %v8803
        %9123 = vmatprep.subr.mxu0 0.0
        %9124 = vmatpush1.msra.mxu0 %v8802
        %9125 = vmatprep.subr.mxu0 0.0
        %9126 = vmatpush1.msra.mxu0 %v8801
        %9127 = vmatprep.subr.mxu0 0.0
        %9128 = vmatpush1.msra.mxu0 %v8800
        %9129 = vmatprep.subr.mxu0 0.0
        %9130 = vmatpush1.msra.mxu0 %v8799
        %9131 = vmatprep.subr.mxu0 0.0
        %9132 = vmatpush1.msra.mxu0 %v8798
        %9133 = vmatprep.subr.mxu0 0.0
        %9134 = vmatpush1.msra.mxu0 %v8797
        %9135 = vmatprep.subr.mxu0 0.0
        %9136 = vmatpush1.msra.mxu0 %v8796
        %9137 = vmatprep.subr.mxu0 0.0
        %9138 = vmatpush1.msra.mxu0 %v8795
        %9139 = vmatprep.subr.mxu0 0.0
        %9140 = vmatpush1.msra.mxu0 %v8794
        %9141 = vmatprep.subr.mxu0 0.0
        %9142 = vmatpush1.msra.mxu0 %v8793
        %9143 = vmatprep.subr.mxu0 0.0
        %9144 = vmatpush1.msra.mxu0 %v8792
        %9145 = vmatprep.subr.mxu0 0.0
        %9146 = vmatpush1.msra.mxu0 %v8791
        %9147 = vmatprep.subr.mxu0 0.0
        %9148 = vmatpush1.msra.mxu0 %v8790
        %9149 = vmatprep.subr.mxu0 0.0
        %9150 = vmatpush1.msra.mxu0 %v8789
        %9151 = vmatprep.subr.mxu0 0.0
        %9152 = vmatpush1.msra.mxu0 %v8788
        %9153 = vmatprep.subr.mxu0 0.0
        %9154 = vmatpush2.msra.mxu0 %v8819
        %9155 = vmatprep.subr.mxu0 0.0
        %9156 = vmatpush2.msra.mxu0 %v8818
        %9157 = vmatprep.subr.mxu0 0.0
        %9158 = vmatpush2.msra.mxu0 %v8817
        %9159 = vmatprep.subr.mxu0 0.0
        %9160 = vmatpush2.msra.mxu0 %v8816
        %9161 = vmatprep.subr.mxu0 0.0
        %9162 = vmatpush2.msra.mxu0 %v8815
        %9163 = vmatprep.subr.mxu0 0.0
        %9164 = vmatpush2.msra.mxu0 %v8814
        %9165 = vmatprep.subr.mxu0 0.0
        %9166 = vmatpush2.msra.mxu0 %v8813
        %9167 = vmatprep.subr.mxu0 0.0
        %9168 = vmatpush2.msra.mxu0 %v8812
        %9169 = vmatprep.subr.mxu0 0.0
        %9170 = vmatpush2.msra.mxu0 %v8811
        %9171 = vmatprep.subr.mxu0 0.0
        %9172 = vmatpush2.msra.mxu0 %v8810
        %9173 = vmatprep.subr.mxu0 0.0
        %9174 = vmatpush2.msra.mxu0 %v8809
        %9175 = vmatprep.subr.mxu0 0.0
        %9176 = vmatpush2.msra.mxu0 %v8808
        %9177 = vmatprep.subr.mxu0 0.0
        %9178 = vmatpush2.msra.mxu0 %v8807
        %9179 = vmatprep.subr.mxu0 0.0
        %9180 = vmatpush2.msra.mxu0 %v8806
        %9181 = vmatprep.subr.mxu0 0.0
        %9182 = vmatpush2.msra.mxu0 %v8805
        %9183 = vmatprep.subr.mxu0 0.0
        %9184 = vmatpush2.msra.mxu0 %v8804
        %9185 = vmatprep.mubr.f32.mxu0 %v8713
        %9186 = vmatmul.mubr.f32.gmra.mxu0 %v8712
        %v9187 = vpop.f32.mrf.mxu0
        %v9188 = vadd.f32 %v9118, %v9187
        %v9189 = vpop.f32.mrf.mxu0
        %9190 = vdwg.mxu0
        %9191 = vmatprep.subr.mxu0 0.0
        %9192 = vmatpush1.msra.mxu0 %v8835
        %9193 = vmatprep.subr.mxu0 0.0
        %9194 = vmatpush1.msra.mxu0 %v8834
        %9195 = vmatprep.subr.mxu0 0.0
        %9196 = vmatpush1.msra.mxu0 %v8833
        %9197 = vmatprep.subr.mxu0 0.0
        %9198 = vmatpush1.msra.mxu0 %v8832
        %9199 = vmatprep.subr.mxu0 0.0
        %9200 = vmatpush1.msra.mxu0 %v8831
        %9201 = vmatprep.subr.mxu0 0.0
        %9202 = vmatpush1.msra.mxu0 %v8830
        %9203 = vmatprep.subr.mxu0 0.0
        %9204 = vmatpush1.msra.mxu0 %v8829
        %9205 = vmatprep.subr.mxu0 0.0
        %9206 = vmatpush1.msra.mxu0 %v8828
        %9207 = vmatprep.subr.mxu0 0.0
        %9208 = vmatpush1.msra.mxu0 %v8827
        %9209 = vmatprep.subr.mxu0 0.0
        %9210 = vmatpush1.msra.mxu0 %v8826
        %9211 = vmatprep.subr.mxu0 0.0
        %9212 = vmatpush1.msra.mxu0 %v8825
        %9213 = vmatprep.subr.mxu0 0.0
        %9214 = vmatpush1.msra.mxu0 %v8824
        %9215 = vmatprep.subr.mxu0 0.0
        %9216 = vmatpush1.msra.mxu0 %v8823
        %9217 = vmatprep.subr.mxu0 0.0
        %9218 = vmatpush1.msra.mxu0 %v8822
        %9219 = vmatprep.subr.mxu0 0.0
        %9220 = vmatpush1.msra.mxu0 %v8821
        %9221 = vmatprep.subr.mxu0 0.0
        %9222 = vmatpush1.msra.mxu0 %v8820
        %9223 = vmatprep.subr.mxu0 0.0
        %9224 = vmatpush2.msra.mxu0 %v8851
        %9225 = vmatprep.subr.mxu0 0.0
        %9226 = vmatpush2.msra.mxu0 %v8850
        %9227 = vmatprep.subr.mxu0 0.0
        %9228 = vmatpush2.msra.mxu0 %v8849
        %9229 = vmatprep.subr.mxu0 0.0
        %9230 = vmatpush2.msra.mxu0 %v8848
        %9231 = vmatprep.subr.mxu0 0.0
        %9232 = vmatpush2.msra.mxu0 %v8847
        %9233 = vmatprep.subr.mxu0 0.0
        %9234 = vmatpush2.msra.mxu0 %v8846
        %9235 = vmatprep.subr.mxu0 0.0
        %9236 = vmatpush2.msra.mxu0 %v8845
        %9237 = vmatprep.subr.mxu0 0.0
        %9238 = vmatpush2.msra.mxu0 %v8844
        %9239 = vmatprep.subr.mxu0 0.0
        %9240 = vmatpush2.msra.mxu0 %v8843
        %9241 = vmatprep.subr.mxu0 0.0
        %9242 = vmatpush2.msra.mxu0 %v8842
        %9243 = vmatprep.subr.mxu0 0.0
        %9244 = vmatpush2.msra.mxu0 %v8841
        %9245 = vmatprep.subr.mxu0 0.0
        %9246 = vmatpush2.msra.mxu0 %v8840
        %9247 = vmatprep.subr.mxu0 0.0
        %9248 = vmatpush2.msra.mxu0 %v8839
        %9249 = vmatprep.subr.mxu0 0.0
        %9250 = vmatpush2.msra.mxu0 %v8838
        %9251 = vmatprep.subr.mxu0 0.0
        %9252 = vmatpush2.msra.mxu0 %v8837
        %9253 = vmatprep.subr.mxu0 0.0
        %9254 = vmatpush2.msra.mxu0 %v8836
        %9255 = vmatprep.mubr.f32.mxu0 %v8715
        %9256 = vmatmul.mubr.f32.gmra.mxu0 %v8714
        %v9257 = vpop.f32.mrf.mxu0
        %v9258 = vadd.f32 %v9188, %v9257
        %v9259 = vpop.f32.mrf.mxu0
        %9260 = vdwg.mxu0
        %9261 = vmatprep.subr.mxu0 0.0
        %9262 = vmatpush1.msra.mxu0 %v8867
        %9263 = vmatprep.subr.mxu0 0.0
        %9264 = vmatpush1.msra.mxu0 %v8866
        %9265 = vmatprep.subr.mxu0 0.0
        %9266 = vmatpush1.msra.mxu0 %v8865
        %9267 = vmatprep.subr.mxu0 0.0
        %9268 = vmatpush1.msra.mxu0 %v8864
        %9269 = vmatprep.subr.mxu0 0.0
        %9270 = vmatpush1.msra.mxu0 %v8863
        %9271 = vmatprep.subr.mxu0 0.0
        %9272 = vmatpush1.msra.mxu0 %v8862
        %9273 = vmatprep.subr.mxu0 0.0
        %9274 = vmatpush1.msra.mxu0 %v8861
        %9275 = vmatprep.subr.mxu0 0.0
        %9276 = vmatpush1.msra.mxu0 %v8860
        %9277 = vmatprep.subr.mxu0 0.0
        %9278 = vmatpush1.msra.mxu0 %v8859
        %9279 = vmatprep.subr.mxu0 0.0
        %9280 = vmatpush1.msra.mxu0 %v8858
        %9281 = vmatprep.subr.mxu0 0.0
        %9282 = vmatpush1.msra.mxu0 %v8857
        %9283 = vmatprep.subr.mxu0 0.0
        %9284 = vmatpush1.msra.mxu0 %v8856
        %9285 = vmatprep.subr.mxu0 0.0
        %9286 = vmatpush1.msra.mxu0 %v8855
        %9287 = vmatprep.subr.mxu0 0.0
        %9288 = vmatpush1.msra.mxu0 %v8854
        %9289 = vmatprep.subr.mxu0 0.0
        %9290 = vmatpush1.msra.mxu0 %v8853
        %9291 = vmatprep.subr.mxu0 0.0
        %9292 = vmatpush1.msra.mxu0 %v8852
        %9293 = vmatprep.subr.mxu0 0.0
        %9294 = vmatpush2.msra.mxu0 %v8883
        %9295 = vmatprep.subr.mxu0 0.0
        %9296 = vmatpush2.msra.mxu0 %v8882
        %9297 = vmatprep.subr.mxu0 0.0
        %9298 = vmatpush2.msra.mxu0 %v8881
        %9299 = vmatprep.subr.mxu0 0.0
        %9300 = vmatpush2.msra.mxu0 %v8880
        %9301 = vmatprep.subr.mxu0 0.0
        %9302 = vmatpush2.msra.mxu0 %v8879
        %9303 = vmatprep.subr.mxu0 0.0
        %9304 = vmatpush2.msra.mxu0 %v8878
        %9305 = vmatprep.subr.mxu0 0.0
        %9306 = vmatpush2.msra.mxu0 %v8877
        %9307 = vmatprep.subr.mxu0 0.0
        %9308 = vmatpush2.msra.mxu0 %v8876
        %9309 = vmatprep.subr.mxu0 0.0
        %9310 = vmatpush2.msra.mxu0 %v8875
        %9311 = vmatprep.subr.mxu0 0.0
        %9312 = vmatpush2.msra.mxu0 %v8874
        %9313 = vmatprep.subr.mxu0 0.0
        %9314 = vmatpush2.msra.mxu0 %v8873
        %9315 = vmatprep.subr.mxu0 0.0
        %9316 = vmatpush2.msra.mxu0 %v8872
        %9317 = vmatprep.subr.mxu0 0.0
        %9318 = vmatpush2.msra.mxu0 %v8871
        %9319 = vmatprep.subr.mxu0 0.0
        %9320 = vmatpush2.msra.mxu0 %v8870
        %9321 = vmatprep.subr.mxu0 0.0
        %9322 = vmatpush2.msra.mxu0 %v8869
        %9323 = vmatprep.subr.mxu0 0.0
        %9324 = vmatpush2.msra.mxu0 %v8868
        %9325 = vmatprep.mubr.f32.mxu0 %v8717
        %9326 = vmatmul.mubr.f32.gmra.mxu0 %v8716
        %v9327 = vpop.f32.mrf.mxu0
        %v9328 = vadd.f32 %v9258, %v9327
        %v9329 = vpop.f32.mrf.mxu0
        %9330 = vdwg.mxu0
        %9331 = vmatprep.subr.mxu0 0.0
        %9332 = vmatpush1.msra.mxu0 %v8899
        %9333 = vmatprep.subr.mxu0 0.0
        %9334 = vmatpush1.msra.mxu0 %v8898
        %9335 = vmatprep.subr.mxu0 0.0
        %9336 = vmatpush1.msra.mxu0 %v8897
        %9337 = vmatprep.subr.mxu0 0.0
        %9338 = vmatpush1.msra.mxu0 %v8896
        %9339 = vmatprep.subr.mxu0 0.0
        %9340 = vmatpush1.msra.mxu0 %v8895
        %9341 = vmatprep.subr.mxu0 0.0
        %9342 = vmatpush1.msra.mxu0 %v8894
        %9343 = vmatprep.subr.mxu0 0.0
        %9344 = vmatpush1.msra.mxu0 %v8893
        %9345 = vmatprep.subr.mxu0 0.0
        %9346 = vmatpush1.msra.mxu0 %v8892
        %9347 = vmatprep.subr.mxu0 0.0
        %9348 = vmatpush1.msra.mxu0 %v8891
        %9349 = vmatprep.subr.mxu0 0.0
        %9350 = vmatpush1.msra.mxu0 %v8890
        %9351 = vmatprep.subr.mxu0 0.0
        %9352 = vmatpush1.msra.mxu0 %v8889
        %9353 = vmatprep.subr.mxu0 0.0
        %9354 = vmatpush1.msra.mxu0 %v8888
        %9355 = vmatprep.subr.mxu0 0.0
        %9356 = vmatpush1.msra.mxu0 %v8887
        %9357 = vmatprep.subr.mxu0 0.0
        %9358 = vmatpush1.msra.mxu0 %v8886
        %9359 = vmatprep.subr.mxu0 0.0
        %9360 = vmatpush1.msra.mxu0 %v8885
        %9361 = vmatprep.subr.mxu0 0.0
        %9362 = vmatpush1.msra.mxu0 %v8884
        %9363 = vmatprep.subr.mxu0 0.0
        %9364 = vmatpush2.msra.mxu0 %v8915
        %9365 = vmatprep.subr.mxu0 0.0
        %9366 = vmatpush2.msra.mxu0 %v8914
        %9367 = vmatprep.subr.mxu0 0.0
        %9368 = vmatpush2.msra.mxu0 %v8913
        %9369 = vmatprep.subr.mxu0 0.0
        %9370 = vmatpush2.msra.mxu0 %v8912
        %9371 = vmatprep.subr.mxu0 0.0
        %9372 = vmatpush2.msra.mxu0 %v8911
        %9373 = vmatprep.subr.mxu0 0.0
        %9374 = vmatpush2.msra.mxu0 %v8910
        %9375 = vmatprep.subr.mxu0 0.0
        %9376 = vmatpush2.msra.mxu0 %v8909
        %9377 = vmatprep.subr.mxu0 0.0
        %9378 = vmatpush2.msra.mxu0 %v8908
        %9379 = vmatprep.subr.mxu0 0.0
        %9380 = vmatpush2.msra.mxu0 %v8907
        %9381 = vmatprep.subr.mxu0 0.0
        %9382 = vmatpush2.msra.mxu0 %v8906
        %9383 = vmatprep.subr.mxu0 0.0
        %9384 = vmatpush2.msra.mxu0 %v8905
        %9385 = vmatprep.subr.mxu0 0.0
        %9386 = vmatpush2.msra.mxu0 %v8904
        %9387 = vmatprep.subr.mxu0 0.0
        %9388 = vmatpush2.msra.mxu0 %v8903
        %9389 = vmatprep.subr.mxu0 0.0
        %9390 = vmatpush2.msra.mxu0 %v8902
        %9391 = vmatprep.subr.mxu0 0.0
        %9392 = vmatpush2.msra.mxu0 %v8901
        %9393 = vmatprep.subr.mxu0 0.0
        %9394 = vmatpush2.msra.mxu0 %v8900
        %9395 = vmatprep.mubr.f32.mxu0 %v8719
        %9396 = vmatmul.mubr.f32.gmra.mxu0 %v8718
        %v9397 = vpop.f32.mrf.mxu0
        %v9398 = vadd.f32 %v9328, %v9397
        %v9399 = vpop.f32.mrf.mxu0
        %9400 = vdwg.mxu0
        %9401 = vmatprep.subr.mxu0 0.0
        %9402 = vmatpush1.msra.mxu0 %v8931
        %9403 = vmatprep.subr.mxu0 0.0
        %9404 = vmatpush1.msra.mxu0 %v8930
        %9405 = vmatprep.subr.mxu0 0.0
        %9406 = vmatpush1.msra.mxu0 %v8929
        %9407 = vmatprep.subr.mxu0 0.0
        %9408 = vmatpush1.msra.mxu0 %v8928
        %9409 = vmatprep.subr.mxu0 0.0
        %9410 = vmatpush1.msra.mxu0 %v8927
        %9411 = vmatprep.subr.mxu0 0.0
        %9412 = vmatpush1.msra.mxu0 %v8926
        %9413 = vmatprep.subr.mxu0 0.0
        %9414 = vmatpush1.msra.mxu0 %v8925
        %9415 = vmatprep.subr.mxu0 0.0
        %9416 = vmatpush1.msra.mxu0 %v8924
        %9417 = vmatprep.subr.mxu0 0.0
        %9418 = vmatpush1.msra.mxu0 %v8923
        %9419 = vmatprep.subr.mxu0 0.0
        %9420 = vmatpush1.msra.mxu0 %v8922
        %9421 = vmatprep.subr.mxu0 0.0
        %9422 = vmatpush1.msra.mxu0 %v8921
        %9423 = vmatprep.subr.mxu0 0.0
        %9424 = vmatpush1.msra.mxu0 %v8920
        %9425 = vmatprep.subr.mxu0 0.0
        %9426 = vmatpush1.msra.mxu0 %v8919
        %9427 = vmatprep.subr.mxu0 0.0
        %9428 = vmatpush1.msra.mxu0 %v8918
        %9429 = vmatprep.subr.mxu0 0.0
        %9430 = vmatpush1.msra.mxu0 %v8917
        %9431 = vmatprep.subr.mxu0 0.0
        %9432 = vmatpush1.msra.mxu0 %v8916
        %9433 = vmatprep.subr.mxu0 0.0
        %9434 = vmatpush2.msra.mxu0 %v8947
        %9435 = vmatprep.subr.mxu0 0.0
        %9436 = vmatpush2.msra.mxu0 %v8946
        %9437 = vmatprep.subr.mxu0 0.0
        %9438 = vmatpush2.msra.mxu0 %v8945
        %9439 = vmatprep.subr.mxu0 0.0
        %9440 = vmatpush2.msra.mxu0 %v8944
        %9441 = vmatprep.subr.mxu0 0.0
        %9442 = vmatpush2.msra.mxu0 %v8943
        %9443 = vmatprep.subr.mxu0 0.0
        %9444 = vmatpush2.msra.mxu0 %v8942
        %9445 = vmatprep.subr.mxu0 0.0
        %9446 = vmatpush2.msra.mxu0 %v8941
        %9447 = vmatprep.subr.mxu0 0.0
        %9448 = vmatpush2.msra.mxu0 %v8940
        %9449 = vmatprep.subr.mxu0 0.0
        %9450 = vmatpush2.msra.mxu0 %v8939
        %9451 = vmatprep.subr.mxu0 0.0
        %9452 = vmatpush2.msra.mxu0 %v8938
        %9453 = vmatprep.subr.mxu0 0.0
        %9454 = vmatpush2.msra.mxu0 %v8937
        %9455 = vmatprep.subr.mxu0 0.0
        %9456 = vmatpush2.msra.mxu0 %v8936
        %9457 = vmatprep.subr.mxu0 0.0
        %9458 = vmatpush2.msra.mxu0 %v8935
        %9459 = vmatprep.subr.mxu0 0.0
        %9460 = vmatpush2.msra.mxu0 %v8934
        %9461 = vmatprep.subr.mxu0 0.0
        %9462 = vmatpush2.msra.mxu0 %v8933
        %9463 = vmatprep.subr.mxu0 0.0
        %9464 = vmatpush2.msra.mxu0 %v8932
        %9465 = vmatprep.mubr.f32.mxu0 %v8721
        %9466 = vmatmul.mubr.f32.gmra.mxu0 %v8720
        %v9467 = vpop.f32.mrf.mxu0
        %v9468 = vadd.f32 %v9398, %v9467
        %v9469 = vpop.f32.mrf.mxu0
        %9470 = vdwg.mxu0
        %9471 = vmatprep.subr.mxu0 0.0
        %9472 = vmatpush1.msra.mxu0 %v8963
        %9473 = vmatprep.subr.mxu0 0.0
        %9474 = vmatpush1.msra.mxu0 %v8962
        %9475 = vmatprep.subr.mxu0 0.0
        %9476 = vmatpush1.msra.mxu0 %v8961
        %9477 = vmatprep.subr.mxu0 0.0
        %9478 = vmatpush1.msra.mxu0 %v8960
        %9479 = vmatprep.subr.mxu0 0.0
        %9480 = vmatpush1.msra.mxu0 %v8959
        %9481 = vmatprep.subr.mxu0 0.0
        %9482 = vmatpush1.msra.mxu0 %v8958
        %9483 = vmatprep.subr.mxu0 0.0
        %9484 = vmatpush1.msra.mxu0 %v8957
        %9485 = vmatprep.subr.mxu0 0.0
        %9486 = vmatpush1.msra.mxu0 %v8956
        %9487 = vmatprep.subr.mxu0 0.0
        %9488 = vmatpush1.msra.mxu0 %v8955
        %9489 = vmatprep.subr.mxu0 0.0
        %9490 = vmatpush1.msra.mxu0 %v8954
        %9491 = vmatprep.subr.mxu0 0.0
        %9492 = vmatpush1.msra.mxu0 %v8953
        %9493 = vmatprep.subr.mxu0 0.0
        %9494 = vmatpush1.msra.mxu0 %v8952
        %9495 = vmatprep.subr.mxu0 0.0
        %9496 = vmatpush1.msra.mxu0 %v8951
        %9497 = vmatprep.subr.mxu0 0.0
        %9498 = vmatpush1.msra.mxu0 %v8950
        %9499 = vmatprep.subr.mxu0 0.0
        %9500 = vmatpush1.msra.mxu0 %v8949
        %9501 = vmatprep.subr.mxu0 0.0
        %9502 = vmatpush1.msra.mxu0 %v8948
        %9503 = vmatprep.subr.mxu0 0.0
        %9504 = vmatpush2.msra.mxu0 %v8979
        %9505 = vmatprep.subr.mxu0 0.0
        %9506 = vmatpush2.msra.mxu0 %v8978
        %9507 = vmatprep.subr.mxu0 0.0
        %9508 = vmatpush2.msra.mxu0 %v8977
        %9509 = vmatprep.subr.mxu0 0.0
        %9510 = vmatpush2.msra.mxu0 %v8976
        %9511 = vmatprep.subr.mxu0 0.0
        %9512 = vmatpush2.msra.mxu0 %v8975
        %9513 = vmatprep.subr.mxu0 0.0
        %9514 = vmatpush2.msra.mxu0 %v8974
        %9515 = vmatprep.subr.mxu0 0.0
        %9516 = vmatpush2.msra.mxu0 %v8973
        %9517 = vmatprep.subr.mxu0 0.0
        %9518 = vmatpush2.msra.mxu0 %v8972
        %9519 = vmatprep.subr.mxu0 0.0
        %9520 = vmatpush2.msra.mxu0 %v8971
        %9521 = vmatprep.subr.mxu0 0.0
        %9522 = vmatpush2.msra.mxu0 %v8970
        %9523 = vmatprep.subr.mxu0 0.0
        %9524 = vmatpush2.msra.mxu0 %v8969
        %9525 = vmatprep.subr.mxu0 0.0
        %9526 = vmatpush2.msra.mxu0 %v8968
        %9527 = vmatprep.subr.mxu0 0.0
        %9528 = vmatpush2.msra.mxu0 %v8967
        %9529 = vmatprep.subr.mxu0 0.0
        %9530 = vmatpush2.msra.mxu0 %v8966
        %9531 = vmatprep.subr.mxu0 0.0
        %9532 = vmatpush2.msra.mxu0 %v8965
        %9533 = vmatprep.subr.mxu0 0.0
        %9534 = vmatpush2.msra.mxu0 %v8964
        %9535 = vmatprep.mubr.f32.mxu0 %v8723
        %9536 = vmatmul.mubr.f32.gmra.mxu0 %v8722
        %v9537 = vpop.f32.mrf.mxu0
        %v9538 = vadd.f32 %v9468, %v9537
        %v9539 = vpop.f32.mrf.mxu0
        %9540 = vdwg.mxu0
        %v9541 = vadd.f32 %v7988, %v9538
        %v9542 = vld [vmem:[%s29] sm:$0x1]
        %v9543 = vld [vmem:[%s27] sm:$0x1]
        %v9544 = vsel %vm7038, %v9541, 0.0
        %9545 = vadd.xlane.f32.xlu0 %v9544
        %v9546 = vpop.xlane.xlu0 %9545
        %v9547 = vmul.f32 %v9546, %v2421
        %v9548 = vsub.f32 %v9541, %v9547
        %v9549 = vmul.f32 %v9548, %v9548
        %v9550 = vsel %vm7038, %v9549, 0.0
        %9551 = vadd.xlane.f32.xlu0 %v9550
        %v9552 = vpop.xlane.xlu0 %9551
        %v9553 = vmul.f32 %v9552, %v2421
        %v9554 = vadd.f32 %v9553, 1e-05
        %v9555 = vrsqrt.pop %v9554
        %v9556 = vmul.f32 %v9548, %v9555
        %v9557 = vmul.f32 %v9556, %v9542
        %v9558 = vadd.f32 %v9557, %v9543
        %9559 = vst.msk [vmem:[%s1472] sm:$0x1] %vm7038, %v9558
        %s9560 = sand.u32 %s1113, 1
        %s9561 = scalar_lea.sflag [#allocation4], %s9560
        %s9562 = sand.u32 %s1113, 1
        %s9563 = scalar_lea.vmem [#allocation13], %s9562
        // Predicated region
        $region233: #{momo_tzuyu_forward.1} parent=207 // pred_check
          %p9564 = pneg %p1123
        $region234: #{momo_tzuyu_forward.1} parent=207 // pred_check_branch
          %9566 = sbr.rel (%p9564) target = $region236
        $region235: #{momo_tzuyu_forward.1} parent=207 // pred_region
          %s9568 = ssub.s32 16, 16
          %9569 = vsyncadd %s9561, %s9568
          %s9570 = smul.addr %s113, 16
          %s9571 = scalar_lea.hbm %s95, %s9570
          %s9573 = sshll.u32 %s9563, 4
          %s9574 = int_to_ptr.vmem [resolvable:$true] %s9573
          %9576 = dma.vmem_to_hbm [thread:$0]  %s9574, 16, %s9571, %s9561
        $region236: #{momo_tzuyu_forward.1} parent=207 // pred_fallthru
          _
      $region208: #{momo_tzuyu_forward.1} parent=5 // pred_fallthru
        _
      %p9577 = scmp.le.s32.totalorder 2, %s108
      // Predicated region
      $region237: #{momo_tzuyu_forward.1} parent=5 // pred_check
        %p9578 = pneg %p9577
      $region238: #{momo_tzuyu_forward.1} parent=5 // pred_check_branch
        %9580 = sbr.rel (%p9578) target = $region240
      $region239: #{momo_tzuyu_forward.1} parent=5 // pred_region
        %s9581 = ssub.s32 %s108, 2
        // Predicated region
        $region241: #{momo_tzuyu_forward.1} parent=239 // pred_check
          %p9582 = pneg %p1129
        $region242: #{momo_tzuyu_forward.1} parent=239 // pred_check_branch
          %9584 = sbr.rel (%p9582) target = $region244
        $region243: #{momo_tzuyu_forward.1} parent=239 // pred_region
          %s9585 = sand.u32 %s1114, 1
          %s9586 = scalar_lea.sflag [#allocation4], %s9585
          %s9587 = sand.u32 %s1114, 1
          %s9588 = scalar_lea.vmem [#allocation13], %s9587
          %9589 = dma.done %s9586, 16
        $region244: #{momo_tzuyu_forward.1} parent=239 // pred_fallthru
          _
      $region240: #{momo_tzuyu_forward.1} parent=5 // pred_fallthru
        _
    $region6: #{momo_tzuyu_forward.1} parent=1 // loop_footer
      %s112 = sadd.s32 1, %s108
    $region7: #{momo_tzuyu_forward.1} parent=1 // loop_footer_branch
      %107 = sbr.rel target = $region3
    $region8: #{momo_tzuyu_forward.1} parent=1 // loop_exit
      _
    %9590 = vsyncpa [#allocation3], 1
    %s9591 = scalar_lea.sflag [#allocation3], 1
    %9592 = vsyncpa %s9591, 1
    %9593 = vsyncpa [#allocation6], 1
    %9594 = vsyncpa [#allocation9], 1
    %9595 = vsyncpa [#allocation12], 1
    %9596 = vsyncpa [#allocation4], 1
    %s9597 = scalar_lea.sflag [#allocation4], 1
    %9598 = vsyncpa %s9597, 1

</llo_original>
